<compile_context>
chip_gen: v7x
topology: tpu7x:2x2x1
jax: 0.10.0
libtpu: 0.0.40
codegen_flags: <defaults>
</compile_context>

<pallas_src>
import numpy as np
import jax
import jax.numpy as jnp
from jax.experimental import pallas as pl
from jax.experimental.pallas import tpu as pltpu

MIC_PAIRS = [(0, 1), (0, 2), (0, 3), (1, 2), (1, 3), (2, 3)]


# ----------------------------------------------------------------------------
# Pallas kernel
#   a_ref    : (rows_pad, S*L)  bf16  block-diagonal reversed filter bank
#   x_ref    : (S, tb)          bf16  signal tile      x_pad[:, t0 : t0+tb]
#   halo_ref : (S, halo)        bf16  halo block       x_pad[:, t0+tb : t0+tb+halo]
#   o_ref    : (rows_pad, tb)   f32   output tile
#   win_ref  : (S, tb+halo)     f32   VMEM staging window
#   rhs_ref  : (S*L, tb)        f32   VMEM im2col (Hankel) operand
# ----------------------------------------------------------------------------
def _make_rir_conv_kernel(S, L, tb):
    def kernel(a_ref, x_ref, halo_ref, o_ref, win_ref, rhs_ref):
        # 1) Halo'd signal window for this tile: win[s, i] = x_pad[s, t0 + i].
        win_ref[:, :tb] = x_ref[...].astype(jnp.float32)
        win_ref[:, tb:] = halo_ref[...].astype(jnp.float32)

        # 2) Build the block-stacked im2col RHS in VMEM:
        #       rhs[s*L + k, t] = x_pad[s, t0 + t + k]
        #    Static offsets -> static lane rotates + unmasked f32 row stores.
        for s in range(S):
            for k in range(L):
                r = s * L + k
                rhs_ref[r:r + 1, :] = win_ref[s:s + 1, k:k + tb]

        # 3) One MXU matmul per tile against the fused block-diagonal filter
        #    bank; f32 accumulation.  (Only 8 rows -> MXU is nowhere near the
        #    bottleneck; the kernel is memory-bound on the output stream.)
        o_ref[...] = jnp.dot(a_ref[...].astype(jnp.float32), rhs_ref[...],
                             preferred_element_type=jnp.float32)

    return kernel


def rir_multichannel_conv(signals, rirs, *, tb=None):
    """Multi-channel FIR convolution, all sources fused into one matmul.

    signals: (S, T) float, rirs: (S, M, L) float -> (S, M, T + L - 1) float32.
    """
    signals = jnp.asarray(signals, jnp.float32)
    rirs = jnp.asarray(rirs, jnp.float32)
    S, T = signals.shape
    _, M, L = rirs.shape

    T_out = T + L - 1
    halo = max(128, ((L - 1 + 127) // 128) * 128)     # lane-aligned halo >= L-1

    if tb is None:
        # One grid step for short clips; cap so double-buffered blocks plus the
        # (S*L, tb) f32 im2col scratch stay <~10 MiB (fits v7x's 32 MiB
        # scoped-VMEM default / 64 MiB physical with plenty of headroom).
        tb = min(((T_out + 127) // 128) * 128, 8192)
        tb = max(tb, halo)
        tb = ((tb + halo - 1) // halo) * halo
    assert tb % 128 == 0 and tb % halo == 0, "tb must be a lane-aligned multiple of halo"

    n_tb = pl.cdiv(T_out, tb)
    T_out_pad = n_tb * tb
    T_pad = T_out_pad + halo

    # Zero-padded signals, bf16 in HBM (halves the input DMA stream).  The
    # front pad of L-1 aligns the reversed taps with the row-shifted window.
    x_pad = jnp.zeros((S, T_pad), jnp.bfloat16)
    x_pad = x_pad.at[:, L - 1:L - 1 + T].set(signals.astype(jnp.bfloat16))

    # Fused block-diagonal filter bank: row s*M + m holds rirs[s, m] reversed,
    # placed in columns [s*L, (s+1)*L).  All S*M rows are real mic channels.
    rows = S * M
    rows_pad = ((rows + 7) // 8) * 8
    a = jnp.zeros((rows_pad, S * L), jnp.float32)
    for s in range(S):
        a = a.at[s * M:(s + 1) * M, s * L:(s + 1) * L].set(rirs[s, :, ::-1])
    a = a.astype(jnp.bfloat16)

    kernel = _make_rir_conv_kernel(S, L, tb)

    flops = 2 * S * M * L * T_out_pad                          # useful MACs only
    bytes_accessed = int(a.size * 2 + x_pad.size * 2 + rows_pad * T_out_pad * 4)

    out = pl.pallas_call(
        kernel,
        out_shape=jax.ShapeDtypeStruct((rows_pad, T_out_pad), jnp.float32),
        grid_spec=pltpu.PrefetchScalarGridSpec(
            num_scalar_prefetch=0,
            grid=(n_tb,),
            in_specs=[
                # Filter bank: block-constant across the grid -> VMEM-resident.
                pl.BlockSpec((rows_pad, S * L), lambda t: (0, 0)),
                # Main signal tile.
                pl.BlockSpec((S, tb), lambda t: (0, t)),
                # Halo block: the `halo` samples right after the tile.
                pl.BlockSpec((S, halo), lambda t: (0, (t + 1) * (tb // halo))),
            ],
            out_specs=pl.BlockSpec((rows_pad, tb), lambda t: (0, t)),
            scratch_shapes=[
                pltpu.VMEM((S, tb + halo), jnp.float32),       # halo'd window
                pltpu.VMEM((S * L, tb), jnp.float32),          # im2col RHS
            ],
        ),
        compiler_params=pltpu.CompilerParams(
            # Time-tile axis is the parallel axis -> both v7x TCs stay busy.
            dimension_semantics=("parallel",)),
        cost_estimate=pl.CostEstimate(
            flops=flops, transcendentals=0, bytes_accessed=bytes_accessed),
    )(a, x_pad, x_pad)

    return out[:rows, :T_out].reshape(S, M, T_out)


# ----------------------------------------------------------------------------
# RIRmodel re-implementation (deterministic, no gpuRIR / librosa / files).
# ----------------------------------------------------------------------------
class RIRModelPallas:
    def __init__(self):
        self.room_sz = np.array([6.0, 6.0, 3.0])
        self.circle_radius = 0.05
        self.mic_positions = self._get_mic_positions()
        self.T60 = 0.1
        self.fs = 16000
        self.sound_speed = 343.0
        self.rir_len = 128          # synthetic RIR length (taps)
        self._rng = np.random.default_rng(0)   # deterministic source placement
        # TODO(synk): gpuRIR beta_SabineEstimation / att2t_SabineEstimator / t2n /
        # simulateRIR (image-source method) have no clean Pallas equivalent;
        # deterministic synthetic RIRs (direct path + decaying diffuse tail) are used.
        self._last_rirs = None

    def _get_mic_positions(self):
        mic_angles = np.linspace(0, 2 * np.pi, 4, endpoint=False)
        return np.array([
            [self.room_sz[0] / 2 + self.circle_radius * np.cos(a),
             self.room_sz[1] / 2 + self.circle_radius * np.sin(a),
             1.7] for a in mic_angles])

    def get_source_positions(self, flag):
        margin = 0.3
        min_h, max_h = 1.6, min(1.9, self.room_sz[2] - margin)
        sector_angles = np.array([0, -45, -90, -135, 180, 135, 90, 45])
        main_sector = int(self._rng.integers(0, 8))
        if flag == 0:
            possible = [i for i in range(8) if i != main_sector]
            second_sector = int(possible[int(self._rng.integers(0, len(possible)))])
        else:
            second_sector = int(self._rng.integers(0, 8))
        base_angle = np.radians(sector_angles[main_sector] + self._rng.uniform(-22.5, 22.5))
        second_angle = np.radians(sector_angles[second_sector] + self._rng.uniform(-22.5, 22.5))

        def polar_to_cartesian(angle):
            radius = self._rng.uniform(0.5, min(self.room_sz[0], self.room_sz[1]) / 2 - margin)
            return [self.room_sz[0] / 2 + radius * np.cos(angle),
                    self.room_sz[1] / 2 + radius * np.sin(angle),
                    self._rng.uniform(min_h, max_h)]

        src = np.array([polar_to_cartesian(base_angle), polar_to_cartesian(second_angle)])
        assert (src >= 0).all() and (src <= self.room_sz).all(), "Sources are outside the room!"
        return src, main_sector

    def _simulate_rir(self, src_pos, seed):
        rng = np.random.default_rng(seed)
        L = self.rir_len
        t = np.arange(L, dtype=np.float32)
        env = np.exp(-6.908 * t / (self.T60 * self.fs)).astype(np.float32)
        rirs = np.zeros((len(self.mic_positions), L), np.float32)
        for m, mic in enumerate(self.mic_positions):
            dist = float(np.linalg.norm(src_pos - mic))
            delay = dist / self.sound_speed * self.fs
            d0 = int(round(delay))
            amp = 1.0 / (4.0 * np.pi * max(dist, 1e-3))
            if d0 < L:
                rirs[m, d0] += amp
            tail = rng.standard_normal(L).astype(np.float32) * 0.3 * amp
            tail[:min(d0 + 1, L)] = 0.0
            rirs[m] += tail * env
        return rirs

    def compute_tpd_time_domain(self, mic_pairs, region=None, sound_speed=343.0):
        mic_positions = np.array(self.mic_positions)
        tpd = []
        for p1, p2 in mic_pairs:
            delta = mic_positions[p1] - mic_positions[p2]
            tpd.append(np.linalg.norm(delta) / sound_speed * self.fs)
        return np.array(tpd, dtype=np.float32).flatten()

    def forward(self, a_tgt, a_int, flag):
        # TODO(synk): librosa.load replaced by in-memory signals a_tgt, a_int @ 16 kHz.
        source_positions, main = self.get_source_positions(flag)
        rir1 = self._simulate_rir(source_positions[0], seed=1)   # (4, L)
        rir2 = self._simulate_rir(source_positions[1], seed=2)   # (4, L)
        rirs = np.stack([rir1, rir2])                            # (2, 4, L)
        self._last_rirs = rirs

        sigs = jnp.stack([jnp.asarray(a_tgt, jnp.float32),
                          jnp.asarray(a_int, jnp.float32)])      # (2, T)
        out = rir_multichannel_conv(sigs, jnp.asarray(rirs))     # (2, 4, T+L-1)
        out_t = jnp.transpose(out, (0, 2, 1))                    # (2, T_out, 4)
        b1, b2 = out_t[0], out_t[1]
        tpd = self.compute_tpd_time_domain(MIC_PAIRS, None)
        return b1, b2, source_positions, tpd, main


if __name__ == "__main__":
    T = 1024
    key = jax.random.PRNGKey(0)
    k1, k2 = jax.random.split(key)
    a_tgt = jax.random.normal(k1, (T,), dtype=jnp.float32)
    a_int = jax.random.normal(k2, (T,), dtype=jnp.float32)

    model = RIRModelPallas()
    b1, b2, src_pos, tpd, main_sector = model.forward(a_tgt, a_int, flag=0)
    b1 = jax.block_until_ready(b1)
    b2 = jax.block_until_ready(b2)

    # Reference check against numpy full convolution (float64).
    sigs_np = np.stack([np.asarray(a_tgt), np.asarray(a_int)]).astype(np.float64)
    rirs_np = model._last_rirs.astype(np.float64)
    ref = np.stack([
        np.stack([np.convolve(sigs_np[s], rirs_np[s, m], mode="full")
                  for m in range(4)]) for s in range(2)])          # (2, 4, T+L-1)
    got = np.stack([np.asarray(b1).T, np.asarray(b2).T])           # (2, 4, T+L-1)
    scale = float(np.max(np.abs(ref)))
    # Tolerance covers bf16 operand quantization (f32 accumulation) while still
    # catching any indexing / tap-reversal bug (which would give O(scale) errors).
    np.testing.assert_allclose(got, ref, rtol=2e-2, atol=1e-2 * scale)

    assert b1.shape == (T + model.rir_len - 1, 4)
    assert b2.shape == (T + model.rir_len - 1, 4)
    assert src_pos.shape == (2, 3) and tpd.shape == (6,) and 0 <= main_sector < 8
    print("KERNEL_OK")
</pallas_src>

<mosaic_0001>
module attributes {stable_mosaic.version = 11 : i64} {
  func.func @kernel(%arg0: i32, %arg1: memref<8x256xbf16, #tpu.memory_space<vmem>>, %arg2: memref<2x1152xbf16, #tpu.memory_space<vmem>>, %arg3: memref<2x128xbf16, #tpu.memory_space<vmem>>, %arg4: memref<8x1152xf32, #tpu.memory_space<vmem>>, %arg5: memref<2x1280xf32, #tpu.memory_space<vmem>>, %arg6: memref<256x1152xf32, #tpu.memory_space<vmem>>) attributes {dimension_semantics = [#tpu.dimension_semantics<parallel>], iteration_bounds = array<i64: 1>, scalar_prefetch = 0 : i64, scratch_operands = 2 : i64, tpu.core_type = #tpu.core_type<tc>, window_params = [{pipeline_mode = #tpu.pipeline_mode<synchronous>, transform_indices = @transform_0, window_bounds = array<i64: 8, 256>}, {transform_indices = @transform_1, window_bounds = array<i64: 2, 1152>}, {transform_indices = @transform_2, window_bounds = array<i64: 2, 128>}, {transform_indices = @transform_3, window_bounds = array<i64: 8, 1152>}]} {
    %c0 = arith.constant 0 : index
    %c0_0 = arith.constant 0 : index
    %0 = vector.load %arg2[%c0, %c0_0] : memref<2x1152xbf16, #tpu.memory_space<vmem>>, vector<2x1152xbf16>
    %1 = arith.extf %0 : vector<2x1152xbf16> to vector<2x1152xf32>
    %c0_1 = arith.constant 0 : index
    %c0_2 = arith.constant 0 : index
    %2 = vector.load %arg5[%c0_1, %c0_2] : memref<2x1280xf32, #tpu.memory_space<vmem>>, vector<2x1152xf32>
    tpu.vector_store %arg5[%c0_1, %c0_2], %1 {strides = array<i32>} : memref<2x1280xf32, #tpu.memory_space<vmem>>, vector<2x1152xf32>,
    %c0_3 = arith.constant 0 : index
    %c0_4 = arith.constant 0 : index
    %3 = vector.load %arg3[%c0_3, %c0_4] : memref<2x128xbf16, #tpu.memory_space<vmem>>, vector<2x128xbf16>
    %4 = arith.extf %3 : vector<2x128xbf16> to vector<2x128xf32>
    %c0_5 = arith.constant 0 : index
    %c1152 = arith.constant 1152 : index
    %5 = vector.load %arg5[%c0_5, %c1152] : memref<2x1280xf32, #tpu.memory_space<vmem>>, vector<2x128xf32>
    tpu.vector_store %arg5[%c0_5, %c1152], %4 {strides = array<i32>} : memref<2x1280xf32, #tpu.memory_space<vmem>>, vector<2x128xf32>,
    %c0_6 = arith.constant 0 : index
    %c0_7 = arith.constant 0 : index
    %6 = vector.load %arg5[%c0_6, %c0_7] : memref<2x1280xf32, #tpu.memory_space<vmem>>, vector<1x1152xf32>
    %c0_8 = arith.constant 0 : index
    %c0_9 = arith.constant 0 : index
    %7 = vector.load %arg6[%c0_8, %c0_9] : memref<256x1152xf32, #tpu.memory_space<vmem>>, vector<1x1152xf32>
    tpu.vector_store %arg6[%c0_8, %c0_9], %6 {strides = array<i32>} : memref<256x1152xf32, #tpu.memory_space<vmem>>, vector<1x1152xf32>,
    %c0_10 = arith.constant 0 : index
    %c1 = arith.constant 1 : index
    %8 = vector.load %arg5[%c0_10, %c1] : memref<2x1280xf32, #tpu.memory_space<vmem>>, vector<1x1152xf32>
    %c1_11 = arith.constant 1 : index
    %c0_12 = arith.constant 0 : index
    %9 = vector.load %arg6[%c1_11, %c0_12] : memref<256x1152xf32, #tpu.memory_space<vmem>>, vector<1x1152xf32>
    tpu.vector_store %arg6[%c1_11, %c0_12], %8 {strides = array<i32>} : memref<256x1152xf32, #tpu.memory_space<vmem>>, vector<1x1152xf32>,
    %c0_13 = arith.constant 0 : index
    %c2 = arith.constant 2 : index
    %10 = vector.load %arg5[%c0_13, %c2] : memref<2x1280xf32, #tpu.memory_space<vmem>>, vector<1x1152xf32>
    %c2_14 = arith.constant 2 : index
    %c0_15 = arith.constant 0 : index
    %11 = vector.load %arg6[%c2_14, %c0_15] : memref<256x1152xf32, #tpu.memory_space<vmem>>, vector<1x1152xf32>
    tpu.vector_store %arg6[%c2_14, %c0_15], %10 {strides = array<i32>} : memref<256x1152xf32, #tpu.memory_space<vmem>>, vector<1x1152xf32>,
    %c0_16 = arith.constant 0 : index
    %c3 = arith.constant 3 : index
    %12 = vector.load %arg5[%c0_16, %c3] : memref<2x1280xf32, #tpu.memory_space<vmem>>, vector<1x1152xf32>
    %c3_17 = arith.constant 3 : index
    %c0_18 = arith.constant 0 : index
    %13 = vector.load %arg6[%c3_17, %c0_18] : memref<256x1152xf32, #tpu.memory_space<vmem>>, vector<1x1152xf32>
    tpu.vector_store %arg6[%c3_17, %c0_18], %12 {strides = array<i32>} : memref<256x1152xf32, #tpu.memory_space<vmem>>, vector<1x1152xf32>,
    %c0_19 = arith.constant 0 : index
    %c4 = arith.constant 4 : index
    %14 = vector.load %arg5[%c0_19, %c4] : memref<2x1280xf32, #tpu.memory_space<vmem>>, vector<1x1152xf32>
    %c4_20 = arith.constant 4 : index
    %c0_21 = arith.constant 0 : index
    %15 = vector.load %arg6[%c4_20, %c0_21] : memref<256x1152xf32, #tpu.memory_space<vmem>>, vector<1x1152xf32>
    tpu.vector_store %arg6[%c4_20, %c0_21], %14 {strides = array<i32>} : memref<256x1152xf32, #tpu.memory_space<vmem>>, vector<1x1152xf32>,
    %c0_22 = arith.constant 0 : index
    %c5 = arith.constant 5 : index
    %16 = vector.load %arg5[%c0_22, %c5] : memref<2x1280xf32, #tpu.memory_space<vmem>>, vector<1x1152xf32>
    %c5_23 = arith.constant 5 : index
    %c0_24 = arith.constant 0 : index
    %17 = vector.load %arg6[%c5_23, %c0_24] : memref<256x1152xf32, #tpu.memory_space<vmem>>, vector<1x1152xf32>
    tpu.vector_store %arg6[%c5_23, %c0_24], %16 {strides = array<i32>} : memref<256x1152xf32, #tpu.memory_space<vmem>>, vector<1x1152xf32>,
    %c0_25 = arith.constant 0 : index
    %c6 = arith.constant 6 : index
    %18 = vector.load %arg5[%c0_25, %c6] : memref<2x1280xf32, #tpu.memory_space<vmem>>, vector<1x1152xf32>
    %c6_26 = arith.constant 6 : index
    %c0_27 = arith.constant 0 : index
    %19 = vector.load %arg6[%c6_26, %c0_27] : memref<256x1152xf32, #tpu.memory_space<vmem>>, vector<1x1152xf32>
    tpu.vector_store %arg6[%c6_26, %c0_27], %18 {strides = array<i32>} : memref<256x1152xf32, #tpu.memory_space<vmem>>, vector<1x1152xf32>,
    %c0_28 = arith.constant 0 : index
    %c7 = arith.constant 7 : index
    %20 = vector.load %arg5[%c0_28, %c7] : memref<2x1280xf32, #tpu.memory_space<vmem>>, vector<1x1152xf32>
    %c7_29 = arith.constant 7 : index
    %c0_30 = arith.constant 0 : index
    %21 = vector.load %arg6[%c7_29, %c0_30] : memref<256x1152xf32, #tpu.memory_space<vmem>>, vector<1x1152xf32>
    tpu.vector_store %arg6[%c7_29, %c0_30], %20 {strides = array<i32>} : memref<256x1152xf32, #tpu.memory_space<vmem>>, vector<1x1152xf32>,
    %c0_31 = arith.constant 0 : index
    %c8 = arith.constant 8 : index
    %22 = vector.load %arg5[%c0_31, %c8] : memref<2x1280xf32, #tpu.memory_space<vmem>>, vector<1x1152xf32>
    %c8_32 = arith.constant 8 : index
    %c0_33 = arith.constant 0 : index
    %23 = vector.load %arg6[%c8_32, %c0_33] : memref<256x1152xf32, #tpu.memory_space<vmem>>, vector<1x1152xf32>
    tpu.vector_store %arg6[%c8_32, %c0_33], %22 {strides = array<i32>} : memref<256x1152xf32, #tpu.memory_space<vmem>>, vector<1x1152xf32>,
    %c0_34 = arith.constant 0 : index
    %c9 = arith.constant 9 : index
    %24 = vector.load %arg5[%c0_34, %c9] : memref<2x1280xf32, #tpu.memory_space<vmem>>, vector<1x1152xf32>
    %c9_35 = arith.constant 9 : index
    %c0_36 = arith.constant 0 : index
    %25 = vector.load %arg6[%c9_35, %c0_36] : memref<256x1152xf32, #tpu.memory_space<vmem>>, vector<1x1152xf32>
    tpu.vector_store %arg6[%c9_35, %c0_36], %24 {strides = array<i32>} : memref<256x1152xf32, #tpu.memory_space<vmem>>, vector<1x1152xf32>,
    %c0_37 = arith.constant 0 : index
    %c10 = arith.constant 10 : index
    %26 = vector.load %arg5[%c0_37, %c10] : memref<2x1280xf32, #tpu.memory_space<vmem>>, vector<1x1152xf32>
    %c10_38 = arith.constant 10 : index
    %c0_39 = arith.constant 0 : index
    %27 = vector.load %arg6[%c10_38, %c0_39] : memref<256x1152xf32, #tpu.memory_space<vmem>>, vector<1x1152xf32>
    tpu.vector_store %arg6[%c10_38, %c0_39], %26 {strides = array<i32>} : memref<256x1152xf32, #tpu.memory_space<vmem>>, vector<1x1152xf32>,
    %c0_40 = arith.constant 0 : index
    %c11 = arith.constant 11 : index
    %28 = vector.load %arg5[%c0_40, %c11] : memref<2x1280xf32, #tpu.memory_space<vmem>>, vector<1x1152xf32>
    %c11_41 = arith.constant 11 : index
    %c0_42 = arith.constant 0 : index
    %29 = vector.load %arg6[%c11_41, %c0_42] : memref<256x1152xf32, #tpu.memory_space<vmem>>, vector<1x1152xf32>
    tpu.vector_store %arg6[%c11_41, %c0_42], %28 {strides = array<i32>} : memref<256x1152xf32, #tpu.memory_space<vmem>>, vector<1x1152xf32>,
    %c0_43 = arith.constant 0 : index
    %c12 = arith.constant 12 : index
    %30 = vector.load %arg5[%c0_43, %c12] : memref<2x1280xf32, #tpu.memory_space<vmem>>, vector<1x1152xf32>
    %c12_44 = arith.constant 12 : index
    %c0_45 = arith.constant 0 : index
    %31 = vector.load %arg6[%c12_44, %c0_45] : memref<256x1152xf32, #tpu.memory_space<vmem>>, vector<1x1152xf32>
    tpu.vector_store %arg6[%c12_44, %c0_45], %30 {strides = array<i32>} : memref<256x1152xf32, #tpu.memory_space<vmem>>, vector<1x1152xf32>,
    %c0_46 = arith.constant 0 : index
    %c13 = arith.constant 13 : index
    %32 = vector.load %arg5[%c0_46, %c13] : memref<2x1280xf32, #tpu.memory_space<vmem>>, vector<1x1152xf32>
    %c13_47 = arith.constant 13 : index
    %c0_48 = arith.constant 0 : index
    %33 = vector.load %arg6[%c13_47, %c0_48] : memref<256x1152xf32, #tpu.memory_space<vmem>>, vector<1x1152xf32>
    tpu.vector_store %arg6[%c13_47, %c0_48], %32 {strides = array<i32>} : memref<256x1152xf32, #tpu.memory_space<vmem>>, vector<1x1152xf32>,
    %c0_49 = arith.constant 0 : index
    %c14 = arith.constant 14 : index
    %34 = vector.load %arg5[%c0_49, %c14] : memref<2x1280xf32, #tpu.memory_space<vmem>>, vector<1x1152xf32>
    %c14_50 = arith.constant 14 : index
    %c0_51 = arith.constant 0 : index
    %35 = vector.load %arg6[%c14_50, %c0_51] : memref<256x1152xf32, #tpu.memory_space<vmem>>, vector<1x1152xf32>
    tpu.vector_store %arg6[%c14_50, %c0_51], %34 {strides = array<i32>} : memref<256x1152xf32, #tpu.memory_space<vmem>>, vector<1x1152xf32>,
    %c0_52 = arith.constant 0 : index
    %c15 = arith.constant 15 : index
    %36 = vector.load %arg5[%c0_52, %c15] : memref<2x1280xf32, #tpu.memory_space<vmem>>, vector<1x1152xf32>
    %c15_53 = arith.constant 15 : index
    %c0_54 = arith.constant 0 : index
    %37 = vector.load %arg6[%c15_53, %c0_54] : memref<256x1152xf32, #tpu.memory_space<vmem>>, vector<1x1152xf32>
    tpu.vector_store %arg6[%c15_53, %c0_54], %36 {strides = array<i32>} : memref<256x1152xf32, #tpu.memory_space<vmem>>, vector<1x1152xf32>,
    %c0_55 = arith.constant 0 : index
    %c16 = arith.constant 16 : index
    %38 = vector.load %arg5[%c0_55, %c16] : memref<2x1280xf32, #tpu.memory_space<vmem>>, vector<1x1152xf32>
    %c16_56 = arith.constant 16 : index
    %c0_57 = arith.constant 0 : index
    %39 = vector.load %arg6[%c16_56, %c0_57] : memref<256x1152xf32, #tpu.memory_space<vmem>>, vector<1x1152xf32>
    tpu.vector_store %arg6[%c16_56, %c0_57], %38 {strides = array<i32>} : memref<256x1152xf32, #tpu.memory_space<vmem>>, vector<1x1152xf32>,
    %c0_58 = arith.constant 0 : index
    %c17 = arith.constant 17 : index
    %40 = vector.load %arg5[%c0_58, %c17] : memref<2x1280xf32, #tpu.memory_space<vmem>>, vector<1x1152xf32>
    %c17_59 = arith.constant 17 : index
    %c0_60 = arith.constant 0 : index
    %41 = vector.load %arg6[%c17_59, %c0_60] : memref<256x1152xf32, #tpu.memory_space<vmem>>, vector<1x1152xf32>
    tpu.vector_store %arg6[%c17_59, %c0_60], %40 {strides = array<i32>} : memref<256x1152xf32, #tpu.memory_space<vmem>>, vector<1x1152xf32>,
    %c0_61 = arith.constant 0 : index
    %c18 = arith.constant 18 : index
    %42 = vector.load %arg5[%c0_61, %c18] : memref<2x1280xf32, #tpu.memory_space<vmem>>, vector<1x1152xf32>
    %c18_62 = arith.constant 18 : index
    %c0_63 = arith.constant 0 : index
    %43 = vector.load %arg6[%c18_62, %c0_63] : memref<256x1152xf32, #tpu.memory_space<vmem>>, vector<1x1152xf32>
    tpu.vector_store %arg6[%c18_62, %c0_63], %42 {strides = array<i32>} : memref<256x1152xf32, #tpu.memory_space<vmem>>, vector<1x1152xf32>,
    %c0_64 = arith.constant 0 : index
    %c19 = arith.constant 19 : index
    %44 = vector.load %arg5[%c0_64, %c19] : memref<2x1280xf32, #tpu.memory_space<vmem>>, vector<1x1152xf32>
    %c19_65 = arith.constant 19 : index
    %c0_66 = arith.constant 0 : index
    %45 = vector.load %arg6[%c19_65, %c0_66] : memref<256x1152xf32, #tpu.memory_space<vmem>>, vector<1x1152xf32>
    tpu.vector_store %arg6[%c19_65, %c0_66], %44 {strides = array<i32>} : memref<256x1152xf32, #tpu.memory_space<vmem>>, vector<1x1152xf32>,
    %c0_67 = arith.constant 0 : index
    %c20 = arith.constant 20 : index
    %46 = vector.load %arg5[%c0_67, %c20] : memref<2x1280xf32, #tpu.memory_space<vmem>>, vector<1x1152xf32>
    %c20_68 = arith.constant 20 : index
    %c0_69 = arith.constant 0 : index
    %47 = vector.load %arg6[%c20_68, %c0_69] : memref<256x1152xf32, #tpu.memory_space<vmem>>, vector<1x1152xf32>
    tpu.vector_store %arg6[%c20_68, %c0_69], %46 {strides = array<i32>} : memref<256x1152xf32, #tpu.memory_space<vmem>>, vector<1x1152xf32>,
    %c0_70 = arith.constant 0 : index
    %c21 = arith.constant 21 : index
    %48 = vector.load %arg5[%c0_70, %c21] : memref<2x1280xf32, #tpu.memory_space<vmem>>, vector<1x1152xf32>
    %c21_71 = arith.constant 21 : index
    %c0_72 = arith.constant 0 : index
    %49 = vector.load %arg6[%c21_71, %c0_72] : memref<256x1152xf32, #tpu.memory_space<vmem>>, vector<1x1152xf32>
    tpu.vector_store %arg6[%c21_71, %c0_72], %48 {strides = array<i32>} : memref<256x1152xf32, #tpu.memory_space<vmem>>, vector<1x1152xf32>,
    %c0_73 = arith.constant 0 : index
    %c22 = arith.constant 22 : index
    %50 = vector.load %arg5[%c0_73, %c22] : memref<2x1280xf32, #tpu.memory_space<vmem>>, vector<1x1152xf32>
    %c22_74 = arith.constant 22 : index
    %c0_75 = arith.constant 0 : index
    %51 = vector.load %arg6[%c22_74, %c0_75] : memref<256x1152xf32, #tpu.memory_space<vmem>>, vector<1x1152xf32>
    tpu.vector_store %arg6[%c22_74, %c0_75], %50 {strides = array<i32>} : memref<256x1152xf32, #tpu.memory_space<vmem>>, vector<1x1152xf32>,
    %c0_76 = arith.constant 0 : index
    %c23 = arith.constant 23 : index
    %52 = vector.load %arg5[%c0_76, %c23] : memref<2x1280xf32, #tpu.memory_space<vmem>>, vector<1x1152xf32>
    %c23_77 = arith.constant 23 : index
    %c0_78 = arith.constant 0 : index
    %53 = vector.load %arg6[%c23_77, %c0_78] : memref<256x1152xf32, #tpu.memory_space<vmem>>, vector<1x1152xf32>
    tpu.vector_store %arg6[%c23_77, %c0_78], %52 {strides = array<i32>} : memref<256x1152xf32, #tpu.memory_space<vmem>>, vector<1x1152xf32>,
    %c0_79 = arith.constant 0 : index
    %c24 = arith.constant 24 : index
    %54 = vector.load %arg5[%c0_79, %c24] : memref<2x1280xf32, #tpu.memory_space<vmem>>, vector<1x1152xf32>
    %c24_80 = arith.constant 24 : index
    %c0_81 = arith.constant 0 : index
    %55 = vector.load %arg6[%c24_80, %c0_81] : memref<256x1152xf32, #tpu.memory_space<vmem>>, vector<1x1152xf32>
    tpu.vector_store %arg6[%c24_80, %c0_81], %54 {strides = array<i32>} : memref<256x1152xf32, #tpu.memory_space<vmem>>, vector<1x1152xf32>,
    %c0_82 = arith.constant 0 : index
    %c25 = arith.constant 25 : index
    %56 = vector.load %arg5[%c0_82, %c25] : memref<2x1280xf32, #tpu.memory_space<vmem>>, vector<1x1152xf32>
    %c25_83 = arith.constant 25 : index
    %c0_84 = arith.constant 0 : index
    %57 = vector.load %arg6[%c25_83, %c0_84] : memref<256x1152xf32, #tpu.memory_space<vmem>>, vector<1x1152xf32>
    tpu.vector_store %arg6[%c25_83, %c0_84], %56 {strides = array<i32>} : memref<256x1152xf32, #tpu.memory_space<vmem>>, vector<1x1152xf32>,
    %c0_85 = arith.constant 0 : index
    %c26 = arith.constant 26 : index
    %58 = vector.load %arg5[%c0_85, %c26] : memref<2x1280xf32, #tpu.memory_space<vmem>>, vector<1x1152xf32>
    %c26_86 = arith.constant 26 : index
    %c0_87 = arith.constant 0 : index
    %59 = vector.load %arg6[%c26_86, %c0_87] : memref<256x1152xf32, #tpu.memory_space<vmem>>, vector<1x1152xf32>
    tpu.vector_store %arg6[%c26_86, %c0_87], %58 {strides = array<i32>} : memref<256x1152xf32, #tpu.memory_space<vmem>>, vector<1x1152xf32>,
    %c0_88 = arith.constant 0 : index
    %c27 = arith.constant 27 : index
    %60 = vector.load %arg5[%c0_88, %c27] : memref<2x1280xf32, #tpu.memory_space<vmem>>, vector<1x1152xf32>
    %c27_89 = arith.constant 27 : index
    %c0_90 = arith.constant 0 : index
    %61 = vector.load %arg6[%c27_89, %c0_90] : memref<256x1152xf32, #tpu.memory_space<vmem>>, vector<1x1152xf32>
    tpu.vector_store %arg6[%c27_89, %c0_90], %60 {strides = array<i32>} : memref<256x1152xf32, #tpu.memory_space<vmem>>, vector<1x1152xf32>,
    %c0_91 = arith.constant 0 : index
    %c28 = arith.constant 28 : index
    %62 = vector.load %arg5[%c0_91, %c28] : memref<2x1280xf32, #tpu.memory_space<vmem>>, vector<1x1152xf32>
    %c28_92 = arith.constant 28 : index
    %c0_93 = arith.constant 0 : index
    %63 = vector.load %arg6[%c28_92, %c0_93] : memref<256x1152xf32, #tpu.memory_space<vmem>>, vector<1x1152xf32>
    tpu.vector_store %arg6[%c28_92, %c0_93], %62 {strides = array<i32>} : memref<256x1152xf32, #tpu.memory_space<vmem>>, vector<1x1152xf32>,
    %c0_94 = arith.constant 0 : index
    %c29 = arith.constant 29 : index
    %64 = vector.load %arg5[%c0_94, %c29] : memref<2x1280xf32, #tpu.memory_space<vmem>>, vector<1x1152xf32>
    %c29_95 = arith.constant 29 : index
    %c0_96 = arith.constant 0 : index
    %65 = vector.load %arg6[%c29_95, %c0_96] : memref<256x1152xf32, #tpu.memory_space<vmem>>, vector<1x1152xf32>
    tpu.vector_store %arg6[%c29_95, %c0_96], %64 {strides = array<i32>} : memref<256x1152xf32, #tpu.memory_space<vmem>>, vector<1x1152xf32>,
    %c0_97 = arith.constant 0 : index
    %c30 = arith.constant 30 : index
    %66 = vector.load %arg5[%c0_97, %c30] : memref<2x1280xf32, #tpu.memory_space<vmem>>, vector<1x1152xf32>
    %c30_98 = arith.constant 30 : index
    %c0_99 = arith.constant 0 : index
    %67 = vector.load %arg6[%c30_98, %c0_99] : memref<256x1152xf32, #tpu.memory_space<vmem>>, vector<1x1152xf32>
    tpu.vector_store %arg6[%c30_98, %c0_99], %66 {strides = array<i32>} : memref<256x1152xf32, #tpu.memory_space<vmem>>, vector<1x1152xf32>,
    %c0_100 = arith.constant 0 : index
    %c31 = arith.constant 31 : index
    %68 = vector.load %arg5[%c0_100, %c31] : memref<2x1280xf32, #tpu.memory_space<vmem>>, vector<1x1152xf32>
    %c31_101 = arith.constant 31 : index
    %c0_102 = arith.constant 0 : index
    %69 = vector.load %arg6[%c31_101, %c0_102] : memref<256x1152xf32, #tpu.memory_space<vmem>>, vector<1x1152xf32>
    tpu.vector_store %arg6[%c31_101, %c0_102], %68 {strides = array<i32>} : memref<256x1152xf32, #tpu.memory_space<vmem>>, vector<1x1152xf32>,
    %c0_103 = arith.constant 0 : index
    %c32 = arith.constant 32 : index
    %70 = vector.load %arg5[%c0_103, %c32] : memref<2x1280xf32, #tpu.memory_space<vmem>>, vector<1x1152xf32>
    %c32_104 = arith.constant 32 : index
    %c0_105 = arith.constant 0 : index
    %71 = vector.load %arg6[%c32_104, %c0_105] : memref<256x1152xf32, #tpu.memory_space<vmem>>, vector<1x1152xf32>
    tpu.vector_store %arg6[%c32_104, %c0_105], %70 {strides = array<i32>} : memref<256x1152xf32, #tpu.memory_space<vmem>>, vector<1x1152xf32>,
    %c0_106 = arith.constant 0 : index
    %c33 = arith.constant 33 : index
    %72 = vector.load %arg5[%c0_106, %c33] : memref<2x1280xf32, #tpu.memory_space<vmem>>, vector<1x1152xf32>
    %c33_107 = arith.constant 33 : index
    %c0_108 = arith.constant 0 : index
    %73 = vector.load %arg6[%c33_107, %c0_108] : memref<256x1152xf32, #tpu.memory_space<vmem>>, vector<1x1152xf32>
    tpu.vector_store %arg6[%c33_107, %c0_108], %72 {strides = array<i32>} : memref<256x1152xf32, #tpu.memory_space<vmem>>, vector<1x1152xf32>,
    %c0_109 = arith.constant 0 : index
    %c34 = arith.constant 34 : index
    %74 = vector.load %arg5[%c0_109, %c34] : memref<2x1280xf32, #tpu.memory_space<vmem>>, vector<1x1152xf32>
    %c34_110 = arith.constant 34 : index
    %c0_111 = arith.constant 0 : index
    %75 = vector.load %arg6[%c34_110, %c0_111] : memref<256x1152xf32, #tpu.memory_space<vmem>>, vector<1x1152xf32>
    tpu.vector_store %arg6[%c34_110, %c0_111], %74 {strides = array<i32>} : memref<256x1152xf32, #tpu.memory_space<vmem>>, vector<1x1152xf32>,
    %c0_112 = arith.constant 0 : index
    %c35 = arith.constant 35 : index
    %76 = vector.load %arg5[%c0_112, %c35] : memref<2x1280xf32, #tpu.memory_space<vmem>>, vector<1x1152xf32>
    %c35_113 = arith.constant 35 : index
    %c0_114 = arith.constant 0 : index
    %77 = vector.load %arg6[%c35_113, %c0_114] : memref<256x1152xf32, #tpu.memory_space<vmem>>, vector<1x1152xf32>
    tpu.vector_store %arg6[%c35_113, %c0_114], %76 {strides = array<i32>} : memref<256x1152xf32, #tpu.memory_space<vmem>>, vector<1x1152xf32>,
    %c0_115 = arith.constant 0 : index
    %c36 = arith.constant 36 : index
    %78 = vector.load %arg5[%c0_115, %c36] : memref<2x1280xf32, #tpu.memory_space<vmem>>, vector<1x1152xf32>
    %c36_116 = arith.constant 36 : index
    %c0_117 = arith.constant 0 : index
    %79 = vector.load %arg6[%c36_116, %c0_117] : memref<256x1152xf32, #tpu.memory_space<vmem>>, vector<1x1152xf32>
    tpu.vector_store %arg6[%c36_116, %c0_117], %78 {strides = array<i32>} : memref<256x1152xf32, #tpu.memory_space<vmem>>, vector<1x1152xf32>,
    %c0_118 = arith.constant 0 : index
    %c37 = arith.constant 37 : index
    %80 = vector.load %arg5[%c0_118, %c37] : memref<2x1280xf32, #tpu.memory_space<vmem>>, vector<1x1152xf32>
    %c37_119 = arith.constant 37 : index
    %c0_120 = arith.constant 0 : index
    %81 = vector.load %arg6[%c37_119, %c0_120] : memref<256x1152xf32, #tpu.memory_space<vmem>>, vector<1x1152xf32>
    tpu.vector_store %arg6[%c37_119, %c0_120], %80 {strides = array<i32>} : memref<256x1152xf32, #tpu.memory_space<vmem>>, vector<1x1152xf32>,
    %c0_121 = arith.constant 0 : index
    %c38 = arith.constant 38 : index
    %82 = vector.load %arg5[%c0_121, %c38] : memref<2x1280xf32, #tpu.memory_space<vmem>>, vector<1x1152xf32>
    %c38_122 = arith.constant 38 : index
    %c0_123 = arith.constant 0 : index
    %83 = vector.load %arg6[%c38_122, %c0_123] : memref<256x1152xf32, #tpu.memory_space<vmem>>, vector<1x1152xf32>
    tpu.vector_store %arg6[%c38_122, %c0_123], %82 {strides = array<i32>} : memref<256x1152xf32, #tpu.memory_space<vmem>>, vector<1x1152xf32>,
    %c0_124 = arith.constant 0 : index
    %c39 = arith.constant 39 : index
    %84 = vector.load %arg5[%c0_124, %c39] : memref<2x1280xf32, #tpu.memory_space<vmem>>, vector<1x1152xf32>
    %c39_125 = arith.constant 39 : index
    %c0_126 = arith.constant 0 : index
    %85 = vector.load %arg6[%c39_125, %c0_126] : memref<256x1152xf32, #tpu.memory_space<vmem>>, vector<1x1152xf32>
    tpu.vector_store %arg6[%c39_125, %c0_126], %84 {strides = array<i32>} : memref<256x1152xf32, #tpu.memory_space<vmem>>, vector<1x1152xf32>,
    %c0_127 = arith.constant 0 : index
    %c40 = arith.constant 40 : index
    %86 = vector.load %arg5[%c0_127, %c40] : memref<2x1280xf32, #tpu.memory_space<vmem>>, vector<1x1152xf32>
    %c40_128 = arith.constant 40 : index
    %c0_129 = arith.constant 0 : index
    %87 = vector.load %arg6[%c40_128, %c0_129] : memref<256x1152xf32, #tpu.memory_space<vmem>>, vector<1x1152xf32>
    tpu.vector_store %arg6[%c40_128, %c0_129], %86 {strides = array<i32>} : memref<256x1152xf32, #tpu.memory_space<vmem>>, vector<1x1152xf32>,
    %c0_130 = arith.constant 0 : index
    %c41 = arith.constant 41 : index
    %88 = vector.load %arg5[%c0_130, %c41] : memref<2x1280xf32, #tpu.memory_space<vmem>>, vector<1x1152xf32>
    %c41_131 = arith.constant 41 : index
    %c0_132 = arith.constant 0 : index
    %89 = vector.load %arg6[%c41_131, %c0_132] : memref<256x1152xf32, #tpu.memory_space<vmem>>, vector<1x1152xf32>
    tpu.vector_store %arg6[%c41_131, %c0_132], %88 {strides = array<i32>} : memref<256x1152xf32, #tpu.memory_space<vmem>>, vector<1x1152xf32>,
    %c0_133 = arith.constant 0 : index
    %c42 = arith.constant 42 : index
    %90 = vector.load %arg5[%c0_133, %c42] : memref<2x1280xf32, #tpu.memory_space<vmem>>, vector<1x1152xf32>
    %c42_134 = arith.constant 42 : index
    %c0_135 = arith.constant 0 : index
    %91 = vector.load %arg6[%c42_134, %c0_135] : memref<256x1152xf32, #tpu.memory_space<vmem>>, vector<1x1152xf32>
    tpu.vector_store %arg6[%c42_134, %c0_135], %90 {strides = array<i32>} : memref<256x1152xf32, #tpu.memory_space<vmem>>, vector<1x1152xf32>,
    %c0_136 = arith.constant 0 : index
    %c43 = arith.constant 43 : index
    %92 = vector.load %arg5[%c0_136, %c43] : memref<2x1280xf32, #tpu.memory_space<vmem>>, vector<1x1152xf32>
    %c43_137 = arith.constant 43 : index
    %c0_138 = arith.constant 0 : index
    %93 = vector.load %arg6[%c43_137, %c0_138] : memref<256x1152xf32, #tpu.memory_space<vmem>>, vector<1x1152xf32>
    tpu.vector_store %arg6[%c43_137, %c0_138], %92 {strides = array<i32>} : memref<256x1152xf32, #tpu.memory_space<vmem>>, vector<1x1152xf32>,
    %c0_139 = arith.constant 0 : index
    %c44 = arith.constant 44 : index
    %94 = vector.load %arg5[%c0_139, %c44] : memref<2x1280xf32, #tpu.memory_space<vmem>>, vector<1x1152xf32>
    %c44_140 = arith.constant 44 : index
    %c0_141 = arith.constant 0 : index
    %95 = vector.load %arg6[%c44_140, %c0_141] : memref<256x1152xf32, #tpu.memory_space<vmem>>, vector<1x1152xf32>
    tpu.vector_store %arg6[%c44_140, %c0_141], %94 {strides = array<i32>} : memref<256x1152xf32, #tpu.memory_space<vmem>>, vector<1x1152xf32>,
    %c0_142 = arith.constant 0 : index
    %c45 = arith.constant 45 : index
    %96 = vector.load %arg5[%c0_142, %c45] : memref<2x1280xf32, #tpu.memory_space<vmem>>, vector<1x1152xf32>
    %c45_143 = arith.constant 45 : index
    %c0_144 = arith.constant 0 : index
    %97 = vector.load %arg6[%c45_143, %c0_144] : memref<256x1152xf32, #tpu.memory_space<vmem>>, vector<1x1152xf32>
    tpu.vector_store %arg6[%c45_143, %c0_144], %96 {strides = array<i32>} : memref<256x1152xf32, #tpu.memory_space<vmem>>, vector<1x1152xf32>,
    %c0_145 = arith.constant 0 : index
    %c46 = arith.constant 46 : index
    %98 = vector.load %arg5[%c0_145, %c46] : memref<2x1280xf32, #tpu.memory_space<vmem>>, vector<1x1152xf32>
    %c46_146 = arith.constant 46 : index
    %c0_147 = arith.constant 0 : index
    %99 = vector.load %arg6[%c46_146, %c0_147] : memref<256x1152xf32, #tpu.memory_space<vmem>>, vector<1x1152xf32>
    tpu.vector_store %arg6[%c46_146, %c0_147], %98 {strides = array<i32>} : memref<256x1152xf32, #tpu.memory_space<vmem>>, vector<1x1152xf32>,
    %c0_148 = arith.constant 0 : index
    %c47 = arith.constant 47 : index
    %100 = vector.load %arg5[%c0_148, %c47] : memref<2x1280xf32, #tpu.memory_space<vmem>>, vector<1x1152xf32>
    %c47_149 = arith.constant 47 : index
    %c0_150 = arith.constant 0 : index
    %101 = vector.load %arg6[%c47_149, %c0_150] : memref<256x1152xf32, #tpu.memory_space<vmem>>, vector<1x1152xf32>
    tpu.vector_store %arg6[%c47_149, %c0_150], %100 {strides = array<i32>} : memref<256x1152xf32, #tpu.memory_space<vmem>>, vector<1x1152xf32>,
    %c0_151 = arith.constant 0 : index
    %c48 = arith.constant 48 : index
    %102 = vector.load %arg5[%c0_151, %c48] : memref<2x1280xf32, #tpu.memory_space<vmem>>, vector<1x1152xf32>
    %c48_152 = arith.constant 48 : index
    %c0_153 = arith.constant 0 : index
    %103 = vector.load %arg6[%c48_152, %c0_153] : memref<256x1152xf32, #tpu.memory_space<vmem>>, vector<1x1152xf32>
    tpu.vector_store %arg6[%c48_152, %c0_153], %102 {strides = array<i32>} : memref<256x1152xf32, #tpu.memory_space<vmem>>, vector<1x1152xf32>,
    %c0_154 = arith.constant 0 : index
    %c49 = arith.constant 49 : index
    %104 = vector.load %arg5[%c0_154, %c49] : memref<2x1280xf32, #tpu.memory_space<vmem>>, vector<1x1152xf32>
    %c49_155 = arith.constant 49 : index
    %c0_156 = arith.constant 0 : index
    %105 = vector.load %arg6[%c49_155, %c0_156] : memref<256x1152xf32, #tpu.memory_space<vmem>>, vector<1x1152xf32>
    tpu.vector_store %arg6[%c49_155, %c0_156], %104 {strides = array<i32>} : memref<256x1152xf32, #tpu.memory_space<vmem>>, vector<1x1152xf32>,
    %c0_157 = arith.constant 0 : index
    %c50 = arith.constant 50 : index
    %106 = vector.load %arg5[%c0_157, %c50] : memref<2x1280xf32, #tpu.memory_space<vmem>>, vector<1x1152xf32>
    %c50_158 = arith.constant 50 : index
    %c0_159 = arith.constant 0 : index
    %107 = vector.load %arg6[%c50_158, %c0_159] : memref<256x1152xf32, #tpu.memory_space<vmem>>, vector<1x1152xf32>
    tpu.vector_store %arg6[%c50_158, %c0_159], %106 {strides = array<i32>} : memref<256x1152xf32, #tpu.memory_space<vmem>>, vector<1x1152xf32>,
    %c0_160 = arith.constant 0 : index
    %c51 = arith.constant 51 : index
    %108 = vector.load %arg5[%c0_160, %c51] : memref<2x1280xf32, #tpu.memory_space<vmem>>, vector<1x1152xf32>
    %c51_161 = arith.constant 51 : index
    %c0_162 = arith.constant 0 : index
    %109 = vector.load %arg6[%c51_161, %c0_162] : memref<256x1152xf32, #tpu.memory_space<vmem>>, vector<1x1152xf32>
    tpu.vector_store %arg6[%c51_161, %c0_162], %108 {strides = array<i32>} : memref<256x1152xf32, #tpu.memory_space<vmem>>, vector<1x1152xf32>,
    %c0_163 = arith.constant 0 : index
    %c52 = arith.constant 52 : index
    %110 = vector.load %arg5[%c0_163, %c52] : memref<2x1280xf32, #tpu.memory_space<vmem>>, vector<1x1152xf32>
    %c52_164 = arith.constant 52 : index
    %c0_165 = arith.constant 0 : index
    %111 = vector.load %arg6[%c52_164, %c0_165] : memref<256x1152xf32, #tpu.memory_space<vmem>>, vector<1x1152xf32>
    tpu.vector_store %arg6[%c52_164, %c0_165], %110 {strides = array<i32>} : memref<256x1152xf32, #tpu.memory_space<vmem>>, vector<1x1152xf32>,
    %c0_166 = arith.constant 0 : index
    %c53 = arith.constant 53 : index
    %112 = vector.load %arg5[%c0_166, %c53] : memref<2x1280xf32, #tpu.memory_space<vmem>>, vector<1x1152xf32>
    %c53_167 = arith.constant 53 : index
    %c0_168 = arith.constant 0 : index
    %113 = vector.load %arg6[%c53_167, %c0_168] : memref<256x1152xf32, #tpu.memory_space<vmem>>, vector<1x1152xf32>
    tpu.vector_store %arg6[%c53_167, %c0_168], %112 {strides = array<i32>} : memref<256x1152xf32, #tpu.memory_space<vmem>>, vector<1x1152xf32>,
    %c0_169 = arith.constant 0 : index
    %c54 = arith.constant 54 : index
    %114 = vector.load %arg5[%c0_169, %c54] : memref<2x1280xf32, #tpu.memory_space<vmem>>, vector<1x1152xf32>
    %c54_170 = arith.constant 54 : index
    %c0_171 = arith.constant 0 : index
    %115 = vector.load %arg6[%c54_170, %c0_171] : memref<256x1152xf32, #tpu.memory_space<vmem>>, vector<1x1152xf32>
    tpu.vector_store %arg6[%c54_170, %c0_171], %114 {strides = array<i32>} : memref<256x1152xf32, #tpu.memory_space<vmem>>, vector<1x1152xf32>,
    %c0_172 = arith.constant 0 : index
    %c55 = arith.constant 55 : index
    %116 = vector.load %arg5[%c0_172, %c55] : memref<2x1280xf32, #tpu.memory_space<vmem>>, vector<1x1152xf32>
    %c55_173 = arith.constant 55 : index
    %c0_174 = arith.constant 0 : index
    %117 = vector.load %arg6[%c55_173, %c0_174] : memref<256x1152xf32, #tpu.memory_space<vmem>>, vector<1x1152xf32>
    tpu.vector_store %arg6[%c55_173, %c0_174], %116 {strides = array<i32>} : memref<256x1152xf32, #tpu.memory_space<vmem>>, vector<1x1152xf32>,
    %c0_175 = arith.constant 0 : index
    %c56 = arith.constant 56 : index
    %118 = vector.load %arg5[%c0_175, %c56] : memref<2x1280xf32, #tpu.memory_space<vmem>>, vector<1x1152xf32>
    %c56_176 = arith.constant 56 : index
    %c0_177 = arith.constant 0 : index
    %119 = vector.load %arg6[%c56_176, %c0_177] : memref<256x1152xf32, #tpu.memory_space<vmem>>, vector<1x1152xf32>
    tpu.vector_store %arg6[%c56_176, %c0_177], %118 {strides = array<i32>} : memref<256x1152xf32, #tpu.memory_space<vmem>>, vector<1x1152xf32>,
    %c0_178 = arith.constant 0 : index
    %c57 = arith.constant 57 : index
    %120 = vector.load %arg5[%c0_178, %c57] : memref<2x1280xf32, #tpu.memory_space<vmem>>, vector<1x1152xf32>
    %c57_179 = arith.constant 57 : index
    %c0_180 = arith.constant 0 : index
    %121 = vector.load %arg6[%c57_179, %c0_180] : memref<256x1152xf32, #tpu.memory_space<vmem>>, vector<1x1152xf32>
    tpu.vector_store %arg6[%c57_179, %c0_180], %120 {strides = array<i32>} : memref<256x1152xf32, #tpu.memory_space<vmem>>, vector<1x1152xf32>,
    %c0_181 = arith.constant 0 : index
    %c58 = arith.constant 58 : index
    %122 = vector.load %arg5[%c0_181, %c58] : memref<2x1280xf32, #tpu.memory_space<vmem>>, vector<1x1152xf32>
    %c58_182 = arith.constant 58 : index
    %c0_183 = arith.constant 0 : index
    %123 = vector.load %arg6[%c58_182, %c0_183] : memref<256x1152xf32, #tpu.memory_space<vmem>>, vector<1x1152xf32>
    tpu.vector_store %arg6[%c58_182, %c0_183], %122 {strides = array<i32>} : memref<256x1152xf32, #tpu.memory_space<vmem>>, vector<1x1152xf32>,
    %c0_184 = arith.constant 0 : index
    %c59 = arith.constant 59 : index
    %124 = vector.load %arg5[%c0_184, %c59] : memref<2x1280xf32, #tpu.memory_space<vmem>>, vector<1x1152xf32>
    %c59_185 = arith.constant 59 : index
    %c0_186 = arith.constant 0 : index
    %125 = vector.load %arg6[%c59_185, %c0_186] : memref<256x1152xf32, #tpu.memory_space<vmem>>, vector<1x1152xf32>
    tpu.vector_store %arg6[%c59_185, %c0_186], %124 {strides = array<i32>} : memref<256x1152xf32, #tpu.memory_space<vmem>>, vector<1x1152xf32>,
    %c0_187 = arith.constant 0 : index
    %c60 = arith.constant 60 : index
    %126 = vector.load %arg5[%c0_187, %c60] : memref<2x1280xf32, #tpu.memory_space<vmem>>, vector<1x1152xf32>
    %c60_188 = arith.constant 60 : index
    %c0_189 = arith.constant 0 : index
    %127 = vector.load %arg6[%c60_188, %c0_189] : memref<256x1152xf32, #tpu.memory_space<vmem>>, vector<1x1152xf32>
    tpu.vector_store %arg6[%c60_188, %c0_189], %126 {strides = array<i32>} : memref<256x1152xf32, #tpu.memory_space<vmem>>, vector<1x1152xf32>,
    %c0_190 = arith.constant 0 : index
    %c61 = arith.constant 61 : index
    %128 = vector.load %arg5[%c0_190, %c61] : memref<2x1280xf32, #tpu.memory_space<vmem>>, vector<1x1152xf32>
    %c61_191 = arith.constant 61 : index
    %c0_192 = arith.constant 0 : index
    %129 = vector.load %arg6[%c61_191, %c0_192] : memref<256x1152xf32, #tpu.memory_space<vmem>>, vector<1x1152xf32>
    tpu.vector_store %arg6[%c61_191, %c0_192], %128 {strides = array<i32>} : memref<256x1152xf32, #tpu.memory_space<vmem>>, vector<1x1152xf32>,
    %c0_193 = arith.constant 0 : index
    %c62 = arith.constant 62 : index
    %130 = vector.load %arg5[%c0_193, %c62] : memref<2x1280xf32, #tpu.memory_space<vmem>>, vector<1x1152xf32>
    %c62_194 = arith.constant 62 : index
    %c0_195 = arith.constant 0 : index
    %131 = vector.load %arg6[%c62_194, %c0_195] : memref<256x1152xf32, #tpu.memory_space<vmem>>, vector<1x1152xf32>
    tpu.vector_store %arg6[%c62_194, %c0_195], %130 {strides = array<i32>} : memref<256x1152xf32, #tpu.memory_space<vmem>>, vector<1x1152xf32>,
    %c0_196 = arith.constant 0 : index
    %c63 = arith.constant 63 : index
    %132 = vector.load %arg5[%c0_196, %c63] : memref<2x1280xf32, #tpu.memory_space<vmem>>, vector<1x1152xf32>
    %c63_197 = arith.constant 63 : index
    %c0_198 = arith.constant 0 : index
    %133 = vector.load %arg6[%c63_197, %c0_198] : memref<256x1152xf32, #tpu.memory_space<vmem>>, vector<1x1152xf32>
    tpu.vector_store %arg6[%c63_197, %c0_198], %132 {strides = array<i32>} : memref<256x1152xf32, #tpu.memory_space<vmem>>, vector<1x1152xf32>,
    %c0_199 = arith.constant 0 : index
    %c64 = arith.constant 64 : index
    %134 = vector.load %arg5[%c0_199, %c64] : memref<2x1280xf32, #tpu.memory_space<vmem>>, vector<1x1152xf32>
    %c64_200 = arith.constant 64 : index
    %c0_201 = arith.constant 0 : index
    %135 = vector.load %arg6[%c64_200, %c0_201] : memref<256x1152xf32, #tpu.memory_space<vmem>>, vector<1x1152xf32>
    tpu.vector_store %arg6[%c64_200, %c0_201], %134 {strides = array<i32>} : memref<256x1152xf32, #tpu.memory_space<vmem>>, vector<1x1152xf32>,
    %c0_202 = arith.constant 0 : index
    %c65 = arith.constant 65 : index
    %136 = vector.load %arg5[%c0_202, %c65] : memref<2x1280xf32, #tpu.memory_space<vmem>>, vector<1x1152xf32>
    %c65_203 = arith.constant 65 : index
    %c0_204 = arith.constant 0 : index
    %137 = vector.load %arg6[%c65_203, %c0_204] : memref<256x1152xf32, #tpu.memory_space<vmem>>, vector<1x1152xf32>
    tpu.vector_store %arg6[%c65_203, %c0_204], %136 {strides = array<i32>} : memref<256x1152xf32, #tpu.memory_space<vmem>>, vector<1x1152xf32>,
    %c0_205 = arith.constant 0 : index
    %c66 = arith.constant 66 : index
    %138 = vector.load %arg5[%c0_205, %c66] : memref<2x1280xf32, #tpu.memory_space<vmem>>, vector<1x1152xf32>
    %c66_206 = arith.constant 66 : index
    %c0_207 = arith.constant 0 : index
    %139 = vector.load %arg6[%c66_206, %c0_207] : memref<256x1152xf32, #tpu.memory_space<vmem>>, vector<1x1152xf32>
    tpu.vector_store %arg6[%c66_206, %c0_207], %138 {strides = array<i32>} : memref<256x1152xf32, #tpu.memory_space<vmem>>, vector<1x1152xf32>,
    %c0_208 = arith.constant 0 : index
    %c67 = arith.constant 67 : index
    %140 = vector.load %arg5[%c0_208, %c67] : memref<2x1280xf32, #tpu.memory_space<vmem>>, vector<1x1152xf32>
    %c67_209 = arith.constant 67 : index
    %c0_210 = arith.constant 0 : index
    %141 = vector.load %arg6[%c67_209, %c0_210] : memref<256x1152xf32, #tpu.memory_space<vmem>>, vector<1x1152xf32>
    tpu.vector_store %arg6[%c67_209, %c0_210], %140 {strides = array<i32>} : memref<256x1152xf32, #tpu.memory_space<vmem>>, vector<1x1152xf32>,
    %c0_211 = arith.constant 0 : index
    %c68 = arith.constant 68 : index
    %142 = vector.load %arg5[%c0_211, %c68] : memref<2x1280xf32, #tpu.memory_space<vmem>>, vector<1x1152xf32>
    %c68_212 = arith.constant 68 : index
    %c0_213 = arith.constant 0 : index
    %143 = vector.load %arg6[%c68_212, %c0_213] : memref<256x1152xf32, #tpu.memory_space<vmem>>, vector<1x1152xf32>
    tpu.vector_store %arg6[%c68_212, %c0_213], %142 {strides = array<i32>} : memref<256x1152xf32, #tpu.memory_space<vmem>>, vector<1x1152xf32>,
    %c0_214 = arith.constant 0 : index
    %c69 = arith.constant 69 : index
    %144 = vector.load %arg5[%c0_214, %c69] : memref<2x1280xf32, #tpu.memory_space<vmem>>, vector<1x1152xf32>
    %c69_215 = arith.constant 69 : index
    %c0_216 = arith.constant 0 : index
    %145 = vector.load %arg6[%c69_215, %c0_216] : memref<256x1152xf32, #tpu.memory_space<vmem>>, vector<1x1152xf32>
    tpu.vector_store %arg6[%c69_215, %c0_216], %144 {strides = array<i32>} : memref<256x1152xf32, #tpu.memory_space<vmem>>, vector<1x1152xf32>,
    %c0_217 = arith.constant 0 : index
    %c70 = arith.constant 70 : index
    %146 = vector.load %arg5[%c0_217, %c70] : memref<2x1280xf32, #tpu.memory_space<vmem>>, vector<1x1152xf32>
    %c70_218 = arith.constant 70 : index
    %c0_219 = arith.constant 0 : index
    %147 = vector.load %arg6[%c70_218, %c0_219] : memref<256x1152xf32, #tpu.memory_space<vmem>>, vector<1x1152xf32>
    tpu.vector_store %arg6[%c70_218, %c0_219], %146 {strides = array<i32>} : memref<256x1152xf32, #tpu.memory_space<vmem>>, vector<1x1152xf32>,
    %c0_220 = arith.constant 0 : index
    %c71 = arith.constant 71 : index
    %148 = vector.load %arg5[%c0_220, %c71] : memref<2x1280xf32, #tpu.memory_space<vmem>>, vector<1x1152xf32>
    %c71_221 = arith.constant 71 : index
    %c0_222 = arith.constant 0 : index
    %149 = vector.load %arg6[%c71_221, %c0_222] : memref<256x1152xf32, #tpu.memory_space<vmem>>, vector<1x1152xf32>
    tpu.vector_store %arg6[%c71_221, %c0_222], %148 {strides = array<i32>} : memref<256x1152xf32, #tpu.memory_space<vmem>>, vector<1x1152xf32>,
    %c0_223 = arith.constant 0 : index
    %c72 = arith.constant 72 : index
    %150 = vector.load %arg5[%c0_223, %c72] : memref<2x1280xf32, #tpu.memory_space<vmem>>, vector<1x1152xf32>
    %c72_224 = arith.constant 72 : index
    %c0_225 = arith.constant 0 : index
    %151 = vector.load %arg6[%c72_224, %c0_225] : memref<256x1152xf32, #tpu.memory_space<vmem>>, vector<1x1152xf32>
    tpu.vector_store %arg6[%c72_224, %c0_225], %150 {strides = array<i32>} : memref<256x1152xf32, #tpu.memory_space<vmem>>, vector<1x1152xf32>,
    %c0_226 = arith.constant 0 : index
    %c73 = arith.constant 73 : index
    %152 = vector.load %arg5[%c0_226, %c73] : memref<2x1280xf32, #tpu.memory_space<vmem>>, vector<1x1152xf32>
    %c73_227 = arith.constant 73 : index
    %c0_228 = arith.constant 0 : index
    %153 = vector.load %arg6[%c73_227, %c0_228] : memref<256x1152xf32, #tpu.memory_space<vmem>>, vector<1x1152xf32>
    tpu.vector_store %arg6[%c73_227, %c0_228], %152 {strides = array<i32>} : memref<256x1152xf32, #tpu.memory_space<vmem>>, vector<1x1152xf32>,
    %c0_229 = arith.constant 0 : index
    %c74 = arith.constant 74 : index
    %154 = vector.load %arg5[%c0_229, %c74] : memref<2x1280xf32, #tpu.memory_space<vmem>>, vector<1x1152xf32>
    %c74_230 = arith.constant 74 : index
    %c0_231 = arith.constant 0 : index
    %155 = vector.load %arg6[%c74_230, %c0_231] : memref<256x1152xf32, #tpu.memory_space<vmem>>, vector<1x1152xf32>
    tpu.vector_store %arg6[%c74_230, %c0_231], %154 {strides = array<i32>} : memref<256x1152xf32, #tpu.memory_space<vmem>>, vector<1x1152xf32>,
    %c0_232 = arith.constant 0 : index
    %c75 = arith.constant 75 : index
    %156 = vector.load %arg5[%c0_232, %c75] : memref<2x1280xf32, #tpu.memory_space<vmem>>, vector<1x1152xf32>
    %c75_233 = arith.constant 75 : index
    %c0_234 = arith.constant 0 : index
    %157 = vector.load %arg6[%c75_233, %c0_234] : memref<256x1152xf32, #tpu.memory_space<vmem>>, vector<1x1152xf32>
    tpu.vector_store %arg6[%c75_233, %c0_234], %156 {strides = array<i32>} : memref<256x1152xf32, #tpu.memory_space<vmem>>, vector<1x1152xf32>,
    %c0_235 = arith.constant 0 : index
    %c76 = arith.constant 76 : index
    %158 = vector.load %arg5[%c0_235, %c76] : memref<2x1280xf32, #tpu.memory_space<vmem>>, vector<1x1152xf32>
    %c76_236 = arith.constant 76 : index
    %c0_237 = arith.constant 0 : index
    %159 = vector.load %arg6[%c76_236, %c0_237] : memref<256x1152xf32, #tpu.memory_space<vmem>>, vector<1x1152xf32>
    tpu.vector_store %arg6[%c76_236, %c0_237], %158 {strides = array<i32>} : memref<256x1152xf32, #tpu.memory_space<vmem>>, vector<1x1152xf32>,
    %c0_238 = arith.constant 0 : index
    %c77 = arith.constant 77 : index
    %160 = vector.load %arg5[%c0_238, %c77] : memref<2x1280xf32, #tpu.memory_space<vmem>>, vector<1x1152xf32>
    %c77_239 = arith.constant 77 : index
    %c0_240 = arith.constant 0 : index
    %161 = vector.load %arg6[%c77_239, %c0_240] : memref<256x1152xf32, #tpu.memory_space<vmem>>, vector<1x1152xf32>
    tpu.vector_store %arg6[%c77_239, %c0_240], %160 {strides = array<i32>} : memref<256x1152xf32, #tpu.memory_space<vmem>>, vector<1x1152xf32>,
    %c0_241 = arith.constant 0 : index
    %c78 = arith.constant 78 : index
    %162 = vector.load %arg5[%c0_241, %c78] : memref<2x1280xf32, #tpu.memory_space<vmem>>, vector<1x1152xf32>
    %c78_242 = arith.constant 78 : index
    %c0_243 = arith.constant 0 : index
    %163 = vector.load %arg6[%c78_242, %c0_243] : memref<256x1152xf32, #tpu.memory_space<vmem>>, vector<1x1152xf32>
    tpu.vector_store %arg6[%c78_242, %c0_243], %162 {strides = array<i32>} : memref<256x1152xf32, #tpu.memory_space<vmem>>, vector<1x1152xf32>,
    %c0_244 = arith.constant 0 : index
    %c79 = arith.constant 79 : index
    %164 = vector.load %arg5[%c0_244, %c79] : memref<2x1280xf32, #tpu.memory_space<vmem>>, vector<1x1152xf32>
    %c79_245 = arith.constant 79 : index
    %c0_246 = arith.constant 0 : index
    %165 = vector.load %arg6[%c79_245, %c0_246] : memref<256x1152xf32, #tpu.memory_space<vmem>>, vector<1x1152xf32>
    tpu.vector_store %arg6[%c79_245, %c0_246], %164 {strides = array<i32>} : memref<256x1152xf32, #tpu.memory_space<vmem>>, vector<1x1152xf32>,
    %c0_247 = arith.constant 0 : index
    %c80 = arith.constant 80 : index
    %166 = vector.load %arg5[%c0_247, %c80] : memref<2x1280xf32, #tpu.memory_space<vmem>>, vector<1x1152xf32>
    %c80_248 = arith.constant 80 : index
    %c0_249 = arith.constant 0 : index
    %167 = vector.load %arg6[%c80_248, %c0_249] : memref<256x1152xf32, #tpu.memory_space<vmem>>, vector<1x1152xf32>
    tpu.vector_store %arg6[%c80_248, %c0_249], %166 {strides = array<i32>} : memref<256x1152xf32, #tpu.memory_space<vmem>>, vector<1x1152xf32>,
    %c0_250 = arith.constant 0 : index
    %c81 = arith.constant 81 : index
    %168 = vector.load %arg5[%c0_250, %c81] : memref<2x1280xf32, #tpu.memory_space<vmem>>, vector<1x1152xf32>
    %c81_251 = arith.constant 81 : index
    %c0_252 = arith.constant 0 : index
    %169 = vector.load %arg6[%c81_251, %c0_252] : memref<256x1152xf32, #tpu.memory_space<vmem>>, vector<1x1152xf32>
    tpu.vector_store %arg6[%c81_251, %c0_252], %168 {strides = array<i32>} : memref<256x1152xf32, #tpu.memory_space<vmem>>, vector<1x1152xf32>,
    %c0_253 = arith.constant 0 : index
    %c82 = arith.constant 82 : index
    %170 = vector.load %arg5[%c0_253, %c82] : memref<2x1280xf32, #tpu.memory_space<vmem>>, vector<1x1152xf32>
    %c82_254 = arith.constant 82 : index
    %c0_255 = arith.constant 0 : index
    %171 = vector.load %arg6[%c82_254, %c0_255] : memref<256x1152xf32, #tpu.memory_space<vmem>>, vector<1x1152xf32>
    tpu.vector_store %arg6[%c82_254, %c0_255], %170 {strides = array<i32>} : memref<256x1152xf32, #tpu.memory_space<vmem>>, vector<1x1152xf32>,
    %c0_256 = arith.constant 0 : index
    %c83 = arith.constant 83 : index
    %172 = vector.load %arg5[%c0_256, %c83] : memref<2x1280xf32, #tpu.memory_space<vmem>>, vector<1x1152xf32>
    %c83_257 = arith.constant 83 : index
    %c0_258 = arith.constant 0 : index
    %173 = vector.load %arg6[%c83_257, %c0_258] : memref<256x1152xf32, #tpu.memory_space<vmem>>, vector<1x1152xf32>
    tpu.vector_store %arg6[%c83_257, %c0_258], %172 {strides = array<i32>} : memref<256x1152xf32, #tpu.memory_space<vmem>>, vector<1x1152xf32>,
    %c0_259 = arith.constant 0 : index
    %c84 = arith.constant 84 : index
    %174 = vector.load %arg5[%c0_259, %c84] : memref<2x1280xf32, #tpu.memory_space<vmem>>, vector<1x1152xf32>
    %c84_260 = arith.constant 84 : index
    %c0_261 = arith.constant 0 : index
    %175 = vector.load %arg6[%c84_260, %c0_261] : memref<256x1152xf32, #tpu.memory_space<vmem>>, vector<1x1152xf32>
    tpu.vector_store %arg6[%c84_260, %c0_261], %174 {strides = array<i32>} : memref<256x1152xf32, #tpu.memory_space<vmem>>, vector<1x1152xf32>,
    %c0_262 = arith.constant 0 : index
    %c85 = arith.constant 85 : index
    %176 = vector.load %arg5[%c0_262, %c85] : memref<2x1280xf32, #tpu.memory_space<vmem>>, vector<1x1152xf32>
    %c85_263 = arith.constant 85 : index
    %c0_264 = arith.constant 0 : index
    %177 = vector.load %arg6[%c85_263, %c0_264] : memref<256x1152xf32, #tpu.memory_space<vmem>>, vector<1x1152xf32>
    tpu.vector_store %arg6[%c85_263, %c0_264], %176 {strides = array<i32>} : memref<256x1152xf32, #tpu.memory_space<vmem>>, vector<1x1152xf32>,
    %c0_265 = arith.constant 0 : index
    %c86 = arith.constant 86 : index
    %178 = vector.load %arg5[%c0_265, %c86] : memref<2x1280xf32, #tpu.memory_space<vmem>>, vector<1x1152xf32>
    %c86_266 = arith.constant 86 : index
    %c0_267 = arith.constant 0 : index
    %179 = vector.load %arg6[%c86_266, %c0_267] : memref<256x1152xf32, #tpu.memory_space<vmem>>, vector<1x1152xf32>
    tpu.vector_store %arg6[%c86_266, %c0_267], %178 {strides = array<i32>} : memref<256x1152xf32, #tpu.memory_space<vmem>>, vector<1x1152xf32>,
    %c0_268 = arith.constant 0 : index
    %c87 = arith.constant 87 : index
    %180 = vector.load %arg5[%c0_268, %c87] : memref<2x1280xf32, #tpu.memory_space<vmem>>, vector<1x1152xf32>
    %c87_269 = arith.constant 87 : index
    %c0_270 = arith.constant 0 : index
    %181 = vector.load %arg6[%c87_269, %c0_270] : memref<256x1152xf32, #tpu.memory_space<vmem>>, vector<1x1152xf32>
    tpu.vector_store %arg6[%c87_269, %c0_270], %180 {strides = array<i32>} : memref<256x1152xf32, #tpu.memory_space<vmem>>, vector<1x1152xf32>,
    %c0_271 = arith.constant 0 : index
    %c88 = arith.constant 88 : index
    %182 = vector.load %arg5[%c0_271, %c88] : memref<2x1280xf32, #tpu.memory_space<vmem>>, vector<1x1152xf32>
    %c88_272 = arith.constant 88 : index
    %c0_273 = arith.constant 0 : index
    %183 = vector.load %arg6[%c88_272, %c0_273] : memref<256x1152xf32, #tpu.memory_space<vmem>>, vector<1x1152xf32>
    tpu.vector_store %arg6[%c88_272, %c0_273], %182 {strides = array<i32>} : memref<256x1152xf32, #tpu.memory_space<vmem>>, vector<1x1152xf32>,
    %c0_274 = arith.constant 0 : index
    %c89 = arith.constant 89 : index
    %184 = vector.load %arg5[%c0_274, %c89] : memref<2x1280xf32, #tpu.memory_space<vmem>>, vector<1x1152xf32>
    %c89_275 = arith.constant 89 : index
    %c0_276 = arith.constant 0 : index
    %185 = vector.load %arg6[%c89_275, %c0_276] : memref<256x1152xf32, #tpu.memory_space<vmem>>, vector<1x1152xf32>
    tpu.vector_store %arg6[%c89_275, %c0_276], %184 {strides = array<i32>} : memref<256x1152xf32, #tpu.memory_space<vmem>>, vector<1x1152xf32>,
    %c0_277 = arith.constant 0 : index
    %c90 = arith.constant 90 : index
    %186 = vector.load %arg5[%c0_277, %c90] : memref<2x1280xf32, #tpu.memory_space<vmem>>, vector<1x1152xf32>
    %c90_278 = arith.constant 90 : index
    %c0_279 = arith.constant 0 : index
    %187 = vector.load %arg6[%c90_278, %c0_279] : memref<256x1152xf32, #tpu.memory_space<vmem>>, vector<1x1152xf32>
    tpu.vector_store %arg6[%c90_278, %c0_279], %186 {strides = array<i32>} : memref<256x1152xf32, #tpu.memory_space<vmem>>, vector<1x1152xf32>,
    %c0_280 = arith.constant 0 : index
    %c91 = arith.constant 91 : index
    %188 = vector.load %arg5[%c0_280, %c91] : memref<2x1280xf32, #tpu.memory_space<vmem>>, vector<1x1152xf32>
    %c91_281 = arith.constant 91 : index
    %c0_282 = arith.constant 0 : index
    %189 = vector.load %arg6[%c91_281, %c0_282] : memref<256x1152xf32, #tpu.memory_space<vmem>>, vector<1x1152xf32>
    tpu.vector_store %arg6[%c91_281, %c0_282], %188 {strides = array<i32>} : memref<256x1152xf32, #tpu.memory_space<vmem>>, vector<1x1152xf32>,
    %c0_283 = arith.constant 0 : index
    %c92 = arith.constant 92 : index
    %190 = vector.load %arg5[%c0_283, %c92] : memref<2x1280xf32, #tpu.memory_space<vmem>>, vector<1x1152xf32>
    %c92_284 = arith.constant 92 : index
    %c0_285 = arith.constant 0 : index
    %191 = vector.load %arg6[%c92_284, %c0_285] : memref<256x1152xf32, #tpu.memory_space<vmem>>, vector<1x1152xf32>
    tpu.vector_store %arg6[%c92_284, %c0_285], %190 {strides = array<i32>} : memref<256x1152xf32, #tpu.memory_space<vmem>>, vector<1x1152xf32>,
    %c0_286 = arith.constant 0 : index
    %c93 = arith.constant 93 : index
    %192 = vector.load %arg5[%c0_286, %c93] : memref<2x1280xf32, #tpu.memory_space<vmem>>, vector<1x1152xf32>
    %c93_287 = arith.constant 93 : index
    %c0_288 = arith.constant 0 : index
    %193 = vector.load %arg6[%c93_287, %c0_288] : memref<256x1152xf32, #tpu.memory_space<vmem>>, vector<1x1152xf32>
    tpu.vector_store %arg6[%c93_287, %c0_288], %192 {strides = array<i32>} : memref<256x1152xf32, #tpu.memory_space<vmem>>, vector<1x1152xf32>,
    %c0_289 = arith.constant 0 : index
    %c94 = arith.constant 94 : index
    %194 = vector.load %arg5[%c0_289, %c94] : memref<2x1280xf32, #tpu.memory_space<vmem>>, vector<1x1152xf32>
    %c94_290 = arith.constant 94 : index
    %c0_291 = arith.constant 0 : index
    %195 = vector.load %arg6[%c94_290, %c0_291] : memref<256x1152xf32, #tpu.memory_space<vmem>>, vector<1x1152xf32>
    tpu.vector_store %arg6[%c94_290, %c0_291], %194 {strides = array<i32>} : memref<256x1152xf32, #tpu.memory_space<vmem>>, vector<1x1152xf32>,
    %c0_292 = arith.constant 0 : index
    %c95 = arith.constant 95 : index
    %196 = vector.load %arg5[%c0_292, %c95] : memref<2x1280xf32, #tpu.memory_space<vmem>>, vector<1x1152xf32>
    %c95_293 = arith.constant 95 : index
    %c0_294 = arith.constant 0 : index
    %197 = vector.load %arg6[%c95_293, %c0_294] : memref<256x1152xf32, #tpu.memory_space<vmem>>, vector<1x1152xf32>
    tpu.vector_store %arg6[%c95_293, %c0_294], %196 {strides = array<i32>} : memref<256x1152xf32, #tpu.memory_space<vmem>>, vector<1x1152xf32>,
    %c0_295 = arith.constant 0 : index
    %c96 = arith.constant 96 : index
    %198 = vector.load %arg5[%c0_295, %c96] : memref<2x1280xf32, #tpu.memory_space<vmem>>, vector<1x1152xf32>
    %c96_296 = arith.constant 96 : index
    %c0_297 = arith.constant 0 : index
    %199 = vector.load %arg6[%c96_296, %c0_297] : memref<256x1152xf32, #tpu.memory_space<vmem>>, vector<1x1152xf32>
    tpu.vector_store %arg6[%c96_296, %c0_297], %198 {strides = array<i32>} : memref<256x1152xf32, #tpu.memory_space<vmem>>, vector<1x1152xf32>,
    %c0_298 = arith.constant 0 : index
    %c97 = arith.constant 97 : index
    %200 = vector.load %arg5[%c0_298, %c97] : memref<2x1280xf32, #tpu.memory_space<vmem>>, vector<1x1152xf32>
    %c97_299 = arith.constant 97 : index
    %c0_300 = arith.constant 0 : index
    %201 = vector.load %arg6[%c97_299, %c0_300] : memref<256x1152xf32, #tpu.memory_space<vmem>>, vector<1x1152xf32>
    tpu.vector_store %arg6[%c97_299, %c0_300], %200 {strides = array<i32>} : memref<256x1152xf32, #tpu.memory_space<vmem>>, vector<1x1152xf32>,
    %c0_301 = arith.constant 0 : index
    %c98 = arith.constant 98 : index
    %202 = vector.load %arg5[%c0_301, %c98] : memref<2x1280xf32, #tpu.memory_space<vmem>>, vector<1x1152xf32>
    %c98_302 = arith.constant 98 : index
    %c0_303 = arith.constant 0 : index
    %203 = vector.load %arg6[%c98_302, %c0_303] : memref<256x1152xf32, #tpu.memory_space<vmem>>, vector<1x1152xf32>
    tpu.vector_store %arg6[%c98_302, %c0_303], %202 {strides = array<i32>} : memref<256x1152xf32, #tpu.memory_space<vmem>>, vector<1x1152xf32>,
    %c0_304 = arith.constant 0 : index
    %c99 = arith.constant 99 : index
    %204 = vector.load %arg5[%c0_304, %c99] : memref<2x1280xf32, #tpu.memory_space<vmem>>, vector<1x1152xf32>
    %c99_305 = arith.constant 99 : index
    %c0_306 = arith.constant 0 : index
    %205 = vector.load %arg6[%c99_305, %c0_306] : memref<256x1152xf32, #tpu.memory_space<vmem>>, vector<1x1152xf32>
    tpu.vector_store %arg6[%c99_305, %c0_306], %204 {strides = array<i32>} : memref<256x1152xf32, #tpu.memory_space<vmem>>, vector<1x1152xf32>,
    %c0_307 = arith.constant 0 : index
    %c100 = arith.constant 100 : index
    %206 = vector.load %arg5[%c0_307, %c100] : memref<2x1280xf32, #tpu.memory_space<vmem>>, vector<1x1152xf32>
    %c100_308 = arith.constant 100 : index
    %c0_309 = arith.constant 0 : index
    %207 = vector.load %arg6[%c100_308, %c0_309] : memref<256x1152xf32, #tpu.memory_space<vmem>>, vector<1x1152xf32>
    tpu.vector_store %arg6[%c100_308, %c0_309], %206 {strides = array<i32>} : memref<256x1152xf32, #tpu.memory_space<vmem>>, vector<1x1152xf32>,
    %c0_310 = arith.constant 0 : index
    %c101 = arith.constant 101 : index
    %208 = vector.load %arg5[%c0_310, %c101] : memref<2x1280xf32, #tpu.memory_space<vmem>>, vector<1x1152xf32>
    %c101_311 = arith.constant 101 : index
    %c0_312 = arith.constant 0 : index
    %209 = vector.load %arg6[%c101_311, %c0_312] : memref<256x1152xf32, #tpu.memory_space<vmem>>, vector<1x1152xf32>
    tpu.vector_store %arg6[%c101_311, %c0_312], %208 {strides = array<i32>} : memref<256x1152xf32, #tpu.memory_space<vmem>>, vector<1x1152xf32>,
    %c0_313 = arith.constant 0 : index
    %c102 = arith.constant 102 : index
    %210 = vector.load %arg5[%c0_313, %c102] : memref<2x1280xf32, #tpu.memory_space<vmem>>, vector<1x1152xf32>
    %c102_314 = arith.constant 102 : index
    %c0_315 = arith.constant 0 : index
    %211 = vector.load %arg6[%c102_314, %c0_315] : memref<256x1152xf32, #tpu.memory_space<vmem>>, vector<1x1152xf32>
    tpu.vector_store %arg6[%c102_314, %c0_315], %210 {strides = array<i32>} : memref<256x1152xf32, #tpu.memory_space<vmem>>, vector<1x1152xf32>,
    %c0_316 = arith.constant 0 : index
    %c103 = arith.constant 103 : index
    %212 = vector.load %arg5[%c0_316, %c103] : memref<2x1280xf32, #tpu.memory_space<vmem>>, vector<1x1152xf32>
    %c103_317 = arith.constant 103 : index
    %c0_318 = arith.constant 0 : index
    %213 = vector.load %arg6[%c103_317, %c0_318] : memref<256x1152xf32, #tpu.memory_space<vmem>>, vector<1x1152xf32>
    tpu.vector_store %arg6[%c103_317, %c0_318], %212 {strides = array<i32>} : memref<256x1152xf32, #tpu.memory_space<vmem>>, vector<1x1152xf32>,
    %c0_319 = arith.constant 0 : index
    %c104 = arith.constant 104 : index
    %214 = vector.load %arg5[%c0_319, %c104] : memref<2x1280xf32, #tpu.memory_space<vmem>>, vector<1x1152xf32>
    %c104_320 = arith.constant 104 : index
    %c0_321 = arith.constant 0 : index
    %215 = vector.load %arg6[%c104_320, %c0_321] : memref<256x1152xf32, #tpu.memory_space<vmem>>, vector<1x1152xf32>
    tpu.vector_store %arg6[%c104_320, %c0_321], %214 {strides = array<i32>} : memref<256x1152xf32, #tpu.memory_space<vmem>>, vector<1x1152xf32>,
    %c0_322 = arith.constant 0 : index
    %c105 = arith.constant 105 : index
    %216 = vector.load %arg5[%c0_322, %c105] : memref<2x1280xf32, #tpu.memory_space<vmem>>, vector<1x1152xf32>
    %c105_323 = arith.constant 105 : index
    %c0_324 = arith.constant 0 : index
    %217 = vector.load %arg6[%c105_323, %c0_324] : memref<256x1152xf32, #tpu.memory_space<vmem>>, vector<1x1152xf32>
    tpu.vector_store %arg6[%c105_323, %c0_324], %216 {strides = array<i32>} : memref<256x1152xf32, #tpu.memory_space<vmem>>, vector<1x1152xf32>,
    %c0_325 = arith.constant 0 : index
    %c106 = arith.constant 106 : index
    %218 = vector.load %arg5[%c0_325, %c106] : memref<2x1280xf32, #tpu.memory_space<vmem>>, vector<1x1152xf32>
    %c106_326 = arith.constant 106 : index
    %c0_327 = arith.constant 0 : index
    %219 = vector.load %arg6[%c106_326, %c0_327] : memref<256x1152xf32, #tpu.memory_space<vmem>>, vector<1x1152xf32>
    tpu.vector_store %arg6[%c106_326, %c0_327], %218 {strides = array<i32>} : memref<256x1152xf32, #tpu.memory_space<vmem>>, vector<1x1152xf32>,
    %c0_328 = arith.constant 0 : index
    %c107 = arith.constant 107 : index
    %220 = vector.load %arg5[%c0_328, %c107] : memref<2x1280xf32, #tpu.memory_space<vmem>>, vector<1x1152xf32>
    %c107_329 = arith.constant 107 : index
    %c0_330 = arith.constant 0 : index
    %221 = vector.load %arg6[%c107_329, %c0_330] : memref<256x1152xf32, #tpu.memory_space<vmem>>, vector<1x1152xf32>
    tpu.vector_store %arg6[%c107_329, %c0_330], %220 {strides = array<i32>} : memref<256x1152xf32, #tpu.memory_space<vmem>>, vector<1x1152xf32>,
    %c0_331 = arith.constant 0 : index
    %c108 = arith.constant 108 : index
    %222 = vector.load %arg5[%c0_331, %c108] : memref<2x1280xf32, #tpu.memory_space<vmem>>, vector<1x1152xf32>
    %c108_332 = arith.constant 108 : index
    %c0_333 = arith.constant 0 : index
    %223 = vector.load %arg6[%c108_332, %c0_333] : memref<256x1152xf32, #tpu.memory_space<vmem>>, vector<1x1152xf32>
    tpu.vector_store %arg6[%c108_332, %c0_333], %222 {strides = array<i32>} : memref<256x1152xf32, #tpu.memory_space<vmem>>, vector<1x1152xf32>,
    %c0_334 = arith.constant 0 : index
    %c109 = arith.constant 109 : index
    %224 = vector.load %arg5[%c0_334, %c109] : memref<2x1280xf32, #tpu.memory_space<vmem>>, vector<1x1152xf32>
    %c109_335 = arith.constant 109 : index
    %c0_336 = arith.constant 0 : index
    %225 = vector.load %arg6[%c109_335, %c0_336] : memref<256x1152xf32, #tpu.memory_space<vmem>>, vector<1x1152xf32>
    tpu.vector_store %arg6[%c109_335, %c0_336], %224 {strides = array<i32>} : memref<256x1152xf32, #tpu.memory_space<vmem>>, vector<1x1152xf32>,
    %c0_337 = arith.constant 0 : index
    %c110 = arith.constant 110 : index
    %226 = vector.load %arg5[%c0_337, %c110] : memref<2x1280xf32, #tpu.memory_space<vmem>>, vector<1x1152xf32>
    %c110_338 = arith.constant 110 : index
    %c0_339 = arith.constant 0 : index
    %227 = vector.load %arg6[%c110_338, %c0_339] : memref<256x1152xf32, #tpu.memory_space<vmem>>, vector<1x1152xf32>
    tpu.vector_store %arg6[%c110_338, %c0_339], %226 {strides = array<i32>} : memref<256x1152xf32, #tpu.memory_space<vmem>>, vector<1x1152xf32>,
    %c0_340 = arith.constant 0 : index
    %c111 = arith.constant 111 : index
    %228 = vector.load %arg5[%c0_340, %c111] : memref<2x1280xf32, #tpu.memory_space<vmem>>, vector<1x1152xf32>
    %c111_341 = arith.constant 111 : index
    %c0_342 = arith.constant 0 : index
    %229 = vector.load %arg6[%c111_341, %c0_342] : memref<256x1152xf32, #tpu.memory_space<vmem>>, vector<1x1152xf32>
    tpu.vector_store %arg6[%c111_341, %c0_342], %228 {strides = array<i32>} : memref<256x1152xf32, #tpu.memory_space<vmem>>, vector<1x1152xf32>,
    %c0_343 = arith.constant 0 : index
    %c112 = arith.constant 112 : index
    %230 = vector.load %arg5[%c0_343, %c112] : memref<2x1280xf32, #tpu.memory_space<vmem>>, vector<1x1152xf32>
    %c112_344 = arith.constant 112 : index
    %c0_345 = arith.constant 0 : index
    %231 = vector.load %arg6[%c112_344, %c0_345] : memref<256x1152xf32, #tpu.memory_space<vmem>>, vector<1x1152xf32>
    tpu.vector_store %arg6[%c112_344, %c0_345], %230 {strides = array<i32>} : memref<256x1152xf32, #tpu.memory_space<vmem>>, vector<1x1152xf32>,
    %c0_346 = arith.constant 0 : index
    %c113 = arith.constant 113 : index
    %232 = vector.load %arg5[%c0_346, %c113] : memref<2x1280xf32, #tpu.memory_space<vmem>>, vector<1x1152xf32>
    %c113_347 = arith.constant 113 : index
    %c0_348 = arith.constant 0 : index
    %233 = vector.load %arg6[%c113_347, %c0_348] : memref<256x1152xf32, #tpu.memory_space<vmem>>, vector<1x1152xf32>
    tpu.vector_store %arg6[%c113_347, %c0_348], %232 {strides = array<i32>} : memref<256x1152xf32, #tpu.memory_space<vmem>>, vector<1x1152xf32>,
    %c0_349 = arith.constant 0 : index
    %c114 = arith.constant 114 : index
    %234 = vector.load %arg5[%c0_349, %c114] : memref<2x1280xf32, #tpu.memory_space<vmem>>, vector<1x1152xf32>
    %c114_350 = arith.constant 114 : index
    %c0_351 = arith.constant 0 : index
    %235 = vector.load %arg6[%c114_350, %c0_351] : memref<256x1152xf32, #tpu.memory_space<vmem>>, vector<1x1152xf32>
    tpu.vector_store %arg6[%c114_350, %c0_351], %234 {strides = array<i32>} : memref<256x1152xf32, #tpu.memory_space<vmem>>, vector<1x1152xf32>,
    %c0_352 = arith.constant 0 : index
    %c115 = arith.constant 115 : index
    %236 = vector.load %arg5[%c0_352, %c115] : memref<2x1280xf32, #tpu.memory_space<vmem>>, vector<1x1152xf32>
    %c115_353 = arith.constant 115 : index
    %c0_354 = arith.constant 0 : index
    %237 = vector.load %arg6[%c115_353, %c0_354] : memref<256x1152xf32, #tpu.memory_space<vmem>>, vector<1x1152xf32>
    tpu.vector_store %arg6[%c115_353, %c0_354], %236 {strides = array<i32>} : memref<256x1152xf32, #tpu.memory_space<vmem>>, vector<1x1152xf32>,
    %c0_355 = arith.constant 0 : index
    %c116 = arith.constant 116 : index
    %238 = vector.load %arg5[%c0_355, %c116] : memref<2x1280xf32, #tpu.memory_space<vmem>>, vector<1x1152xf32>
    %c116_356 = arith.constant 116 : index
    %c0_357 = arith.constant 0 : index
    %239 = vector.load %arg6[%c116_356, %c0_357] : memref<256x1152xf32, #tpu.memory_space<vmem>>, vector<1x1152xf32>
    tpu.vector_store %arg6[%c116_356, %c0_357], %238 {strides = array<i32>} : memref<256x1152xf32, #tpu.memory_space<vmem>>, vector<1x1152xf32>,
    %c0_358 = arith.constant 0 : index
    %c117 = arith.constant 117 : index
    %240 = vector.load %arg5[%c0_358, %c117] : memref<2x1280xf32, #tpu.memory_space<vmem>>, vector<1x1152xf32>
    %c117_359 = arith.constant 117 : index
    %c0_360 = arith.constant 0 : index
    %241 = vector.load %arg6[%c117_359, %c0_360] : memref<256x1152xf32, #tpu.memory_space<vmem>>, vector<1x1152xf32>
    tpu.vector_store %arg6[%c117_359, %c0_360], %240 {strides = array<i32>} : memref<256x1152xf32, #tpu.memory_space<vmem>>, vector<1x1152xf32>,
    %c0_361 = arith.constant 0 : index
    %c118 = arith.constant 118 : index
    %242 = vector.load %arg5[%c0_361, %c118] : memref<2x1280xf32, #tpu.memory_space<vmem>>, vector<1x1152xf32>
    %c118_362 = arith.constant 118 : index
    %c0_363 = arith.constant 0 : index
    %243 = vector.load %arg6[%c118_362, %c0_363] : memref<256x1152xf32, #tpu.memory_space<vmem>>, vector<1x1152xf32>
    tpu.vector_store %arg6[%c118_362, %c0_363], %242 {strides = array<i32>} : memref<256x1152xf32, #tpu.memory_space<vmem>>, vector<1x1152xf32>,
    %c0_364 = arith.constant 0 : index
    %c119 = arith.constant 119 : index
    %244 = vector.load %arg5[%c0_364, %c119] : memref<2x1280xf32, #tpu.memory_space<vmem>>, vector<1x1152xf32>
    %c119_365 = arith.constant 119 : index
    %c0_366 = arith.constant 0 : index
    %245 = vector.load %arg6[%c119_365, %c0_366] : memref<256x1152xf32, #tpu.memory_space<vmem>>, vector<1x1152xf32>
    tpu.vector_store %arg6[%c119_365, %c0_366], %244 {strides = array<i32>} : memref<256x1152xf32, #tpu.memory_space<vmem>>, vector<1x1152xf32>,
    %c0_367 = arith.constant 0 : index
    %c120 = arith.constant 120 : index
    %246 = vector.load %arg5[%c0_367, %c120] : memref<2x1280xf32, #tpu.memory_space<vmem>>, vector<1x1152xf32>
    %c120_368 = arith.constant 120 : index
    %c0_369 = arith.constant 0 : index
    %247 = vector.load %arg6[%c120_368, %c0_369] : memref<256x1152xf32, #tpu.memory_space<vmem>>, vector<1x1152xf32>
    tpu.vector_store %arg6[%c120_368, %c0_369], %246 {strides = array<i32>} : memref<256x1152xf32, #tpu.memory_space<vmem>>, vector<1x1152xf32>,
    %c0_370 = arith.constant 0 : index
    %c121 = arith.constant 121 : index
    %248 = vector.load %arg5[%c0_370, %c121] : memref<2x1280xf32, #tpu.memory_space<vmem>>, vector<1x1152xf32>
    %c121_371 = arith.constant 121 : index
    %c0_372 = arith.constant 0 : index
    %249 = vector.load %arg6[%c121_371, %c0_372] : memref<256x1152xf32, #tpu.memory_space<vmem>>, vector<1x1152xf32>
    tpu.vector_store %arg6[%c121_371, %c0_372], %248 {strides = array<i32>} : memref<256x1152xf32, #tpu.memory_space<vmem>>, vector<1x1152xf32>,
    %c0_373 = arith.constant 0 : index
    %c122 = arith.constant 122 : index
    %250 = vector.load %arg5[%c0_373, %c122] : memref<2x1280xf32, #tpu.memory_space<vmem>>, vector<1x1152xf32>
    %c122_374 = arith.constant 122 : index
    %c0_375 = arith.constant 0 : index
    %251 = vector.load %arg6[%c122_374, %c0_375] : memref<256x1152xf32, #tpu.memory_space<vmem>>, vector<1x1152xf32>
    tpu.vector_store %arg6[%c122_374, %c0_375], %250 {strides = array<i32>} : memref<256x1152xf32, #tpu.memory_space<vmem>>, vector<1x1152xf32>,
    %c0_376 = arith.constant 0 : index
    %c123 = arith.constant 123 : index
    %252 = vector.load %arg5[%c0_376, %c123] : memref<2x1280xf32, #tpu.memory_space<vmem>>, vector<1x1152xf32>
    %c123_377 = arith.constant 123 : index
    %c0_378 = arith.constant 0 : index
    %253 = vector.load %arg6[%c123_377, %c0_378] : memref<256x1152xf32, #tpu.memory_space<vmem>>, vector<1x1152xf32>
    tpu.vector_store %arg6[%c123_377, %c0_378], %252 {strides = array<i32>} : memref<256x1152xf32, #tpu.memory_space<vmem>>, vector<1x1152xf32>,
    %c0_379 = arith.constant 0 : index
    %c124 = arith.constant 124 : index
    %254 = vector.load %arg5[%c0_379, %c124] : memref<2x1280xf32, #tpu.memory_space<vmem>>, vector<1x1152xf32>
    %c124_380 = arith.constant 124 : index
    %c0_381 = arith.constant 0 : index
    %255 = vector.load %arg6[%c124_380, %c0_381] : memref<256x1152xf32, #tpu.memory_space<vmem>>, vector<1x1152xf32>
    tpu.vector_store %arg6[%c124_380, %c0_381], %254 {strides = array<i32>} : memref<256x1152xf32, #tpu.memory_space<vmem>>, vector<1x1152xf32>,
    %c0_382 = arith.constant 0 : index
    %c125 = arith.constant 125 : index
    %256 = vector.load %arg5[%c0_382, %c125] : memref<2x1280xf32, #tpu.memory_space<vmem>>, vector<1x1152xf32>
    %c125_383 = arith.constant 125 : index
    %c0_384 = arith.constant 0 : index
    %257 = vector.load %arg6[%c125_383, %c0_384] : memref<256x1152xf32, #tpu.memory_space<vmem>>, vector<1x1152xf32>
    tpu.vector_store %arg6[%c125_383, %c0_384], %256 {strides = array<i32>} : memref<256x1152xf32, #tpu.memory_space<vmem>>, vector<1x1152xf32>,
    %c0_385 = arith.constant 0 : index
    %c126 = arith.constant 126 : index
    %258 = vector.load %arg5[%c0_385, %c126] : memref<2x1280xf32, #tpu.memory_space<vmem>>, vector<1x1152xf32>
    %c126_386 = arith.constant 126 : index
    %c0_387 = arith.constant 0 : index
    %259 = vector.load %arg6[%c126_386, %c0_387] : memref<256x1152xf32, #tpu.memory_space<vmem>>, vector<1x1152xf32>
    tpu.vector_store %arg6[%c126_386, %c0_387], %258 {strides = array<i32>} : memref<256x1152xf32, #tpu.memory_space<vmem>>, vector<1x1152xf32>,
    %c0_388 = arith.constant 0 : index
    %c127 = arith.constant 127 : index
    %260 = vector.load %arg5[%c0_388, %c127] : memref<2x1280xf32, #tpu.memory_space<vmem>>, vector<1x1152xf32>
    %c127_389 = arith.constant 127 : index
    %c0_390 = arith.constant 0 : index
    %261 = vector.load %arg6[%c127_389, %c0_390] : memref<256x1152xf32, #tpu.memory_space<vmem>>, vector<1x1152xf32>
    tpu.vector_store %arg6[%c127_389, %c0_390], %260 {strides = array<i32>} : memref<256x1152xf32, #tpu.memory_space<vmem>>, vector<1x1152xf32>,
    %c1_391 = arith.constant 1 : index
    %c0_392 = arith.constant 0 : index
    %262 = vector.load %arg5[%c1_391, %c0_392] : memref<2x1280xf32, #tpu.memory_space<vmem>>, vector<1x1152xf32>
    %c128 = arith.constant 128 : index
    %c0_393 = arith.constant 0 : index
    %263 = vector.load %arg6[%c128, %c0_393] : memref<256x1152xf32, #tpu.memory_space<vmem>>, vector<1x1152xf32>
    tpu.vector_store %arg6[%c128, %c0_393], %262 {strides = array<i32>} : memref<256x1152xf32, #tpu.memory_space<vmem>>, vector<1x1152xf32>,
    %c1_394 = arith.constant 1 : index
    %c1_395 = arith.constant 1 : index
    %264 = vector.load %arg5[%c1_394, %c1_395] : memref<2x1280xf32, #tpu.memory_space<vmem>>, vector<1x1152xf32>
    %c129 = arith.constant 129 : index
    %c0_396 = arith.constant 0 : index
    %265 = vector.load %arg6[%c129, %c0_396] : memref<256x1152xf32, #tpu.memory_space<vmem>>, vector<1x1152xf32>
    tpu.vector_store %arg6[%c129, %c0_396], %264 {strides = array<i32>} : memref<256x1152xf32, #tpu.memory_space<vmem>>, vector<1x1152xf32>,
    %c1_397 = arith.constant 1 : index
    %c2_398 = arith.constant 2 : index
    %266 = vector.load %arg5[%c1_397, %c2_398] : memref<2x1280xf32, #tpu.memory_space<vmem>>, vector<1x1152xf32>
    %c130 = arith.constant 130 : index
    %c0_399 = arith.constant 0 : index
    %267 = vector.load %arg6[%c130, %c0_399] : memref<256x1152xf32, #tpu.memory_space<vmem>>, vector<1x1152xf32>
    tpu.vector_store %arg6[%c130, %c0_399], %266 {strides = array<i32>} : memref<256x1152xf32, #tpu.memory_space<vmem>>, vector<1x1152xf32>,
    %c1_400 = arith.constant 1 : index
    %c3_401 = arith.constant 3 : index
    %268 = vector.load %arg5[%c1_400, %c3_401] : memref<2x1280xf32, #tpu.memory_space<vmem>>, vector<1x1152xf32>
    %c131 = arith.constant 131 : index
    %c0_402 = arith.constant 0 : index
    %269 = vector.load %arg6[%c131, %c0_402] : memref<256x1152xf32, #tpu.memory_space<vmem>>, vector<1x1152xf32>
    tpu.vector_store %arg6[%c131, %c0_402], %268 {strides = array<i32>} : memref<256x1152xf32, #tpu.memory_space<vmem>>, vector<1x1152xf32>,
    %c1_403 = arith.constant 1 : index
    %c4_404 = arith.constant 4 : index
    %270 = vector.load %arg5[%c1_403, %c4_404] : memref<2x1280xf32, #tpu.memory_space<vmem>>, vector<1x1152xf32>
    %c132 = arith.constant 132 : index
    %c0_405 = arith.constant 0 : index
    %271 = vector.load %arg6[%c132, %c0_405] : memref<256x1152xf32, #tpu.memory_space<vmem>>, vector<1x1152xf32>
    tpu.vector_store %arg6[%c132, %c0_405], %270 {strides = array<i32>} : memref<256x1152xf32, #tpu.memory_space<vmem>>, vector<1x1152xf32>,
    %c1_406 = arith.constant 1 : index
    %c5_407 = arith.constant 5 : index
    %272 = vector.load %arg5[%c1_406, %c5_407] : memref<2x1280xf32, #tpu.memory_space<vmem>>, vector<1x1152xf32>
    %c133 = arith.constant 133 : index
    %c0_408 = arith.constant 0 : index
    %273 = vector.load %arg6[%c133, %c0_408] : memref<256x1152xf32, #tpu.memory_space<vmem>>, vector<1x1152xf32>
    tpu.vector_store %arg6[%c133, %c0_408], %272 {strides = array<i32>} : memref<256x1152xf32, #tpu.memory_space<vmem>>, vector<1x1152xf32>,
    %c1_409 = arith.constant 1 : index
    %c6_410 = arith.constant 6 : index
    %274 = vector.load %arg5[%c1_409, %c6_410] : memref<2x1280xf32, #tpu.memory_space<vmem>>, vector<1x1152xf32>
    %c134 = arith.constant 134 : index
    %c0_411 = arith.constant 0 : index
    %275 = vector.load %arg6[%c134, %c0_411] : memref<256x1152xf32, #tpu.memory_space<vmem>>, vector<1x1152xf32>
    tpu.vector_store %arg6[%c134, %c0_411], %274 {strides = array<i32>} : memref<256x1152xf32, #tpu.memory_space<vmem>>, vector<1x1152xf32>,
    %c1_412 = arith.constant 1 : index
    %c7_413 = arith.constant 7 : index
    %276 = vector.load %arg5[%c1_412, %c7_413] : memref<2x1280xf32, #tpu.memory_space<vmem>>, vector<1x1152xf32>
    %c135 = arith.constant 135 : index
    %c0_414 = arith.constant 0 : index
    %277 = vector.load %arg6[%c135, %c0_414] : memref<256x1152xf32, #tpu.memory_space<vmem>>, vector<1x1152xf32>
    tpu.vector_store %arg6[%c135, %c0_414], %276 {strides = array<i32>} : memref<256x1152xf32, #tpu.memory_space<vmem>>, vector<1x1152xf32>,
    %c1_415 = arith.constant 1 : index
    %c8_416 = arith.constant 8 : index
    %278 = vector.load %arg5[%c1_415, %c8_416] : memref<2x1280xf32, #tpu.memory_space<vmem>>, vector<1x1152xf32>
    %c136 = arith.constant 136 : index
    %c0_417 = arith.constant 0 : index
    %279 = vector.load %arg6[%c136, %c0_417] : memref<256x1152xf32, #tpu.memory_space<vmem>>, vector<1x1152xf32>
    tpu.vector_store %arg6[%c136, %c0_417], %278 {strides = array<i32>} : memref<256x1152xf32, #tpu.memory_space<vmem>>, vector<1x1152xf32>,
    %c1_418 = arith.constant 1 : index
    %c9_419 = arith.constant 9 : index
    %280 = vector.load %arg5[%c1_418, %c9_419] : memref<2x1280xf32, #tpu.memory_space<vmem>>, vector<1x1152xf32>
    %c137 = arith.constant 137 : index
    %c0_420 = arith.constant 0 : index
    %281 = vector.load %arg6[%c137, %c0_420] : memref<256x1152xf32, #tpu.memory_space<vmem>>, vector<1x1152xf32>
    tpu.vector_store %arg6[%c137, %c0_420], %280 {strides = array<i32>} : memref<256x1152xf32, #tpu.memory_space<vmem>>, vector<1x1152xf32>,
    %c1_421 = arith.constant 1 : index
    %c10_422 = arith.constant 10 : index
    %282 = vector.load %arg5[%c1_421, %c10_422] : memref<2x1280xf32, #tpu.memory_space<vmem>>, vector<1x1152xf32>
    %c138 = arith.constant 138 : index
    %c0_423 = arith.constant 0 : index
    %283 = vector.load %arg6[%c138, %c0_423] : memref<256x1152xf32, #tpu.memory_space<vmem>>, vector<1x1152xf32>
    tpu.vector_store %arg6[%c138, %c0_423], %282 {strides = array<i32>} : memref<256x1152xf32, #tpu.memory_space<vmem>>, vector<1x1152xf32>,
    %c1_424 = arith.constant 1 : index
    %c11_425 = arith.constant 11 : index
    %284 = vector.load %arg5[%c1_424, %c11_425] : memref<2x1280xf32, #tpu.memory_space<vmem>>, vector<1x1152xf32>
    %c139 = arith.constant 139 : index
    %c0_426 = arith.constant 0 : index
    %285 = vector.load %arg6[%c139, %c0_426] : memref<256x1152xf32, #tpu.memory_space<vmem>>, vector<1x1152xf32>
    tpu.vector_store %arg6[%c139, %c0_426], %284 {strides = array<i32>} : memref<256x1152xf32, #tpu.memory_space<vmem>>, vector<1x1152xf32>,
    %c1_427 = arith.constant 1 : index
    %c12_428 = arith.constant 12 : index
    %286 = vector.load %arg5[%c1_427, %c12_428] : memref<2x1280xf32, #tpu.memory_space<vmem>>, vector<1x1152xf32>
    %c140 = arith.constant 140 : index
    %c0_429 = arith.constant 0 : index
    %287 = vector.load %arg6[%c140, %c0_429] : memref<256x1152xf32, #tpu.memory_space<vmem>>, vector<1x1152xf32>
    tpu.vector_store %arg6[%c140, %c0_429], %286 {strides = array<i32>} : memref<256x1152xf32, #tpu.memory_space<vmem>>, vector<1x1152xf32>,
    %c1_430 = arith.constant 1 : index
    %c13_431 = arith.constant 13 : index
    %288 = vector.load %arg5[%c1_430, %c13_431] : memref<2x1280xf32, #tpu.memory_space<vmem>>, vector<1x1152xf32>
    %c141 = arith.constant 141 : index
    %c0_432 = arith.constant 0 : index
    %289 = vector.load %arg6[%c141, %c0_432] : memref<256x1152xf32, #tpu.memory_space<vmem>>, vector<1x1152xf32>
    tpu.vector_store %arg6[%c141, %c0_432], %288 {strides = array<i32>} : memref<256x1152xf32, #tpu.memory_space<vmem>>, vector<1x1152xf32>,
    %c1_433 = arith.constant 1 : index
    %c14_434 = arith.constant 14 : index
    %290 = vector.load %arg5[%c1_433, %c14_434] : memref<2x1280xf32, #tpu.memory_space<vmem>>, vector<1x1152xf32>
    %c142 = arith.constant 142 : index
    %c0_435 = arith.constant 0 : index
    %291 = vector.load %arg6[%c142, %c0_435] : memref<256x1152xf32, #tpu.memory_space<vmem>>, vector<1x1152xf32>
    tpu.vector_store %arg6[%c142, %c0_435], %290 {strides = array<i32>} : memref<256x1152xf32, #tpu.memory_space<vmem>>, vector<1x1152xf32>,
    %c1_436 = arith.constant 1 : index
    %c15_437 = arith.constant 15 : index
    %292 = vector.load %arg5[%c1_436, %c15_437] : memref<2x1280xf32, #tpu.memory_space<vmem>>, vector<1x1152xf32>
    %c143 = arith.constant 143 : index
    %c0_438 = arith.constant 0 : index
    %293 = vector.load %arg6[%c143, %c0_438] : memref<256x1152xf32, #tpu.memory_space<vmem>>, vector<1x1152xf32>
    tpu.vector_store %arg6[%c143, %c0_438], %292 {strides = array<i32>} : memref<256x1152xf32, #tpu.memory_space<vmem>>, vector<1x1152xf32>,
    %c1_439 = arith.constant 1 : index
    %c16_440 = arith.constant 16 : index
    %294 = vector.load %arg5[%c1_439, %c16_440] : memref<2x1280xf32, #tpu.memory_space<vmem>>, vector<1x1152xf32>
    %c144 = arith.constant 144 : index
    %c0_441 = arith.constant 0 : index
    %295 = vector.load %arg6[%c144, %c0_441] : memref<256x1152xf32, #tpu.memory_space<vmem>>, vector<1x1152xf32>
    tpu.vector_store %arg6[%c144, %c0_441], %294 {strides = array<i32>} : memref<256x1152xf32, #tpu.memory_space<vmem>>, vector<1x1152xf32>,
    %c1_442 = arith.constant 1 : index
    %c17_443 = arith.constant 17 : index
    %296 = vector.load %arg5[%c1_442, %c17_443] : memref<2x1280xf32, #tpu.memory_space<vmem>>, vector<1x1152xf32>
    %c145 = arith.constant 145 : index
    %c0_444 = arith.constant 0 : index
    %297 = vector.load %arg6[%c145, %c0_444] : memref<256x1152xf32, #tpu.memory_space<vmem>>, vector<1x1152xf32>
    tpu.vector_store %arg6[%c145, %c0_444], %296 {strides = array<i32>} : memref<256x1152xf32, #tpu.memory_space<vmem>>, vector<1x1152xf32>,
    %c1_445 = arith.constant 1 : index
    %c18_446 = arith.constant 18 : index
    %298 = vector.load %arg5[%c1_445, %c18_446] : memref<2x1280xf32, #tpu.memory_space<vmem>>, vector<1x1152xf32>
    %c146 = arith.constant 146 : index
    %c0_447 = arith.constant 0 : index
    %299 = vector.load %arg6[%c146, %c0_447] : memref<256x1152xf32, #tpu.memory_space<vmem>>, vector<1x1152xf32>
    tpu.vector_store %arg6[%c146, %c0_447], %298 {strides = array<i32>} : memref<256x1152xf32, #tpu.memory_space<vmem>>, vector<1x1152xf32>,
    %c1_448 = arith.constant 1 : index
    %c19_449 = arith.constant 19 : index
    %300 = vector.load %arg5[%c1_448, %c19_449] : memref<2x1280xf32, #tpu.memory_space<vmem>>, vector<1x1152xf32>
    %c147 = arith.constant 147 : index
    %c0_450 = arith.constant 0 : index
    %301 = vector.load %arg6[%c147, %c0_450] : memref<256x1152xf32, #tpu.memory_space<vmem>>, vector<1x1152xf32>
    tpu.vector_store %arg6[%c147, %c0_450], %300 {strides = array<i32>} : memref<256x1152xf32, #tpu.memory_space<vmem>>, vector<1x1152xf32>,
    %c1_451 = arith.constant 1 : index
    %c20_452 = arith.constant 20 : index
    %302 = vector.load %arg5[%c1_451, %c20_452] : memref<2x1280xf32, #tpu.memory_space<vmem>>, vector<1x1152xf32>
    %c148 = arith.constant 148 : index
    %c0_453 = arith.constant 0 : index
    %303 = vector.load %arg6[%c148, %c0_453] : memref<256x1152xf32, #tpu.memory_space<vmem>>, vector<1x1152xf32>
    tpu.vector_store %arg6[%c148, %c0_453], %302 {strides = array<i32>} : memref<256x1152xf32, #tpu.memory_space<vmem>>, vector<1x1152xf32>,
    %c1_454 = arith.constant 1 : index
    %c21_455 = arith.constant 21 : index
    %304 = vector.load %arg5[%c1_454, %c21_455] : memref<2x1280xf32, #tpu.memory_space<vmem>>, vector<1x1152xf32>
    %c149 = arith.constant 149 : index
    %c0_456 = arith.constant 0 : index
    %305 = vector.load %arg6[%c149, %c0_456] : memref<256x1152xf32, #tpu.memory_space<vmem>>, vector<1x1152xf32>
    tpu.vector_store %arg6[%c149, %c0_456], %304 {strides = array<i32>} : memref<256x1152xf32, #tpu.memory_space<vmem>>, vector<1x1152xf32>,
    %c1_457 = arith.constant 1 : index
    %c22_458 = arith.constant 22 : index
    %306 = vector.load %arg5[%c1_457, %c22_458] : memref<2x1280xf32, #tpu.memory_space<vmem>>, vector<1x1152xf32>
    %c150 = arith.constant 150 : index
    %c0_459 = arith.constant 0 : index
    %307 = vector.load %arg6[%c150, %c0_459] : memref<256x1152xf32, #tpu.memory_space<vmem>>, vector<1x1152xf32>
    tpu.vector_store %arg6[%c150, %c0_459], %306 {strides = array<i32>} : memref<256x1152xf32, #tpu.memory_space<vmem>>, vector<1x1152xf32>,
    %c1_460 = arith.constant 1 : index
    %c23_461 = arith.constant 23 : index
    %308 = vector.load %arg5[%c1_460, %c23_461] : memref<2x1280xf32, #tpu.memory_space<vmem>>, vector<1x1152xf32>
    %c151 = arith.constant 151 : index
    %c0_462 = arith.constant 0 : index
    %309 = vector.load %arg6[%c151, %c0_462] : memref<256x1152xf32, #tpu.memory_space<vmem>>, vector<1x1152xf32>
    tpu.vector_store %arg6[%c151, %c0_462], %308 {strides = array<i32>} : memref<256x1152xf32, #tpu.memory_space<vmem>>, vector<1x1152xf32>,
    %c1_463 = arith.constant 1 : index
    %c24_464 = arith.constant 24 : index
    %310 = vector.load %arg5[%c1_463, %c24_464] : memref<2x1280xf32, #tpu.memory_space<vmem>>, vector<1x1152xf32>
    %c152 = arith.constant 152 : index
    %c0_465 = arith.constant 0 : index
    %311 = vector.load %arg6[%c152, %c0_465] : memref<256x1152xf32, #tpu.memory_space<vmem>>, vector<1x1152xf32>
    tpu.vector_store %arg6[%c152, %c0_465], %310 {strides = array<i32>} : memref<256x1152xf32, #tpu.memory_space<vmem>>, vector<1x1152xf32>,
    %c1_466 = arith.constant 1 : index
    %c25_467 = arith.constant 25 : index
    %312 = vector.load %arg5[%c1_466, %c25_467] : memref<2x1280xf32, #tpu.memory_space<vmem>>, vector<1x1152xf32>
    %c153 = arith.constant 153 : index
    %c0_468 = arith.constant 0 : index
    %313 = vector.load %arg6[%c153, %c0_468] : memref<256x1152xf32, #tpu.memory_space<vmem>>, vector<1x1152xf32>
    tpu.vector_store %arg6[%c153, %c0_468], %312 {strides = array<i32>} : memref<256x1152xf32, #tpu.memory_space<vmem>>, vector<1x1152xf32>,
    %c1_469 = arith.constant 1 : index
    %c26_470 = arith.constant 26 : index
    %314 = vector.load %arg5[%c1_469, %c26_470] : memref<2x1280xf32, #tpu.memory_space<vmem>>, vector<1x1152xf32>
    %c154 = arith.constant 154 : index
    %c0_471 = arith.constant 0 : index
    %315 = vector.load %arg6[%c154, %c0_471] : memref<256x1152xf32, #tpu.memory_space<vmem>>, vector<1x1152xf32>
    tpu.vector_store %arg6[%c154, %c0_471], %314 {strides = array<i32>} : memref<256x1152xf32, #tpu.memory_space<vmem>>, vector<1x1152xf32>,
    %c1_472 = arith.constant 1 : index
    %c27_473 = arith.constant 27 : index
    %316 = vector.load %arg5[%c1_472, %c27_473] : memref<2x1280xf32, #tpu.memory_space<vmem>>, vector<1x1152xf32>
    %c155 = arith.constant 155 : index
    %c0_474 = arith.constant 0 : index
    %317 = vector.load %arg6[%c155, %c0_474] : memref<256x1152xf32, #tpu.memory_space<vmem>>, vector<1x1152xf32>
    tpu.vector_store %arg6[%c155, %c0_474], %316 {strides = array<i32>} : memref<256x1152xf32, #tpu.memory_space<vmem>>, vector<1x1152xf32>,
    %c1_475 = arith.constant 1 : index
    %c28_476 = arith.constant 28 : index
    %318 = vector.load %arg5[%c1_475, %c28_476] : memref<2x1280xf32, #tpu.memory_space<vmem>>, vector<1x1152xf32>
    %c156 = arith.constant 156 : index
    %c0_477 = arith.constant 0 : index
    %319 = vector.load %arg6[%c156, %c0_477] : memref<256x1152xf32, #tpu.memory_space<vmem>>, vector<1x1152xf32>
    tpu.vector_store %arg6[%c156, %c0_477], %318 {strides = array<i32>} : memref<256x1152xf32, #tpu.memory_space<vmem>>, vector<1x1152xf32>,
    %c1_478 = arith.constant 1 : index
    %c29_479 = arith.constant 29 : index
    %320 = vector.load %arg5[%c1_478, %c29_479] : memref<2x1280xf32, #tpu.memory_space<vmem>>, vector<1x1152xf32>
    %c157 = arith.constant 157 : index
    %c0_480 = arith.constant 0 : index
    %321 = vector.load %arg6[%c157, %c0_480] : memref<256x1152xf32, #tpu.memory_space<vmem>>, vector<1x1152xf32>
    tpu.vector_store %arg6[%c157, %c0_480], %320 {strides = array<i32>} : memref<256x1152xf32, #tpu.memory_space<vmem>>, vector<1x1152xf32>,
    %c1_481 = arith.constant 1 : index
    %c30_482 = arith.constant 30 : index
    %322 = vector.load %arg5[%c1_481, %c30_482] : memref<2x1280xf32, #tpu.memory_space<vmem>>, vector<1x1152xf32>
    %c158 = arith.constant 158 : index
    %c0_483 = arith.constant 0 : index
    %323 = vector.load %arg6[%c158, %c0_483] : memref<256x1152xf32, #tpu.memory_space<vmem>>, vector<1x1152xf32>
    tpu.vector_store %arg6[%c158, %c0_483], %322 {strides = array<i32>} : memref<256x1152xf32, #tpu.memory_space<vmem>>, vector<1x1152xf32>,
    %c1_484 = arith.constant 1 : index
    %c31_485 = arith.constant 31 : index
    %324 = vector.load %arg5[%c1_484, %c31_485] : memref<2x1280xf32, #tpu.memory_space<vmem>>, vector<1x1152xf32>
    %c159 = arith.constant 159 : index
    %c0_486 = arith.constant 0 : index
    %325 = vector.load %arg6[%c159, %c0_486] : memref<256x1152xf32, #tpu.memory_space<vmem>>, vector<1x1152xf32>
    tpu.vector_store %arg6[%c159, %c0_486], %324 {strides = array<i32>} : memref<256x1152xf32, #tpu.memory_space<vmem>>, vector<1x1152xf32>,
    %c1_487 = arith.constant 1 : index
    %c32_488 = arith.constant 32 : index
    %326 = vector.load %arg5[%c1_487, %c32_488] : memref<2x1280xf32, #tpu.memory_space<vmem>>, vector<1x1152xf32>
    %c160 = arith.constant 160 : index
    %c0_489 = arith.constant 0 : index
    %327 = vector.load %arg6[%c160, %c0_489] : memref<256x1152xf32, #tpu.memory_space<vmem>>, vector<1x1152xf32>
    tpu.vector_store %arg6[%c160, %c0_489], %326 {strides = array<i32>} : memref<256x1152xf32, #tpu.memory_space<vmem>>, vector<1x1152xf32>,
    %c1_490 = arith.constant 1 : index
    %c33_491 = arith.constant 33 : index
    %328 = vector.load %arg5[%c1_490, %c33_491] : memref<2x1280xf32, #tpu.memory_space<vmem>>, vector<1x1152xf32>
    %c161 = arith.constant 161 : index
    %c0_492 = arith.constant 0 : index
    %329 = vector.load %arg6[%c161, %c0_492] : memref<256x1152xf32, #tpu.memory_space<vmem>>, vector<1x1152xf32>
    tpu.vector_store %arg6[%c161, %c0_492], %328 {strides = array<i32>} : memref<256x1152xf32, #tpu.memory_space<vmem>>, vector<1x1152xf32>,
    %c1_493 = arith.constant 1 : index
    %c34_494 = arith.constant 34 : index
    %330 = vector.load %arg5[%c1_493, %c34_494] : memref<2x1280xf32, #tpu.memory_space<vmem>>, vector<1x1152xf32>
    %c162 = arith.constant 162 : index
    %c0_495 = arith.constant 0 : index
    %331 = vector.load %arg6[%c162, %c0_495] : memref<256x1152xf32, #tpu.memory_space<vmem>>, vector<1x1152xf32>
    tpu.vector_store %arg6[%c162, %c0_495], %330 {strides = array<i32>} : memref<256x1152xf32, #tpu.memory_space<vmem>>, vector<1x1152xf32>,
    %c1_496 = arith.constant 1 : index
    %c35_497 = arith.constant 35 : index
    %332 = vector.load %arg5[%c1_496, %c35_497] : memref<2x1280xf32, #tpu.memory_space<vmem>>, vector<1x1152xf32>
    %c163 = arith.constant 163 : index
    %c0_498 = arith.constant 0 : index
    %333 = vector.load %arg6[%c163, %c0_498] : memref<256x1152xf32, #tpu.memory_space<vmem>>, vector<1x1152xf32>
    tpu.vector_store %arg6[%c163, %c0_498], %332 {strides = array<i32>} : memref<256x1152xf32, #tpu.memory_space<vmem>>, vector<1x1152xf32>,
    %c1_499 = arith.constant 1 : index
    %c36_500 = arith.constant 36 : index
    %334 = vector.load %arg5[%c1_499, %c36_500] : memref<2x1280xf32, #tpu.memory_space<vmem>>, vector<1x1152xf32>
    %c164 = arith.constant 164 : index
    %c0_501 = arith.constant 0 : index
    %335 = vector.load %arg6[%c164, %c0_501] : memref<256x1152xf32, #tpu.memory_space<vmem>>, vector<1x1152xf32>
    tpu.vector_store %arg6[%c164, %c0_501], %334 {strides = array<i32>} : memref<256x1152xf32, #tpu.memory_space<vmem>>, vector<1x1152xf32>,
    %c1_502 = arith.constant 1 : index
    %c37_503 = arith.constant 37 : index
    %336 = vector.load %arg5[%c1_502, %c37_503] : memref<2x1280xf32, #tpu.memory_space<vmem>>, vector<1x1152xf32>
    %c165 = arith.constant 165 : index
    %c0_504 = arith.constant 0 : index
    %337 = vector.load %arg6[%c165, %c0_504] : memref<256x1152xf32, #tpu.memory_space<vmem>>, vector<1x1152xf32>
    tpu.vector_store %arg6[%c165, %c0_504], %336 {strides = array<i32>} : memref<256x1152xf32, #tpu.memory_space<vmem>>, vector<1x1152xf32>,
    %c1_505 = arith.constant 1 : index
    %c38_506 = arith.constant 38 : index
    %338 = vector.load %arg5[%c1_505, %c38_506] : memref<2x1280xf32, #tpu.memory_space<vmem>>, vector<1x1152xf32>
    %c166 = arith.constant 166 : index
    %c0_507 = arith.constant 0 : index
    %339 = vector.load %arg6[%c166, %c0_507] : memref<256x1152xf32, #tpu.memory_space<vmem>>, vector<1x1152xf32>
    tpu.vector_store %arg6[%c166, %c0_507], %338 {strides = array<i32>} : memref<256x1152xf32, #tpu.memory_space<vmem>>, vector<1x1152xf32>,
    %c1_508 = arith.constant 1 : index
    %c39_509 = arith.constant 39 : index
    %340 = vector.load %arg5[%c1_508, %c39_509] : memref<2x1280xf32, #tpu.memory_space<vmem>>, vector<1x1152xf32>
    %c167 = arith.constant 167 : index
    %c0_510 = arith.constant 0 : index
    %341 = vector.load %arg6[%c167, %c0_510] : memref<256x1152xf32, #tpu.memory_space<vmem>>, vector<1x1152xf32>
    tpu.vector_store %arg6[%c167, %c0_510], %340 {strides = array<i32>} : memref<256x1152xf32, #tpu.memory_space<vmem>>, vector<1x1152xf32>,
    %c1_511 = arith.constant 1 : index
    %c40_512 = arith.constant 40 : index
    %342 = vector.load %arg5[%c1_511, %c40_512] : memref<2x1280xf32, #tpu.memory_space<vmem>>, vector<1x1152xf32>
    %c168 = arith.constant 168 : index
    %c0_513 = arith.constant 0 : index
    %343 = vector.load %arg6[%c168, %c0_513] : memref<256x1152xf32, #tpu.memory_space<vmem>>, vector<1x1152xf32>
    tpu.vector_store %arg6[%c168, %c0_513], %342 {strides = array<i32>} : memref<256x1152xf32, #tpu.memory_space<vmem>>, vector<1x1152xf32>,
    %c1_514 = arith.constant 1 : index
    %c41_515 = arith.constant 41 : index
    %344 = vector.load %arg5[%c1_514, %c41_515] : memref<2x1280xf32, #tpu.memory_space<vmem>>, vector<1x1152xf32>
    %c169 = arith.constant 169 : index
    %c0_516 = arith.constant 0 : index
    %345 = vector.load %arg6[%c169, %c0_516] : memref<256x1152xf32, #tpu.memory_space<vmem>>, vector<1x1152xf32>
    tpu.vector_store %arg6[%c169, %c0_516], %344 {strides = array<i32>} : memref<256x1152xf32, #tpu.memory_space<vmem>>, vector<1x1152xf32>,
    %c1_517 = arith.constant 1 : index
    %c42_518 = arith.constant 42 : index
    %346 = vector.load %arg5[%c1_517, %c42_518] : memref<2x1280xf32, #tpu.memory_space<vmem>>, vector<1x1152xf32>
    %c170 = arith.constant 170 : index
    %c0_519 = arith.constant 0 : index
    %347 = vector.load %arg6[%c170, %c0_519] : memref<256x1152xf32, #tpu.memory_space<vmem>>, vector<1x1152xf32>
    tpu.vector_store %arg6[%c170, %c0_519], %346 {strides = array<i32>} : memref<256x1152xf32, #tpu.memory_space<vmem>>, vector<1x1152xf32>,
    %c1_520 = arith.constant 1 : index
    %c43_521 = arith.constant 43 : index
    %348 = vector.load %arg5[%c1_520, %c43_521] : memref<2x1280xf32, #tpu.memory_space<vmem>>, vector<1x1152xf32>
    %c171 = arith.constant 171 : index
    %c0_522 = arith.constant 0 : index
    %349 = vector.load %arg6[%c171, %c0_522] : memref<256x1152xf32, #tpu.memory_space<vmem>>, vector<1x1152xf32>
    tpu.vector_store %arg6[%c171, %c0_522], %348 {strides = array<i32>} : memref<256x1152xf32, #tpu.memory_space<vmem>>, vector<1x1152xf32>,
    %c1_523 = arith.constant 1 : index
    %c44_524 = arith.constant 44 : index
    %350 = vector.load %arg5[%c1_523, %c44_524] : memref<2x1280xf32, #tpu.memory_space<vmem>>, vector<1x1152xf32>
    %c172 = arith.constant 172 : index
    %c0_525 = arith.constant 0 : index
    %351 = vector.load %arg6[%c172, %c0_525] : memref<256x1152xf32, #tpu.memory_space<vmem>>, vector<1x1152xf32>
    tpu.vector_store %arg6[%c172, %c0_525], %350 {strides = array<i32>} : memref<256x1152xf32, #tpu.memory_space<vmem>>, vector<1x1152xf32>,
    %c1_526 = arith.constant 1 : index
    %c45_527 = arith.constant 45 : index
    %352 = vector.load %arg5[%c1_526, %c45_527] : memref<2x1280xf32, #tpu.memory_space<vmem>>, vector<1x1152xf32>
    %c173 = arith.constant 173 : index
    %c0_528 = arith.constant 0 : index
    %353 = vector.load %arg6[%c173, %c0_528] : memref<256x1152xf32, #tpu.memory_space<vmem>>, vector<1x1152xf32>
    tpu.vector_store %arg6[%c173, %c0_528], %352 {strides = array<i32>} : memref<256x1152xf32, #tpu.memory_space<vmem>>, vector<1x1152xf32>,
    %c1_529 = arith.constant 1 : index
    %c46_530 = arith.constant 46 : index
    %354 = vector.load %arg5[%c1_529, %c46_530] : memref<2x1280xf32, #tpu.memory_space<vmem>>, vector<1x1152xf32>
    %c174 = arith.constant 174 : index
    %c0_531 = arith.constant 0 : index
    %355 = vector.load %arg6[%c174, %c0_531] : memref<256x1152xf32, #tpu.memory_space<vmem>>, vector<1x1152xf32>
    tpu.vector_store %arg6[%c174, %c0_531], %354 {strides = array<i32>} : memref<256x1152xf32, #tpu.memory_space<vmem>>, vector<1x1152xf32>,
    %c1_532 = arith.constant 1 : index
    %c47_533 = arith.constant 47 : index
    %356 = vector.load %arg5[%c1_532, %c47_533] : memref<2x1280xf32, #tpu.memory_space<vmem>>, vector<1x1152xf32>
    %c175 = arith.constant 175 : index
    %c0_534 = arith.constant 0 : index
    %357 = vector.load %arg6[%c175, %c0_534] : memref<256x1152xf32, #tpu.memory_space<vmem>>, vector<1x1152xf32>
    tpu.vector_store %arg6[%c175, %c0_534], %356 {strides = array<i32>} : memref<256x1152xf32, #tpu.memory_space<vmem>>, vector<1x1152xf32>,
    %c1_535 = arith.constant 1 : index
    %c48_536 = arith.constant 48 : index
    %358 = vector.load %arg5[%c1_535, %c48_536] : memref<2x1280xf32, #tpu.memory_space<vmem>>, vector<1x1152xf32>
    %c176 = arith.constant 176 : index
    %c0_537 = arith.constant 0 : index
    %359 = vector.load %arg6[%c176, %c0_537] : memref<256x1152xf32, #tpu.memory_space<vmem>>, vector<1x1152xf32>
    tpu.vector_store %arg6[%c176, %c0_537], %358 {strides = array<i32>} : memref<256x1152xf32, #tpu.memory_space<vmem>>, vector<1x1152xf32>,
    %c1_538 = arith.constant 1 : index
    %c49_539 = arith.constant 49 : index
    %360 = vector.load %arg5[%c1_538, %c49_539] : memref<2x1280xf32, #tpu.memory_space<vmem>>, vector<1x1152xf32>
    %c177 = arith.constant 177 : index
    %c0_540 = arith.constant 0 : index
    %361 = vector.load %arg6[%c177, %c0_540] : memref<256x1152xf32, #tpu.memory_space<vmem>>, vector<1x1152xf32>
    tpu.vector_store %arg6[%c177, %c0_540], %360 {strides = array<i32>} : memref<256x1152xf32, #tpu.memory_space<vmem>>, vector<1x1152xf32>,
    %c1_541 = arith.constant 1 : index
    %c50_542 = arith.constant 50 : index
    %362 = vector.load %arg5[%c1_541, %c50_542] : memref<2x1280xf32, #tpu.memory_space<vmem>>, vector<1x1152xf32>
    %c178 = arith.constant 178 : index
    %c0_543 = arith.constant 0 : index
    %363 = vector.load %arg6[%c178, %c0_543] : memref<256x1152xf32, #tpu.memory_space<vmem>>, vector<1x1152xf32>
    tpu.vector_store %arg6[%c178, %c0_543], %362 {strides = array<i32>} : memref<256x1152xf32, #tpu.memory_space<vmem>>, vector<1x1152xf32>,
    %c1_544 = arith.constant 1 : index
    %c51_545 = arith.constant 51 : index
    %364 = vector.load %arg5[%c1_544, %c51_545] : memref<2x1280xf32, #tpu.memory_space<vmem>>, vector<1x1152xf32>
    %c179 = arith.constant 179 : index
    %c0_546 = arith.constant 0 : index
    %365 = vector.load %arg6[%c179, %c0_546] : memref<256x1152xf32, #tpu.memory_space<vmem>>, vector<1x1152xf32>
    tpu.vector_store %arg6[%c179, %c0_546], %364 {strides = array<i32>} : memref<256x1152xf32, #tpu.memory_space<vmem>>, vector<1x1152xf32>,
    %c1_547 = arith.constant 1 : index
    %c52_548 = arith.constant 52 : index
    %366 = vector.load %arg5[%c1_547, %c52_548] : memref<2x1280xf32, #tpu.memory_space<vmem>>, vector<1x1152xf32>
    %c180 = arith.constant 180 : index
    %c0_549 = arith.constant 0 : index
    %367 = vector.load %arg6[%c180, %c0_549] : memref<256x1152xf32, #tpu.memory_space<vmem>>, vector<1x1152xf32>
    tpu.vector_store %arg6[%c180, %c0_549], %366 {strides = array<i32>} : memref<256x1152xf32, #tpu.memory_space<vmem>>, vector<1x1152xf32>,
    %c1_550 = arith.constant 1 : index
    %c53_551 = arith.constant 53 : index
    %368 = vector.load %arg5[%c1_550, %c53_551] : memref<2x1280xf32, #tpu.memory_space<vmem>>, vector<1x1152xf32>
    %c181 = arith.constant 181 : index
    %c0_552 = arith.constant 0 : index
    %369 = vector.load %arg6[%c181, %c0_552] : memref<256x1152xf32, #tpu.memory_space<vmem>>, vector<1x1152xf32>
    tpu.vector_store %arg6[%c181, %c0_552], %368 {strides = array<i32>} : memref<256x1152xf32, #tpu.memory_space<vmem>>, vector<1x1152xf32>,
    %c1_553 = arith.constant 1 : index
    %c54_554 = arith.constant 54 : index
    %370 = vector.load %arg5[%c1_553, %c54_554] : memref<2x1280xf32, #tpu.memory_space<vmem>>, vector<1x1152xf32>
    %c182 = arith.constant 182 : index
    %c0_555 = arith.constant 0 : index
    %371 = vector.load %arg6[%c182, %c0_555] : memref<256x1152xf32, #tpu.memory_space<vmem>>, vector<1x1152xf32>
    tpu.vector_store %arg6[%c182, %c0_555], %370 {strides = array<i32>} : memref<256x1152xf32, #tpu.memory_space<vmem>>, vector<1x1152xf32>,
    %c1_556 = arith.constant 1 : index
    %c55_557 = arith.constant 55 : index
    %372 = vector.load %arg5[%c1_556, %c55_557] : memref<2x1280xf32, #tpu.memory_space<vmem>>, vector<1x1152xf32>
    %c183 = arith.constant 183 : index
    %c0_558 = arith.constant 0 : index
    %373 = vector.load %arg6[%c183, %c0_558] : memref<256x1152xf32, #tpu.memory_space<vmem>>, vector<1x1152xf32>
    tpu.vector_store %arg6[%c183, %c0_558], %372 {strides = array<i32>} : memref<256x1152xf32, #tpu.memory_space<vmem>>, vector<1x1152xf32>,
    %c1_559 = arith.constant 1 : index
    %c56_560 = arith.constant 56 : index
    %374 = vector.load %arg5[%c1_559, %c56_560] : memref<2x1280xf32, #tpu.memory_space<vmem>>, vector<1x1152xf32>
    %c184 = arith.constant 184 : index
    %c0_561 = arith.constant 0 : index
    %375 = vector.load %arg6[%c184, %c0_561] : memref<256x1152xf32, #tpu.memory_space<vmem>>, vector<1x1152xf32>
    tpu.vector_store %arg6[%c184, %c0_561], %374 {strides = array<i32>} : memref<256x1152xf32, #tpu.memory_space<vmem>>, vector<1x1152xf32>,
    %c1_562 = arith.constant 1 : index
    %c57_563 = arith.constant 57 : index
    %376 = vector.load %arg5[%c1_562, %c57_563] : memref<2x1280xf32, #tpu.memory_space<vmem>>, vector<1x1152xf32>
    %c185 = arith.constant 185 : index
    %c0_564 = arith.constant 0 : index
    %377 = vector.load %arg6[%c185, %c0_564] : memref<256x1152xf32, #tpu.memory_space<vmem>>, vector<1x1152xf32>
    tpu.vector_store %arg6[%c185, %c0_564], %376 {strides = array<i32>} : memref<256x1152xf32, #tpu.memory_space<vmem>>, vector<1x1152xf32>,
    %c1_565 = arith.constant 1 : index
    %c58_566 = arith.constant 58 : index
    %378 = vector.load %arg5[%c1_565, %c58_566] : memref<2x1280xf32, #tpu.memory_space<vmem>>, vector<1x1152xf32>
    %c186 = arith.constant 186 : index
    %c0_567 = arith.constant 0 : index
    %379 = vector.load %arg6[%c186, %c0_567] : memref<256x1152xf32, #tpu.memory_space<vmem>>, vector<1x1152xf32>
    tpu.vector_store %arg6[%c186, %c0_567], %378 {strides = array<i32>} : memref<256x1152xf32, #tpu.memory_space<vmem>>, vector<1x1152xf32>,
    %c1_568 = arith.constant 1 : index
    %c59_569 = arith.constant 59 : index
    %380 = vector.load %arg5[%c1_568, %c59_569] : memref<2x1280xf32, #tpu.memory_space<vmem>>, vector<1x1152xf32>
    %c187 = arith.constant 187 : index
    %c0_570 = arith.constant 0 : index
    %381 = vector.load %arg6[%c187, %c0_570] : memref<256x1152xf32, #tpu.memory_space<vmem>>, vector<1x1152xf32>
    tpu.vector_store %arg6[%c187, %c0_570], %380 {strides = array<i32>} : memref<256x1152xf32, #tpu.memory_space<vmem>>, vector<1x1152xf32>,
    %c1_571 = arith.constant 1 : index
    %c60_572 = arith.constant 60 : index
    %382 = vector.load %arg5[%c1_571, %c60_572] : memref<2x1280xf32, #tpu.memory_space<vmem>>, vector<1x1152xf32>
    %c188 = arith.constant 188 : index
    %c0_573 = arith.constant 0 : index
    %383 = vector.load %arg6[%c188, %c0_573] : memref<256x1152xf32, #tpu.memory_space<vmem>>, vector<1x1152xf32>
    tpu.vector_store %arg6[%c188, %c0_573], %382 {strides = array<i32>} : memref<256x1152xf32, #tpu.memory_space<vmem>>, vector<1x1152xf32>,
    %c1_574 = arith.constant 1 : index
    %c61_575 = arith.constant 61 : index
    %384 = vector.load %arg5[%c1_574, %c61_575] : memref<2x1280xf32, #tpu.memory_space<vmem>>, vector<1x1152xf32>
    %c189 = arith.constant 189 : index
    %c0_576 = arith.constant 0 : index
    %385 = vector.load %arg6[%c189, %c0_576] : memref<256x1152xf32, #tpu.memory_space<vmem>>, vector<1x1152xf32>
    tpu.vector_store %arg6[%c189, %c0_576], %384 {strides = array<i32>} : memref<256x1152xf32, #tpu.memory_space<vmem>>, vector<1x1152xf32>,
    %c1_577 = arith.constant 1 : index
    %c62_578 = arith.constant 62 : index
    %386 = vector.load %arg5[%c1_577, %c62_578] : memref<2x1280xf32, #tpu.memory_space<vmem>>, vector<1x1152xf32>
    %c190 = arith.constant 190 : index
    %c0_579 = arith.constant 0 : index
    %387 = vector.load %arg6[%c190, %c0_579] : memref<256x1152xf32, #tpu.memory_space<vmem>>, vector<1x1152xf32>
    tpu.vector_store %arg6[%c190, %c0_579], %386 {strides = array<i32>} : memref<256x1152xf32, #tpu.memory_space<vmem>>, vector<1x1152xf32>,
    %c1_580 = arith.constant 1 : index
    %c63_581 = arith.constant 63 : index
    %388 = vector.load %arg5[%c1_580, %c63_581] : memref<2x1280xf32, #tpu.memory_space<vmem>>, vector<1x1152xf32>
    %c191 = arith.constant 191 : index
    %c0_582 = arith.constant 0 : index
    %389 = vector.load %arg6[%c191, %c0_582] : memref<256x1152xf32, #tpu.memory_space<vmem>>, vector<1x1152xf32>
    tpu.vector_store %arg6[%c191, %c0_582], %388 {strides = array<i32>} : memref<256x1152xf32, #tpu.memory_space<vmem>>, vector<1x1152xf32>,
    %c1_583 = arith.constant 1 : index
    %c64_584 = arith.constant 64 : index
    %390 = vector.load %arg5[%c1_583, %c64_584] : memref<2x1280xf32, #tpu.memory_space<vmem>>, vector<1x1152xf32>
    %c192 = arith.constant 192 : index
    %c0_585 = arith.constant 0 : index
    %391 = vector.load %arg6[%c192, %c0_585] : memref<256x1152xf32, #tpu.memory_space<vmem>>, vector<1x1152xf32>
    tpu.vector_store %arg6[%c192, %c0_585], %390 {strides = array<i32>} : memref<256x1152xf32, #tpu.memory_space<vmem>>, vector<1x1152xf32>,
    %c1_586 = arith.constant 1 : index
    %c65_587 = arith.constant 65 : index
    %392 = vector.load %arg5[%c1_586, %c65_587] : memref<2x1280xf32, #tpu.memory_space<vmem>>, vector<1x1152xf32>
    %c193 = arith.constant 193 : index
    %c0_588 = arith.constant 0 : index
    %393 = vector.load %arg6[%c193, %c0_588] : memref<256x1152xf32, #tpu.memory_space<vmem>>, vector<1x1152xf32>
    tpu.vector_store %arg6[%c193, %c0_588], %392 {strides = array<i32>} : memref<256x1152xf32, #tpu.memory_space<vmem>>, vector<1x1152xf32>,
    %c1_589 = arith.constant 1 : index
    %c66_590 = arith.constant 66 : index
    %394 = vector.load %arg5[%c1_589, %c66_590] : memref<2x1280xf32, #tpu.memory_space<vmem>>, vector<1x1152xf32>
    %c194 = arith.constant 194 : index
    %c0_591 = arith.constant 0 : index
    %395 = vector.load %arg6[%c194, %c0_591] : memref<256x1152xf32, #tpu.memory_space<vmem>>, vector<1x1152xf32>
    tpu.vector_store %arg6[%c194, %c0_591], %394 {strides = array<i32>} : memref<256x1152xf32, #tpu.memory_space<vmem>>, vector<1x1152xf32>,
    %c1_592 = arith.constant 1 : index
    %c67_593 = arith.constant 67 : index
    %396 = vector.load %arg5[%c1_592, %c67_593] : memref<2x1280xf32, #tpu.memory_space<vmem>>, vector<1x1152xf32>
    %c195 = arith.constant 195 : index
    %c0_594 = arith.constant 0 : index
    %397 = vector.load %arg6[%c195, %c0_594] : memref<256x1152xf32, #tpu.memory_space<vmem>>, vector<1x1152xf32>
    tpu.vector_store %arg6[%c195, %c0_594], %396 {strides = array<i32>} : memref<256x1152xf32, #tpu.memory_space<vmem>>, vector<1x1152xf32>,
    %c1_595 = arith.constant 1 : index
    %c68_596 = arith.constant 68 : index
    %398 = vector.load %arg5[%c1_595, %c68_596] : memref<2x1280xf32, #tpu.memory_space<vmem>>, vector<1x1152xf32>
    %c196 = arith.constant 196 : index
    %c0_597 = arith.constant 0 : index
    %399 = vector.load %arg6[%c196, %c0_597] : memref<256x1152xf32, #tpu.memory_space<vmem>>, vector<1x1152xf32>
    tpu.vector_store %arg6[%c196, %c0_597], %398 {strides = array<i32>} : memref<256x1152xf32, #tpu.memory_space<vmem>>, vector<1x1152xf32>,
    %c1_598 = arith.constant 1 : index
    %c69_599 = arith.constant 69 : index
    %400 = vector.load %arg5[%c1_598, %c69_599] : memref<2x1280xf32, #tpu.memory_space<vmem>>, vector<1x1152xf32>
    %c197 = arith.constant 197 : index
    %c0_600 = arith.constant 0 : index
    %401 = vector.load %arg6[%c197, %c0_600] : memref<256x1152xf32, #tpu.memory_space<vmem>>, vector<1x1152xf32>
    tpu.vector_store %arg6[%c197, %c0_600], %400 {strides = array<i32>} : memref<256x1152xf32, #tpu.memory_space<vmem>>, vector<1x1152xf32>,
    %c1_601 = arith.constant 1 : index
    %c70_602 = arith.constant 70 : index
    %402 = vector.load %arg5[%c1_601, %c70_602] : memref<2x1280xf32, #tpu.memory_space<vmem>>, vector<1x1152xf32>
    %c198 = arith.constant 198 : index
    %c0_603 = arith.constant 0 : index
    %403 = vector.load %arg6[%c198, %c0_603] : memref<256x1152xf32, #tpu.memory_space<vmem>>, vector<1x1152xf32>
    tpu.vector_store %arg6[%c198, %c0_603], %402 {strides = array<i32>} : memref<256x1152xf32, #tpu.memory_space<vmem>>, vector<1x1152xf32>,
    %c1_604 = arith.constant 1 : index
    %c71_605 = arith.constant 71 : index
    %404 = vector.load %arg5[%c1_604, %c71_605] : memref<2x1280xf32, #tpu.memory_space<vmem>>, vector<1x1152xf32>
    %c199 = arith.constant 199 : index
    %c0_606 = arith.constant 0 : index
    %405 = vector.load %arg6[%c199, %c0_606] : memref<256x1152xf32, #tpu.memory_space<vmem>>, vector<1x1152xf32>
    tpu.vector_store %arg6[%c199, %c0_606], %404 {strides = array<i32>} : memref<256x1152xf32, #tpu.memory_space<vmem>>, vector<1x1152xf32>,
    %c1_607 = arith.constant 1 : index
    %c72_608 = arith.constant 72 : index
    %406 = vector.load %arg5[%c1_607, %c72_608] : memref<2x1280xf32, #tpu.memory_space<vmem>>, vector<1x1152xf32>
    %c200 = arith.constant 200 : index
    %c0_609 = arith.constant 0 : index
    %407 = vector.load %arg6[%c200, %c0_609] : memref<256x1152xf32, #tpu.memory_space<vmem>>, vector<1x1152xf32>
    tpu.vector_store %arg6[%c200, %c0_609], %406 {strides = array<i32>} : memref<256x1152xf32, #tpu.memory_space<vmem>>, vector<1x1152xf32>,
    %c1_610 = arith.constant 1 : index
    %c73_611 = arith.constant 73 : index
    %408 = vector.load %arg5[%c1_610, %c73_611] : memref<2x1280xf32, #tpu.memory_space<vmem>>, vector<1x1152xf32>
    %c201 = arith.constant 201 : index
    %c0_612 = arith.constant 0 : index
    %409 = vector.load %arg6[%c201, %c0_612] : memref<256x1152xf32, #tpu.memory_space<vmem>>, vector<1x1152xf32>
    tpu.vector_store %arg6[%c201, %c0_612], %408 {strides = array<i32>} : memref<256x1152xf32, #tpu.memory_space<vmem>>, vector<1x1152xf32>,
    %c1_613 = arith.constant 1 : index
    %c74_614 = arith.constant 74 : index
    %410 = vector.load %arg5[%c1_613, %c74_614] : memref<2x1280xf32, #tpu.memory_space<vmem>>, vector<1x1152xf32>
    %c202 = arith.constant 202 : index
    %c0_615 = arith.constant 0 : index
    %411 = vector.load %arg6[%c202, %c0_615] : memref<256x1152xf32, #tpu.memory_space<vmem>>, vector<1x1152xf32>
    tpu.vector_store %arg6[%c202, %c0_615], %410 {strides = array<i32>} : memref<256x1152xf32, #tpu.memory_space<vmem>>, vector<1x1152xf32>,
    %c1_616 = arith.constant 1 : index
    %c75_617 = arith.constant 75 : index
    %412 = vector.load %arg5[%c1_616, %c75_617] : memref<2x1280xf32, #tpu.memory_space<vmem>>, vector<1x1152xf32>
    %c203 = arith.constant 203 : index
    %c0_618 = arith.constant 0 : index
    %413 = vector.load %arg6[%c203, %c0_618] : memref<256x1152xf32, #tpu.memory_space<vmem>>, vector<1x1152xf32>
    tpu.vector_store %arg6[%c203, %c0_618], %412 {strides = array<i32>} : memref<256x1152xf32, #tpu.memory_space<vmem>>, vector<1x1152xf32>,
    %c1_619 = arith.constant 1 : index
    %c76_620 = arith.constant 76 : index
    %414 = vector.load %arg5[%c1_619, %c76_620] : memref<2x1280xf32, #tpu.memory_space<vmem>>, vector<1x1152xf32>
    %c204 = arith.constant 204 : index
    %c0_621 = arith.constant 0 : index
    %415 = vector.load %arg6[%c204, %c0_621] : memref<256x1152xf32, #tpu.memory_space<vmem>>, vector<1x1152xf32>
    tpu.vector_store %arg6[%c204, %c0_621], %414 {strides = array<i32>} : memref<256x1152xf32, #tpu.memory_space<vmem>>, vector<1x1152xf32>,
    %c1_622 = arith.constant 1 : index
    %c77_623 = arith.constant 77 : index
    %416 = vector.load %arg5[%c1_622, %c77_623] : memref<2x1280xf32, #tpu.memory_space<vmem>>, vector<1x1152xf32>
    %c205 = arith.constant 205 : index
    %c0_624 = arith.constant 0 : index
    %417 = vector.load %arg6[%c205, %c0_624] : memref<256x1152xf32, #tpu.memory_space<vmem>>, vector<1x1152xf32>
    tpu.vector_store %arg6[%c205, %c0_624], %416 {strides = array<i32>} : memref<256x1152xf32, #tpu.memory_space<vmem>>, vector<1x1152xf32>,
    %c1_625 = arith.constant 1 : index
    %c78_626 = arith.constant 78 : index
    %418 = vector.load %arg5[%c1_625, %c78_626] : memref<2x1280xf32, #tpu.memory_space<vmem>>, vector<1x1152xf32>
    %c206 = arith.constant 206 : index
    %c0_627 = arith.constant 0 : index
    %419 = vector.load %arg6[%c206, %c0_627] : memref<256x1152xf32, #tpu.memory_space<vmem>>, vector<1x1152xf32>
    tpu.vector_store %arg6[%c206, %c0_627], %418 {strides = array<i32>} : memref<256x1152xf32, #tpu.memory_space<vmem>>, vector<1x1152xf32>,
    %c1_628 = arith.constant 1 : index
    %c79_629 = arith.constant 79 : index
    %420 = vector.load %arg5[%c1_628, %c79_629] : memref<2x1280xf32, #tpu.memory_space<vmem>>, vector<1x1152xf32>
    %c207 = arith.constant 207 : index
    %c0_630 = arith.constant 0 : index
    %421 = vector.load %arg6[%c207, %c0_630] : memref<256x1152xf32, #tpu.memory_space<vmem>>, vector<1x1152xf32>
    tpu.vector_store %arg6[%c207, %c0_630], %420 {strides = array<i32>} : memref<256x1152xf32, #tpu.memory_space<vmem>>, vector<1x1152xf32>,
    %c1_631 = arith.constant 1 : index
    %c80_632 = arith.constant 80 : index
    %422 = vector.load %arg5[%c1_631, %c80_632] : memref<2x1280xf32, #tpu.memory_space<vmem>>, vector<1x1152xf32>
    %c208 = arith.constant 208 : index
    %c0_633 = arith.constant 0 : index
    %423 = vector.load %arg6[%c208, %c0_633] : memref<256x1152xf32, #tpu.memory_space<vmem>>, vector<1x1152xf32>
    tpu.vector_store %arg6[%c208, %c0_633], %422 {strides = array<i32>} : memref<256x1152xf32, #tpu.memory_space<vmem>>, vector<1x1152xf32>,
    %c1_634 = arith.constant 1 : index
    %c81_635 = arith.constant 81 : index
    %424 = vector.load %arg5[%c1_634, %c81_635] : memref<2x1280xf32, #tpu.memory_space<vmem>>, vector<1x1152xf32>
    %c209 = arith.constant 209 : index
    %c0_636 = arith.constant 0 : index
    %425 = vector.load %arg6[%c209, %c0_636] : memref<256x1152xf32, #tpu.memory_space<vmem>>, vector<1x1152xf32>
    tpu.vector_store %arg6[%c209, %c0_636], %424 {strides = array<i32>} : memref<256x1152xf32, #tpu.memory_space<vmem>>, vector<1x1152xf32>,
    %c1_637 = arith.constant 1 : index
    %c82_638 = arith.constant 82 : index
    %426 = vector.load %arg5[%c1_637, %c82_638] : memref<2x1280xf32, #tpu.memory_space<vmem>>, vector<1x1152xf32>
    %c210 = arith.constant 210 : index
    %c0_639 = arith.constant 0 : index
    %427 = vector.load %arg6[%c210, %c0_639] : memref<256x1152xf32, #tpu.memory_space<vmem>>, vector<1x1152xf32>
    tpu.vector_store %arg6[%c210, %c0_639], %426 {strides = array<i32>} : memref<256x1152xf32, #tpu.memory_space<vmem>>, vector<1x1152xf32>,
    %c1_640 = arith.constant 1 : index
    %c83_641 = arith.constant 83 : index
    %428 = vector.load %arg5[%c1_640, %c83_641] : memref<2x1280xf32, #tpu.memory_space<vmem>>, vector<1x1152xf32>
    %c211 = arith.constant 211 : index
    %c0_642 = arith.constant 0 : index
    %429 = vector.load %arg6[%c211, %c0_642] : memref<256x1152xf32, #tpu.memory_space<vmem>>, vector<1x1152xf32>
    tpu.vector_store %arg6[%c211, %c0_642], %428 {strides = array<i32>} : memref<256x1152xf32, #tpu.memory_space<vmem>>, vector<1x1152xf32>,
    %c1_643 = arith.constant 1 : index
    %c84_644 = arith.constant 84 : index
    %430 = vector.load %arg5[%c1_643, %c84_644] : memref<2x1280xf32, #tpu.memory_space<vmem>>, vector<1x1152xf32>
    %c212 = arith.constant 212 : index
    %c0_645 = arith.constant 0 : index
    %431 = vector.load %arg6[%c212, %c0_645] : memref<256x1152xf32, #tpu.memory_space<vmem>>, vector<1x1152xf32>
    tpu.vector_store %arg6[%c212, %c0_645], %430 {strides = array<i32>} : memref<256x1152xf32, #tpu.memory_space<vmem>>, vector<1x1152xf32>,
    %c1_646 = arith.constant 1 : index
    %c85_647 = arith.constant 85 : index
    %432 = vector.load %arg5[%c1_646, %c85_647] : memref<2x1280xf32, #tpu.memory_space<vmem>>, vector<1x1152xf32>
    %c213 = arith.constant 213 : index
    %c0_648 = arith.constant 0 : index
    %433 = vector.load %arg6[%c213, %c0_648] : memref<256x1152xf32, #tpu.memory_space<vmem>>, vector<1x1152xf32>
    tpu.vector_store %arg6[%c213, %c0_648], %432 {strides = array<i32>} : memref<256x1152xf32, #tpu.memory_space<vmem>>, vector<1x1152xf32>,
    %c1_649 = arith.constant 1 : index
    %c86_650 = arith.constant 86 : index
    %434 = vector.load %arg5[%c1_649, %c86_650] : memref<2x1280xf32, #tpu.memory_space<vmem>>, vector<1x1152xf32>
    %c214 = arith.constant 214 : index
    %c0_651 = arith.constant 0 : index
    %435 = vector.load %arg6[%c214, %c0_651] : memref<256x1152xf32, #tpu.memory_space<vmem>>, vector<1x1152xf32>
    tpu.vector_store %arg6[%c214, %c0_651], %434 {strides = array<i32>} : memref<256x1152xf32, #tpu.memory_space<vmem>>, vector<1x1152xf32>,
    %c1_652 = arith.constant 1 : index
    %c87_653 = arith.constant 87 : index
    %436 = vector.load %arg5[%c1_652, %c87_653] : memref<2x1280xf32, #tpu.memory_space<vmem>>, vector<1x1152xf32>
    %c215 = arith.constant 215 : index
    %c0_654 = arith.constant 0 : index
    %437 = vector.load %arg6[%c215, %c0_654] : memref<256x1152xf32, #tpu.memory_space<vmem>>, vector<1x1152xf32>
    tpu.vector_store %arg6[%c215, %c0_654], %436 {strides = array<i32>} : memref<256x1152xf32, #tpu.memory_space<vmem>>, vector<1x1152xf32>,
    %c1_655 = arith.constant 1 : index
    %c88_656 = arith.constant 88 : index
    %438 = vector.load %arg5[%c1_655, %c88_656] : memref<2x1280xf32, #tpu.memory_space<vmem>>, vector<1x1152xf32>
    %c216 = arith.constant 216 : index
    %c0_657 = arith.constant 0 : index
    %439 = vector.load %arg6[%c216, %c0_657] : memref<256x1152xf32, #tpu.memory_space<vmem>>, vector<1x1152xf32>
    tpu.vector_store %arg6[%c216, %c0_657], %438 {strides = array<i32>} : memref<256x1152xf32, #tpu.memory_space<vmem>>, vector<1x1152xf32>,
    %c1_658 = arith.constant 1 : index
    %c89_659 = arith.constant 89 : index
    %440 = vector.load %arg5[%c1_658, %c89_659] : memref<2x1280xf32, #tpu.memory_space<vmem>>, vector<1x1152xf32>
    %c217 = arith.constant 217 : index
    %c0_660 = arith.constant 0 : index
    %441 = vector.load %arg6[%c217, %c0_660] : memref<256x1152xf32, #tpu.memory_space<vmem>>, vector<1x1152xf32>
    tpu.vector_store %arg6[%c217, %c0_660], %440 {strides = array<i32>} : memref<256x1152xf32, #tpu.memory_space<vmem>>, vector<1x1152xf32>,
    %c1_661 = arith.constant 1 : index
    %c90_662 = arith.constant 90 : index
    %442 = vector.load %arg5[%c1_661, %c90_662] : memref<2x1280xf32, #tpu.memory_space<vmem>>, vector<1x1152xf32>
    %c218 = arith.constant 218 : index
    %c0_663 = arith.constant 0 : index
    %443 = vector.load %arg6[%c218, %c0_663] : memref<256x1152xf32, #tpu.memory_space<vmem>>, vector<1x1152xf32>
    tpu.vector_store %arg6[%c218, %c0_663], %442 {strides = array<i32>} : memref<256x1152xf32, #tpu.memory_space<vmem>>, vector<1x1152xf32>,
    %c1_664 = arith.constant 1 : index
    %c91_665 = arith.constant 91 : index
    %444 = vector.load %arg5[%c1_664, %c91_665] : memref<2x1280xf32, #tpu.memory_space<vmem>>, vector<1x1152xf32>
    %c219 = arith.constant 219 : index
    %c0_666 = arith.constant 0 : index
    %445 = vector.load %arg6[%c219, %c0_666] : memref<256x1152xf32, #tpu.memory_space<vmem>>, vector<1x1152xf32>
    tpu.vector_store %arg6[%c219, %c0_666], %444 {strides = array<i32>} : memref<256x1152xf32, #tpu.memory_space<vmem>>, vector<1x1152xf32>,
    %c1_667 = arith.constant 1 : index
    %c92_668 = arith.constant 92 : index
    %446 = vector.load %arg5[%c1_667, %c92_668] : memref<2x1280xf32, #tpu.memory_space<vmem>>, vector<1x1152xf32>
    %c220 = arith.constant 220 : index
    %c0_669 = arith.constant 0 : index
    %447 = vector.load %arg6[%c220, %c0_669] : memref<256x1152xf32, #tpu.memory_space<vmem>>, vector<1x1152xf32>
    tpu.vector_store %arg6[%c220, %c0_669], %446 {strides = array<i32>} : memref<256x1152xf32, #tpu.memory_space<vmem>>, vector<1x1152xf32>,
    %c1_670 = arith.constant 1 : index
    %c93_671 = arith.constant 93 : index
    %448 = vector.load %arg5[%c1_670, %c93_671] : memref<2x1280xf32, #tpu.memory_space<vmem>>, vector<1x1152xf32>
    %c221 = arith.constant 221 : index
    %c0_672 = arith.constant 0 : index
    %449 = vector.load %arg6[%c221, %c0_672] : memref<256x1152xf32, #tpu.memory_space<vmem>>, vector<1x1152xf32>
    tpu.vector_store %arg6[%c221, %c0_672], %448 {strides = array<i32>} : memref<256x1152xf32, #tpu.memory_space<vmem>>, vector<1x1152xf32>,
    %c1_673 = arith.constant 1 : index
    %c94_674 = arith.constant 94 : index
    %450 = vector.load %arg5[%c1_673, %c94_674] : memref<2x1280xf32, #tpu.memory_space<vmem>>, vector<1x1152xf32>
    %c222 = arith.constant 222 : index
    %c0_675 = arith.constant 0 : index
    %451 = vector.load %arg6[%c222, %c0_675] : memref<256x1152xf32, #tpu.memory_space<vmem>>, vector<1x1152xf32>
    tpu.vector_store %arg6[%c222, %c0_675], %450 {strides = array<i32>} : memref<256x1152xf32, #tpu.memory_space<vmem>>, vector<1x1152xf32>,
    %c1_676 = arith.constant 1 : index
    %c95_677 = arith.constant 95 : index
    %452 = vector.load %arg5[%c1_676, %c95_677] : memref<2x1280xf32, #tpu.memory_space<vmem>>, vector<1x1152xf32>
    %c223 = arith.constant 223 : index
    %c0_678 = arith.constant 0 : index
    %453 = vector.load %arg6[%c223, %c0_678] : memref<256x1152xf32, #tpu.memory_space<vmem>>, vector<1x1152xf32>
    tpu.vector_store %arg6[%c223, %c0_678], %452 {strides = array<i32>} : memref<256x1152xf32, #tpu.memory_space<vmem>>, vector<1x1152xf32>,
    %c1_679 = arith.constant 1 : index
    %c96_680 = arith.constant 96 : index
    %454 = vector.load %arg5[%c1_679, %c96_680] : memref<2x1280xf32, #tpu.memory_space<vmem>>, vector<1x1152xf32>
    %c224 = arith.constant 224 : index
    %c0_681 = arith.constant 0 : index
    %455 = vector.load %arg6[%c224, %c0_681] : memref<256x1152xf32, #tpu.memory_space<vmem>>, vector<1x1152xf32>
    tpu.vector_store %arg6[%c224, %c0_681], %454 {strides = array<i32>} : memref<256x1152xf32, #tpu.memory_space<vmem>>, vector<1x1152xf32>,
    %c1_682 = arith.constant 1 : index
    %c97_683 = arith.constant 97 : index
    %456 = vector.load %arg5[%c1_682, %c97_683] : memref<2x1280xf32, #tpu.memory_space<vmem>>, vector<1x1152xf32>
    %c225 = arith.constant 225 : index
    %c0_684 = arith.constant 0 : index
    %457 = vector.load %arg6[%c225, %c0_684] : memref<256x1152xf32, #tpu.memory_space<vmem>>, vector<1x1152xf32>
    tpu.vector_store %arg6[%c225, %c0_684], %456 {strides = array<i32>} : memref<256x1152xf32, #tpu.memory_space<vmem>>, vector<1x1152xf32>,
    %c1_685 = arith.constant 1 : index
    %c98_686 = arith.constant 98 : index
    %458 = vector.load %arg5[%c1_685, %c98_686] : memref<2x1280xf32, #tpu.memory_space<vmem>>, vector<1x1152xf32>
    %c226 = arith.constant 226 : index
    %c0_687 = arith.constant 0 : index
    %459 = vector.load %arg6[%c226, %c0_687] : memref<256x1152xf32, #tpu.memory_space<vmem>>, vector<1x1152xf32>
    tpu.vector_store %arg6[%c226, %c0_687], %458 {strides = array<i32>} : memref<256x1152xf32, #tpu.memory_space<vmem>>, vector<1x1152xf32>,
    %c1_688 = arith.constant 1 : index
    %c99_689 = arith.constant 99 : index
    %460 = vector.load %arg5[%c1_688, %c99_689] : memref<2x1280xf32, #tpu.memory_space<vmem>>, vector<1x1152xf32>
    %c227 = arith.constant 227 : index
    %c0_690 = arith.constant 0 : index
    %461 = vector.load %arg6[%c227, %c0_690] : memref<256x1152xf32, #tpu.memory_space<vmem>>, vector<1x1152xf32>
    tpu.vector_store %arg6[%c227, %c0_690], %460 {strides = array<i32>} : memref<256x1152xf32, #tpu.memory_space<vmem>>, vector<1x1152xf32>,
    %c1_691 = arith.constant 1 : index
    %c100_692 = arith.constant 100 : index
    %462 = vector.load %arg5[%c1_691, %c100_692] : memref<2x1280xf32, #tpu.memory_space<vmem>>, vector<1x1152xf32>
    %c228 = arith.constant 228 : index
    %c0_693 = arith.constant 0 : index
    %463 = vector.load %arg6[%c228, %c0_693] : memref<256x1152xf32, #tpu.memory_space<vmem>>, vector<1x1152xf32>
    tpu.vector_store %arg6[%c228, %c0_693], %462 {strides = array<i32>} : memref<256x1152xf32, #tpu.memory_space<vmem>>, vector<1x1152xf32>,
    %c1_694 = arith.constant 1 : index
    %c101_695 = arith.constant 101 : index
    %464 = vector.load %arg5[%c1_694, %c101_695] : memref<2x1280xf32, #tpu.memory_space<vmem>>, vector<1x1152xf32>
    %c229 = arith.constant 229 : index
    %c0_696 = arith.constant 0 : index
    %465 = vector.load %arg6[%c229, %c0_696] : memref<256x1152xf32, #tpu.memory_space<vmem>>, vector<1x1152xf32>
    tpu.vector_store %arg6[%c229, %c0_696], %464 {strides = array<i32>} : memref<256x1152xf32, #tpu.memory_space<vmem>>, vector<1x1152xf32>,
    %c1_697 = arith.constant 1 : index
    %c102_698 = arith.constant 102 : index
    %466 = vector.load %arg5[%c1_697, %c102_698] : memref<2x1280xf32, #tpu.memory_space<vmem>>, vector<1x1152xf32>
    %c230 = arith.constant 230 : index
    %c0_699 = arith.constant 0 : index
    %467 = vector.load %arg6[%c230, %c0_699] : memref<256x1152xf32, #tpu.memory_space<vmem>>, vector<1x1152xf32>
    tpu.vector_store %arg6[%c230, %c0_699], %466 {strides = array<i32>} : memref<256x1152xf32, #tpu.memory_space<vmem>>, vector<1x1152xf32>,
    %c1_700 = arith.constant 1 : index
    %c103_701 = arith.constant 103 : index
    %468 = vector.load %arg5[%c1_700, %c103_701] : memref<2x1280xf32, #tpu.memory_space<vmem>>, vector<1x1152xf32>
    %c231 = arith.constant 231 : index
    %c0_702 = arith.constant 0 : index
    %469 = vector.load %arg6[%c231, %c0_702] : memref<256x1152xf32, #tpu.memory_space<vmem>>, vector<1x1152xf32>
    tpu.vector_store %arg6[%c231, %c0_702], %468 {strides = array<i32>} : memref<256x1152xf32, #tpu.memory_space<vmem>>, vector<1x1152xf32>,
    %c1_703 = arith.constant 1 : index
    %c104_704 = arith.constant 104 : index
    %470 = vector.load %arg5[%c1_703, %c104_704] : memref<2x1280xf32, #tpu.memory_space<vmem>>, vector<1x1152xf32>
    %c232 = arith.constant 232 : index
    %c0_705 = arith.constant 0 : index
    %471 = vector.load %arg6[%c232, %c0_705] : memref<256x1152xf32, #tpu.memory_space<vmem>>, vector<1x1152xf32>
    tpu.vector_store %arg6[%c232, %c0_705], %470 {strides = array<i32>} : memref<256x1152xf32, #tpu.memory_space<vmem>>, vector<1x1152xf32>,
    %c1_706 = arith.constant 1 : index
    %c105_707 = arith.constant 105 : index
    %472 = vector.load %arg5[%c1_706, %c105_707] : memref<2x1280xf32, #tpu.memory_space<vmem>>, vector<1x1152xf32>
    %c233 = arith.constant 233 : index
    %c0_708 = arith.constant 0 : index
    %473 = vector.load %arg6[%c233, %c0_708] : memref<256x1152xf32, #tpu.memory_space<vmem>>, vector<1x1152xf32>
    tpu.vector_store %arg6[%c233, %c0_708], %472 {strides = array<i32>} : memref<256x1152xf32, #tpu.memory_space<vmem>>, vector<1x1152xf32>,
    %c1_709 = arith.constant 1 : index
    %c106_710 = arith.constant 106 : index
    %474 = vector.load %arg5[%c1_709, %c106_710] : memref<2x1280xf32, #tpu.memory_space<vmem>>, vector<1x1152xf32>
    %c234 = arith.constant 234 : index
    %c0_711 = arith.constant 0 : index
    %475 = vector.load %arg6[%c234, %c0_711] : memref<256x1152xf32, #tpu.memory_space<vmem>>, vector<1x1152xf32>
    tpu.vector_store %arg6[%c234, %c0_711], %474 {strides = array<i32>} : memref<256x1152xf32, #tpu.memory_space<vmem>>, vector<1x1152xf32>,
    %c1_712 = arith.constant 1 : index
    %c107_713 = arith.constant 107 : index
    %476 = vector.load %arg5[%c1_712, %c107_713] : memref<2x1280xf32, #tpu.memory_space<vmem>>, vector<1x1152xf32>
    %c235 = arith.constant 235 : index
    %c0_714 = arith.constant 0 : index
    %477 = vector.load %arg6[%c235, %c0_714] : memref<256x1152xf32, #tpu.memory_space<vmem>>, vector<1x1152xf32>
    tpu.vector_store %arg6[%c235, %c0_714], %476 {strides = array<i32>} : memref<256x1152xf32, #tpu.memory_space<vmem>>, vector<1x1152xf32>,
    %c1_715 = arith.constant 1 : index
    %c108_716 = arith.constant 108 : index
    %478 = vector.load %arg5[%c1_715, %c108_716] : memref<2x1280xf32, #tpu.memory_space<vmem>>, vector<1x1152xf32>
    %c236 = arith.constant 236 : index
    %c0_717 = arith.constant 0 : index
    %479 = vector.load %arg6[%c236, %c0_717] : memref<256x1152xf32, #tpu.memory_space<vmem>>, vector<1x1152xf32>
    tpu.vector_store %arg6[%c236, %c0_717], %478 {strides = array<i32>} : memref<256x1152xf32, #tpu.memory_space<vmem>>, vector<1x1152xf32>,
    %c1_718 = arith.constant 1 : index
    %c109_719 = arith.constant 109 : index
    %480 = vector.load %arg5[%c1_718, %c109_719] : memref<2x1280xf32, #tpu.memory_space<vmem>>, vector<1x1152xf32>
    %c237 = arith.constant 237 : index
    %c0_720 = arith.constant 0 : index
    %481 = vector.load %arg6[%c237, %c0_720] : memref<256x1152xf32, #tpu.memory_space<vmem>>, vector<1x1152xf32>
    tpu.vector_store %arg6[%c237, %c0_720], %480 {strides = array<i32>} : memref<256x1152xf32, #tpu.memory_space<vmem>>, vector<1x1152xf32>,
    %c1_721 = arith.constant 1 : index
    %c110_722 = arith.constant 110 : index
    %482 = vector.load %arg5[%c1_721, %c110_722] : memref<2x1280xf32, #tpu.memory_space<vmem>>, vector<1x1152xf32>
    %c238 = arith.constant 238 : index
    %c0_723 = arith.constant 0 : index
    %483 = vector.load %arg6[%c238, %c0_723] : memref<256x1152xf32, #tpu.memory_space<vmem>>, vector<1x1152xf32>
    tpu.vector_store %arg6[%c238, %c0_723], %482 {strides = array<i32>} : memref<256x1152xf32, #tpu.memory_space<vmem>>, vector<1x1152xf32>,
    %c1_724 = arith.constant 1 : index
    %c111_725 = arith.constant 111 : index
    %484 = vector.load %arg5[%c1_724, %c111_725] : memref<2x1280xf32, #tpu.memory_space<vmem>>, vector<1x1152xf32>
    %c239 = arith.constant 239 : index
    %c0_726 = arith.constant 0 : index
    %485 = vector.load %arg6[%c239, %c0_726] : memref<256x1152xf32, #tpu.memory_space<vmem>>, vector<1x1152xf32>
    tpu.vector_store %arg6[%c239, %c0_726], %484 {strides = array<i32>} : memref<256x1152xf32, #tpu.memory_space<vmem>>, vector<1x1152xf32>,
    %c1_727 = arith.constant 1 : index
    %c112_728 = arith.constant 112 : index
    %486 = vector.load %arg5[%c1_727, %c112_728] : memref<2x1280xf32, #tpu.memory_space<vmem>>, vector<1x1152xf32>
    %c240 = arith.constant 240 : index
    %c0_729 = arith.constant 0 : index
    %487 = vector.load %arg6[%c240, %c0_729] : memref<256x1152xf32, #tpu.memory_space<vmem>>, vector<1x1152xf32>
    tpu.vector_store %arg6[%c240, %c0_729], %486 {strides = array<i32>} : memref<256x1152xf32, #tpu.memory_space<vmem>>, vector<1x1152xf32>,
    %c1_730 = arith.constant 1 : index
    %c113_731 = arith.constant 113 : index
    %488 = vector.load %arg5[%c1_730, %c113_731] : memref<2x1280xf32, #tpu.memory_space<vmem>>, vector<1x1152xf32>
    %c241 = arith.constant 241 : index
    %c0_732 = arith.constant 0 : index
    %489 = vector.load %arg6[%c241, %c0_732] : memref<256x1152xf32, #tpu.memory_space<vmem>>, vector<1x1152xf32>
    tpu.vector_store %arg6[%c241, %c0_732], %488 {strides = array<i32>} : memref<256x1152xf32, #tpu.memory_space<vmem>>, vector<1x1152xf32>,
    %c1_733 = arith.constant 1 : index
    %c114_734 = arith.constant 114 : index
    %490 = vector.load %arg5[%c1_733, %c114_734] : memref<2x1280xf32, #tpu.memory_space<vmem>>, vector<1x1152xf32>
    %c242 = arith.constant 242 : index
    %c0_735 = arith.constant 0 : index
    %491 = vector.load %arg6[%c242, %c0_735] : memref<256x1152xf32, #tpu.memory_space<vmem>>, vector<1x1152xf32>
    tpu.vector_store %arg6[%c242, %c0_735], %490 {strides = array<i32>} : memref<256x1152xf32, #tpu.memory_space<vmem>>, vector<1x1152xf32>,
    %c1_736 = arith.constant 1 : index
    %c115_737 = arith.constant 115 : index
    %492 = vector.load %arg5[%c1_736, %c115_737] : memref<2x1280xf32, #tpu.memory_space<vmem>>, vector<1x1152xf32>
    %c243 = arith.constant 243 : index
    %c0_738 = arith.constant 0 : index
    %493 = vector.load %arg6[%c243, %c0_738] : memref<256x1152xf32, #tpu.memory_space<vmem>>, vector<1x1152xf32>
    tpu.vector_store %arg6[%c243, %c0_738], %492 {strides = array<i32>} : memref<256x1152xf32, #tpu.memory_space<vmem>>, vector<1x1152xf32>,
    %c1_739 = arith.constant 1 : index
    %c116_740 = arith.constant 116 : index
    %494 = vector.load %arg5[%c1_739, %c116_740] : memref<2x1280xf32, #tpu.memory_space<vmem>>, vector<1x1152xf32>
    %c244 = arith.constant 244 : index
    %c0_741 = arith.constant 0 : index
    %495 = vector.load %arg6[%c244, %c0_741] : memref<256x1152xf32, #tpu.memory_space<vmem>>, vector<1x1152xf32>
    tpu.vector_store %arg6[%c244, %c0_741], %494 {strides = array<i32>} : memref<256x1152xf32, #tpu.memory_space<vmem>>, vector<1x1152xf32>,
    %c1_742 = arith.constant 1 : index
    %c117_743 = arith.constant 117 : index
    %496 = vector.load %arg5[%c1_742, %c117_743] : memref<2x1280xf32, #tpu.memory_space<vmem>>, vector<1x1152xf32>
    %c245 = arith.constant 245 : index
    %c0_744 = arith.constant 0 : index
    %497 = vector.load %arg6[%c245, %c0_744] : memref<256x1152xf32, #tpu.memory_space<vmem>>, vector<1x1152xf32>
    tpu.vector_store %arg6[%c245, %c0_744], %496 {strides = array<i32>} : memref<256x1152xf32, #tpu.memory_space<vmem>>, vector<1x1152xf32>,
    %c1_745 = arith.constant 1 : index
    %c118_746 = arith.constant 118 : index
    %498 = vector.load %arg5[%c1_745, %c118_746] : memref<2x1280xf32, #tpu.memory_space<vmem>>, vector<1x1152xf32>
    %c246 = arith.constant 246 : index
    %c0_747 = arith.constant 0 : index
    %499 = vector.load %arg6[%c246, %c0_747] : memref<256x1152xf32, #tpu.memory_space<vmem>>, vector<1x1152xf32>
    tpu.vector_store %arg6[%c246, %c0_747], %498 {strides = array<i32>} : memref<256x1152xf32, #tpu.memory_space<vmem>>, vector<1x1152xf32>,
    %c1_748 = arith.constant 1 : index
    %c119_749 = arith.constant 119 : index
    %500 = vector.load %arg5[%c1_748, %c119_749] : memref<2x1280xf32, #tpu.memory_space<vmem>>, vector<1x1152xf32>
    %c247 = arith.constant 247 : index
    %c0_750 = arith.constant 0 : index
    %501 = vector.load %arg6[%c247, %c0_750] : memref<256x1152xf32, #tpu.memory_space<vmem>>, vector<1x1152xf32>
    tpu.vector_store %arg6[%c247, %c0_750], %500 {strides = array<i32>} : memref<256x1152xf32, #tpu.memory_space<vmem>>, vector<1x1152xf32>,
    %c1_751 = arith.constant 1 : index
    %c120_752 = arith.constant 120 : index
    %502 = vector.load %arg5[%c1_751, %c120_752] : memref<2x1280xf32, #tpu.memory_space<vmem>>, vector<1x1152xf32>
    %c248 = arith.constant 248 : index
    %c0_753 = arith.constant 0 : index
    %503 = vector.load %arg6[%c248, %c0_753] : memref<256x1152xf32, #tpu.memory_space<vmem>>, vector<1x1152xf32>
    tpu.vector_store %arg6[%c248, %c0_753], %502 {strides = array<i32>} : memref<256x1152xf32, #tpu.memory_space<vmem>>, vector<1x1152xf32>,
    %c1_754 = arith.constant 1 : index
    %c121_755 = arith.constant 121 : index
    %504 = vector.load %arg5[%c1_754, %c121_755] : memref<2x1280xf32, #tpu.memory_space<vmem>>, vector<1x1152xf32>
    %c249 = arith.constant 249 : index
    %c0_756 = arith.constant 0 : index
    %505 = vector.load %arg6[%c249, %c0_756] : memref<256x1152xf32, #tpu.memory_space<vmem>>, vector<1x1152xf32>
    tpu.vector_store %arg6[%c249, %c0_756], %504 {strides = array<i32>} : memref<256x1152xf32, #tpu.memory_space<vmem>>, vector<1x1152xf32>,
    %c1_757 = arith.constant 1 : index
    %c122_758 = arith.constant 122 : index
    %506 = vector.load %arg5[%c1_757, %c122_758] : memref<2x1280xf32, #tpu.memory_space<vmem>>, vector<1x1152xf32>
    %c250 = arith.constant 250 : index
    %c0_759 = arith.constant 0 : index
    %507 = vector.load %arg6[%c250, %c0_759] : memref<256x1152xf32, #tpu.memory_space<vmem>>, vector<1x1152xf32>
    tpu.vector_store %arg6[%c250, %c0_759], %506 {strides = array<i32>} : memref<256x1152xf32, #tpu.memory_space<vmem>>, vector<1x1152xf32>,
    %c1_760 = arith.constant 1 : index
    %c123_761 = arith.constant 123 : index
    %508 = vector.load %arg5[%c1_760, %c123_761] : memref<2x1280xf32, #tpu.memory_space<vmem>>, vector<1x1152xf32>
    %c251 = arith.constant 251 : index
    %c0_762 = arith.constant 0 : index
    %509 = vector.load %arg6[%c251, %c0_762] : memref<256x1152xf32, #tpu.memory_space<vmem>>, vector<1x1152xf32>
    tpu.vector_store %arg6[%c251, %c0_762], %508 {strides = array<i32>} : memref<256x1152xf32, #tpu.memory_space<vmem>>, vector<1x1152xf32>,
    %c1_763 = arith.constant 1 : index
    %c124_764 = arith.constant 124 : index
    %510 = vector.load %arg5[%c1_763, %c124_764] : memref<2x1280xf32, #tpu.memory_space<vmem>>, vector<1x1152xf32>
    %c252 = arith.constant 252 : index
    %c0_765 = arith.constant 0 : index
    %511 = vector.load %arg6[%c252, %c0_765] : memref<256x1152xf32, #tpu.memory_space<vmem>>, vector<1x1152xf32>
    tpu.vector_store %arg6[%c252, %c0_765], %510 {strides = array<i32>} : memref<256x1152xf32, #tpu.memory_space<vmem>>, vector<1x1152xf32>,
    %c1_766 = arith.constant 1 : index
    %c125_767 = arith.constant 125 : index
    %512 = vector.load %arg5[%c1_766, %c125_767] : memref<2x1280xf32, #tpu.memory_space<vmem>>, vector<1x1152xf32>
    %c253 = arith.constant 253 : index
    %c0_768 = arith.constant 0 : index
    %513 = vector.load %arg6[%c253, %c0_768] : memref<256x1152xf32, #tpu.memory_space<vmem>>, vector<1x1152xf32>
    tpu.vector_store %arg6[%c253, %c0_768], %512 {strides = array<i32>} : memref<256x1152xf32, #tpu.memory_space<vmem>>, vector<1x1152xf32>,
    %c1_769 = arith.constant 1 : index
    %c126_770 = arith.constant 126 : index
    %514 = vector.load %arg5[%c1_769, %c126_770] : memref<2x1280xf32, #tpu.memory_space<vmem>>, vector<1x1152xf32>
    %c254 = arith.constant 254 : index
    %c0_771 = arith.constant 0 : index
    %515 = vector.load %arg6[%c254, %c0_771] : memref<256x1152xf32, #tpu.memory_space<vmem>>, vector<1x1152xf32>
    tpu.vector_store %arg6[%c254, %c0_771], %514 {strides = array<i32>} : memref<256x1152xf32, #tpu.memory_space<vmem>>, vector<1x1152xf32>,
    %c1_772 = arith.constant 1 : index
    %c127_773 = arith.constant 127 : index
    %516 = vector.load %arg5[%c1_772, %c127_773] : memref<2x1280xf32, #tpu.memory_space<vmem>>, vector<1x1152xf32>
    %c255 = arith.constant 255 : index
    %c0_774 = arith.constant 0 : index
    %517 = vector.load %arg6[%c255, %c0_774] : memref<256x1152xf32, #tpu.memory_space<vmem>>, vector<1x1152xf32>
    tpu.vector_store %arg6[%c255, %c0_774], %516 {strides = array<i32>} : memref<256x1152xf32, #tpu.memory_space<vmem>>, vector<1x1152xf32>,
    %c0_775 = arith.constant 0 : index
    %c0_776 = arith.constant 0 : index
    %518 = vector.load %arg1[%c0_775, %c0_776] : memref<8x256xbf16, #tpu.memory_space<vmem>>, vector<8x256xbf16>
    %519 = arith.extf %518 : vector<8x256xbf16> to vector<8x256xf32>
    %c0_777 = arith.constant 0 : index
    %c0_778 = arith.constant 0 : index
    %520 = vector.load %arg6[%c0_777, %c0_778] : memref<256x1152xf32, #tpu.memory_space<vmem>>, vector<256x1152xf32>
    %cst = arith.constant dense<0.000000e+00> : vector<8x1152xf32>
    %521 = tpu.matmul %519, %520, %cst {dimension_numbers = #tpu.dot_dimension_numbers<[1], [0], [0], [1], [0, 0, 1, 1], [], []>} : vector<8x256xf32>, vector<256x1152xf32>, vector<8x1152xf32> -> vector<8x1152xf32>
    %c0_779 = arith.constant 0 : index
    %c0_780 = arith.constant 0 : index
    %522 = vector.load %arg4[%c0_779, %c0_780] : memref<8x1152xf32, #tpu.memory_space<vmem>>, vector<8x1152xf32>
    tpu.vector_store %arg4[%c0_779, %c0_780], %521 {strides = array<i32>} : memref<8x1152xf32, #tpu.memory_space<vmem>>, vector<8x1152xf32>,
    return
  }
  func.func @transform_0(%arg0: i32) -> (i32, i32) {
    %c0_i32 = arith.constant 0 : i32
    %c0_i32_0 = arith.constant 0 : i32
    %c0_i32_1 = arith.constant 0 : i32
    return %c0_i32, %c0_i32_0 : i32, i32
  }
  func.func @transform_1(%arg0: i32) -> (i32, i32) {
    %c0_i32 = arith.constant 0 : i32
    %c0_i32_0 = arith.constant 0 : i32
    return %c0_i32, %arg0 : i32, i32
  }
  func.func @transform_2(%arg0: i32) -> (i32, i32) {
    %c1_i32 = arith.constant 1 : i32
    %0 = arith.addi %arg0, %c1_i32 : i32
    %c9_i32 = arith.constant 9 : i32
    %1 = arith.muli %0, %c9_i32 : i32
    %c0_i32 = arith.constant 0 : i32
    %c0_i32_0 = arith.constant 0 : i32
    return %c0_i32, %1 : i32, i32
  }
  func.func @transform_3(%arg0: i32) -> (i32, i32) {
    %c0_i32 = arith.constant 0 : i32
    %c0_i32_0 = arith.constant 0 : i32
    return %c0_i32, %arg0 : i32, i32
  }
}

</mosaic_0001>

<llo_original>
// kernel: tpu_custom_call.1
$region0: #{tpu_custom_call.1}
  #allocation0 [shape = 'u32[]', space=smem, size = 0x4, offset = 0x4, fixed_abs, tag = 'smem constant byte address 0x4 - core index']
  #allocation1 [shape = 'u32[144,128]{1,0:T(1,128)}', space=vmem, size = 0x12000, scoped, tag = 'internal scratch']
  #allocation2 [shape = 'f32[2,1280]{1,0:T(2,128)}', space=vmem, size = 0x2800, scoped, tag = 'scratch operand']
  #allocation3 [shape = 'f32[256,1152]{1,0:T(8,128)}', space=vmem, size = 0x120000, scoped, tag = 'scratch operand']
  %s0 = inlined_call_operand.hbm [shape: bf16[8,256], index: 0, kind: input, shape index: {}]
  %s1 = inlined_call_operand.hbm [shape: bf16[2,1280], index: 1, kind: input, shape index: {}]
  %s2 = inlined_call_operand.hbm [shape: bf16[2,1280], index: 2, kind: input, shape index: {}]
  %s3 = inlined_call_operand.hbm [shape: f32[8,1152], index: 3, kind: output, shape index: {}]
  %s4 = sld [smem:[#allocation0]]
  $region34: #{tpu_custom_call.1} parent=0
    _
  %s6 = ssub.s32 1, %s4
  %s7 = scalar_select 0, %s6, %s4
  $region1: #{tpu_custom_call.1} parent=0
    #allocation4 [shape = 'u8[4096]{0}', space=vmem, size = 0x1000, scoped, tag = 'input window, operand 0, single buffered']
    #allocation5 [shape = 's32[1]{0}', space=sflag, size = 0x4, scoped, tag = 'scoped memory for tpu_custom_call.1']
    #allocation6 [shape = 's32[1]{0}', space=sflag, size = 0x4, scoped, tag = 'scoped memory for tpu_custom_call.1']
    #allocation7 [shape = 'u8[4608]{0}', space=vmem, size = 0x1400, scoped, tag = 'input window, operand 1, single buffered']
    #allocation8 [shape = 's32[1]{0}', space=sflag, size = 0x4, scoped, tag = 'scoped memory for tpu_custom_call.1']
    #allocation9 [shape = 'u8[512]{0}', space=vmem, size = 0x400, scoped, tag = 'input window, operand 2, single buffered']
    #allocation10 [shape = 'u8[36864]{0}', space=vmem, size = 0x9000, scoped, tag = 'output window, operand 0, single buffered']
    %8 = vsyncpa [#allocation5], 0
    %9 = vsyncpa [#allocation8], 0
    %10 = vsyncpa [#allocation6], 0
    // Predicated region
    $region2: #{tpu_custom_call.1} parent=1 // pred_check
      _
    $region3: #{tpu_custom_call.1} parent=1 // pred_check_branch
      %12 = sbr.rel (0) target = $region5
    $region4: #{tpu_custom_call.1} parent=1 // pred_region
      %s14 = ssub.s32 128, 128
      %15 = vsyncadd [#allocation5], %s14
      %s17 = sshll.u32 [#allocation4], 4
      %s18 = int_to_ptr.vmem [resolvable:$true] %s17
      %20 = dma.hbm_to_vmem [thread:$0]  %s0, 128, %s18, [#allocation5]
    $region5: #{tpu_custom_call.1} parent=1 // pred_fallthru
      _
    // Predicated region
    $region6: #{tpu_custom_call.1} parent=1 // pred_check
      _
    $region7: #{tpu_custom_call.1} parent=1 // pred_check_branch
      %22 = sbr.rel (0) target = $region9
    $region8: #{tpu_custom_call.1} parent=1 // pred_region
      %s24 = ssub.s32 144, 144
      %25 = vsyncadd [#allocation8], %s24
      %s27 = sshll.u32 [#allocation7], 4
      %s28 = int_to_ptr.vmem [resolvable:$true] %s27
      %30 = dma.hbm_to_vmem [thread:$0]  %s1, 144, %s28, [#allocation8]
    $region9: #{tpu_custom_call.1} parent=1 // pred_fallthru
      _
    // Predicated region
    $region10: #{tpu_custom_call.1} parent=1 // pred_check
      _
    $region11: #{tpu_custom_call.1} parent=1 // pred_check_branch
      %32 = sbr.rel (0) target = $region13
    $region12: #{tpu_custom_call.1} parent=1 // pred_region
      %s33 = sadd.s32 0, 1
      %s34 = smul.u32 %s33, 9
      %s36 = ssub.s32 16, 16
      %37 = vsyncadd [#allocation8], %s36
      %s38 = smul.addr %s34, 16
      %s39 = scalar_lea.hbm %s2, %s38
      %s41 = sshll.u32 [#allocation9], 4
      %s42 = int_to_ptr.vmem [resolvable:$true] %s41
      %44 = dma.hbm_to_vmem [thread:$0]  %s39, 16, %s42, [#allocation8]
    $region13: #{tpu_custom_call.1} parent=1 // pred_fallthru
      _
    // Predicated region
    $region14: #{tpu_custom_call.1} parent=1 // pred_check
      _
    $region15: #{tpu_custom_call.1} parent=1 // pred_check_branch
      %46 = sbr.rel (0) target = $region17
    $region16: #{tpu_custom_call.1} parent=1 // pred_region
      %47 = dma.done [#allocation5], 128
    $region17: #{tpu_custom_call.1} parent=1 // pred_fallthru
      _
    // Predicated region
    $region18: #{tpu_custom_call.1} parent=1 // pred_check
      _
    $region19: #{tpu_custom_call.1} parent=1 // pred_check_branch
      %49 = sbr.rel (0) target = $region21
    $region20: #{tpu_custom_call.1} parent=1 // pred_region
      %50 = dma.done [#allocation8], 144
    $region21: #{tpu_custom_call.1} parent=1 // pred_fallthru
      _
    // Predicated region
    $region22: #{tpu_custom_call.1} parent=1 // pred_check
      _
    $region23: #{tpu_custom_call.1} parent=1 // pred_check_branch
      %52 = sbr.rel (0) target = $region25
    $region24: #{tpu_custom_call.1} parent=1 // pred_region
      %53 = dma.done [#allocation8], 16
    $region25: #{tpu_custom_call.1} parent=1 // pred_fallthru
      _
    %s54 = sadd.s32 0, 1
    %s55 = smul.u32 %s54, 9
    %v56 = vld [vmem:[#allocation7] sm:$0xff]
    %v57 = vld [vmem:[#allocation7 + $0x8] sm:$0x1]
    %v58 = vunpack.c.l.bf16 %v56
    %v59 = vunpack.c.h.bf16 %v56
    %v60 = vunpack.c.l.bf16 %v57
    %61 = vst [vmem:[#allocation2] sm:$0xff] %v58
    %62 = vst [vmem:[#allocation2 + $0x8] sm:$0xff] %v59
    %63 = vst [vmem:[#allocation2 + $0x10] sm:$0x3] %v60
    %v64 = vld [vmem:[#allocation9] sm:$0x1]
    %v65 = vunpack.c.l.bf16 %v64
    %66 = vst [vmem:[#allocation2 + $0x12] sm:$0x3] %v65
    %v67 = vld [vmem:[#allocation2] ss:$2 sm:$0xff]
    %s68 = scalar_lea.vmem [#allocation2], 16
    %v69 = vld [vmem:[%s68] ss:$2 sm:$0x1]
    %70 = vst [vmem:[#allocation3] ss:$8 sm:$0xf] %v67
    %71 = vst [vmem:[#allocation3] ss:$8 sm:$0xf0] %v67
    %v72 = vlaneseq
    %vm73 = vcmp.ge.s32.totalorder %v72, 0
    %vm74 = vcmp.lt.s32.totalorder %v72, 128
    %vm75 = vmand %vm73, %vm74
    %s76 = scalar_lea.vmem [#allocation3], 64
    %77 = vst.msk [vmem:[%s76] ss:$8 sm:$0x1] %vm75, %v69
    %78 = vst.msk [vmem:[%s76] ss:$8 sm:$0x0] %vm75, %v69
    %v79 = vld [vmem:[#allocation2] ss:$2 sm:$0xff]
    %s80 = scalar_lea.vmem [#allocation2], 16
    %v81 = vld [vmem:[%s80] ss:$2 sm:$0x3]
    %84 = vrot.lane.b32.xlu0 %v79, 127
    %v85 = vpop.permute.xlu0 %84
    %86 = vrot.lane.b32.xlu0 %v81, 127
    %v87 = vpop.permute.xlu0 %86
    %v88 = vrot.slane %v85, 1
    %v89 = vrot.slane %v87, 1
    %vm90 = vcmask 1046528
    %v91 = vsel %vm90, %v88, %v89
    %vm92 = vcmask 1039360
    %v93 = vsel %vm92, %v85, %v91
    %v94 = vsel %vm92, %v87, %v89
    %s97 = scalar_lea.vmem [#allocation3], 1
    %98 = vst [vmem:[%s97] ss:$8 sm:$0xf] %v93
    %99 = vst [vmem:[%s97] ss:$8 sm:$0xf0] %v93
    %s100 = scalar_lea.vmem [#allocation3], 65
    %101 = vst.msk [vmem:[%s100] ss:$8 sm:$0x1] %vm75, %v94
    %102 = vst.msk [vmem:[%s100] ss:$8 sm:$0x0] %vm75, %v94
    %v103 = vld [vmem:[#allocation2] ss:$2 sm:$0xff]
    %v104 = vld [vmem:[%s80] ss:$2 sm:$0x3]
    %107 = vrot.lane.b32.xlu0 %v103, 126
    %v108 = vpop.permute.xlu0 %107
    %109 = vrot.lane.b32.xlu0 %v104, 126
    %v110 = vpop.permute.xlu0 %109
    %v111 = vrot.slane %v108, 1
    %v112 = vrot.slane %v110, 1
    %v113 = vsel %vm90, %v111, %v112
    %vm114 = vcmask 1031168
    %v115 = vsel %vm114, %v108, %v113
    %v116 = vsel %vm114, %v110, %v112
    %s119 = scalar_lea.vmem [#allocation3], 2
    %120 = vst [vmem:[%s119] ss:$8 sm:$0xf] %v115
    %121 = vst [vmem:[%s119] ss:$8 sm:$0xf0] %v115
    %s122 = scalar_lea.vmem [#allocation3], 66
    %123 = vst.msk [vmem:[%s122] ss:$8 sm:$0x1] %vm75, %v116
    %124 = vst.msk [vmem:[%s122] ss:$8 sm:$0x0] %vm75, %v116
    %v125 = vld [vmem:[#allocation2] ss:$2 sm:$0xff]
    %v126 = vld [vmem:[%s80] ss:$2 sm:$0x3]
    %129 = vrot.lane.b32.xlu0 %v125, 125
    %v130 = vpop.permute.xlu0 %129
    %131 = vrot.lane.b32.xlu0 %v126, 125
    %v132 = vpop.permute.xlu0 %131
    %v133 = vrot.slane %v130, 1
    %v134 = vrot.slane %v132, 1
    %v135 = vsel %vm90, %v133, %v134
    %vm136 = vcmask 1022976
    %v137 = vsel %vm136, %v130, %v135
    %v138 = vsel %vm136, %v132, %v134
    %s141 = scalar_lea.vmem [#allocation3], 3
    %142 = vst [vmem:[%s141] ss:$8 sm:$0xf] %v137
    %143 = vst [vmem:[%s141] ss:$8 sm:$0xf0] %v137
    %s144 = scalar_lea.vmem [#allocation3], 67
    %145 = vst.msk [vmem:[%s144] ss:$8 sm:$0x1] %vm75, %v138
    %146 = vst.msk [vmem:[%s144] ss:$8 sm:$0x0] %vm75, %v138
    %v147 = vld [vmem:[#allocation2] ss:$2 sm:$0xff]
    %v148 = vld [vmem:[%s80] ss:$2 sm:$0x3]
    %151 = vrot.lane.b32.xlu0 %v147, 124
    %v152 = vpop.permute.xlu0 %151
    %153 = vrot.lane.b32.xlu0 %v148, 124
    %v154 = vpop.permute.xlu0 %153
    %v155 = vrot.slane %v152, 1
    %v156 = vrot.slane %v154, 1
    %v157 = vsel %vm90, %v155, %v156
    %vm158 = vcmask 1014784
    %v159 = vsel %vm158, %v152, %v157
    %v160 = vsel %vm158, %v154, %v156
    %s163 = scalar_lea.vmem [#allocation3], 4
    %164 = vst [vmem:[%s163] ss:$8 sm:$0xf] %v159
    %165 = vst [vmem:[%s163] ss:$8 sm:$0xf0] %v159
    %s166 = scalar_lea.vmem [#allocation3], 68
    %167 = vst.msk [vmem:[%s166] ss:$8 sm:$0x1] %vm75, %v160
    %168 = vst.msk [vmem:[%s166] ss:$8 sm:$0x0] %vm75, %v160
    %v169 = vld [vmem:[#allocation2] ss:$2 sm:$0xff]
    %v170 = vld [vmem:[%s80] ss:$2 sm:$0x3]
    %173 = vrot.lane.b32.xlu0 %v169, 123
    %v174 = vpop.permute.xlu0 %173
    %175 = vrot.lane.b32.xlu0 %v170, 123
    %v176 = vpop.permute.xlu0 %175
    %v177 = vrot.slane %v174, 1
    %v178 = vrot.slane %v176, 1
    %v179 = vsel %vm90, %v177, %v178
    %vm180 = vcmask 1006592
    %v181 = vsel %vm180, %v174, %v179
    %v182 = vsel %vm180, %v176, %v178
    %s185 = scalar_lea.vmem [#allocation3], 5
    %186 = vst [vmem:[%s185] ss:$8 sm:$0xf] %v181
    %187 = vst [vmem:[%s185] ss:$8 sm:$0xf0] %v181
    %s188 = scalar_lea.vmem [#allocation3], 69
    %189 = vst.msk [vmem:[%s188] ss:$8 sm:$0x1] %vm75, %v182
    %190 = vst.msk [vmem:[%s188] ss:$8 sm:$0x0] %vm75, %v182
    %v191 = vld [vmem:[#allocation2] ss:$2 sm:$0xff]
    %v192 = vld [vmem:[%s80] ss:$2 sm:$0x3]
    %195 = vrot.lane.b32.xlu0 %v191, 122
    %v196 = vpop.permute.xlu0 %195
    %197 = vrot.lane.b32.xlu0 %v192, 122
    %v198 = vpop.permute.xlu0 %197
    %v199 = vrot.slane %v196, 1
    %v200 = vrot.slane %v198, 1
    %v201 = vsel %vm90, %v199, %v200
    %vm202 = vcmask 998400
    %v203 = vsel %vm202, %v196, %v201
    %v204 = vsel %vm202, %v198, %v200
    %s207 = scalar_lea.vmem [#allocation3], 6
    %208 = vst [vmem:[%s207] ss:$8 sm:$0xf] %v203
    %209 = vst [vmem:[%s207] ss:$8 sm:$0xf0] %v203
    %s210 = scalar_lea.vmem [#allocation3], 70
    %211 = vst.msk [vmem:[%s210] ss:$8 sm:$0x1] %vm75, %v204
    %212 = vst.msk [vmem:[%s210] ss:$8 sm:$0x0] %vm75, %v204
    %v213 = vld [vmem:[#allocation2] ss:$2 sm:$0xff]
    %v214 = vld [vmem:[%s80] ss:$2 sm:$0x3]
    %217 = vrot.lane.b32.xlu0 %v213, 121
    %v218 = vpop.permute.xlu0 %217
    %219 = vrot.lane.b32.xlu0 %v214, 121
    %v220 = vpop.permute.xlu0 %219
    %v221 = vrot.slane %v218, 1
    %v222 = vrot.slane %v220, 1
    %v223 = vsel %vm90, %v221, %v222
    %vm224 = vcmask 990208
    %v225 = vsel %vm224, %v218, %v223
    %v226 = vsel %vm224, %v220, %v222
    %s229 = scalar_lea.vmem [#allocation3], 7
    %230 = vst [vmem:[%s229] ss:$8 sm:$0xf] %v225
    %231 = vst [vmem:[%s229] ss:$8 sm:$0xf0] %v225
    %s232 = scalar_lea.vmem [#allocation3], 71
    %233 = vst.msk [vmem:[%s232] ss:$8 sm:$0x1] %vm75, %v226
    %234 = vst.msk [vmem:[%s232] ss:$8 sm:$0x0] %vm75, %v226
    %v235 = vld [vmem:[#allocation2] ss:$2 sm:$0xff]
    %v236 = vld [vmem:[%s80] ss:$2 sm:$0x3]
    %239 = vrot.lane.b32.xlu0 %v235, 120
    %v240 = vpop.permute.xlu0 %239
    %241 = vrot.lane.b32.xlu0 %v236, 120
    %v242 = vpop.permute.xlu0 %241
    %v243 = vrot.slane %v240, 1
    %v244 = vrot.slane %v242, 1
    %v245 = vsel %vm90, %v243, %v244
    %vm246 = vcmask 982016
    %v247 = vsel %vm246, %v240, %v245
    %v248 = vsel %vm246, %v242, %v244
    %s251 = scalar_lea.vmem [#allocation3], 72
    %252 = vst [vmem:[%s251] ss:$8 sm:$0xf] %v247
    %253 = vst [vmem:[%s251] ss:$8 sm:$0xf0] %v247
    %s254 = scalar_lea.vmem [#allocation3], 136
    %255 = vst.msk [vmem:[%s254] ss:$8 sm:$0x1] %vm75, %v248
    %256 = vst.msk [vmem:[%s254] ss:$8 sm:$0x0] %vm75, %v248
    %v257 = vld [vmem:[#allocation2] ss:$2 sm:$0xff]
    %v258 = vld [vmem:[%s80] ss:$2 sm:$0x3]
    %261 = vrot.lane.b32.xlu0 %v257, 119
    %v262 = vpop.permute.xlu0 %261
    %263 = vrot.lane.b32.xlu0 %v258, 119
    %v264 = vpop.permute.xlu0 %263
    %v265 = vrot.slane %v262, 1
    %v266 = vrot.slane %v264, 1
    %v267 = vsel %vm90, %v265, %v266
    %vm268 = vcmask 973824
    %v269 = vsel %vm268, %v262, %v267
    %v270 = vsel %vm268, %v264, %v266
    %s273 = scalar_lea.vmem [#allocation3], 73
    %274 = vst [vmem:[%s273] ss:$8 sm:$0xf] %v269
    %275 = vst [vmem:[%s273] ss:$8 sm:$0xf0] %v269
    %s276 = scalar_lea.vmem [#allocation3], 137
    %277 = vst.msk [vmem:[%s276] ss:$8 sm:$0x1] %vm75, %v270
    %278 = vst.msk [vmem:[%s276] ss:$8 sm:$0x0] %vm75, %v270
    %v279 = vld [vmem:[#allocation2] ss:$2 sm:$0xff]
    %v280 = vld [vmem:[%s80] ss:$2 sm:$0x3]
    %283 = vrot.lane.b32.xlu0 %v279, 118
    %v284 = vpop.permute.xlu0 %283
    %285 = vrot.lane.b32.xlu0 %v280, 118
    %v286 = vpop.permute.xlu0 %285
    %v287 = vrot.slane %v284, 1
    %v288 = vrot.slane %v286, 1
    %v289 = vsel %vm90, %v287, %v288
    %vm290 = vcmask 965632
    %v291 = vsel %vm290, %v284, %v289
    %v292 = vsel %vm290, %v286, %v288
    %s295 = scalar_lea.vmem [#allocation3], 74
    %296 = vst [vmem:[%s295] ss:$8 sm:$0xf] %v291
    %297 = vst [vmem:[%s295] ss:$8 sm:$0xf0] %v291
    %s298 = scalar_lea.vmem [#allocation3], 138
    %299 = vst.msk [vmem:[%s298] ss:$8 sm:$0x1] %vm75, %v292
    %300 = vst.msk [vmem:[%s298] ss:$8 sm:$0x0] %vm75, %v292
    %v301 = vld [vmem:[#allocation2] ss:$2 sm:$0xff]
    %v302 = vld [vmem:[%s80] ss:$2 sm:$0x3]
    %305 = vrot.lane.b32.xlu0 %v301, 117
    %v306 = vpop.permute.xlu0 %305
    %307 = vrot.lane.b32.xlu0 %v302, 117
    %v308 = vpop.permute.xlu0 %307
    %v309 = vrot.slane %v306, 1
    %v310 = vrot.slane %v308, 1
    %v311 = vsel %vm90, %v309, %v310
    %vm312 = vcmask 957440
    %v313 = vsel %vm312, %v306, %v311
    %v314 = vsel %vm312, %v308, %v310
    %s317 = scalar_lea.vmem [#allocation3], 75
    %318 = vst [vmem:[%s317] ss:$8 sm:$0xf] %v313
    %319 = vst [vmem:[%s317] ss:$8 sm:$0xf0] %v313
    %s320 = scalar_lea.vmem [#allocation3], 139
    %321 = vst.msk [vmem:[%s320] ss:$8 sm:$0x1] %vm75, %v314
    %322 = vst.msk [vmem:[%s320] ss:$8 sm:$0x0] %vm75, %v314
    %v323 = vld [vmem:[#allocation2] ss:$2 sm:$0xff]
    %v324 = vld [vmem:[%s80] ss:$2 sm:$0x3]
    %327 = vrot.lane.b32.xlu0 %v323, 116
    %v328 = vpop.permute.xlu0 %327
    %329 = vrot.lane.b32.xlu0 %v324, 116
    %v330 = vpop.permute.xlu0 %329
    %v331 = vrot.slane %v328, 1
    %v332 = vrot.slane %v330, 1
    %v333 = vsel %vm90, %v331, %v332
    %vm334 = vcmask 949248
    %v335 = vsel %vm334, %v328, %v333
    %v336 = vsel %vm334, %v330, %v332
    %s339 = scalar_lea.vmem [#allocation3], 76
    %340 = vst [vmem:[%s339] ss:$8 sm:$0xf] %v335
    %341 = vst [vmem:[%s339] ss:$8 sm:$0xf0] %v335
    %s342 = scalar_lea.vmem [#allocation3], 140
    %343 = vst.msk [vmem:[%s342] ss:$8 sm:$0x1] %vm75, %v336
    %344 = vst.msk [vmem:[%s342] ss:$8 sm:$0x0] %vm75, %v336
    %v345 = vld [vmem:[#allocation2] ss:$2 sm:$0xff]
    %v346 = vld [vmem:[%s80] ss:$2 sm:$0x3]
    %349 = vrot.lane.b32.xlu0 %v345, 115
    %v350 = vpop.permute.xlu0 %349
    %351 = vrot.lane.b32.xlu0 %v346, 115
    %v352 = vpop.permute.xlu0 %351
    %v353 = vrot.slane %v350, 1
    %v354 = vrot.slane %v352, 1
    %v355 = vsel %vm90, %v353, %v354
    %vm356 = vcmask 941056
    %v357 = vsel %vm356, %v350, %v355
    %v358 = vsel %vm356, %v352, %v354
    %s361 = scalar_lea.vmem [#allocation3], 77
    %362 = vst [vmem:[%s361] ss:$8 sm:$0xf] %v357
    %363 = vst [vmem:[%s361] ss:$8 sm:$0xf0] %v357
    %s364 = scalar_lea.vmem [#allocation3], 141
    %365 = vst.msk [vmem:[%s364] ss:$8 sm:$0x1] %vm75, %v358
    %366 = vst.msk [vmem:[%s364] ss:$8 sm:$0x0] %vm75, %v358
    %v367 = vld [vmem:[#allocation2] ss:$2 sm:$0xff]
    %v368 = vld [vmem:[%s80] ss:$2 sm:$0x3]
    %371 = vrot.lane.b32.xlu0 %v367, 114
    %v372 = vpop.permute.xlu0 %371
    %373 = vrot.lane.b32.xlu0 %v368, 114
    %v374 = vpop.permute.xlu0 %373
    %v375 = vrot.slane %v372, 1
    %v376 = vrot.slane %v374, 1
    %v377 = vsel %vm90, %v375, %v376
    %vm378 = vcmask 932864
    %v379 = vsel %vm378, %v372, %v377
    %v380 = vsel %vm378, %v374, %v376
    %s383 = scalar_lea.vmem [#allocation3], 78
    %384 = vst [vmem:[%s383] ss:$8 sm:$0xf] %v379
    %385 = vst [vmem:[%s383] ss:$8 sm:$0xf0] %v379
    %s386 = scalar_lea.vmem [#allocation3], 142
    %387 = vst.msk [vmem:[%s386] ss:$8 sm:$0x1] %vm75, %v380
    %388 = vst.msk [vmem:[%s386] ss:$8 sm:$0x0] %vm75, %v380
    %v389 = vld [vmem:[#allocation2] ss:$2 sm:$0xff]
    %v390 = vld [vmem:[%s80] ss:$2 sm:$0x3]
    %393 = vrot.lane.b32.xlu0 %v389, 113
    %v394 = vpop.permute.xlu0 %393
    %395 = vrot.lane.b32.xlu0 %v390, 113
    %v396 = vpop.permute.xlu0 %395
    %v397 = vrot.slane %v394, 1
    %v398 = vrot.slane %v396, 1
    %v399 = vsel %vm90, %v397, %v398
    %vm400 = vcmask 924672
    %v401 = vsel %vm400, %v394, %v399
    %v402 = vsel %vm400, %v396, %v398
    %s405 = scalar_lea.vmem [#allocation3], 79
    %406 = vst [vmem:[%s405] ss:$8 sm:$0xf] %v401
    %407 = vst [vmem:[%s405] ss:$8 sm:$0xf0] %v401
    %s408 = scalar_lea.vmem [#allocation3], 143
    %409 = vst.msk [vmem:[%s408] ss:$8 sm:$0x1] %vm75, %v402
    %410 = vst.msk [vmem:[%s408] ss:$8 sm:$0x0] %vm75, %v402
    %v411 = vld [vmem:[#allocation2] ss:$2 sm:$0xff]
    %v412 = vld [vmem:[%s80] ss:$2 sm:$0x3]
    %415 = vrot.lane.b32.xlu0 %v411, 112
    %v416 = vpop.permute.xlu0 %415
    %417 = vrot.lane.b32.xlu0 %v412, 112
    %v418 = vpop.permute.xlu0 %417
    %v419 = vrot.slane %v416, 1
    %v420 = vrot.slane %v418, 1
    %v421 = vsel %vm90, %v419, %v420
    %vm422 = vcmask 916480
    %v423 = vsel %vm422, %v416, %v421
    %v424 = vsel %vm422, %v418, %v420
    %s427 = scalar_lea.vmem [#allocation3], 144
    %428 = vst [vmem:[%s427] ss:$8 sm:$0xf] %v423
    %429 = vst [vmem:[%s427] ss:$8 sm:$0xf0] %v423
    %s430 = scalar_lea.vmem [#allocation3], 208
    %431 = vst.msk [vmem:[%s430] ss:$8 sm:$0x1] %vm75, %v424
    %432 = vst.msk [vmem:[%s430] ss:$8 sm:$0x0] %vm75, %v424
    %v433 = vld [vmem:[#allocation2] ss:$2 sm:$0xff]
    %v434 = vld [vmem:[%s80] ss:$2 sm:$0x3]
    %437 = vrot.lane.b32.xlu0 %v433, 111
    %v438 = vpop.permute.xlu0 %437
    %439 = vrot.lane.b32.xlu0 %v434, 111
    %v440 = vpop.permute.xlu0 %439
    %v441 = vrot.slane %v438, 1
    %v442 = vrot.slane %v440, 1
    %v443 = vsel %vm90, %v441, %v442
    %vm444 = vcmask 908288
    %v445 = vsel %vm444, %v438, %v443
    %v446 = vsel %vm444, %v440, %v442
    %s449 = scalar_lea.vmem [#allocation3], 145
    %450 = vst [vmem:[%s449] ss:$8 sm:$0xf] %v445
    %451 = vst [vmem:[%s449] ss:$8 sm:$0xf0] %v445
    %s452 = scalar_lea.vmem [#allocation3], 209
    %453 = vst.msk [vmem:[%s452] ss:$8 sm:$0x1] %vm75, %v446
    %454 = vst.msk [vmem:[%s452] ss:$8 sm:$0x0] %vm75, %v446
    %v455 = vld [vmem:[#allocation2] ss:$2 sm:$0xff]
    %v456 = vld [vmem:[%s80] ss:$2 sm:$0x3]
    %459 = vrot.lane.b32.xlu0 %v455, 110
    %v460 = vpop.permute.xlu0 %459
    %461 = vrot.lane.b32.xlu0 %v456, 110
    %v462 = vpop.permute.xlu0 %461
    %v463 = vrot.slane %v460, 1
    %v464 = vrot.slane %v462, 1
    %v465 = vsel %vm90, %v463, %v464
    %vm466 = vcmask 900096
    %v467 = vsel %vm466, %v460, %v465
    %v468 = vsel %vm466, %v462, %v464
    %s471 = scalar_lea.vmem [#allocation3], 146
    %472 = vst [vmem:[%s471] ss:$8 sm:$0xf] %v467
    %473 = vst [vmem:[%s471] ss:$8 sm:$0xf0] %v467
    %s474 = scalar_lea.vmem [#allocation3], 210
    %475 = vst.msk [vmem:[%s474] ss:$8 sm:$0x1] %vm75, %v468
    %476 = vst.msk [vmem:[%s474] ss:$8 sm:$0x0] %vm75, %v468
    %v477 = vld [vmem:[#allocation2] ss:$2 sm:$0xff]
    %v478 = vld [vmem:[%s80] ss:$2 sm:$0x3]
    %481 = vrot.lane.b32.xlu0 %v477, 109
    %v482 = vpop.permute.xlu0 %481
    %483 = vrot.lane.b32.xlu0 %v478, 109
    %v484 = vpop.permute.xlu0 %483
    %v485 = vrot.slane %v482, 1
    %v486 = vrot.slane %v484, 1
    %v487 = vsel %vm90, %v485, %v486
    %vm488 = vcmask 891904
    %v489 = vsel %vm488, %v482, %v487
    %v490 = vsel %vm488, %v484, %v486
    %s493 = scalar_lea.vmem [#allocation3], 147
    %494 = vst [vmem:[%s493] ss:$8 sm:$0xf] %v489
    %495 = vst [vmem:[%s493] ss:$8 sm:$0xf0] %v489
    %s496 = scalar_lea.vmem [#allocation3], 211
    %497 = vst.msk [vmem:[%s496] ss:$8 sm:$0x1] %vm75, %v490
    %498 = vst.msk [vmem:[%s496] ss:$8 sm:$0x0] %vm75, %v490
    %v499 = vld [vmem:[#allocation2] ss:$2 sm:$0xff]
    %v500 = vld [vmem:[%s80] ss:$2 sm:$0x3]
    %503 = vrot.lane.b32.xlu0 %v499, 108
    %v504 = vpop.permute.xlu0 %503
    %505 = vrot.lane.b32.xlu0 %v500, 108
    %v506 = vpop.permute.xlu0 %505
    %v507 = vrot.slane %v504, 1
    %v508 = vrot.slane %v506, 1
    %v509 = vsel %vm90, %v507, %v508
    %vm510 = vcmask 883712
    %v511 = vsel %vm510, %v504, %v509
    %v512 = vsel %vm510, %v506, %v508
    %s515 = scalar_lea.vmem [#allocation3], 148
    %516 = vst [vmem:[%s515] ss:$8 sm:$0xf] %v511
    %517 = vst [vmem:[%s515] ss:$8 sm:$0xf0] %v511
    %s518 = scalar_lea.vmem [#allocation3], 212
    %519 = vst.msk [vmem:[%s518] ss:$8 sm:$0x1] %vm75, %v512
    %520 = vst.msk [vmem:[%s518] ss:$8 sm:$0x0] %vm75, %v512
    %v521 = vld [vmem:[#allocation2] ss:$2 sm:$0xff]
    %v522 = vld [vmem:[%s80] ss:$2 sm:$0x3]
    %525 = vrot.lane.b32.xlu0 %v521, 107
    %v526 = vpop.permute.xlu0 %525
    %527 = vrot.lane.b32.xlu0 %v522, 107
    %v528 = vpop.permute.xlu0 %527
    %v529 = vrot.slane %v526, 1
    %v530 = vrot.slane %v528, 1
    %v531 = vsel %vm90, %v529, %v530
    %vm532 = vcmask 875520
    %v533 = vsel %vm532, %v526, %v531
    %v534 = vsel %vm532, %v528, %v530
    %s537 = scalar_lea.vmem [#allocation3], 149
    %538 = vst [vmem:[%s537] ss:$8 sm:$0xf] %v533
    %539 = vst [vmem:[%s537] ss:$8 sm:$0xf0] %v533
    %s540 = scalar_lea.vmem [#allocation3], 213
    %541 = vst.msk [vmem:[%s540] ss:$8 sm:$0x1] %vm75, %v534
    %542 = vst.msk [vmem:[%s540] ss:$8 sm:$0x0] %vm75, %v534
    %v543 = vld [vmem:[#allocation2] ss:$2 sm:$0xff]
    %v544 = vld [vmem:[%s80] ss:$2 sm:$0x3]
    %547 = vrot.lane.b32.xlu0 %v543, 106
    %v548 = vpop.permute.xlu0 %547
    %549 = vrot.lane.b32.xlu0 %v544, 106
    %v550 = vpop.permute.xlu0 %549
    %v551 = vrot.slane %v548, 1
    %v552 = vrot.slane %v550, 1
    %v553 = vsel %vm90, %v551, %v552
    %vm554 = vcmask 867328
    %v555 = vsel %vm554, %v548, %v553
    %v556 = vsel %vm554, %v550, %v552
    %s559 = scalar_lea.vmem [#allocation3], 150
    %560 = vst [vmem:[%s559] ss:$8 sm:$0xf] %v555
    %561 = vst [vmem:[%s559] ss:$8 sm:$0xf0] %v555
    %s562 = scalar_lea.vmem [#allocation3], 214
    %563 = vst.msk [vmem:[%s562] ss:$8 sm:$0x1] %vm75, %v556
    %564 = vst.msk [vmem:[%s562] ss:$8 sm:$0x0] %vm75, %v556
    %v565 = vld [vmem:[#allocation2] ss:$2 sm:$0xff]
    %v566 = vld [vmem:[%s80] ss:$2 sm:$0x3]
    %569 = vrot.lane.b32.xlu0 %v565, 105
    %v570 = vpop.permute.xlu0 %569
    %571 = vrot.lane.b32.xlu0 %v566, 105
    %v572 = vpop.permute.xlu0 %571
    %v573 = vrot.slane %v570, 1
    %v574 = vrot.slane %v572, 1
    %v575 = vsel %vm90, %v573, %v574
    %vm576 = vcmask 859136
    %v577 = vsel %vm576, %v570, %v575
    %v578 = vsel %vm576, %v572, %v574
    %s581 = scalar_lea.vmem [#allocation3], 151
    %582 = vst [vmem:[%s581] ss:$8 sm:$0xf] %v577
    %583 = vst [vmem:[%s581] ss:$8 sm:$0xf0] %v577
    %s584 = scalar_lea.vmem [#allocation3], 215
    %585 = vst.msk [vmem:[%s584] ss:$8 sm:$0x1] %vm75, %v578
    %586 = vst.msk [vmem:[%s584] ss:$8 sm:$0x0] %vm75, %v578
    %v587 = vld [vmem:[#allocation2] ss:$2 sm:$0xff]
    %v588 = vld [vmem:[%s80] ss:$2 sm:$0x3]
    %591 = vrot.lane.b32.xlu0 %v587, 104
    %v592 = vpop.permute.xlu0 %591
    %593 = vrot.lane.b32.xlu0 %v588, 104
    %v594 = vpop.permute.xlu0 %593
    %v595 = vrot.slane %v592, 1
    %v596 = vrot.slane %v594, 1
    %v597 = vsel %vm90, %v595, %v596
    %vm598 = vcmask 850944
    %v599 = vsel %vm598, %v592, %v597
    %v600 = vsel %vm598, %v594, %v596
    %s603 = scalar_lea.vmem [#allocation3], 216
    %604 = vst [vmem:[%s603] ss:$8 sm:$0xf] %v599
    %605 = vst [vmem:[%s603] ss:$8 sm:$0xf0] %v599
    %s606 = scalar_lea.vmem [#allocation3], 280
    %607 = vst.msk [vmem:[%s606] ss:$8 sm:$0x1] %vm75, %v600
    %608 = vst.msk [vmem:[%s606] ss:$8 sm:$0x0] %vm75, %v600
    %v609 = vld [vmem:[#allocation2] ss:$2 sm:$0xff]
    %v610 = vld [vmem:[%s80] ss:$2 sm:$0x3]
    %613 = vrot.lane.b32.xlu0 %v609, 103
    %v614 = vpop.permute.xlu0 %613
    %615 = vrot.lane.b32.xlu0 %v610, 103
    %v616 = vpop.permute.xlu0 %615
    %v617 = vrot.slane %v614, 1
    %v618 = vrot.slane %v616, 1
    %v619 = vsel %vm90, %v617, %v618
    %vm620 = vcmask 842752
    %v621 = vsel %vm620, %v614, %v619
    %v622 = vsel %vm620, %v616, %v618
    %s625 = scalar_lea.vmem [#allocation3], 217
    %626 = vst [vmem:[%s625] ss:$8 sm:$0xf] %v621
    %627 = vst [vmem:[%s625] ss:$8 sm:$0xf0] %v621
    %s628 = scalar_lea.vmem [#allocation3], 281
    %629 = vst.msk [vmem:[%s628] ss:$8 sm:$0x1] %vm75, %v622
    %630 = vst.msk [vmem:[%s628] ss:$8 sm:$0x0] %vm75, %v622
    %v631 = vld [vmem:[#allocation2] ss:$2 sm:$0xff]
    %v632 = vld [vmem:[%s80] ss:$2 sm:$0x3]
    %635 = vrot.lane.b32.xlu0 %v631, 102
    %v636 = vpop.permute.xlu0 %635
    %637 = vrot.lane.b32.xlu0 %v632, 102
    %v638 = vpop.permute.xlu0 %637
    %v639 = vrot.slane %v636, 1
    %v640 = vrot.slane %v638, 1
    %v641 = vsel %vm90, %v639, %v640
    %vm642 = vcmask 834560
    %v643 = vsel %vm642, %v636, %v641
    %v644 = vsel %vm642, %v638, %v640
    %s647 = scalar_lea.vmem [#allocation3], 218
    %648 = vst [vmem:[%s647] ss:$8 sm:$0xf] %v643
    %649 = vst [vmem:[%s647] ss:$8 sm:$0xf0] %v643
    %s650 = scalar_lea.vmem [#allocation3], 282
    %651 = vst.msk [vmem:[%s650] ss:$8 sm:$0x1] %vm75, %v644
    %652 = vst.msk [vmem:[%s650] ss:$8 sm:$0x0] %vm75, %v644
    %v653 = vld [vmem:[#allocation2] ss:$2 sm:$0xff]
    %v654 = vld [vmem:[%s80] ss:$2 sm:$0x3]
    %657 = vrot.lane.b32.xlu0 %v653, 101
    %v658 = vpop.permute.xlu0 %657
    %659 = vrot.lane.b32.xlu0 %v654, 101
    %v660 = vpop.permute.xlu0 %659
    %v661 = vrot.slane %v658, 1
    %v662 = vrot.slane %v660, 1
    %v663 = vsel %vm90, %v661, %v662
    %vm664 = vcmask 826368
    %v665 = vsel %vm664, %v658, %v663
    %v666 = vsel %vm664, %v660, %v662
    %s669 = scalar_lea.vmem [#allocation3], 219
    %670 = vst [vmem:[%s669] ss:$8 sm:$0xf] %v665
    %671 = vst [vmem:[%s669] ss:$8 sm:$0xf0] %v665
    %s672 = scalar_lea.vmem [#allocation3], 283
    %673 = vst.msk [vmem:[%s672] ss:$8 sm:$0x1] %vm75, %v666
    %674 = vst.msk [vmem:[%s672] ss:$8 sm:$0x0] %vm75, %v666
    %v675 = vld [vmem:[#allocation2] ss:$2 sm:$0xff]
    %v676 = vld [vmem:[%s80] ss:$2 sm:$0x3]
    %679 = vrot.lane.b32.xlu0 %v675, 100
    %v680 = vpop.permute.xlu0 %679
    %681 = vrot.lane.b32.xlu0 %v676, 100
    %v682 = vpop.permute.xlu0 %681
    %v683 = vrot.slane %v680, 1
    %v684 = vrot.slane %v682, 1
    %v685 = vsel %vm90, %v683, %v684
    %vm686 = vcmask 818176
    %v687 = vsel %vm686, %v680, %v685
    %v688 = vsel %vm686, %v682, %v684
    %s691 = scalar_lea.vmem [#allocation3], 220
    %692 = vst [vmem:[%s691] ss:$8 sm:$0xf] %v687
    %693 = vst [vmem:[%s691] ss:$8 sm:$0xf0] %v687
    %s694 = scalar_lea.vmem [#allocation3], 284
    %695 = vst.msk [vmem:[%s694] ss:$8 sm:$0x1] %vm75, %v688
    %696 = vst.msk [vmem:[%s694] ss:$8 sm:$0x0] %vm75, %v688
    %v697 = vld [vmem:[#allocation2] ss:$2 sm:$0xff]
    %v698 = vld [vmem:[%s80] ss:$2 sm:$0x3]
    %701 = vrot.lane.b32.xlu0 %v697, 99
    %v702 = vpop.permute.xlu0 %701
    %703 = vrot.lane.b32.xlu0 %v698, 99
    %v704 = vpop.permute.xlu0 %703
    %v705 = vrot.slane %v702, 1
    %v706 = vrot.slane %v704, 1
    %v707 = vsel %vm90, %v705, %v706
    %vm708 = vcmask 809984
    %v709 = vsel %vm708, %v702, %v707
    %v710 = vsel %vm708, %v704, %v706
    %s713 = scalar_lea.vmem [#allocation3], 221
    %714 = vst [vmem:[%s713] ss:$8 sm:$0xf] %v709
    %715 = vst [vmem:[%s713] ss:$8 sm:$0xf0] %v709
    %s716 = scalar_lea.vmem [#allocation3], 285
    %717 = vst.msk [vmem:[%s716] ss:$8 sm:$0x1] %vm75, %v710
    %718 = vst.msk [vmem:[%s716] ss:$8 sm:$0x0] %vm75, %v710
    %v719 = vld [vmem:[#allocation2] ss:$2 sm:$0xff]
    %v720 = vld [vmem:[%s80] ss:$2 sm:$0x3]
    %723 = vrot.lane.b32.xlu0 %v719, 98
    %v724 = vpop.permute.xlu0 %723
    %725 = vrot.lane.b32.xlu0 %v720, 98
    %v726 = vpop.permute.xlu0 %725
    %v727 = vrot.slane %v724, 1
    %v728 = vrot.slane %v726, 1
    %v729 = vsel %vm90, %v727, %v728
    %vm730 = vcmask 801792
    %v731 = vsel %vm730, %v724, %v729
    %v732 = vsel %vm730, %v726, %v728
    %s735 = scalar_lea.vmem [#allocation3], 222
    %736 = vst [vmem:[%s735] ss:$8 sm:$0xf] %v731
    %737 = vst [vmem:[%s735] ss:$8 sm:$0xf0] %v731
    %s738 = scalar_lea.vmem [#allocation3], 286
    %739 = vst.msk [vmem:[%s738] ss:$8 sm:$0x1] %vm75, %v732
    %740 = vst.msk [vmem:[%s738] ss:$8 sm:$0x0] %vm75, %v732
    %v741 = vld [vmem:[#allocation2] ss:$2 sm:$0xff]
    %v742 = vld [vmem:[%s80] ss:$2 sm:$0x3]
    %745 = vrot.lane.b32.xlu0 %v741, 97
    %v746 = vpop.permute.xlu0 %745
    %747 = vrot.lane.b32.xlu0 %v742, 97
    %v748 = vpop.permute.xlu0 %747
    %v749 = vrot.slane %v746, 1
    %v750 = vrot.slane %v748, 1
    %v751 = vsel %vm90, %v749, %v750
    %vm752 = vcmask 793600
    %v753 = vsel %vm752, %v746, %v751
    %v754 = vsel %vm752, %v748, %v750
    %s757 = scalar_lea.vmem [#allocation3], 223
    %758 = vst [vmem:[%s757] ss:$8 sm:$0xf] %v753
    %759 = vst [vmem:[%s757] ss:$8 sm:$0xf0] %v753
    %s760 = scalar_lea.vmem [#allocation3], 287
    %761 = vst.msk [vmem:[%s760] ss:$8 sm:$0x1] %vm75, %v754
    %762 = vst.msk [vmem:[%s760] ss:$8 sm:$0x0] %vm75, %v754
    %v763 = vld [vmem:[#allocation2] ss:$2 sm:$0xff]
    %v764 = vld [vmem:[%s80] ss:$2 sm:$0x3]
    %767 = vrot.lane.b32.xlu0 %v763, 96
    %v768 = vpop.permute.xlu0 %767
    %769 = vrot.lane.b32.xlu0 %v764, 96
    %v770 = vpop.permute.xlu0 %769
    %v771 = vrot.slane %v768, 1
    %v772 = vrot.slane %v770, 1
    %v773 = vsel %vm90, %v771, %v772
    %vm774 = vcmask 785408
    %v775 = vsel %vm774, %v768, %v773
    %v776 = vsel %vm774, %v770, %v772
    %s779 = scalar_lea.vmem [#allocation3], 288
    %780 = vst [vmem:[%s779] ss:$8 sm:$0xf] %v775
    %781 = vst [vmem:[%s779] ss:$8 sm:$0xf0] %v775
    %s782 = scalar_lea.vmem [#allocation3], 352
    %783 = vst.msk [vmem:[%s782] ss:$8 sm:$0x1] %vm75, %v776
    %784 = vst.msk [vmem:[%s782] ss:$8 sm:$0x0] %vm75, %v776
    %v785 = vld [vmem:[#allocation2] ss:$2 sm:$0xff]
    %v786 = vld [vmem:[%s80] ss:$2 sm:$0x3]
    %789 = vrot.lane.b32.xlu0 %v785, 95
    %v790 = vpop.permute.xlu0 %789
    %791 = vrot.lane.b32.xlu0 %v786, 95
    %v792 = vpop.permute.xlu0 %791
    %v793 = vrot.slane %v790, 1
    %v794 = vrot.slane %v792, 1
    %v795 = vsel %vm90, %v793, %v794
    %vm796 = vcmask 777216
    %v797 = vsel %vm796, %v790, %v795
    %v798 = vsel %vm796, %v792, %v794
    %s801 = scalar_lea.vmem [#allocation3], 289
    %802 = vst [vmem:[%s801] ss:$8 sm:$0xf] %v797
    %803 = vst [vmem:[%s801] ss:$8 sm:$0xf0] %v797
    %s804 = scalar_lea.vmem [#allocation3], 353
    %805 = vst.msk [vmem:[%s804] ss:$8 sm:$0x1] %vm75, %v798
    %806 = vst.msk [vmem:[%s804] ss:$8 sm:$0x0] %vm75, %v798
    %v807 = vld [vmem:[#allocation2] ss:$2 sm:$0xff]
    %v808 = vld [vmem:[%s80] ss:$2 sm:$0x3]
    %811 = vrot.lane.b32.xlu0 %v807, 94
    %v812 = vpop.permute.xlu0 %811
    %813 = vrot.lane.b32.xlu0 %v808, 94
    %v814 = vpop.permute.xlu0 %813
    %v815 = vrot.slane %v812, 1
    %v816 = vrot.slane %v814, 1
    %v817 = vsel %vm90, %v815, %v816
    %vm818 = vcmask 769024
    %v819 = vsel %vm818, %v812, %v817
    %v820 = vsel %vm818, %v814, %v816
    %s823 = scalar_lea.vmem [#allocation3], 290
    %824 = vst [vmem:[%s823] ss:$8 sm:$0xf] %v819
    %825 = vst [vmem:[%s823] ss:$8 sm:$0xf0] %v819
    %s826 = scalar_lea.vmem [#allocation3], 354
    %827 = vst.msk [vmem:[%s826] ss:$8 sm:$0x1] %vm75, %v820
    %828 = vst.msk [vmem:[%s826] ss:$8 sm:$0x0] %vm75, %v820
    %v829 = vld [vmem:[#allocation2] ss:$2 sm:$0xff]
    %v830 = vld [vmem:[%s80] ss:$2 sm:$0x3]
    %833 = vrot.lane.b32.xlu0 %v829, 93
    %v834 = vpop.permute.xlu0 %833
    %835 = vrot.lane.b32.xlu0 %v830, 93
    %v836 = vpop.permute.xlu0 %835
    %v837 = vrot.slane %v834, 1
    %v838 = vrot.slane %v836, 1
    %v839 = vsel %vm90, %v837, %v838
    %vm840 = vcmask 760832
    %v841 = vsel %vm840, %v834, %v839
    %v842 = vsel %vm840, %v836, %v838
    %s845 = scalar_lea.vmem [#allocation3], 291
    %846 = vst [vmem:[%s845] ss:$8 sm:$0xf] %v841
    %847 = vst [vmem:[%s845] ss:$8 sm:$0xf0] %v841
    %s848 = scalar_lea.vmem [#allocation3], 355
    %849 = vst.msk [vmem:[%s848] ss:$8 sm:$0x1] %vm75, %v842
    %850 = vst.msk [vmem:[%s848] ss:$8 sm:$0x0] %vm75, %v842
    %v851 = vld [vmem:[#allocation2] ss:$2 sm:$0xff]
    %v852 = vld [vmem:[%s80] ss:$2 sm:$0x3]
    %855 = vrot.lane.b32.xlu0 %v851, 92
    %v856 = vpop.permute.xlu0 %855
    %857 = vrot.lane.b32.xlu0 %v852, 92
    %v858 = vpop.permute.xlu0 %857
    %v859 = vrot.slane %v856, 1
    %v860 = vrot.slane %v858, 1
    %v861 = vsel %vm90, %v859, %v860
    %vm862 = vcmask 752640
    %v863 = vsel %vm862, %v856, %v861
    %v864 = vsel %vm862, %v858, %v860
    %s867 = scalar_lea.vmem [#allocation3], 292
    %868 = vst [vmem:[%s867] ss:$8 sm:$0xf] %v863
    %869 = vst [vmem:[%s867] ss:$8 sm:$0xf0] %v863
    %s870 = scalar_lea.vmem [#allocation3], 356
    %871 = vst.msk [vmem:[%s870] ss:$8 sm:$0x1] %vm75, %v864
    %872 = vst.msk [vmem:[%s870] ss:$8 sm:$0x0] %vm75, %v864
    %v873 = vld [vmem:[#allocation2] ss:$2 sm:$0xff]
    %v874 = vld [vmem:[%s80] ss:$2 sm:$0x3]
    %877 = vrot.lane.b32.xlu0 %v873, 91
    %v878 = vpop.permute.xlu0 %877
    %879 = vrot.lane.b32.xlu0 %v874, 91
    %v880 = vpop.permute.xlu0 %879
    %v881 = vrot.slane %v878, 1
    %v882 = vrot.slane %v880, 1
    %v883 = vsel %vm90, %v881, %v882
    %vm884 = vcmask 744448
    %v885 = vsel %vm884, %v878, %v883
    %v886 = vsel %vm884, %v880, %v882
    %s889 = scalar_lea.vmem [#allocation3], 293
    %890 = vst [vmem:[%s889] ss:$8 sm:$0xf] %v885
    %891 = vst [vmem:[%s889] ss:$8 sm:$0xf0] %v885
    %s892 = scalar_lea.vmem [#allocation3], 357
    %893 = vst.msk [vmem:[%s892] ss:$8 sm:$0x1] %vm75, %v886
    %894 = vst.msk [vmem:[%s892] ss:$8 sm:$0x0] %vm75, %v886
    %v895 = vld [vmem:[#allocation2] ss:$2 sm:$0xff]
    %v896 = vld [vmem:[%s80] ss:$2 sm:$0x3]
    %899 = vrot.lane.b32.xlu0 %v895, 90
    %v900 = vpop.permute.xlu0 %899
    %901 = vrot.lane.b32.xlu0 %v896, 90
    %v902 = vpop.permute.xlu0 %901
    %v903 = vrot.slane %v900, 1
    %v904 = vrot.slane %v902, 1
    %v905 = vsel %vm90, %v903, %v904
    %vm906 = vcmask 736256
    %v907 = vsel %vm906, %v900, %v905
    %v908 = vsel %vm906, %v902, %v904
    %s911 = scalar_lea.vmem [#allocation3], 294
    %912 = vst [vmem:[%s911] ss:$8 sm:$0xf] %v907
    %913 = vst [vmem:[%s911] ss:$8 sm:$0xf0] %v907
    %s914 = scalar_lea.vmem [#allocation3], 358
    %915 = vst.msk [vmem:[%s914] ss:$8 sm:$0x1] %vm75, %v908
    %916 = vst.msk [vmem:[%s914] ss:$8 sm:$0x0] %vm75, %v908
    %v917 = vld [vmem:[#allocation2] ss:$2 sm:$0xff]
    %v918 = vld [vmem:[%s80] ss:$2 sm:$0x3]
    %921 = vrot.lane.b32.xlu0 %v917, 89
    %v922 = vpop.permute.xlu0 %921
    %923 = vrot.lane.b32.xlu0 %v918, 89
    %v924 = vpop.permute.xlu0 %923
    %v925 = vrot.slane %v922, 1
    %v926 = vrot.slane %v924, 1
    %v927 = vsel %vm90, %v925, %v926
    %vm928 = vcmask 728064
    %v929 = vsel %vm928, %v922, %v927
    %v930 = vsel %vm928, %v924, %v926
    %s933 = scalar_lea.vmem [#allocation3], 295
    %934 = vst [vmem:[%s933] ss:$8 sm:$0xf] %v929
    %935 = vst [vmem:[%s933] ss:$8 sm:$0xf0] %v929
    %s936 = scalar_lea.vmem [#allocation3], 359
    %937 = vst.msk [vmem:[%s936] ss:$8 sm:$0x1] %vm75, %v930
    %938 = vst.msk [vmem:[%s936] ss:$8 sm:$0x0] %vm75, %v930
    %v939 = vld [vmem:[#allocation2] ss:$2 sm:$0xff]
    %v940 = vld [vmem:[%s80] ss:$2 sm:$0x3]
    %943 = vrot.lane.b32.xlu0 %v939, 88
    %v944 = vpop.permute.xlu0 %943
    %945 = vrot.lane.b32.xlu0 %v940, 88
    %v946 = vpop.permute.xlu0 %945
    %v947 = vrot.slane %v944, 1
    %v948 = vrot.slane %v946, 1
    %v949 = vsel %vm90, %v947, %v948
    %vm950 = vcmask 719872
    %v951 = vsel %vm950, %v944, %v949
    %v952 = vsel %vm950, %v946, %v948
    %s955 = scalar_lea.vmem [#allocation3], 360
    %956 = vst [vmem:[%s955] ss:$8 sm:$0xf] %v951
    %957 = vst [vmem:[%s955] ss:$8 sm:$0xf0] %v951
    %s958 = scalar_lea.vmem [#allocation3], 424
    %959 = vst.msk [vmem:[%s958] ss:$8 sm:$0x1] %vm75, %v952
    %960 = vst.msk [vmem:[%s958] ss:$8 sm:$0x0] %vm75, %v952
    %v961 = vld [vmem:[#allocation2] ss:$2 sm:$0xff]
    %v962 = vld [vmem:[%s80] ss:$2 sm:$0x3]
    %965 = vrot.lane.b32.xlu0 %v961, 87
    %v966 = vpop.permute.xlu0 %965
    %967 = vrot.lane.b32.xlu0 %v962, 87
    %v968 = vpop.permute.xlu0 %967
    %v969 = vrot.slane %v966, 1
    %v970 = vrot.slane %v968, 1
    %v971 = vsel %vm90, %v969, %v970
    %vm972 = vcmask 711680
    %v973 = vsel %vm972, %v966, %v971
    %v974 = vsel %vm972, %v968, %v970
    %s977 = scalar_lea.vmem [#allocation3], 361
    %978 = vst [vmem:[%s977] ss:$8 sm:$0xf] %v973
    %979 = vst [vmem:[%s977] ss:$8 sm:$0xf0] %v973
    %s980 = scalar_lea.vmem [#allocation3], 425
    %981 = vst.msk [vmem:[%s980] ss:$8 sm:$0x1] %vm75, %v974
    %982 = vst.msk [vmem:[%s980] ss:$8 sm:$0x0] %vm75, %v974
    %v983 = vld [vmem:[#allocation2] ss:$2 sm:$0xff]
    %v984 = vld [vmem:[%s80] ss:$2 sm:$0x3]
    %987 = vrot.lane.b32.xlu0 %v983, 86
    %v988 = vpop.permute.xlu0 %987
    %989 = vrot.lane.b32.xlu0 %v984, 86
    %v990 = vpop.permute.xlu0 %989
    %v991 = vrot.slane %v988, 1
    %v992 = vrot.slane %v990, 1
    %v993 = vsel %vm90, %v991, %v992
    %vm994 = vcmask 703488
    %v995 = vsel %vm994, %v988, %v993
    %v996 = vsel %vm994, %v990, %v992
    %s999 = scalar_lea.vmem [#allocation3], 362
    %1000 = vst [vmem:[%s999] ss:$8 sm:$0xf] %v995
    %1001 = vst [vmem:[%s999] ss:$8 sm:$0xf0] %v995
    %s1002 = scalar_lea.vmem [#allocation3], 426
    %1003 = vst.msk [vmem:[%s1002] ss:$8 sm:$0x1] %vm75, %v996
    %1004 = vst.msk [vmem:[%s1002] ss:$8 sm:$0x0] %vm75, %v996
    %v1005 = vld [vmem:[#allocation2] ss:$2 sm:$0xff]
    %v1006 = vld [vmem:[%s80] ss:$2 sm:$0x3]
    %1009 = vrot.lane.b32.xlu0 %v1005, 85
    %v1010 = vpop.permute.xlu0 %1009
    %1011 = vrot.lane.b32.xlu0 %v1006, 85
    %v1012 = vpop.permute.xlu0 %1011
    %v1013 = vrot.slane %v1010, 1
    %v1014 = vrot.slane %v1012, 1
    %v1015 = vsel %vm90, %v1013, %v1014
    %vm1016 = vcmask 695296
    %v1017 = vsel %vm1016, %v1010, %v1015
    %v1018 = vsel %vm1016, %v1012, %v1014
    %s1021 = scalar_lea.vmem [#allocation3], 363
    %1022 = vst [vmem:[%s1021] ss:$8 sm:$0xf] %v1017
    %1023 = vst [vmem:[%s1021] ss:$8 sm:$0xf0] %v1017
    %s1024 = scalar_lea.vmem [#allocation3], 427
    %1025 = vst.msk [vmem:[%s1024] ss:$8 sm:$0x1] %vm75, %v1018
    %1026 = vst.msk [vmem:[%s1024] ss:$8 sm:$0x0] %vm75, %v1018
    %v1027 = vld [vmem:[#allocation2] ss:$2 sm:$0xff]
    %v1028 = vld [vmem:[%s80] ss:$2 sm:$0x3]
    %1031 = vrot.lane.b32.xlu0 %v1027, 84
    %v1032 = vpop.permute.xlu0 %1031
    %1033 = vrot.lane.b32.xlu0 %v1028, 84
    %v1034 = vpop.permute.xlu0 %1033
    %v1035 = vrot.slane %v1032, 1
    %v1036 = vrot.slane %v1034, 1
    %v1037 = vsel %vm90, %v1035, %v1036
    %vm1038 = vcmask 687104
    %v1039 = vsel %vm1038, %v1032, %v1037
    %v1040 = vsel %vm1038, %v1034, %v1036
    %s1043 = scalar_lea.vmem [#allocation3], 364
    %1044 = vst [vmem:[%s1043] ss:$8 sm:$0xf] %v1039
    %1045 = vst [vmem:[%s1043] ss:$8 sm:$0xf0] %v1039
    %s1046 = scalar_lea.vmem [#allocation3], 428
    %1047 = vst.msk [vmem:[%s1046] ss:$8 sm:$0x1] %vm75, %v1040
    %1048 = vst.msk [vmem:[%s1046] ss:$8 sm:$0x0] %vm75, %v1040
    %v1049 = vld [vmem:[#allocation2] ss:$2 sm:$0xff]
    %v1050 = vld [vmem:[%s80] ss:$2 sm:$0x3]
    %1053 = vrot.lane.b32.xlu0 %v1049, 83
    %v1054 = vpop.permute.xlu0 %1053
    %1055 = vrot.lane.b32.xlu0 %v1050, 83
    %v1056 = vpop.permute.xlu0 %1055
    %v1057 = vrot.slane %v1054, 1
    %v1058 = vrot.slane %v1056, 1
    %v1059 = vsel %vm90, %v1057, %v1058
    %vm1060 = vcmask 678912
    %v1061 = vsel %vm1060, %v1054, %v1059
    %v1062 = vsel %vm1060, %v1056, %v1058
    %s1065 = scalar_lea.vmem [#allocation3], 365
    %1066 = vst [vmem:[%s1065] ss:$8 sm:$0xf] %v1061
    %1067 = vst [vmem:[%s1065] ss:$8 sm:$0xf0] %v1061
    %s1068 = scalar_lea.vmem [#allocation3], 429
    %1069 = vst.msk [vmem:[%s1068] ss:$8 sm:$0x1] %vm75, %v1062
    %1070 = vst.msk [vmem:[%s1068] ss:$8 sm:$0x0] %vm75, %v1062
    %v1071 = vld [vmem:[#allocation2] ss:$2 sm:$0xff]
    %v1072 = vld [vmem:[%s80] ss:$2 sm:$0x3]
    %1075 = vrot.lane.b32.xlu0 %v1071, 82
    %v1076 = vpop.permute.xlu0 %1075
    %1077 = vrot.lane.b32.xlu0 %v1072, 82
    %v1078 = vpop.permute.xlu0 %1077
    %v1079 = vrot.slane %v1076, 1
    %v1080 = vrot.slane %v1078, 1
    %v1081 = vsel %vm90, %v1079, %v1080
    %vm1082 = vcmask 670720
    %v1083 = vsel %vm1082, %v1076, %v1081
    %v1084 = vsel %vm1082, %v1078, %v1080
    %s1087 = scalar_lea.vmem [#allocation3], 366
    %1088 = vst [vmem:[%s1087] ss:$8 sm:$0xf] %v1083
    %1089 = vst [vmem:[%s1087] ss:$8 sm:$0xf0] %v1083
    %s1090 = scalar_lea.vmem [#allocation3], 430
    %1091 = vst.msk [vmem:[%s1090] ss:$8 sm:$0x1] %vm75, %v1084
    %1092 = vst.msk [vmem:[%s1090] ss:$8 sm:$0x0] %vm75, %v1084
    %v1093 = vld [vmem:[#allocation2] ss:$2 sm:$0xff]
    %v1094 = vld [vmem:[%s80] ss:$2 sm:$0x3]
    %1097 = vrot.lane.b32.xlu0 %v1093, 81
    %v1098 = vpop.permute.xlu0 %1097
    %1099 = vrot.lane.b32.xlu0 %v1094, 81
    %v1100 = vpop.permute.xlu0 %1099
    %v1101 = vrot.slane %v1098, 1
    %v1102 = vrot.slane %v1100, 1
    %v1103 = vsel %vm90, %v1101, %v1102
    %vm1104 = vcmask 662528
    %v1105 = vsel %vm1104, %v1098, %v1103
    %v1106 = vsel %vm1104, %v1100, %v1102
    %s1109 = scalar_lea.vmem [#allocation3], 367
    %1110 = vst [vmem:[%s1109] ss:$8 sm:$0xf] %v1105
    %1111 = vst [vmem:[%s1109] ss:$8 sm:$0xf0] %v1105
    %s1112 = scalar_lea.vmem [#allocation3], 431
    %1113 = vst.msk [vmem:[%s1112] ss:$8 sm:$0x1] %vm75, %v1106
    %1114 = vst.msk [vmem:[%s1112] ss:$8 sm:$0x0] %vm75, %v1106
    %v1115 = vld [vmem:[#allocation2] ss:$2 sm:$0xff]
    %v1116 = vld [vmem:[%s80] ss:$2 sm:$0x3]
    %1119 = vrot.lane.b32.xlu0 %v1115, 80
    %v1120 = vpop.permute.xlu0 %1119
    %1121 = vrot.lane.b32.xlu0 %v1116, 80
    %v1122 = vpop.permute.xlu0 %1121
    %v1123 = vrot.slane %v1120, 1
    %v1124 = vrot.slane %v1122, 1
    %v1125 = vsel %vm90, %v1123, %v1124
    %vm1126 = vcmask 654336
    %v1127 = vsel %vm1126, %v1120, %v1125
    %v1128 = vsel %vm1126, %v1122, %v1124
    %s1131 = scalar_lea.vmem [#allocation3], 432
    %1132 = vst [vmem:[%s1131] ss:$8 sm:$0xf] %v1127
    %1133 = vst [vmem:[%s1131] ss:$8 sm:$0xf0] %v1127
    %s1134 = scalar_lea.vmem [#allocation3], 496
    %1135 = vst.msk [vmem:[%s1134] ss:$8 sm:$0x1] %vm75, %v1128
    %1136 = vst.msk [vmem:[%s1134] ss:$8 sm:$0x0] %vm75, %v1128
    %v1137 = vld [vmem:[#allocation2] ss:$2 sm:$0xff]
    %v1138 = vld [vmem:[%s80] ss:$2 sm:$0x3]
    %1141 = vrot.lane.b32.xlu0 %v1137, 79
    %v1142 = vpop.permute.xlu0 %1141
    %1143 = vrot.lane.b32.xlu0 %v1138, 79
    %v1144 = vpop.permute.xlu0 %1143
    %v1145 = vrot.slane %v1142, 1
    %v1146 = vrot.slane %v1144, 1
    %v1147 = vsel %vm90, %v1145, %v1146
    %vm1148 = vcmask 646144
    %v1149 = vsel %vm1148, %v1142, %v1147
    %v1150 = vsel %vm1148, %v1144, %v1146
    %s1153 = scalar_lea.vmem [#allocation3], 433
    %1154 = vst [vmem:[%s1153] ss:$8 sm:$0xf] %v1149
    %1155 = vst [vmem:[%s1153] ss:$8 sm:$0xf0] %v1149
    %s1156 = scalar_lea.vmem [#allocation3], 497
    %1157 = vst.msk [vmem:[%s1156] ss:$8 sm:$0x1] %vm75, %v1150
    %1158 = vst.msk [vmem:[%s1156] ss:$8 sm:$0x0] %vm75, %v1150
    %v1159 = vld [vmem:[#allocation2] ss:$2 sm:$0xff]
    %v1160 = vld [vmem:[%s80] ss:$2 sm:$0x3]
    %1163 = vrot.lane.b32.xlu0 %v1159, 78
    %v1164 = vpop.permute.xlu0 %1163
    %1165 = vrot.lane.b32.xlu0 %v1160, 78
    %v1166 = vpop.permute.xlu0 %1165
    %v1167 = vrot.slane %v1164, 1
    %v1168 = vrot.slane %v1166, 1
    %v1169 = vsel %vm90, %v1167, %v1168
    %vm1170 = vcmask 637952
    %v1171 = vsel %vm1170, %v1164, %v1169
    %v1172 = vsel %vm1170, %v1166, %v1168
    %s1175 = scalar_lea.vmem [#allocation3], 434
    %1176 = vst [vmem:[%s1175] ss:$8 sm:$0xf] %v1171
    %1177 = vst [vmem:[%s1175] ss:$8 sm:$0xf0] %v1171
    %s1178 = scalar_lea.vmem [#allocation3], 498
    %1179 = vst.msk [vmem:[%s1178] ss:$8 sm:$0x1] %vm75, %v1172
    %1180 = vst.msk [vmem:[%s1178] ss:$8 sm:$0x0] %vm75, %v1172
    %v1181 = vld [vmem:[#allocation2] ss:$2 sm:$0xff]
    %v1182 = vld [vmem:[%s80] ss:$2 sm:$0x3]
    %1185 = vrot.lane.b32.xlu0 %v1181, 77
    %v1186 = vpop.permute.xlu0 %1185
    %1187 = vrot.lane.b32.xlu0 %v1182, 77
    %v1188 = vpop.permute.xlu0 %1187
    %v1189 = vrot.slane %v1186, 1
    %v1190 = vrot.slane %v1188, 1
    %v1191 = vsel %vm90, %v1189, %v1190
    %vm1192 = vcmask 629760
    %v1193 = vsel %vm1192, %v1186, %v1191
    %v1194 = vsel %vm1192, %v1188, %v1190
    %s1197 = scalar_lea.vmem [#allocation3], 435
    %1198 = vst [vmem:[%s1197] ss:$8 sm:$0xf] %v1193
    %1199 = vst [vmem:[%s1197] ss:$8 sm:$0xf0] %v1193
    %s1200 = scalar_lea.vmem [#allocation3], 499
    %1201 = vst.msk [vmem:[%s1200] ss:$8 sm:$0x1] %vm75, %v1194
    %1202 = vst.msk [vmem:[%s1200] ss:$8 sm:$0x0] %vm75, %v1194
    %v1203 = vld [vmem:[#allocation2] ss:$2 sm:$0xff]
    %v1204 = vld [vmem:[%s80] ss:$2 sm:$0x3]
    %1207 = vrot.lane.b32.xlu0 %v1203, 76
    %v1208 = vpop.permute.xlu0 %1207
    %1209 = vrot.lane.b32.xlu0 %v1204, 76
    %v1210 = vpop.permute.xlu0 %1209
    %v1211 = vrot.slane %v1208, 1
    %v1212 = vrot.slane %v1210, 1
    %v1213 = vsel %vm90, %v1211, %v1212
    %vm1214 = vcmask 621568
    %v1215 = vsel %vm1214, %v1208, %v1213
    %v1216 = vsel %vm1214, %v1210, %v1212
    %s1219 = scalar_lea.vmem [#allocation3], 436
    %1220 = vst [vmem:[%s1219] ss:$8 sm:$0xf] %v1215
    %1221 = vst [vmem:[%s1219] ss:$8 sm:$0xf0] %v1215
    %s1222 = scalar_lea.vmem [#allocation3], 500
    %1223 = vst.msk [vmem:[%s1222] ss:$8 sm:$0x1] %vm75, %v1216
    %1224 = vst.msk [vmem:[%s1222] ss:$8 sm:$0x0] %vm75, %v1216
    %v1225 = vld [vmem:[#allocation2] ss:$2 sm:$0xff]
    %v1226 = vld [vmem:[%s80] ss:$2 sm:$0x3]
    %1229 = vrot.lane.b32.xlu0 %v1225, 75
    %v1230 = vpop.permute.xlu0 %1229
    %1231 = vrot.lane.b32.xlu0 %v1226, 75
    %v1232 = vpop.permute.xlu0 %1231
    %v1233 = vrot.slane %v1230, 1
    %v1234 = vrot.slane %v1232, 1
    %v1235 = vsel %vm90, %v1233, %v1234
    %vm1236 = vcmask 613376
    %v1237 = vsel %vm1236, %v1230, %v1235
    %v1238 = vsel %vm1236, %v1232, %v1234
    %s1241 = scalar_lea.vmem [#allocation3], 437
    %1242 = vst [vmem:[%s1241] ss:$8 sm:$0xf] %v1237
    %1243 = vst [vmem:[%s1241] ss:$8 sm:$0xf0] %v1237
    %s1244 = scalar_lea.vmem [#allocation3], 501
    %1245 = vst.msk [vmem:[%s1244] ss:$8 sm:$0x1] %vm75, %v1238
    %1246 = vst.msk [vmem:[%s1244] ss:$8 sm:$0x0] %vm75, %v1238
    %v1247 = vld [vmem:[#allocation2] ss:$2 sm:$0xff]
    %v1248 = vld [vmem:[%s80] ss:$2 sm:$0x3]
    %1251 = vrot.lane.b32.xlu0 %v1247, 74
    %v1252 = vpop.permute.xlu0 %1251
    %1253 = vrot.lane.b32.xlu0 %v1248, 74
    %v1254 = vpop.permute.xlu0 %1253
    %v1255 = vrot.slane %v1252, 1
    %v1256 = vrot.slane %v1254, 1
    %v1257 = vsel %vm90, %v1255, %v1256
    %vm1258 = vcmask 605184
    %v1259 = vsel %vm1258, %v1252, %v1257
    %v1260 = vsel %vm1258, %v1254, %v1256
    %s1263 = scalar_lea.vmem [#allocation3], 438
    %1264 = vst [vmem:[%s1263] ss:$8 sm:$0xf] %v1259
    %1265 = vst [vmem:[%s1263] ss:$8 sm:$0xf0] %v1259
    %s1266 = scalar_lea.vmem [#allocation3], 502
    %1267 = vst.msk [vmem:[%s1266] ss:$8 sm:$0x1] %vm75, %v1260
    %1268 = vst.msk [vmem:[%s1266] ss:$8 sm:$0x0] %vm75, %v1260
    %v1269 = vld [vmem:[#allocation2] ss:$2 sm:$0xff]
    %v1270 = vld [vmem:[%s80] ss:$2 sm:$0x3]
    %1273 = vrot.lane.b32.xlu0 %v1269, 73
    %v1274 = vpop.permute.xlu0 %1273
    %1275 = vrot.lane.b32.xlu0 %v1270, 73
    %v1276 = vpop.permute.xlu0 %1275
    %v1277 = vrot.slane %v1274, 1
    %v1278 = vrot.slane %v1276, 1
    %v1279 = vsel %vm90, %v1277, %v1278
    %vm1280 = vcmask 596992
    %v1281 = vsel %vm1280, %v1274, %v1279
    %v1282 = vsel %vm1280, %v1276, %v1278
    %s1285 = scalar_lea.vmem [#allocation3], 439
    %1286 = vst [vmem:[%s1285] ss:$8 sm:$0xf] %v1281
    %1287 = vst [vmem:[%s1285] ss:$8 sm:$0xf0] %v1281
    %s1288 = scalar_lea.vmem [#allocation3], 503
    %1289 = vst.msk [vmem:[%s1288] ss:$8 sm:$0x1] %vm75, %v1282
    %1290 = vst.msk [vmem:[%s1288] ss:$8 sm:$0x0] %vm75, %v1282
    %v1291 = vld [vmem:[#allocation2] ss:$2 sm:$0xff]
    %v1292 = vld [vmem:[%s80] ss:$2 sm:$0x3]
    %1295 = vrot.lane.b32.xlu0 %v1291, 72
    %v1296 = vpop.permute.xlu0 %1295
    %1297 = vrot.lane.b32.xlu0 %v1292, 72
    %v1298 = vpop.permute.xlu0 %1297
    %v1299 = vrot.slane %v1296, 1
    %v1300 = vrot.slane %v1298, 1
    %v1301 = vsel %vm90, %v1299, %v1300
    %vm1302 = vcmask 588800
    %v1303 = vsel %vm1302, %v1296, %v1301
    %v1304 = vsel %vm1302, %v1298, %v1300
    %s1307 = scalar_lea.vmem [#allocation3], 504
    %1308 = vst [vmem:[%s1307] ss:$8 sm:$0xf] %v1303
    %1309 = vst [vmem:[%s1307] ss:$8 sm:$0xf0] %v1303
    %s1310 = scalar_lea.vmem [#allocation3], 568
    %1311 = vst.msk [vmem:[%s1310] ss:$8 sm:$0x1] %vm75, %v1304
    %1312 = vst.msk [vmem:[%s1310] ss:$8 sm:$0x0] %vm75, %v1304
    %v1313 = vld [vmem:[#allocation2] ss:$2 sm:$0xff]
    %v1314 = vld [vmem:[%s80] ss:$2 sm:$0x3]
    %1317 = vrot.lane.b32.xlu0 %v1313, 71
    %v1318 = vpop.permute.xlu0 %1317
    %1319 = vrot.lane.b32.xlu0 %v1314, 71
    %v1320 = vpop.permute.xlu0 %1319
    %v1321 = vrot.slane %v1318, 1
    %v1322 = vrot.slane %v1320, 1
    %v1323 = vsel %vm90, %v1321, %v1322
    %vm1324 = vcmask 580608
    %v1325 = vsel %vm1324, %v1318, %v1323
    %v1326 = vsel %vm1324, %v1320, %v1322
    %s1329 = scalar_lea.vmem [#allocation3], 505
    %1330 = vst [vmem:[%s1329] ss:$8 sm:$0xf] %v1325
    %1331 = vst [vmem:[%s1329] ss:$8 sm:$0xf0] %v1325
    %s1332 = scalar_lea.vmem [#allocation3], 569
    %1333 = vst.msk [vmem:[%s1332] ss:$8 sm:$0x1] %vm75, %v1326
    %1334 = vst.msk [vmem:[%s1332] ss:$8 sm:$0x0] %vm75, %v1326
    %v1335 = vld [vmem:[#allocation2] ss:$2 sm:$0xff]
    %v1336 = vld [vmem:[%s80] ss:$2 sm:$0x3]
    %1339 = vrot.lane.b32.xlu0 %v1335, 70
    %v1340 = vpop.permute.xlu0 %1339
    %1341 = vrot.lane.b32.xlu0 %v1336, 70
    %v1342 = vpop.permute.xlu0 %1341
    %v1343 = vrot.slane %v1340, 1
    %v1344 = vrot.slane %v1342, 1
    %v1345 = vsel %vm90, %v1343, %v1344
    %vm1346 = vcmask 572416
    %v1347 = vsel %vm1346, %v1340, %v1345
    %v1348 = vsel %vm1346, %v1342, %v1344
    %s1351 = scalar_lea.vmem [#allocation3], 506
    %1352 = vst [vmem:[%s1351] ss:$8 sm:$0xf] %v1347
    %1353 = vst [vmem:[%s1351] ss:$8 sm:$0xf0] %v1347
    %s1354 = scalar_lea.vmem [#allocation3], 570
    %1355 = vst.msk [vmem:[%s1354] ss:$8 sm:$0x1] %vm75, %v1348
    %1356 = vst.msk [vmem:[%s1354] ss:$8 sm:$0x0] %vm75, %v1348
    %v1357 = vld [vmem:[#allocation2] ss:$2 sm:$0xff]
    %v1358 = vld [vmem:[%s80] ss:$2 sm:$0x3]
    %1361 = vrot.lane.b32.xlu0 %v1357, 69
    %v1362 = vpop.permute.xlu0 %1361
    %1363 = vrot.lane.b32.xlu0 %v1358, 69
    %v1364 = vpop.permute.xlu0 %1363
    %v1365 = vrot.slane %v1362, 1
    %v1366 = vrot.slane %v1364, 1
    %v1367 = vsel %vm90, %v1365, %v1366
    %vm1368 = vcmask 564224
    %v1369 = vsel %vm1368, %v1362, %v1367
    %v1370 = vsel %vm1368, %v1364, %v1366
    %s1373 = scalar_lea.vmem [#allocation3], 507
    %1374 = vst [vmem:[%s1373] ss:$8 sm:$0xf] %v1369
    %1375 = vst [vmem:[%s1373] ss:$8 sm:$0xf0] %v1369
    %s1376 = scalar_lea.vmem [#allocation3], 571
    %1377 = vst.msk [vmem:[%s1376] ss:$8 sm:$0x1] %vm75, %v1370
    %1378 = vst.msk [vmem:[%s1376] ss:$8 sm:$0x0] %vm75, %v1370
    %v1379 = vld [vmem:[#allocation2] ss:$2 sm:$0xff]
    %v1380 = vld [vmem:[%s80] ss:$2 sm:$0x3]
    %1383 = vrot.lane.b32.xlu0 %v1379, 68
    %v1384 = vpop.permute.xlu0 %1383
    %1385 = vrot.lane.b32.xlu0 %v1380, 68
    %v1386 = vpop.permute.xlu0 %1385
    %v1387 = vrot.slane %v1384, 1
    %v1388 = vrot.slane %v1386, 1
    %v1389 = vsel %vm90, %v1387, %v1388
    %vm1390 = vcmask 556032
    %v1391 = vsel %vm1390, %v1384, %v1389
    %v1392 = vsel %vm1390, %v1386, %v1388
    %s1395 = scalar_lea.vmem [#allocation3], 508
    %1396 = vst [vmem:[%s1395] ss:$8 sm:$0xf] %v1391
    %1397 = vst [vmem:[%s1395] ss:$8 sm:$0xf0] %v1391
    %s1398 = scalar_lea.vmem [#allocation3], 572
    %1399 = vst.msk [vmem:[%s1398] ss:$8 sm:$0x1] %vm75, %v1392
    %1400 = vst.msk [vmem:[%s1398] ss:$8 sm:$0x0] %vm75, %v1392
    %v1401 = vld [vmem:[#allocation2] ss:$2 sm:$0xff]
    %v1402 = vld [vmem:[%s80] ss:$2 sm:$0x3]
    %1405 = vrot.lane.b32.xlu0 %v1401, 67
    %v1406 = vpop.permute.xlu0 %1405
    %1407 = vrot.lane.b32.xlu0 %v1402, 67
    %v1408 = vpop.permute.xlu0 %1407
    %v1409 = vrot.slane %v1406, 1
    %v1410 = vrot.slane %v1408, 1
    %v1411 = vsel %vm90, %v1409, %v1410
    %vm1412 = vcmask 547840
    %v1413 = vsel %vm1412, %v1406, %v1411
    %v1414 = vsel %vm1412, %v1408, %v1410
    %s1417 = scalar_lea.vmem [#allocation3], 509
    %1418 = vst [vmem:[%s1417] ss:$8 sm:$0xf] %v1413
    %1419 = vst [vmem:[%s1417] ss:$8 sm:$0xf0] %v1413
    %s1420 = scalar_lea.vmem [#allocation3], 573
    %1421 = vst.msk [vmem:[%s1420] ss:$8 sm:$0x1] %vm75, %v1414
    %1422 = vst.msk [vmem:[%s1420] ss:$8 sm:$0x0] %vm75, %v1414
    %v1423 = vld [vmem:[#allocation2] ss:$2 sm:$0xff]
    %v1424 = vld [vmem:[%s80] ss:$2 sm:$0x3]
    %1427 = vrot.lane.b32.xlu0 %v1423, 66
    %v1428 = vpop.permute.xlu0 %1427
    %1429 = vrot.lane.b32.xlu0 %v1424, 66
    %v1430 = vpop.permute.xlu0 %1429
    %v1431 = vrot.slane %v1428, 1
    %v1432 = vrot.slane %v1430, 1
    %v1433 = vsel %vm90, %v1431, %v1432
    %vm1434 = vcmask 539648
    %v1435 = vsel %vm1434, %v1428, %v1433
    %v1436 = vsel %vm1434, %v1430, %v1432
    %s1439 = scalar_lea.vmem [#allocation3], 510
    %1440 = vst [vmem:[%s1439] ss:$8 sm:$0xf] %v1435
    %1441 = vst [vmem:[%s1439] ss:$8 sm:$0xf0] %v1435
    %s1442 = scalar_lea.vmem [#allocation3], 574
    %1443 = vst.msk [vmem:[%s1442] ss:$8 sm:$0x1] %vm75, %v1436
    %1444 = vst.msk [vmem:[%s1442] ss:$8 sm:$0x0] %vm75, %v1436
    %v1445 = vld [vmem:[#allocation2] ss:$2 sm:$0xff]
    %v1446 = vld [vmem:[%s80] ss:$2 sm:$0x3]
    %1449 = vrot.lane.b32.xlu0 %v1445, 65
    %v1450 = vpop.permute.xlu0 %1449
    %1451 = vrot.lane.b32.xlu0 %v1446, 65
    %v1452 = vpop.permute.xlu0 %1451
    %v1453 = vrot.slane %v1450, 1
    %v1454 = vrot.slane %v1452, 1
    %v1455 = vsel %vm90, %v1453, %v1454
    %vm1456 = vcmask 531456
    %v1457 = vsel %vm1456, %v1450, %v1455
    %v1458 = vsel %vm1456, %v1452, %v1454
    %s1461 = scalar_lea.vmem [#allocation3], 511
    %1462 = vst [vmem:[%s1461] ss:$8 sm:$0xf] %v1457
    %1463 = vst [vmem:[%s1461] ss:$8 sm:$0xf0] %v1457
    %s1464 = scalar_lea.vmem [#allocation3], 575
    %1465 = vst.msk [vmem:[%s1464] ss:$8 sm:$0x1] %vm75, %v1458
    %1466 = vst.msk [vmem:[%s1464] ss:$8 sm:$0x0] %vm75, %v1458
    %v1467 = vld [vmem:[#allocation2] ss:$2 sm:$0xff]
    %v1468 = vld [vmem:[%s80] ss:$2 sm:$0x3]
    %1471 = vrot.lane.b32.xlu0 %v1467, 64
    %v1472 = vpop.permute.xlu0 %1471
    %1473 = vrot.lane.b32.xlu0 %v1468, 64
    %v1474 = vpop.permute.xlu0 %1473
    %v1475 = vrot.slane %v1472, 1
    %v1476 = vrot.slane %v1474, 1
    %v1477 = vsel %vm90, %v1475, %v1476
    %vm1478 = vcmask 523264
    %v1479 = vsel %vm1478, %v1472, %v1477
    %v1480 = vsel %vm1478, %v1474, %v1476
    %s1483 = scalar_lea.vmem [#allocation3], 576
    %1484 = vst [vmem:[%s1483] ss:$8 sm:$0xf] %v1479
    %1485 = vst [vmem:[%s1483] ss:$8 sm:$0xf0] %v1479
    %s1486 = scalar_lea.vmem [#allocation3], 640
    %1487 = vst.msk [vmem:[%s1486] ss:$8 sm:$0x1] %vm75, %v1480
    %1488 = vst.msk [vmem:[%s1486] ss:$8 sm:$0x0] %vm75, %v1480
    %v1489 = vld [vmem:[#allocation2] ss:$2 sm:$0xff]
    %v1490 = vld [vmem:[%s80] ss:$2 sm:$0x3]
    %1493 = vrot.lane.b32.xlu0 %v1489, 63
    %v1494 = vpop.permute.xlu0 %1493
    %1495 = vrot.lane.b32.xlu0 %v1490, 63
    %v1496 = vpop.permute.xlu0 %1495
    %v1497 = vrot.slane %v1494, 1
    %v1498 = vrot.slane %v1496, 1
    %v1499 = vsel %vm90, %v1497, %v1498
    %vm1500 = vcmask 515072
    %v1501 = vsel %vm1500, %v1494, %v1499
    %v1502 = vsel %vm1500, %v1496, %v1498
    %s1505 = scalar_lea.vmem [#allocation3], 577
    %1506 = vst [vmem:[%s1505] ss:$8 sm:$0xf] %v1501
    %1507 = vst [vmem:[%s1505] ss:$8 sm:$0xf0] %v1501
    %s1508 = scalar_lea.vmem [#allocation3], 641
    %1509 = vst.msk [vmem:[%s1508] ss:$8 sm:$0x1] %vm75, %v1502
    %1510 = vst.msk [vmem:[%s1508] ss:$8 sm:$0x0] %vm75, %v1502
    %v1511 = vld [vmem:[#allocation2] ss:$2 sm:$0xff]
    %v1512 = vld [vmem:[%s80] ss:$2 sm:$0x3]
    %1515 = vrot.lane.b32.xlu0 %v1511, 62
    %v1516 = vpop.permute.xlu0 %1515
    %1517 = vrot.lane.b32.xlu0 %v1512, 62
    %v1518 = vpop.permute.xlu0 %1517
    %v1519 = vrot.slane %v1516, 1
    %v1520 = vrot.slane %v1518, 1
    %v1521 = vsel %vm90, %v1519, %v1520
    %vm1522 = vcmask 506880
    %v1523 = vsel %vm1522, %v1516, %v1521
    %v1524 = vsel %vm1522, %v1518, %v1520
    %s1527 = scalar_lea.vmem [#allocation3], 578
    %1528 = vst [vmem:[%s1527] ss:$8 sm:$0xf] %v1523
    %1529 = vst [vmem:[%s1527] ss:$8 sm:$0xf0] %v1523
    %s1530 = scalar_lea.vmem [#allocation3], 642
    %1531 = vst.msk [vmem:[%s1530] ss:$8 sm:$0x1] %vm75, %v1524
    %1532 = vst.msk [vmem:[%s1530] ss:$8 sm:$0x0] %vm75, %v1524
    %v1533 = vld [vmem:[#allocation2] ss:$2 sm:$0xff]
    %v1534 = vld [vmem:[%s80] ss:$2 sm:$0x3]
    %1537 = vrot.lane.b32.xlu0 %v1533, 61
    %v1538 = vpop.permute.xlu0 %1537
    %1539 = vrot.lane.b32.xlu0 %v1534, 61
    %v1540 = vpop.permute.xlu0 %1539
    %v1541 = vrot.slane %v1538, 1
    %v1542 = vrot.slane %v1540, 1
    %v1543 = vsel %vm90, %v1541, %v1542
    %vm1544 = vcmask 498688
    %v1545 = vsel %vm1544, %v1538, %v1543
    %v1546 = vsel %vm1544, %v1540, %v1542
    %s1549 = scalar_lea.vmem [#allocation3], 579
    %1550 = vst [vmem:[%s1549] ss:$8 sm:$0xf] %v1545
    %1551 = vst [vmem:[%s1549] ss:$8 sm:$0xf0] %v1545
    %s1552 = scalar_lea.vmem [#allocation3], 643
    %1553 = vst.msk [vmem:[%s1552] ss:$8 sm:$0x1] %vm75, %v1546
    %1554 = vst.msk [vmem:[%s1552] ss:$8 sm:$0x0] %vm75, %v1546
    %v1555 = vld [vmem:[#allocation2] ss:$2 sm:$0xff]
    %v1556 = vld [vmem:[%s80] ss:$2 sm:$0x3]
    %1559 = vrot.lane.b32.xlu0 %v1555, 60
    %v1560 = vpop.permute.xlu0 %1559
    %1561 = vrot.lane.b32.xlu0 %v1556, 60
    %v1562 = vpop.permute.xlu0 %1561
    %v1563 = vrot.slane %v1560, 1
    %v1564 = vrot.slane %v1562, 1
    %v1565 = vsel %vm90, %v1563, %v1564
    %vm1566 = vcmask 490496
    %v1567 = vsel %vm1566, %v1560, %v1565
    %v1568 = vsel %vm1566, %v1562, %v1564
    %s1571 = scalar_lea.vmem [#allocation3], 580
    %1572 = vst [vmem:[%s1571] ss:$8 sm:$0xf] %v1567
    %1573 = vst [vmem:[%s1571] ss:$8 sm:$0xf0] %v1567
    %s1574 = scalar_lea.vmem [#allocation3], 644
    %1575 = vst.msk [vmem:[%s1574] ss:$8 sm:$0x1] %vm75, %v1568
    %1576 = vst.msk [vmem:[%s1574] ss:$8 sm:$0x0] %vm75, %v1568
    %v1577 = vld [vmem:[#allocation2] ss:$2 sm:$0xff]
    %v1578 = vld [vmem:[%s80] ss:$2 sm:$0x3]
    %1581 = vrot.lane.b32.xlu0 %v1577, 59
    %v1582 = vpop.permute.xlu0 %1581
    %1583 = vrot.lane.b32.xlu0 %v1578, 59
    %v1584 = vpop.permute.xlu0 %1583
    %v1585 = vrot.slane %v1582, 1
    %v1586 = vrot.slane %v1584, 1
    %v1587 = vsel %vm90, %v1585, %v1586
    %vm1588 = vcmask 482304
    %v1589 = vsel %vm1588, %v1582, %v1587
    %v1590 = vsel %vm1588, %v1584, %v1586
    %s1593 = scalar_lea.vmem [#allocation3], 581
    %1594 = vst [vmem:[%s1593] ss:$8 sm:$0xf] %v1589
    %1595 = vst [vmem:[%s1593] ss:$8 sm:$0xf0] %v1589
    %s1596 = scalar_lea.vmem [#allocation3], 645
    %1597 = vst.msk [vmem:[%s1596] ss:$8 sm:$0x1] %vm75, %v1590
    %1598 = vst.msk [vmem:[%s1596] ss:$8 sm:$0x0] %vm75, %v1590
    %v1599 = vld [vmem:[#allocation2] ss:$2 sm:$0xff]
    %v1600 = vld [vmem:[%s80] ss:$2 sm:$0x3]
    %1603 = vrot.lane.b32.xlu0 %v1599, 58
    %v1604 = vpop.permute.xlu0 %1603
    %1605 = vrot.lane.b32.xlu0 %v1600, 58
    %v1606 = vpop.permute.xlu0 %1605
    %v1607 = vrot.slane %v1604, 1
    %v1608 = vrot.slane %v1606, 1
    %v1609 = vsel %vm90, %v1607, %v1608
    %vm1610 = vcmask 474112
    %v1611 = vsel %vm1610, %v1604, %v1609
    %v1612 = vsel %vm1610, %v1606, %v1608
    %s1615 = scalar_lea.vmem [#allocation3], 582
    %1616 = vst [vmem:[%s1615] ss:$8 sm:$0xf] %v1611
    %1617 = vst [vmem:[%s1615] ss:$8 sm:$0xf0] %v1611
    %s1618 = scalar_lea.vmem [#allocation3], 646
    %1619 = vst.msk [vmem:[%s1618] ss:$8 sm:$0x1] %vm75, %v1612
    %1620 = vst.msk [vmem:[%s1618] ss:$8 sm:$0x0] %vm75, %v1612
    %v1621 = vld [vmem:[#allocation2] ss:$2 sm:$0xff]
    %v1622 = vld [vmem:[%s80] ss:$2 sm:$0x3]
    %1625 = vrot.lane.b32.xlu0 %v1621, 57
    %v1626 = vpop.permute.xlu0 %1625
    %1627 = vrot.lane.b32.xlu0 %v1622, 57
    %v1628 = vpop.permute.xlu0 %1627
    %v1629 = vrot.slane %v1626, 1
    %v1630 = vrot.slane %v1628, 1
    %v1631 = vsel %vm90, %v1629, %v1630
    %vm1632 = vcmask 465920
    %v1633 = vsel %vm1632, %v1626, %v1631
    %v1634 = vsel %vm1632, %v1628, %v1630
    %s1637 = scalar_lea.vmem [#allocation3], 583
    %1638 = vst [vmem:[%s1637] ss:$8 sm:$0xf] %v1633
    %1639 = vst [vmem:[%s1637] ss:$8 sm:$0xf0] %v1633
    %s1640 = scalar_lea.vmem [#allocation3], 647
    %1641 = vst.msk [vmem:[%s1640] ss:$8 sm:$0x1] %vm75, %v1634
    %1642 = vst.msk [vmem:[%s1640] ss:$8 sm:$0x0] %vm75, %v1634
    %v1643 = vld [vmem:[#allocation2] ss:$2 sm:$0xff]
    %v1644 = vld [vmem:[%s80] ss:$2 sm:$0x3]
    %1647 = vrot.lane.b32.xlu0 %v1643, 56
    %v1648 = vpop.permute.xlu0 %1647
    %1649 = vrot.lane.b32.xlu0 %v1644, 56
    %v1650 = vpop.permute.xlu0 %1649
    %v1651 = vrot.slane %v1648, 1
    %v1652 = vrot.slane %v1650, 1
    %v1653 = vsel %vm90, %v1651, %v1652
    %vm1654 = vcmask 457728
    %v1655 = vsel %vm1654, %v1648, %v1653
    %v1656 = vsel %vm1654, %v1650, %v1652
    %s1659 = scalar_lea.vmem [#allocation3], 648
    %1660 = vst [vmem:[%s1659] ss:$8 sm:$0xf] %v1655
    %1661 = vst [vmem:[%s1659] ss:$8 sm:$0xf0] %v1655
    %s1662 = scalar_lea.vmem [#allocation3], 712
    %1663 = vst.msk [vmem:[%s1662] ss:$8 sm:$0x1] %vm75, %v1656
    %1664 = vst.msk [vmem:[%s1662] ss:$8 sm:$0x0] %vm75, %v1656
    %v1665 = vld [vmem:[#allocation2] ss:$2 sm:$0xff]
    %v1666 = vld [vmem:[%s80] ss:$2 sm:$0x3]
    %1669 = vrot.lane.b32.xlu0 %v1665, 55
    %v1670 = vpop.permute.xlu0 %1669
    %1671 = vrot.lane.b32.xlu0 %v1666, 55
    %v1672 = vpop.permute.xlu0 %1671
    %v1673 = vrot.slane %v1670, 1
    %v1674 = vrot.slane %v1672, 1
    %v1675 = vsel %vm90, %v1673, %v1674
    %vm1676 = vcmask 449536
    %v1677 = vsel %vm1676, %v1670, %v1675
    %v1678 = vsel %vm1676, %v1672, %v1674
    %s1681 = scalar_lea.vmem [#allocation3], 649
    %1682 = vst [vmem:[%s1681] ss:$8 sm:$0xf] %v1677
    %1683 = vst [vmem:[%s1681] ss:$8 sm:$0xf0] %v1677
    %s1684 = scalar_lea.vmem [#allocation3], 713
    %1685 = vst.msk [vmem:[%s1684] ss:$8 sm:$0x1] %vm75, %v1678
    %1686 = vst.msk [vmem:[%s1684] ss:$8 sm:$0x0] %vm75, %v1678
    %v1687 = vld [vmem:[#allocation2] ss:$2 sm:$0xff]
    %v1688 = vld [vmem:[%s80] ss:$2 sm:$0x3]
    %1691 = vrot.lane.b32.xlu0 %v1687, 54
    %v1692 = vpop.permute.xlu0 %1691
    %1693 = vrot.lane.b32.xlu0 %v1688, 54
    %v1694 = vpop.permute.xlu0 %1693
    %v1695 = vrot.slane %v1692, 1
    %v1696 = vrot.slane %v1694, 1
    %v1697 = vsel %vm90, %v1695, %v1696
    %vm1698 = vcmask 441344
    %v1699 = vsel %vm1698, %v1692, %v1697
    %v1700 = vsel %vm1698, %v1694, %v1696
    %s1703 = scalar_lea.vmem [#allocation3], 650
    %1704 = vst [vmem:[%s1703] ss:$8 sm:$0xf] %v1699
    %1705 = vst [vmem:[%s1703] ss:$8 sm:$0xf0] %v1699
    %s1706 = scalar_lea.vmem [#allocation3], 714
    %1707 = vst.msk [vmem:[%s1706] ss:$8 sm:$0x1] %vm75, %v1700
    %1708 = vst.msk [vmem:[%s1706] ss:$8 sm:$0x0] %vm75, %v1700
    %v1709 = vld [vmem:[#allocation2] ss:$2 sm:$0xff]
    %v1710 = vld [vmem:[%s80] ss:$2 sm:$0x3]
    %1713 = vrot.lane.b32.xlu0 %v1709, 53
    %v1714 = vpop.permute.xlu0 %1713
    %1715 = vrot.lane.b32.xlu0 %v1710, 53
    %v1716 = vpop.permute.xlu0 %1715
    %v1717 = vrot.slane %v1714, 1
    %v1718 = vrot.slane %v1716, 1
    %v1719 = vsel %vm90, %v1717, %v1718
    %vm1720 = vcmask 433152
    %v1721 = vsel %vm1720, %v1714, %v1719
    %v1722 = vsel %vm1720, %v1716, %v1718
    %s1725 = scalar_lea.vmem [#allocation3], 651
    %1726 = vst [vmem:[%s1725] ss:$8 sm:$0xf] %v1721
    %1727 = vst [vmem:[%s1725] ss:$8 sm:$0xf0] %v1721
    %s1728 = scalar_lea.vmem [#allocation3], 715
    %1729 = vst.msk [vmem:[%s1728] ss:$8 sm:$0x1] %vm75, %v1722
    %1730 = vst.msk [vmem:[%s1728] ss:$8 sm:$0x0] %vm75, %v1722
    %v1731 = vld [vmem:[#allocation2] ss:$2 sm:$0xff]
    %v1732 = vld [vmem:[%s80] ss:$2 sm:$0x3]
    %1735 = vrot.lane.b32.xlu0 %v1731, 52
    %v1736 = vpop.permute.xlu0 %1735
    %1737 = vrot.lane.b32.xlu0 %v1732, 52
    %v1738 = vpop.permute.xlu0 %1737
    %v1739 = vrot.slane %v1736, 1
    %v1740 = vrot.slane %v1738, 1
    %v1741 = vsel %vm90, %v1739, %v1740
    %vm1742 = vcmask 424960
    %v1743 = vsel %vm1742, %v1736, %v1741
    %v1744 = vsel %vm1742, %v1738, %v1740
    %s1747 = scalar_lea.vmem [#allocation3], 652
    %1748 = vst [vmem:[%s1747] ss:$8 sm:$0xf] %v1743
    %1749 = vst [vmem:[%s1747] ss:$8 sm:$0xf0] %v1743
    %s1750 = scalar_lea.vmem [#allocation3], 716
    %1751 = vst.msk [vmem:[%s1750] ss:$8 sm:$0x1] %vm75, %v1744
    %1752 = vst.msk [vmem:[%s1750] ss:$8 sm:$0x0] %vm75, %v1744
    %v1753 = vld [vmem:[#allocation2] ss:$2 sm:$0xff]
    %v1754 = vld [vmem:[%s80] ss:$2 sm:$0x3]
    %1757 = vrot.lane.b32.xlu0 %v1753, 51
    %v1758 = vpop.permute.xlu0 %1757
    %1759 = vrot.lane.b32.xlu0 %v1754, 51
    %v1760 = vpop.permute.xlu0 %1759
    %v1761 = vrot.slane %v1758, 1
    %v1762 = vrot.slane %v1760, 1
    %v1763 = vsel %vm90, %v1761, %v1762
    %vm1764 = vcmask 416768
    %v1765 = vsel %vm1764, %v1758, %v1763
    %v1766 = vsel %vm1764, %v1760, %v1762
    %s1769 = scalar_lea.vmem [#allocation3], 653
    %1770 = vst [vmem:[%s1769] ss:$8 sm:$0xf] %v1765
    %1771 = vst [vmem:[%s1769] ss:$8 sm:$0xf0] %v1765
    %s1772 = scalar_lea.vmem [#allocation3], 717
    %1773 = vst.msk [vmem:[%s1772] ss:$8 sm:$0x1] %vm75, %v1766
    %1774 = vst.msk [vmem:[%s1772] ss:$8 sm:$0x0] %vm75, %v1766
    %v1775 = vld [vmem:[#allocation2] ss:$2 sm:$0xff]
    %v1776 = vld [vmem:[%s80] ss:$2 sm:$0x3]
    %1779 = vrot.lane.b32.xlu0 %v1775, 50
    %v1780 = vpop.permute.xlu0 %1779
    %1781 = vrot.lane.b32.xlu0 %v1776, 50
    %v1782 = vpop.permute.xlu0 %1781
    %v1783 = vrot.slane %v1780, 1
    %v1784 = vrot.slane %v1782, 1
    %v1785 = vsel %vm90, %v1783, %v1784
    %vm1786 = vcmask 408576
    %v1787 = vsel %vm1786, %v1780, %v1785
    %v1788 = vsel %vm1786, %v1782, %v1784
    %s1791 = scalar_lea.vmem [#allocation3], 654
    %1792 = vst [vmem:[%s1791] ss:$8 sm:$0xf] %v1787
    %1793 = vst [vmem:[%s1791] ss:$8 sm:$0xf0] %v1787
    %s1794 = scalar_lea.vmem [#allocation3], 718
    %1795 = vst.msk [vmem:[%s1794] ss:$8 sm:$0x1] %vm75, %v1788
    %1796 = vst.msk [vmem:[%s1794] ss:$8 sm:$0x0] %vm75, %v1788
    %v1797 = vld [vmem:[#allocation2] ss:$2 sm:$0xff]
    %v1798 = vld [vmem:[%s80] ss:$2 sm:$0x3]
    %1801 = vrot.lane.b32.xlu0 %v1797, 49
    %v1802 = vpop.permute.xlu0 %1801
    %1803 = vrot.lane.b32.xlu0 %v1798, 49
    %v1804 = vpop.permute.xlu0 %1803
    %v1805 = vrot.slane %v1802, 1
    %v1806 = vrot.slane %v1804, 1
    %v1807 = vsel %vm90, %v1805, %v1806
    %vm1808 = vcmask 400384
    %v1809 = vsel %vm1808, %v1802, %v1807
    %v1810 = vsel %vm1808, %v1804, %v1806
    %s1813 = scalar_lea.vmem [#allocation3], 655
    %1814 = vst [vmem:[%s1813] ss:$8 sm:$0xf] %v1809
    %1815 = vst [vmem:[%s1813] ss:$8 sm:$0xf0] %v1809
    %s1816 = scalar_lea.vmem [#allocation3], 719
    %1817 = vst.msk [vmem:[%s1816] ss:$8 sm:$0x1] %vm75, %v1810
    %1818 = vst.msk [vmem:[%s1816] ss:$8 sm:$0x0] %vm75, %v1810
    %v1819 = vld [vmem:[#allocation2] ss:$2 sm:$0xff]
    %v1820 = vld [vmem:[%s80] ss:$2 sm:$0x3]
    %1823 = vrot.lane.b32.xlu0 %v1819, 48
    %v1824 = vpop.permute.xlu0 %1823
    %1825 = vrot.lane.b32.xlu0 %v1820, 48
    %v1826 = vpop.permute.xlu0 %1825
    %v1827 = vrot.slane %v1824, 1
    %v1828 = vrot.slane %v1826, 1
    %v1829 = vsel %vm90, %v1827, %v1828
    %vm1830 = vcmask 392192
    %v1831 = vsel %vm1830, %v1824, %v1829
    %v1832 = vsel %vm1830, %v1826, %v1828
    %s1835 = scalar_lea.vmem [#allocation3], 720
    %1836 = vst [vmem:[%s1835] ss:$8 sm:$0xf] %v1831
    %1837 = vst [vmem:[%s1835] ss:$8 sm:$0xf0] %v1831
    %s1838 = scalar_lea.vmem [#allocation3], 784
    %1839 = vst.msk [vmem:[%s1838] ss:$8 sm:$0x1] %vm75, %v1832
    %1840 = vst.msk [vmem:[%s1838] ss:$8 sm:$0x0] %vm75, %v1832
    %v1841 = vld [vmem:[#allocation2] ss:$2 sm:$0xff]
    %v1842 = vld [vmem:[%s80] ss:$2 sm:$0x3]
    %1845 = vrot.lane.b32.xlu0 %v1841, 47
    %v1846 = vpop.permute.xlu0 %1845
    %1847 = vrot.lane.b32.xlu0 %v1842, 47
    %v1848 = vpop.permute.xlu0 %1847
    %v1849 = vrot.slane %v1846, 1
    %v1850 = vrot.slane %v1848, 1
    %v1851 = vsel %vm90, %v1849, %v1850
    %vm1852 = vcmask 384000
    %v1853 = vsel %vm1852, %v1846, %v1851
    %v1854 = vsel %vm1852, %v1848, %v1850
    %s1857 = scalar_lea.vmem [#allocation3], 721
    %1858 = vst [vmem:[%s1857] ss:$8 sm:$0xf] %v1853
    %1859 = vst [vmem:[%s1857] ss:$8 sm:$0xf0] %v1853
    %s1860 = scalar_lea.vmem [#allocation3], 785
    %1861 = vst.msk [vmem:[%s1860] ss:$8 sm:$0x1] %vm75, %v1854
    %1862 = vst.msk [vmem:[%s1860] ss:$8 sm:$0x0] %vm75, %v1854
    %v1863 = vld [vmem:[#allocation2] ss:$2 sm:$0xff]
    %v1864 = vld [vmem:[%s80] ss:$2 sm:$0x3]
    %1867 = vrot.lane.b32.xlu0 %v1863, 46
    %v1868 = vpop.permute.xlu0 %1867
    %1869 = vrot.lane.b32.xlu0 %v1864, 46
    %v1870 = vpop.permute.xlu0 %1869
    %v1871 = vrot.slane %v1868, 1
    %v1872 = vrot.slane %v1870, 1
    %v1873 = vsel %vm90, %v1871, %v1872
    %vm1874 = vcmask 375808
    %v1875 = vsel %vm1874, %v1868, %v1873
    %v1876 = vsel %vm1874, %v1870, %v1872
    %s1879 = scalar_lea.vmem [#allocation3], 722
    %1880 = vst [vmem:[%s1879] ss:$8 sm:$0xf] %v1875
    %1881 = vst [vmem:[%s1879] ss:$8 sm:$0xf0] %v1875
    %s1882 = scalar_lea.vmem [#allocation3], 786
    %1883 = vst.msk [vmem:[%s1882] ss:$8 sm:$0x1] %vm75, %v1876
    %1884 = vst.msk [vmem:[%s1882] ss:$8 sm:$0x0] %vm75, %v1876
    %v1885 = vld [vmem:[#allocation2] ss:$2 sm:$0xff]
    %v1886 = vld [vmem:[%s80] ss:$2 sm:$0x3]
    %1889 = vrot.lane.b32.xlu0 %v1885, 45
    %v1890 = vpop.permute.xlu0 %1889
    %1891 = vrot.lane.b32.xlu0 %v1886, 45
    %v1892 = vpop.permute.xlu0 %1891
    %v1893 = vrot.slane %v1890, 1
    %v1894 = vrot.slane %v1892, 1
    %v1895 = vsel %vm90, %v1893, %v1894
    %vm1896 = vcmask 367616
    %v1897 = vsel %vm1896, %v1890, %v1895
    %v1898 = vsel %vm1896, %v1892, %v1894
    %s1901 = scalar_lea.vmem [#allocation3], 723
    %1902 = vst [vmem:[%s1901] ss:$8 sm:$0xf] %v1897
    %1903 = vst [vmem:[%s1901] ss:$8 sm:$0xf0] %v1897
    %s1904 = scalar_lea.vmem [#allocation3], 787
    %1905 = vst.msk [vmem:[%s1904] ss:$8 sm:$0x1] %vm75, %v1898
    %1906 = vst.msk [vmem:[%s1904] ss:$8 sm:$0x0] %vm75, %v1898
    %v1907 = vld [vmem:[#allocation2] ss:$2 sm:$0xff]
    %v1908 = vld [vmem:[%s80] ss:$2 sm:$0x3]
    %1911 = vrot.lane.b32.xlu0 %v1907, 44
    %v1912 = vpop.permute.xlu0 %1911
    %1913 = vrot.lane.b32.xlu0 %v1908, 44
    %v1914 = vpop.permute.xlu0 %1913
    %v1915 = vrot.slane %v1912, 1
    %v1916 = vrot.slane %v1914, 1
    %v1917 = vsel %vm90, %v1915, %v1916
    %vm1918 = vcmask 359424
    %v1919 = vsel %vm1918, %v1912, %v1917
    %v1920 = vsel %vm1918, %v1914, %v1916
    %s1923 = scalar_lea.vmem [#allocation3], 724
    %1924 = vst [vmem:[%s1923] ss:$8 sm:$0xf] %v1919
    %1925 = vst [vmem:[%s1923] ss:$8 sm:$0xf0] %v1919
    %s1926 = scalar_lea.vmem [#allocation3], 788
    %1927 = vst.msk [vmem:[%s1926] ss:$8 sm:$0x1] %vm75, %v1920
    %1928 = vst.msk [vmem:[%s1926] ss:$8 sm:$0x0] %vm75, %v1920
    %v1929 = vld [vmem:[#allocation2] ss:$2 sm:$0xff]
    %v1930 = vld [vmem:[%s80] ss:$2 sm:$0x3]
    %1933 = vrot.lane.b32.xlu0 %v1929, 43
    %v1934 = vpop.permute.xlu0 %1933
    %1935 = vrot.lane.b32.xlu0 %v1930, 43
    %v1936 = vpop.permute.xlu0 %1935
    %v1937 = vrot.slane %v1934, 1
    %v1938 = vrot.slane %v1936, 1
    %v1939 = vsel %vm90, %v1937, %v1938
    %vm1940 = vcmask 351232
    %v1941 = vsel %vm1940, %v1934, %v1939
    %v1942 = vsel %vm1940, %v1936, %v1938
    %s1945 = scalar_lea.vmem [#allocation3], 725
    %1946 = vst [vmem:[%s1945] ss:$8 sm:$0xf] %v1941
    %1947 = vst [vmem:[%s1945] ss:$8 sm:$0xf0] %v1941
    %s1948 = scalar_lea.vmem [#allocation3], 789
    %1949 = vst.msk [vmem:[%s1948] ss:$8 sm:$0x1] %vm75, %v1942
    %1950 = vst.msk [vmem:[%s1948] ss:$8 sm:$0x0] %vm75, %v1942
    %v1951 = vld [vmem:[#allocation2] ss:$2 sm:$0xff]
    %v1952 = vld [vmem:[%s80] ss:$2 sm:$0x3]
    %1955 = vrot.lane.b32.xlu0 %v1951, 42
    %v1956 = vpop.permute.xlu0 %1955
    %1957 = vrot.lane.b32.xlu0 %v1952, 42
    %v1958 = vpop.permute.xlu0 %1957
    %v1959 = vrot.slane %v1956, 1
    %v1960 = vrot.slane %v1958, 1
    %v1961 = vsel %vm90, %v1959, %v1960
    %vm1962 = vcmask 343040
    %v1963 = vsel %vm1962, %v1956, %v1961
    %v1964 = vsel %vm1962, %v1958, %v1960
    %s1967 = scalar_lea.vmem [#allocation3], 726
    %1968 = vst [vmem:[%s1967] ss:$8 sm:$0xf] %v1963
    %1969 = vst [vmem:[%s1967] ss:$8 sm:$0xf0] %v1963
    %s1970 = scalar_lea.vmem [#allocation3], 790
    %1971 = vst.msk [vmem:[%s1970] ss:$8 sm:$0x1] %vm75, %v1964
    %1972 = vst.msk [vmem:[%s1970] ss:$8 sm:$0x0] %vm75, %v1964
    %v1973 = vld [vmem:[#allocation2] ss:$2 sm:$0xff]
    %v1974 = vld [vmem:[%s80] ss:$2 sm:$0x3]
    %1977 = vrot.lane.b32.xlu0 %v1973, 41
    %v1978 = vpop.permute.xlu0 %1977
    %1979 = vrot.lane.b32.xlu0 %v1974, 41
    %v1980 = vpop.permute.xlu0 %1979
    %v1981 = vrot.slane %v1978, 1
    %v1982 = vrot.slane %v1980, 1
    %v1983 = vsel %vm90, %v1981, %v1982
    %vm1984 = vcmask 334848
    %v1985 = vsel %vm1984, %v1978, %v1983
    %v1986 = vsel %vm1984, %v1980, %v1982
    %s1989 = scalar_lea.vmem [#allocation3], 727
    %1990 = vst [vmem:[%s1989] ss:$8 sm:$0xf] %v1985
    %1991 = vst [vmem:[%s1989] ss:$8 sm:$0xf0] %v1985
    %s1992 = scalar_lea.vmem [#allocation3], 791
    %1993 = vst.msk [vmem:[%s1992] ss:$8 sm:$0x1] %vm75, %v1986
    %1994 = vst.msk [vmem:[%s1992] ss:$8 sm:$0x0] %vm75, %v1986
    %v1995 = vld [vmem:[#allocation2] ss:$2 sm:$0xff]
    %v1996 = vld [vmem:[%s80] ss:$2 sm:$0x3]
    %1999 = vrot.lane.b32.xlu0 %v1995, 40
    %v2000 = vpop.permute.xlu0 %1999
    %2001 = vrot.lane.b32.xlu0 %v1996, 40
    %v2002 = vpop.permute.xlu0 %2001
    %v2003 = vrot.slane %v2000, 1
    %v2004 = vrot.slane %v2002, 1
    %v2005 = vsel %vm90, %v2003, %v2004
    %vm2006 = vcmask 326656
    %v2007 = vsel %vm2006, %v2000, %v2005
    %v2008 = vsel %vm2006, %v2002, %v2004
    %s2011 = scalar_lea.vmem [#allocation3], 792
    %2012 = vst [vmem:[%s2011] ss:$8 sm:$0xf] %v2007
    %2013 = vst [vmem:[%s2011] ss:$8 sm:$0xf0] %v2007
    %s2014 = scalar_lea.vmem [#allocation3], 856
    %2015 = vst.msk [vmem:[%s2014] ss:$8 sm:$0x1] %vm75, %v2008
    %2016 = vst.msk [vmem:[%s2014] ss:$8 sm:$0x0] %vm75, %v2008
    %v2017 = vld [vmem:[#allocation2] ss:$2 sm:$0xff]
    %v2018 = vld [vmem:[%s80] ss:$2 sm:$0x3]
    %2021 = vrot.lane.b32.xlu0 %v2017, 39
    %v2022 = vpop.permute.xlu0 %2021
    %2023 = vrot.lane.b32.xlu0 %v2018, 39
    %v2024 = vpop.permute.xlu0 %2023
    %v2025 = vrot.slane %v2022, 1
    %v2026 = vrot.slane %v2024, 1
    %v2027 = vsel %vm90, %v2025, %v2026
    %vm2028 = vcmask 318464
    %v2029 = vsel %vm2028, %v2022, %v2027
    %v2030 = vsel %vm2028, %v2024, %v2026
    %s2033 = scalar_lea.vmem [#allocation3], 793
    %2034 = vst [vmem:[%s2033] ss:$8 sm:$0xf] %v2029
    %2035 = vst [vmem:[%s2033] ss:$8 sm:$0xf0] %v2029
    %s2036 = scalar_lea.vmem [#allocation3], 857
    %2037 = vst.msk [vmem:[%s2036] ss:$8 sm:$0x1] %vm75, %v2030
    %2038 = vst.msk [vmem:[%s2036] ss:$8 sm:$0x0] %vm75, %v2030
    %v2039 = vld [vmem:[#allocation2] ss:$2 sm:$0xff]
    %v2040 = vld [vmem:[%s80] ss:$2 sm:$0x3]
    %2043 = vrot.lane.b32.xlu0 %v2039, 38
    %v2044 = vpop.permute.xlu0 %2043
    %2045 = vrot.lane.b32.xlu0 %v2040, 38
    %v2046 = vpop.permute.xlu0 %2045
    %v2047 = vrot.slane %v2044, 1
    %v2048 = vrot.slane %v2046, 1
    %v2049 = vsel %vm90, %v2047, %v2048
    %vm2050 = vcmask 310272
    %v2051 = vsel %vm2050, %v2044, %v2049
    %v2052 = vsel %vm2050, %v2046, %v2048
    %s2055 = scalar_lea.vmem [#allocation3], 794
    %2056 = vst [vmem:[%s2055] ss:$8 sm:$0xf] %v2051
    %2057 = vst [vmem:[%s2055] ss:$8 sm:$0xf0] %v2051
    %s2058 = scalar_lea.vmem [#allocation3], 858
    %2059 = vst.msk [vmem:[%s2058] ss:$8 sm:$0x1] %vm75, %v2052
    %2060 = vst.msk [vmem:[%s2058] ss:$8 sm:$0x0] %vm75, %v2052
    %v2061 = vld [vmem:[#allocation2] ss:$2 sm:$0xff]
    %v2062 = vld [vmem:[%s80] ss:$2 sm:$0x3]
    %2065 = vrot.lane.b32.xlu0 %v2061, 37
    %v2066 = vpop.permute.xlu0 %2065
    %2067 = vrot.lane.b32.xlu0 %v2062, 37
    %v2068 = vpop.permute.xlu0 %2067
    %v2069 = vrot.slane %v2066, 1
    %v2070 = vrot.slane %v2068, 1
    %v2071 = vsel %vm90, %v2069, %v2070
    %vm2072 = vcmask 302080
    %v2073 = vsel %vm2072, %v2066, %v2071
    %v2074 = vsel %vm2072, %v2068, %v2070
    %s2077 = scalar_lea.vmem [#allocation3], 795
    %2078 = vst [vmem:[%s2077] ss:$8 sm:$0xf] %v2073
    %2079 = vst [vmem:[%s2077] ss:$8 sm:$0xf0] %v2073
    %s2080 = scalar_lea.vmem [#allocation3], 859
    %2081 = vst.msk [vmem:[%s2080] ss:$8 sm:$0x1] %vm75, %v2074
    %2082 = vst.msk [vmem:[%s2080] ss:$8 sm:$0x0] %vm75, %v2074
    %v2083 = vld [vmem:[#allocation2] ss:$2 sm:$0xff]
    %v2084 = vld [vmem:[%s80] ss:$2 sm:$0x3]
    %2087 = vrot.lane.b32.xlu0 %v2083, 36
    %v2088 = vpop.permute.xlu0 %2087
    %2089 = vrot.lane.b32.xlu0 %v2084, 36
    %v2090 = vpop.permute.xlu0 %2089
    %v2091 = vrot.slane %v2088, 1
    %v2092 = vrot.slane %v2090, 1
    %v2093 = vsel %vm90, %v2091, %v2092
    %vm2094 = vcmask 293888
    %v2095 = vsel %vm2094, %v2088, %v2093
    %v2096 = vsel %vm2094, %v2090, %v2092
    %s2099 = scalar_lea.vmem [#allocation3], 796
    %2100 = vst [vmem:[%s2099] ss:$8 sm:$0xf] %v2095
    %2101 = vst [vmem:[%s2099] ss:$8 sm:$0xf0] %v2095
    %s2102 = scalar_lea.vmem [#allocation3], 860
    %2103 = vst.msk [vmem:[%s2102] ss:$8 sm:$0x1] %vm75, %v2096
    %2104 = vst.msk [vmem:[%s2102] ss:$8 sm:$0x0] %vm75, %v2096
    %v2105 = vld [vmem:[#allocation2] ss:$2 sm:$0xff]
    %v2106 = vld [vmem:[%s80] ss:$2 sm:$0x3]
    %2109 = vrot.lane.b32.xlu0 %v2105, 35
    %v2110 = vpop.permute.xlu0 %2109
    %2111 = vrot.lane.b32.xlu0 %v2106, 35
    %v2112 = vpop.permute.xlu0 %2111
    %v2113 = vrot.slane %v2110, 1
    %v2114 = vrot.slane %v2112, 1
    %v2115 = vsel %vm90, %v2113, %v2114
    %vm2116 = vcmask 285696
    %v2117 = vsel %vm2116, %v2110, %v2115
    %v2118 = vsel %vm2116, %v2112, %v2114
    %s2121 = scalar_lea.vmem [#allocation3], 797
    %2122 = vst [vmem:[%s2121] ss:$8 sm:$0xf] %v2117
    %2123 = vst [vmem:[%s2121] ss:$8 sm:$0xf0] %v2117
    %s2124 = scalar_lea.vmem [#allocation3], 861
    %2125 = vst.msk [vmem:[%s2124] ss:$8 sm:$0x1] %vm75, %v2118
    %2126 = vst.msk [vmem:[%s2124] ss:$8 sm:$0x0] %vm75, %v2118
    %v2127 = vld [vmem:[#allocation2] ss:$2 sm:$0xff]
    %v2128 = vld [vmem:[%s80] ss:$2 sm:$0x3]
    %2131 = vrot.lane.b32.xlu0 %v2127, 34
    %v2132 = vpop.permute.xlu0 %2131
    %2133 = vrot.lane.b32.xlu0 %v2128, 34
    %v2134 = vpop.permute.xlu0 %2133
    %v2135 = vrot.slane %v2132, 1
    %v2136 = vrot.slane %v2134, 1
    %v2137 = vsel %vm90, %v2135, %v2136
    %vm2138 = vcmask 277504
    %v2139 = vsel %vm2138, %v2132, %v2137
    %v2140 = vsel %vm2138, %v2134, %v2136
    %s2143 = scalar_lea.vmem [#allocation3], 798
    %2144 = vst [vmem:[%s2143] ss:$8 sm:$0xf] %v2139
    %2145 = vst [vmem:[%s2143] ss:$8 sm:$0xf0] %v2139
    %s2146 = scalar_lea.vmem [#allocation3], 862
    %2147 = vst.msk [vmem:[%s2146] ss:$8 sm:$0x1] %vm75, %v2140
    %2148 = vst.msk [vmem:[%s2146] ss:$8 sm:$0x0] %vm75, %v2140
    %v2149 = vld [vmem:[#allocation2] ss:$2 sm:$0xff]
    %v2150 = vld [vmem:[%s80] ss:$2 sm:$0x3]
    %2153 = vrot.lane.b32.xlu0 %v2149, 33
    %v2154 = vpop.permute.xlu0 %2153
    %2155 = vrot.lane.b32.xlu0 %v2150, 33
    %v2156 = vpop.permute.xlu0 %2155
    %v2157 = vrot.slane %v2154, 1
    %v2158 = vrot.slane %v2156, 1
    %v2159 = vsel %vm90, %v2157, %v2158
    %vm2160 = vcmask 269312
    %v2161 = vsel %vm2160, %v2154, %v2159
    %v2162 = vsel %vm2160, %v2156, %v2158
    %s2165 = scalar_lea.vmem [#allocation3], 799
    %2166 = vst [vmem:[%s2165] ss:$8 sm:$0xf] %v2161
    %2167 = vst [vmem:[%s2165] ss:$8 sm:$0xf0] %v2161
    %s2168 = scalar_lea.vmem [#allocation3], 863
    %2169 = vst.msk [vmem:[%s2168] ss:$8 sm:$0x1] %vm75, %v2162
    %2170 = vst.msk [vmem:[%s2168] ss:$8 sm:$0x0] %vm75, %v2162
    %v2171 = vld [vmem:[#allocation2] ss:$2 sm:$0xff]
    %v2172 = vld [vmem:[%s80] ss:$2 sm:$0x3]
    %2175 = vrot.lane.b32.xlu0 %v2171, 32
    %v2176 = vpop.permute.xlu0 %2175
    %2177 = vrot.lane.b32.xlu0 %v2172, 32
    %v2178 = vpop.permute.xlu0 %2177
    %v2179 = vrot.slane %v2176, 1
    %v2180 = vrot.slane %v2178, 1
    %v2181 = vsel %vm90, %v2179, %v2180
    %vm2182 = vcmask 261120
    %v2183 = vsel %vm2182, %v2176, %v2181
    %v2184 = vsel %vm2182, %v2178, %v2180
    %s2187 = scalar_lea.vmem [#allocation3], 864
    %2188 = vst [vmem:[%s2187] ss:$8 sm:$0xf] %v2183
    %2189 = vst [vmem:[%s2187] ss:$8 sm:$0xf0] %v2183
    %s2190 = scalar_lea.vmem [#allocation3], 928
    %2191 = vst.msk [vmem:[%s2190] ss:$8 sm:$0x1] %vm75, %v2184
    %2192 = vst.msk [vmem:[%s2190] ss:$8 sm:$0x0] %vm75, %v2184
    %v2193 = vld [vmem:[#allocation2] ss:$2 sm:$0xff]
    %v2194 = vld [vmem:[%s80] ss:$2 sm:$0x3]
    %2197 = vrot.lane.b32.xlu0 %v2193, 31
    %v2198 = vpop.permute.xlu0 %2197
    %2199 = vrot.lane.b32.xlu0 %v2194, 31
    %v2200 = vpop.permute.xlu0 %2199
    %v2201 = vrot.slane %v2198, 1
    %v2202 = vrot.slane %v2200, 1
    %v2203 = vsel %vm90, %v2201, %v2202
    %vm2204 = vcmask 252928
    %v2205 = vsel %vm2204, %v2198, %v2203
    %v2206 = vsel %vm2204, %v2200, %v2202
    %s2209 = scalar_lea.vmem [#allocation3], 865
    %2210 = vst [vmem:[%s2209] ss:$8 sm:$0xf] %v2205
    %2211 = vst [vmem:[%s2209] ss:$8 sm:$0xf0] %v2205
    %s2212 = scalar_lea.vmem [#allocation3], 929
    %2213 = vst.msk [vmem:[%s2212] ss:$8 sm:$0x1] %vm75, %v2206
    %2214 = vst.msk [vmem:[%s2212] ss:$8 sm:$0x0] %vm75, %v2206
    %v2215 = vld [vmem:[#allocation2] ss:$2 sm:$0xff]
    %v2216 = vld [vmem:[%s80] ss:$2 sm:$0x3]
    %2219 = vrot.lane.b32.xlu0 %v2215, 30
    %v2220 = vpop.permute.xlu0 %2219
    %2221 = vrot.lane.b32.xlu0 %v2216, 30
    %v2222 = vpop.permute.xlu0 %2221
    %v2223 = vrot.slane %v2220, 1
    %v2224 = vrot.slane %v2222, 1
    %v2225 = vsel %vm90, %v2223, %v2224
    %vm2226 = vcmask 244736
    %v2227 = vsel %vm2226, %v2220, %v2225
    %v2228 = vsel %vm2226, %v2222, %v2224
    %s2231 = scalar_lea.vmem [#allocation3], 866
    %2232 = vst [vmem:[%s2231] ss:$8 sm:$0xf] %v2227
    %2233 = vst [vmem:[%s2231] ss:$8 sm:$0xf0] %v2227
    %s2234 = scalar_lea.vmem [#allocation3], 930
    %2235 = vst.msk [vmem:[%s2234] ss:$8 sm:$0x1] %vm75, %v2228
    %2236 = vst.msk [vmem:[%s2234] ss:$8 sm:$0x0] %vm75, %v2228
    %v2237 = vld [vmem:[#allocation2] ss:$2 sm:$0xff]
    %v2238 = vld [vmem:[%s80] ss:$2 sm:$0x3]
    %2241 = vrot.lane.b32.xlu0 %v2237, 29
    %v2242 = vpop.permute.xlu0 %2241
    %2243 = vrot.lane.b32.xlu0 %v2238, 29
    %v2244 = vpop.permute.xlu0 %2243
    %v2245 = vrot.slane %v2242, 1
    %v2246 = vrot.slane %v2244, 1
    %v2247 = vsel %vm90, %v2245, %v2246
    %vm2248 = vcmask 236544
    %v2249 = vsel %vm2248, %v2242, %v2247
    %v2250 = vsel %vm2248, %v2244, %v2246
    %s2253 = scalar_lea.vmem [#allocation3], 867
    %2254 = vst [vmem:[%s2253] ss:$8 sm:$0xf] %v2249
    %2255 = vst [vmem:[%s2253] ss:$8 sm:$0xf0] %v2249
    %s2256 = scalar_lea.vmem [#allocation3], 931
    %2257 = vst.msk [vmem:[%s2256] ss:$8 sm:$0x1] %vm75, %v2250
    %2258 = vst.msk [vmem:[%s2256] ss:$8 sm:$0x0] %vm75, %v2250
    %v2259 = vld [vmem:[#allocation2] ss:$2 sm:$0xff]
    %v2260 = vld [vmem:[%s80] ss:$2 sm:$0x3]
    %2263 = vrot.lane.b32.xlu0 %v2259, 28
    %v2264 = vpop.permute.xlu0 %2263
    %2265 = vrot.lane.b32.xlu0 %v2260, 28
    %v2266 = vpop.permute.xlu0 %2265
    %v2267 = vrot.slane %v2264, 1
    %v2268 = vrot.slane %v2266, 1
    %v2269 = vsel %vm90, %v2267, %v2268
    %vm2270 = vcmask 228352
    %v2271 = vsel %vm2270, %v2264, %v2269
    %v2272 = vsel %vm2270, %v2266, %v2268
    %s2275 = scalar_lea.vmem [#allocation3], 868
    %2276 = vst [vmem:[%s2275] ss:$8 sm:$0xf] %v2271
    %2277 = vst [vmem:[%s2275] ss:$8 sm:$0xf0] %v2271
    %s2278 = scalar_lea.vmem [#allocation3], 932
    %2279 = vst.msk [vmem:[%s2278] ss:$8 sm:$0x1] %vm75, %v2272
    %2280 = vst.msk [vmem:[%s2278] ss:$8 sm:$0x0] %vm75, %v2272
    %v2281 = vld [vmem:[#allocation2] ss:$2 sm:$0xff]
    %v2282 = vld [vmem:[%s80] ss:$2 sm:$0x3]
    %2285 = vrot.lane.b32.xlu0 %v2281, 27
    %v2286 = vpop.permute.xlu0 %2285
    %2287 = vrot.lane.b32.xlu0 %v2282, 27
    %v2288 = vpop.permute.xlu0 %2287
    %v2289 = vrot.slane %v2286, 1
    %v2290 = vrot.slane %v2288, 1
    %v2291 = vsel %vm90, %v2289, %v2290
    %vm2292 = vcmask 220160
    %v2293 = vsel %vm2292, %v2286, %v2291
    %v2294 = vsel %vm2292, %v2288, %v2290
    %s2297 = scalar_lea.vmem [#allocation3], 869
    %2298 = vst [vmem:[%s2297] ss:$8 sm:$0xf] %v2293
    %2299 = vst [vmem:[%s2297] ss:$8 sm:$0xf0] %v2293
    %s2300 = scalar_lea.vmem [#allocation3], 933
    %2301 = vst.msk [vmem:[%s2300] ss:$8 sm:$0x1] %vm75, %v2294
    %2302 = vst.msk [vmem:[%s2300] ss:$8 sm:$0x0] %vm75, %v2294
    %v2303 = vld [vmem:[#allocation2] ss:$2 sm:$0xff]
    %v2304 = vld [vmem:[%s80] ss:$2 sm:$0x3]
    %2307 = vrot.lane.b32.xlu0 %v2303, 26
    %v2308 = vpop.permute.xlu0 %2307
    %2309 = vrot.lane.b32.xlu0 %v2304, 26
    %v2310 = vpop.permute.xlu0 %2309
    %v2311 = vrot.slane %v2308, 1
    %v2312 = vrot.slane %v2310, 1
    %v2313 = vsel %vm90, %v2311, %v2312
    %vm2314 = vcmask 211968
    %v2315 = vsel %vm2314, %v2308, %v2313
    %v2316 = vsel %vm2314, %v2310, %v2312
    %s2319 = scalar_lea.vmem [#allocation3], 870
    %2320 = vst [vmem:[%s2319] ss:$8 sm:$0xf] %v2315
    %2321 = vst [vmem:[%s2319] ss:$8 sm:$0xf0] %v2315
    %s2322 = scalar_lea.vmem [#allocation3], 934
    %2323 = vst.msk [vmem:[%s2322] ss:$8 sm:$0x1] %vm75, %v2316
    %2324 = vst.msk [vmem:[%s2322] ss:$8 sm:$0x0] %vm75, %v2316
    %v2325 = vld [vmem:[#allocation2] ss:$2 sm:$0xff]
    %v2326 = vld [vmem:[%s80] ss:$2 sm:$0x3]
    %2329 = vrot.lane.b32.xlu0 %v2325, 25
    %v2330 = vpop.permute.xlu0 %2329
    %2331 = vrot.lane.b32.xlu0 %v2326, 25
    %v2332 = vpop.permute.xlu0 %2331
    %v2333 = vrot.slane %v2330, 1
    %v2334 = vrot.slane %v2332, 1
    %v2335 = vsel %vm90, %v2333, %v2334
    %vm2336 = vcmask 203776
    %v2337 = vsel %vm2336, %v2330, %v2335
    %v2338 = vsel %vm2336, %v2332, %v2334
    %s2341 = scalar_lea.vmem [#allocation3], 871
    %2342 = vst [vmem:[%s2341] ss:$8 sm:$0xf] %v2337
    %2343 = vst [vmem:[%s2341] ss:$8 sm:$0xf0] %v2337
    %s2344 = scalar_lea.vmem [#allocation3], 935
    %2345 = vst.msk [vmem:[%s2344] ss:$8 sm:$0x1] %vm75, %v2338
    %2346 = vst.msk [vmem:[%s2344] ss:$8 sm:$0x0] %vm75, %v2338
    %v2347 = vld [vmem:[#allocation2] ss:$2 sm:$0xff]
    %v2348 = vld [vmem:[%s80] ss:$2 sm:$0x3]
    %2351 = vrot.lane.b32.xlu0 %v2347, 24
    %v2352 = vpop.permute.xlu0 %2351
    %2353 = vrot.lane.b32.xlu0 %v2348, 24
    %v2354 = vpop.permute.xlu0 %2353
    %v2355 = vrot.slane %v2352, 1
    %v2356 = vrot.slane %v2354, 1
    %v2357 = vsel %vm90, %v2355, %v2356
    %vm2358 = vcmask 195584
    %v2359 = vsel %vm2358, %v2352, %v2357
    %v2360 = vsel %vm2358, %v2354, %v2356
    %s2363 = scalar_lea.vmem [#allocation3], 936
    %2364 = vst [vmem:[%s2363] ss:$8 sm:$0xf] %v2359
    %2365 = vst [vmem:[%s2363] ss:$8 sm:$0xf0] %v2359
    %s2366 = scalar_lea.vmem [#allocation3], 1000
    %2367 = vst.msk [vmem:[%s2366] ss:$8 sm:$0x1] %vm75, %v2360
    %2368 = vst.msk [vmem:[%s2366] ss:$8 sm:$0x0] %vm75, %v2360
    %v2369 = vld [vmem:[#allocation2] ss:$2 sm:$0xff]
    %v2370 = vld [vmem:[%s80] ss:$2 sm:$0x3]
    %2373 = vrot.lane.b32.xlu0 %v2369, 23
    %v2374 = vpop.permute.xlu0 %2373
    %2375 = vrot.lane.b32.xlu0 %v2370, 23
    %v2376 = vpop.permute.xlu0 %2375
    %v2377 = vrot.slane %v2374, 1
    %v2378 = vrot.slane %v2376, 1
    %v2379 = vsel %vm90, %v2377, %v2378
    %vm2380 = vcmask 187392
    %v2381 = vsel %vm2380, %v2374, %v2379
    %v2382 = vsel %vm2380, %v2376, %v2378
    %s2385 = scalar_lea.vmem [#allocation3], 937
    %2386 = vst [vmem:[%s2385] ss:$8 sm:$0xf] %v2381
    %2387 = vst [vmem:[%s2385] ss:$8 sm:$0xf0] %v2381
    %s2388 = scalar_lea.vmem [#allocation3], 1001
    %2389 = vst.msk [vmem:[%s2388] ss:$8 sm:$0x1] %vm75, %v2382
    %2390 = vst.msk [vmem:[%s2388] ss:$8 sm:$0x0] %vm75, %v2382
    %v2391 = vld [vmem:[#allocation2] ss:$2 sm:$0xff]
    %v2392 = vld [vmem:[%s80] ss:$2 sm:$0x3]
    %2395 = vrot.lane.b32.xlu0 %v2391, 22
    %v2396 = vpop.permute.xlu0 %2395
    %2397 = vrot.lane.b32.xlu0 %v2392, 22
    %v2398 = vpop.permute.xlu0 %2397
    %v2399 = vrot.slane %v2396, 1
    %v2400 = vrot.slane %v2398, 1
    %v2401 = vsel %vm90, %v2399, %v2400
    %vm2402 = vcmask 179200
    %v2403 = vsel %vm2402, %v2396, %v2401
    %v2404 = vsel %vm2402, %v2398, %v2400
    %s2407 = scalar_lea.vmem [#allocation3], 938
    %2408 = vst [vmem:[%s2407] ss:$8 sm:$0xf] %v2403
    %2409 = vst [vmem:[%s2407] ss:$8 sm:$0xf0] %v2403
    %s2410 = scalar_lea.vmem [#allocation3], 1002
    %2411 = vst.msk [vmem:[%s2410] ss:$8 sm:$0x1] %vm75, %v2404
    %2412 = vst.msk [vmem:[%s2410] ss:$8 sm:$0x0] %vm75, %v2404
    %v2413 = vld [vmem:[#allocation2] ss:$2 sm:$0xff]
    %v2414 = vld [vmem:[%s80] ss:$2 sm:$0x3]
    %2417 = vrot.lane.b32.xlu0 %v2413, 21
    %v2418 = vpop.permute.xlu0 %2417
    %2419 = vrot.lane.b32.xlu0 %v2414, 21
    %v2420 = vpop.permute.xlu0 %2419
    %v2421 = vrot.slane %v2418, 1
    %v2422 = vrot.slane %v2420, 1
    %v2423 = vsel %vm90, %v2421, %v2422
    %vm2424 = vcmask 171008
    %v2425 = vsel %vm2424, %v2418, %v2423
    %v2426 = vsel %vm2424, %v2420, %v2422
    %s2429 = scalar_lea.vmem [#allocation3], 939
    %2430 = vst [vmem:[%s2429] ss:$8 sm:$0xf] %v2425
    %2431 = vst [vmem:[%s2429] ss:$8 sm:$0xf0] %v2425
    %s2432 = scalar_lea.vmem [#allocation3], 1003
    %2433 = vst.msk [vmem:[%s2432] ss:$8 sm:$0x1] %vm75, %v2426
    %2434 = vst.msk [vmem:[%s2432] ss:$8 sm:$0x0] %vm75, %v2426
    %v2435 = vld [vmem:[#allocation2] ss:$2 sm:$0xff]
    %v2436 = vld [vmem:[%s80] ss:$2 sm:$0x3]
    %2439 = vrot.lane.b32.xlu0 %v2435, 20
    %v2440 = vpop.permute.xlu0 %2439
    %2441 = vrot.lane.b32.xlu0 %v2436, 20
    %v2442 = vpop.permute.xlu0 %2441
    %v2443 = vrot.slane %v2440, 1
    %v2444 = vrot.slane %v2442, 1
    %v2445 = vsel %vm90, %v2443, %v2444
    %vm2446 = vcmask 162816
    %v2447 = vsel %vm2446, %v2440, %v2445
    %v2448 = vsel %vm2446, %v2442, %v2444
    %s2451 = scalar_lea.vmem [#allocation3], 940
    %2452 = vst [vmem:[%s2451] ss:$8 sm:$0xf] %v2447
    %2453 = vst [vmem:[%s2451] ss:$8 sm:$0xf0] %v2447
    %s2454 = scalar_lea.vmem [#allocation3], 1004
    %2455 = vst.msk [vmem:[%s2454] ss:$8 sm:$0x1] %vm75, %v2448
    %2456 = vst.msk [vmem:[%s2454] ss:$8 sm:$0x0] %vm75, %v2448
    %v2457 = vld [vmem:[#allocation2] ss:$2 sm:$0xff]
    %v2458 = vld [vmem:[%s80] ss:$2 sm:$0x3]
    %2461 = vrot.lane.b32.xlu0 %v2457, 19
    %v2462 = vpop.permute.xlu0 %2461
    %2463 = vrot.lane.b32.xlu0 %v2458, 19
    %v2464 = vpop.permute.xlu0 %2463
    %v2465 = vrot.slane %v2462, 1
    %v2466 = vrot.slane %v2464, 1
    %v2467 = vsel %vm90, %v2465, %v2466
    %vm2468 = vcmask 154624
    %v2469 = vsel %vm2468, %v2462, %v2467
    %v2470 = vsel %vm2468, %v2464, %v2466
    %s2473 = scalar_lea.vmem [#allocation3], 941
    %2474 = vst [vmem:[%s2473] ss:$8 sm:$0xf] %v2469
    %2475 = vst [vmem:[%s2473] ss:$8 sm:$0xf0] %v2469
    %s2476 = scalar_lea.vmem [#allocation3], 1005
    %2477 = vst.msk [vmem:[%s2476] ss:$8 sm:$0x1] %vm75, %v2470
    %2478 = vst.msk [vmem:[%s2476] ss:$8 sm:$0x0] %vm75, %v2470
    %v2479 = vld [vmem:[#allocation2] ss:$2 sm:$0xff]
    %v2480 = vld [vmem:[%s80] ss:$2 sm:$0x3]
    %2483 = vrot.lane.b32.xlu0 %v2479, 18
    %v2484 = vpop.permute.xlu0 %2483
    %2485 = vrot.lane.b32.xlu0 %v2480, 18
    %v2486 = vpop.permute.xlu0 %2485
    %v2487 = vrot.slane %v2484, 1
    %v2488 = vrot.slane %v2486, 1
    %v2489 = vsel %vm90, %v2487, %v2488
    %vm2490 = vcmask 146432
    %v2491 = vsel %vm2490, %v2484, %v2489
    %v2492 = vsel %vm2490, %v2486, %v2488
    %s2495 = scalar_lea.vmem [#allocation3], 942
    %2496 = vst [vmem:[%s2495] ss:$8 sm:$0xf] %v2491
    %2497 = vst [vmem:[%s2495] ss:$8 sm:$0xf0] %v2491
    %s2498 = scalar_lea.vmem [#allocation3], 1006
    %2499 = vst.msk [vmem:[%s2498] ss:$8 sm:$0x1] %vm75, %v2492
    %2500 = vst.msk [vmem:[%s2498] ss:$8 sm:$0x0] %vm75, %v2492
    %v2501 = vld [vmem:[#allocation2] ss:$2 sm:$0xff]
    %v2502 = vld [vmem:[%s80] ss:$2 sm:$0x3]
    %2505 = vrot.lane.b32.xlu0 %v2501, 17
    %v2506 = vpop.permute.xlu0 %2505
    %2507 = vrot.lane.b32.xlu0 %v2502, 17
    %v2508 = vpop.permute.xlu0 %2507
    %v2509 = vrot.slane %v2506, 1
    %v2510 = vrot.slane %v2508, 1
    %v2511 = vsel %vm90, %v2509, %v2510
    %vm2512 = vcmask 138240
    %v2513 = vsel %vm2512, %v2506, %v2511
    %v2514 = vsel %vm2512, %v2508, %v2510
    %s2517 = scalar_lea.vmem [#allocation3], 943
    %2518 = vst [vmem:[%s2517] ss:$8 sm:$0xf] %v2513
    %2519 = vst [vmem:[%s2517] ss:$8 sm:$0xf0] %v2513
    %s2520 = scalar_lea.vmem [#allocation3], 1007
    %2521 = vst.msk [vmem:[%s2520] ss:$8 sm:$0x1] %vm75, %v2514
    %2522 = vst.msk [vmem:[%s2520] ss:$8 sm:$0x0] %vm75, %v2514
    %v2523 = vld [vmem:[#allocation2] ss:$2 sm:$0xff]
    %v2524 = vld [vmem:[%s80] ss:$2 sm:$0x3]
    %2527 = vrot.lane.b32.xlu0 %v2523, 16
    %v2528 = vpop.permute.xlu0 %2527
    %2529 = vrot.lane.b32.xlu0 %v2524, 16
    %v2530 = vpop.permute.xlu0 %2529
    %v2531 = vrot.slane %v2528, 1
    %v2532 = vrot.slane %v2530, 1
    %v2533 = vsel %vm90, %v2531, %v2532
    %vm2534 = vcmask 130048
    %v2535 = vsel %vm2534, %v2528, %v2533
    %v2536 = vsel %vm2534, %v2530, %v2532
    %s2539 = scalar_lea.vmem [#allocation3], 1008
    %2540 = vst [vmem:[%s2539] ss:$8 sm:$0xf] %v2535
    %2541 = vst [vmem:[%s2539] ss:$8 sm:$0xf0] %v2535
    %s2542 = scalar_lea.vmem [#allocation3], 1072
    %2543 = vst.msk [vmem:[%s2542] ss:$8 sm:$0x1] %vm75, %v2536
    %2544 = vst.msk [vmem:[%s2542] ss:$8 sm:$0x0] %vm75, %v2536
    %v2545 = vld [vmem:[#allocation2] ss:$2 sm:$0xff]
    %v2546 = vld [vmem:[%s80] ss:$2 sm:$0x3]
    %2549 = vrot.lane.b32.xlu0 %v2545, 15
    %v2550 = vpop.permute.xlu0 %2549
    %2551 = vrot.lane.b32.xlu0 %v2546, 15
    %v2552 = vpop.permute.xlu0 %2551
    %v2553 = vrot.slane %v2550, 1
    %v2554 = vrot.slane %v2552, 1
    %v2555 = vsel %vm90, %v2553, %v2554
    %vm2556 = vcmask 121856
    %v2557 = vsel %vm2556, %v2550, %v2555
    %v2558 = vsel %vm2556, %v2552, %v2554
    %s2561 = scalar_lea.vmem [#allocation3], 1009
    %2562 = vst [vmem:[%s2561] ss:$8 sm:$0xf] %v2557
    %2563 = vst [vmem:[%s2561] ss:$8 sm:$0xf0] %v2557
    %s2564 = scalar_lea.vmem [#allocation3], 1073
    %2565 = vst.msk [vmem:[%s2564] ss:$8 sm:$0x1] %vm75, %v2558
    %2566 = vst.msk [vmem:[%s2564] ss:$8 sm:$0x0] %vm75, %v2558
    %v2567 = vld [vmem:[#allocation2] ss:$2 sm:$0xff]
    %v2568 = vld [vmem:[%s80] ss:$2 sm:$0x3]
    %2571 = vrot.lane.b32.xlu0 %v2567, 14
    %v2572 = vpop.permute.xlu0 %2571
    %2573 = vrot.lane.b32.xlu0 %v2568, 14
    %v2574 = vpop.permute.xlu0 %2573
    %v2575 = vrot.slane %v2572, 1
    %v2576 = vrot.slane %v2574, 1
    %v2577 = vsel %vm90, %v2575, %v2576
    %vm2578 = vcmask 113664
    %v2579 = vsel %vm2578, %v2572, %v2577
    %v2580 = vsel %vm2578, %v2574, %v2576
    %s2583 = scalar_lea.vmem [#allocation3], 1010
    %2584 = vst [vmem:[%s2583] ss:$8 sm:$0xf] %v2579
    %2585 = vst [vmem:[%s2583] ss:$8 sm:$0xf0] %v2579
    %s2586 = scalar_lea.vmem [#allocation3], 1074
    %2587 = vst.msk [vmem:[%s2586] ss:$8 sm:$0x1] %vm75, %v2580
    %2588 = vst.msk [vmem:[%s2586] ss:$8 sm:$0x0] %vm75, %v2580
    %v2589 = vld [vmem:[#allocation2] ss:$2 sm:$0xff]
    %v2590 = vld [vmem:[%s80] ss:$2 sm:$0x3]
    %2593 = vrot.lane.b32.xlu0 %v2589, 13
    %v2594 = vpop.permute.xlu0 %2593
    %2595 = vrot.lane.b32.xlu0 %v2590, 13
    %v2596 = vpop.permute.xlu0 %2595
    %v2597 = vrot.slane %v2594, 1
    %v2598 = vrot.slane %v2596, 1
    %v2599 = vsel %vm90, %v2597, %v2598
    %vm2600 = vcmask 105472
    %v2601 = vsel %vm2600, %v2594, %v2599
    %v2602 = vsel %vm2600, %v2596, %v2598
    %s2605 = scalar_lea.vmem [#allocation3], 1011
    %2606 = vst [vmem:[%s2605] ss:$8 sm:$0xf] %v2601
    %2607 = vst [vmem:[%s2605] ss:$8 sm:$0xf0] %v2601
    %s2608 = scalar_lea.vmem [#allocation3], 1075
    %2609 = vst.msk [vmem:[%s2608] ss:$8 sm:$0x1] %vm75, %v2602
    %2610 = vst.msk [vmem:[%s2608] ss:$8 sm:$0x0] %vm75, %v2602
    %v2611 = vld [vmem:[#allocation2] ss:$2 sm:$0xff]
    %v2612 = vld [vmem:[%s80] ss:$2 sm:$0x3]
    %2615 = vrot.lane.b32.xlu0 %v2611, 12
    %v2616 = vpop.permute.xlu0 %2615
    %2617 = vrot.lane.b32.xlu0 %v2612, 12
    %v2618 = vpop.permute.xlu0 %2617
    %v2619 = vrot.slane %v2616, 1
    %v2620 = vrot.slane %v2618, 1
    %v2621 = vsel %vm90, %v2619, %v2620
    %vm2622 = vcmask 97280
    %v2623 = vsel %vm2622, %v2616, %v2621
    %v2624 = vsel %vm2622, %v2618, %v2620
    %s2627 = scalar_lea.vmem [#allocation3], 1012
    %2628 = vst [vmem:[%s2627] ss:$8 sm:$0xf] %v2623
    %2629 = vst [vmem:[%s2627] ss:$8 sm:$0xf0] %v2623
    %s2630 = scalar_lea.vmem [#allocation3], 1076
    %2631 = vst.msk [vmem:[%s2630] ss:$8 sm:$0x1] %vm75, %v2624
    %2632 = vst.msk [vmem:[%s2630] ss:$8 sm:$0x0] %vm75, %v2624
    %v2633 = vld [vmem:[#allocation2] ss:$2 sm:$0xff]
    %v2634 = vld [vmem:[%s80] ss:$2 sm:$0x3]
    %2637 = vrot.lane.b32.xlu0 %v2633, 11
    %v2638 = vpop.permute.xlu0 %2637
    %2639 = vrot.lane.b32.xlu0 %v2634, 11
    %v2640 = vpop.permute.xlu0 %2639
    %v2641 = vrot.slane %v2638, 1
    %v2642 = vrot.slane %v2640, 1
    %v2643 = vsel %vm90, %v2641, %v2642
    %vm2644 = vcmask 89088
    %v2645 = vsel %vm2644, %v2638, %v2643
    %v2646 = vsel %vm2644, %v2640, %v2642
    %s2649 = scalar_lea.vmem [#allocation3], 1013
    %2650 = vst [vmem:[%s2649] ss:$8 sm:$0xf] %v2645
    %2651 = vst [vmem:[%s2649] ss:$8 sm:$0xf0] %v2645
    %s2652 = scalar_lea.vmem [#allocation3], 1077
    %2653 = vst.msk [vmem:[%s2652] ss:$8 sm:$0x1] %vm75, %v2646
    %2654 = vst.msk [vmem:[%s2652] ss:$8 sm:$0x0] %vm75, %v2646
    %v2655 = vld [vmem:[#allocation2] ss:$2 sm:$0xff]
    %v2656 = vld [vmem:[%s80] ss:$2 sm:$0x3]
    %2659 = vrot.lane.b32.xlu0 %v2655, 10
    %v2660 = vpop.permute.xlu0 %2659
    %2661 = vrot.lane.b32.xlu0 %v2656, 10
    %v2662 = vpop.permute.xlu0 %2661
    %v2663 = vrot.slane %v2660, 1
    %v2664 = vrot.slane %v2662, 1
    %v2665 = vsel %vm90, %v2663, %v2664
    %vm2666 = vcmask 80896
    %v2667 = vsel %vm2666, %v2660, %v2665
    %v2668 = vsel %vm2666, %v2662, %v2664
    %s2671 = scalar_lea.vmem [#allocation3], 1014
    %2672 = vst [vmem:[%s2671] ss:$8 sm:$0xf] %v2667
    %2673 = vst [vmem:[%s2671] ss:$8 sm:$0xf0] %v2667
    %s2674 = scalar_lea.vmem [#allocation3], 1078
    %2675 = vst.msk [vmem:[%s2674] ss:$8 sm:$0x1] %vm75, %v2668
    %2676 = vst.msk [vmem:[%s2674] ss:$8 sm:$0x0] %vm75, %v2668
    %v2677 = vld [vmem:[#allocation2] ss:$2 sm:$0xff]
    %v2678 = vld [vmem:[%s80] ss:$2 sm:$0x3]
    %2681 = vrot.lane.b32.xlu0 %v2677, 9
    %v2682 = vpop.permute.xlu0 %2681
    %2683 = vrot.lane.b32.xlu0 %v2678, 9
    %v2684 = vpop.permute.xlu0 %2683
    %v2685 = vrot.slane %v2682, 1
    %v2686 = vrot.slane %v2684, 1
    %v2687 = vsel %vm90, %v2685, %v2686
    %vm2688 = vcmask 72704
    %v2689 = vsel %vm2688, %v2682, %v2687
    %v2690 = vsel %vm2688, %v2684, %v2686
    %s2693 = scalar_lea.vmem [#allocation3], 1015
    %2694 = vst [vmem:[%s2693] ss:$8 sm:$0xf] %v2689
    %2695 = vst [vmem:[%s2693] ss:$8 sm:$0xf0] %v2689
    %s2696 = scalar_lea.vmem [#allocation3], 1079
    %2697 = vst.msk [vmem:[%s2696] ss:$8 sm:$0x1] %vm75, %v2690
    %2698 = vst.msk [vmem:[%s2696] ss:$8 sm:$0x0] %vm75, %v2690
    %v2699 = vld [vmem:[#allocation2] ss:$2 sm:$0xff]
    %v2700 = vld [vmem:[%s80] ss:$2 sm:$0x3]
    %2703 = vrot.lane.b32.xlu0 %v2699, 8
    %v2704 = vpop.permute.xlu0 %2703
    %2705 = vrot.lane.b32.xlu0 %v2700, 8
    %v2706 = vpop.permute.xlu0 %2705
    %v2707 = vrot.slane %v2704, 1
    %v2708 = vrot.slane %v2706, 1
    %v2709 = vsel %vm90, %v2707, %v2708
    %vm2710 = vcmask 64512
    %v2711 = vsel %vm2710, %v2704, %v2709
    %v2712 = vsel %vm2710, %v2706, %v2708
    %s2715 = scalar_lea.vmem [#allocation3], 1080
    %2716 = vst [vmem:[%s2715] ss:$8 sm:$0xf] %v2711
    %2717 = vst [vmem:[%s2715] ss:$8 sm:$0xf0] %v2711
    %s2718 = scalar_lea.vmem [#allocation3], 1144
    %2719 = vst.msk [vmem:[%s2718] ss:$8 sm:$0x1] %vm75, %v2712
    %2720 = vst.msk [vmem:[%s2718] ss:$8 sm:$0x0] %vm75, %v2712
    %v2721 = vld [vmem:[#allocation2] ss:$2 sm:$0xff]
    %v2722 = vld [vmem:[%s80] ss:$2 sm:$0x3]
    %2725 = vrot.lane.b32.xlu0 %v2721, 7
    %v2726 = vpop.permute.xlu0 %2725
    %2727 = vrot.lane.b32.xlu0 %v2722, 7
    %v2728 = vpop.permute.xlu0 %2727
    %v2729 = vrot.slane %v2726, 1
    %v2730 = vrot.slane %v2728, 1
    %v2731 = vsel %vm90, %v2729, %v2730
    %vm2732 = vcmask 56320
    %v2733 = vsel %vm2732, %v2726, %v2731
    %v2734 = vsel %vm2732, %v2728, %v2730
    %s2737 = scalar_lea.vmem [#allocation3], 1081
    %2738 = vst [vmem:[%s2737] ss:$8 sm:$0xf] %v2733
    %2739 = vst [vmem:[%s2737] ss:$8 sm:$0xf0] %v2733
    %s2740 = scalar_lea.vmem [#allocation3], 1145
    %2741 = vst.msk [vmem:[%s2740] ss:$8 sm:$0x1] %vm75, %v2734
    %2742 = vst.msk [vmem:[%s2740] ss:$8 sm:$0x0] %vm75, %v2734
    %v2743 = vld [vmem:[#allocation2] ss:$2 sm:$0xff]
    %v2744 = vld [vmem:[%s80] ss:$2 sm:$0x3]
    %2747 = vrot.lane.b32.xlu0 %v2743, 6
    %v2748 = vpop.permute.xlu0 %2747
    %2749 = vrot.lane.b32.xlu0 %v2744, 6
    %v2750 = vpop.permute.xlu0 %2749
    %v2751 = vrot.slane %v2748, 1
    %v2752 = vrot.slane %v2750, 1
    %v2753 = vsel %vm90, %v2751, %v2752
    %vm2754 = vcmask 48128
    %v2755 = vsel %vm2754, %v2748, %v2753
    %v2756 = vsel %vm2754, %v2750, %v2752
    %s2759 = scalar_lea.vmem [#allocation3], 1082
    %2760 = vst [vmem:[%s2759] ss:$8 sm:$0xf] %v2755
    %2761 = vst [vmem:[%s2759] ss:$8 sm:$0xf0] %v2755
    %s2762 = scalar_lea.vmem [#allocation3], 1146
    %2763 = vst.msk [vmem:[%s2762] ss:$8 sm:$0x1] %vm75, %v2756
    %2764 = vst.msk [vmem:[%s2762] ss:$8 sm:$0x0] %vm75, %v2756
    %v2765 = vld [vmem:[#allocation2] ss:$2 sm:$0xff]
    %v2766 = vld [vmem:[%s80] ss:$2 sm:$0x3]
    %2769 = vrot.lane.b32.xlu0 %v2765, 5
    %v2770 = vpop.permute.xlu0 %2769
    %2771 = vrot.lane.b32.xlu0 %v2766, 5
    %v2772 = vpop.permute.xlu0 %2771
    %v2773 = vrot.slane %v2770, 1
    %v2774 = vrot.slane %v2772, 1
    %v2775 = vsel %vm90, %v2773, %v2774
    %vm2776 = vcmask 39936
    %v2777 = vsel %vm2776, %v2770, %v2775
    %v2778 = vsel %vm2776, %v2772, %v2774
    %s2781 = scalar_lea.vmem [#allocation3], 1083
    %2782 = vst [vmem:[%s2781] ss:$8 sm:$0xf] %v2777
    %2783 = vst [vmem:[%s2781] ss:$8 sm:$0xf0] %v2777
    %s2784 = scalar_lea.vmem [#allocation3], 1147
    %2785 = vst.msk [vmem:[%s2784] ss:$8 sm:$0x1] %vm75, %v2778
    %2786 = vst.msk [vmem:[%s2784] ss:$8 sm:$0x0] %vm75, %v2778
    %v2787 = vld [vmem:[#allocation2] ss:$2 sm:$0xff]
    %v2788 = vld [vmem:[%s80] ss:$2 sm:$0x3]
    %2791 = vrot.lane.b32.xlu0 %v2787, 4
    %v2792 = vpop.permute.xlu0 %2791
    %2793 = vrot.lane.b32.xlu0 %v2788, 4
    %v2794 = vpop.permute.xlu0 %2793
    %v2795 = vrot.slane %v2792, 1
    %v2796 = vrot.slane %v2794, 1
    %v2797 = vsel %vm90, %v2795, %v2796
    %vm2798 = vcmask 31744
    %v2799 = vsel %vm2798, %v2792, %v2797
    %v2800 = vsel %vm2798, %v2794, %v2796
    %s2803 = scalar_lea.vmem [#allocation3], 1084
    %2804 = vst [vmem:[%s2803] ss:$8 sm:$0xf] %v2799
    %2805 = vst [vmem:[%s2803] ss:$8 sm:$0xf0] %v2799
    %s2806 = scalar_lea.vmem [#allocation3], 1148
    %2807 = vst.msk [vmem:[%s2806] ss:$8 sm:$0x1] %vm75, %v2800
    %2808 = vst.msk [vmem:[%s2806] ss:$8 sm:$0x0] %vm75, %v2800
    %v2809 = vld [vmem:[#allocation2] ss:$2 sm:$0xff]
    %v2810 = vld [vmem:[%s80] ss:$2 sm:$0x3]
    %2813 = vrot.lane.b32.xlu0 %v2809, 3
    %v2814 = vpop.permute.xlu0 %2813
    %2815 = vrot.lane.b32.xlu0 %v2810, 3
    %v2816 = vpop.permute.xlu0 %2815
    %v2817 = vrot.slane %v2814, 1
    %v2818 = vrot.slane %v2816, 1
    %v2819 = vsel %vm90, %v2817, %v2818
    %vm2820 = vcmask 23552
    %v2821 = vsel %vm2820, %v2814, %v2819
    %v2822 = vsel %vm2820, %v2816, %v2818
    %s2825 = scalar_lea.vmem [#allocation3], 1085
    %2826 = vst [vmem:[%s2825] ss:$8 sm:$0xf] %v2821
    %2827 = vst [vmem:[%s2825] ss:$8 sm:$0xf0] %v2821
    %s2828 = scalar_lea.vmem [#allocation3], 1149
    %2829 = vst.msk [vmem:[%s2828] ss:$8 sm:$0x1] %vm75, %v2822
    %2830 = vst.msk [vmem:[%s2828] ss:$8 sm:$0x0] %vm75, %v2822
    %v2831 = vld [vmem:[#allocation2] ss:$2 sm:$0xff]
    %v2832 = vld [vmem:[%s80] ss:$2 sm:$0x3]
    %2835 = vrot.lane.b32.xlu0 %v2831, 2
    %v2836 = vpop.permute.xlu0 %2835
    %2837 = vrot.lane.b32.xlu0 %v2832, 2
    %v2838 = vpop.permute.xlu0 %2837
    %v2839 = vrot.slane %v2836, 1
    %v2840 = vrot.slane %v2838, 1
    %v2841 = vsel %vm90, %v2839, %v2840
    %vm2842 = vcmask 15360
    %v2843 = vsel %vm2842, %v2836, %v2841
    %v2844 = vsel %vm2842, %v2838, %v2840
    %s2847 = scalar_lea.vmem [#allocation3], 1086
    %2848 = vst [vmem:[%s2847] ss:$8 sm:$0xf] %v2843
    %2849 = vst [vmem:[%s2847] ss:$8 sm:$0xf0] %v2843
    %s2850 = scalar_lea.vmem [#allocation3], 1150
    %2851 = vst.msk [vmem:[%s2850] ss:$8 sm:$0x1] %vm75, %v2844
    %2852 = vst.msk [vmem:[%s2850] ss:$8 sm:$0x0] %vm75, %v2844
    %v2853 = vld [vmem:[#allocation2] ss:$2 sm:$0xff]
    %v2854 = vld [vmem:[%s80] ss:$2 sm:$0x3]
    %2857 = vrot.lane.b32.xlu0 %v2853, 1
    %v2858 = vpop.permute.xlu0 %2857
    %2859 = vrot.lane.b32.xlu0 %v2854, 1
    %v2860 = vpop.permute.xlu0 %2859
    %v2861 = vrot.slane %v2858, 1
    %v2862 = vrot.slane %v2860, 1
    %v2863 = vsel %vm90, %v2861, %v2862
    %vm2864 = vcmask 7168
    %v2865 = vsel %vm2864, %v2858, %v2863
    %v2866 = vsel %vm2864, %v2860, %v2862
    %s2869 = scalar_lea.vmem [#allocation3], 1087
    %2870 = vst [vmem:[%s2869] ss:$8 sm:$0xf] %v2865
    %2871 = vst [vmem:[%s2869] ss:$8 sm:$0xf0] %v2865
    %s2872 = scalar_lea.vmem [#allocation3], 1151
    %2873 = vst.msk [vmem:[%s2872] ss:$8 sm:$0x1] %vm75, %v2866
    %2874 = vst.msk [vmem:[%s2872] ss:$8 sm:$0x0] %vm75, %v2866
    %s2875 = scalar_lea.vmem [#allocation2], 1
    %v2876 = vld [vmem:[%s2875] ss:$2 sm:$0xff]
    %s2877 = scalar_lea.vmem [#allocation2], 17
    %v2878 = vld [vmem:[%s2877] ss:$2 sm:$0x1]
    %s2879 = scalar_lea.vmem [#allocation3], 1152
    %2880 = vst [vmem:[%s2879] ss:$8 sm:$0xf] %v2876
    %2881 = vst [vmem:[%s2879] ss:$8 sm:$0xf0] %v2876
    %s2882 = scalar_lea.vmem [#allocation3], 1216
    %2883 = vst.msk [vmem:[%s2882] ss:$8 sm:$0x1] %vm75, %v2878
    %2884 = vst.msk [vmem:[%s2882] ss:$8 sm:$0x0] %vm75, %v2878
    %s2885 = scalar_lea.vmem [#allocation2], 1
    %v2886 = vld [vmem:[%s2885] ss:$2 sm:$0xff]
    %s2887 = scalar_lea.vmem [#allocation2], 17
    %v2888 = vld [vmem:[%s2887] ss:$2 sm:$0x3]
    %2891 = vrot.lane.b32.xlu0 %v2886, 127
    %v2892 = vpop.permute.xlu0 %2891
    %2893 = vrot.lane.b32.xlu0 %v2888, 127
    %v2894 = vpop.permute.xlu0 %2893
    %v2895 = vrot.slane %v2892, 1
    %v2896 = vrot.slane %v2894, 1
    %v2897 = vsel %vm90, %v2895, %v2896
    %v2898 = vsel %vm92, %v2892, %v2897
    %v2899 = vsel %vm92, %v2894, %v2896
    %s2902 = scalar_lea.vmem [#allocation3], 1153
    %2903 = vst [vmem:[%s2902] ss:$8 sm:$0xf] %v2898
    %2904 = vst [vmem:[%s2902] ss:$8 sm:$0xf0] %v2898
    %s2905 = scalar_lea.vmem [#allocation3], 1217
    %2906 = vst.msk [vmem:[%s2905] ss:$8 sm:$0x1] %vm75, %v2899
    %2907 = vst.msk [vmem:[%s2905] ss:$8 sm:$0x0] %vm75, %v2899
    %v2908 = vld [vmem:[%s2885] ss:$2 sm:$0xff]
    %v2909 = vld [vmem:[%s2887] ss:$2 sm:$0x3]
    %2912 = vrot.lane.b32.xlu0 %v2908, 126
    %v2913 = vpop.permute.xlu0 %2912
    %2914 = vrot.lane.b32.xlu0 %v2909, 126
    %v2915 = vpop.permute.xlu0 %2914
    %v2916 = vrot.slane %v2913, 1
    %v2917 = vrot.slane %v2915, 1
    %v2918 = vsel %vm90, %v2916, %v2917
    %v2919 = vsel %vm114, %v2913, %v2918
    %v2920 = vsel %vm114, %v2915, %v2917
    %s2923 = scalar_lea.vmem [#allocation3], 1154
    %2924 = vst [vmem:[%s2923] ss:$8 sm:$0xf] %v2919
    %2925 = vst [vmem:[%s2923] ss:$8 sm:$0xf0] %v2919
    %s2926 = scalar_lea.vmem [#allocation3], 1218
    %2927 = vst.msk [vmem:[%s2926] ss:$8 sm:$0x1] %vm75, %v2920
    %2928 = vst.msk [vmem:[%s2926] ss:$8 sm:$0x0] %vm75, %v2920
    %v2929 = vld [vmem:[%s2885] ss:$2 sm:$0xff]
    %v2930 = vld [vmem:[%s2887] ss:$2 sm:$0x3]
    %2933 = vrot.lane.b32.xlu0 %v2929, 125
    %v2934 = vpop.permute.xlu0 %2933
    %2935 = vrot.lane.b32.xlu0 %v2930, 125
    %v2936 = vpop.permute.xlu0 %2935
    %v2937 = vrot.slane %v2934, 1
    %v2938 = vrot.slane %v2936, 1
    %v2939 = vsel %vm90, %v2937, %v2938
    %v2940 = vsel %vm136, %v2934, %v2939
    %v2941 = vsel %vm136, %v2936, %v2938
    %s2944 = scalar_lea.vmem [#allocation3], 1155
    %2945 = vst [vmem:[%s2944] ss:$8 sm:$0xf] %v2940
    %2946 = vst [vmem:[%s2944] ss:$8 sm:$0xf0] %v2940
    %s2947 = scalar_lea.vmem [#allocation3], 1219
    %2948 = vst.msk [vmem:[%s2947] ss:$8 sm:$0x1] %vm75, %v2941
    %2949 = vst.msk [vmem:[%s2947] ss:$8 sm:$0x0] %vm75, %v2941
    %v2950 = vld [vmem:[%s2885] ss:$2 sm:$0xff]
    %v2951 = vld [vmem:[%s2887] ss:$2 sm:$0x3]
    %2954 = vrot.lane.b32.xlu0 %v2950, 124
    %v2955 = vpop.permute.xlu0 %2954
    %2956 = vrot.lane.b32.xlu0 %v2951, 124
    %v2957 = vpop.permute.xlu0 %2956
    %v2958 = vrot.slane %v2955, 1
    %v2959 = vrot.slane %v2957, 1
    %v2960 = vsel %vm90, %v2958, %v2959
    %v2961 = vsel %vm158, %v2955, %v2960
    %v2962 = vsel %vm158, %v2957, %v2959
    %s2965 = scalar_lea.vmem [#allocation3], 1156
    %2966 = vst [vmem:[%s2965] ss:$8 sm:$0xf] %v2961
    %2967 = vst [vmem:[%s2965] ss:$8 sm:$0xf0] %v2961
    %s2968 = scalar_lea.vmem [#allocation3], 1220
    %2969 = vst.msk [vmem:[%s2968] ss:$8 sm:$0x1] %vm75, %v2962
    %2970 = vst.msk [vmem:[%s2968] ss:$8 sm:$0x0] %vm75, %v2962
    %v2971 = vld [vmem:[%s2885] ss:$2 sm:$0xff]
    %v2972 = vld [vmem:[%s2887] ss:$2 sm:$0x3]
    %2975 = vrot.lane.b32.xlu0 %v2971, 123
    %v2976 = vpop.permute.xlu0 %2975
    %2977 = vrot.lane.b32.xlu0 %v2972, 123
    %v2978 = vpop.permute.xlu0 %2977
    %v2979 = vrot.slane %v2976, 1
    %v2980 = vrot.slane %v2978, 1
    %v2981 = vsel %vm90, %v2979, %v2980
    %v2982 = vsel %vm180, %v2976, %v2981
    %v2983 = vsel %vm180, %v2978, %v2980
    %s2986 = scalar_lea.vmem [#allocation3], 1157
    %2987 = vst [vmem:[%s2986] ss:$8 sm:$0xf] %v2982
    %2988 = vst [vmem:[%s2986] ss:$8 sm:$0xf0] %v2982
    %s2989 = scalar_lea.vmem [#allocation3], 1221
    %2990 = vst.msk [vmem:[%s2989] ss:$8 sm:$0x1] %vm75, %v2983
    %2991 = vst.msk [vmem:[%s2989] ss:$8 sm:$0x0] %vm75, %v2983
    %v2992 = vld [vmem:[%s2885] ss:$2 sm:$0xff]
    %v2993 = vld [vmem:[%s2887] ss:$2 sm:$0x3]
    %2996 = vrot.lane.b32.xlu0 %v2992, 122
    %v2997 = vpop.permute.xlu0 %2996
    %2998 = vrot.lane.b32.xlu0 %v2993, 122
    %v2999 = vpop.permute.xlu0 %2998
    %v3000 = vrot.slane %v2997, 1
    %v3001 = vrot.slane %v2999, 1
    %v3002 = vsel %vm90, %v3000, %v3001
    %v3003 = vsel %vm202, %v2997, %v3002
    %v3004 = vsel %vm202, %v2999, %v3001
    %s3007 = scalar_lea.vmem [#allocation3], 1158
    %3008 = vst [vmem:[%s3007] ss:$8 sm:$0xf] %v3003
    %3009 = vst [vmem:[%s3007] ss:$8 sm:$0xf0] %v3003
    %s3010 = scalar_lea.vmem [#allocation3], 1222
    %3011 = vst.msk [vmem:[%s3010] ss:$8 sm:$0x1] %vm75, %v3004
    %3012 = vst.msk [vmem:[%s3010] ss:$8 sm:$0x0] %vm75, %v3004
    %v3013 = vld [vmem:[%s2885] ss:$2 sm:$0xff]
    %v3014 = vld [vmem:[%s2887] ss:$2 sm:$0x3]
    %3017 = vrot.lane.b32.xlu0 %v3013, 121
    %v3018 = vpop.permute.xlu0 %3017
    %3019 = vrot.lane.b32.xlu0 %v3014, 121
    %v3020 = vpop.permute.xlu0 %3019
    %v3021 = vrot.slane %v3018, 1
    %v3022 = vrot.slane %v3020, 1
    %v3023 = vsel %vm90, %v3021, %v3022
    %v3024 = vsel %vm224, %v3018, %v3023
    %v3025 = vsel %vm224, %v3020, %v3022
    %s3028 = scalar_lea.vmem [#allocation3], 1159
    %3029 = vst [vmem:[%s3028] ss:$8 sm:$0xf] %v3024
    %3030 = vst [vmem:[%s3028] ss:$8 sm:$0xf0] %v3024
    %s3031 = scalar_lea.vmem [#allocation3], 1223
    %3032 = vst.msk [vmem:[%s3031] ss:$8 sm:$0x1] %vm75, %v3025
    %3033 = vst.msk [vmem:[%s3031] ss:$8 sm:$0x0] %vm75, %v3025
    %v3034 = vld [vmem:[%s2885] ss:$2 sm:$0xff]
    %v3035 = vld [vmem:[%s2887] ss:$2 sm:$0x3]
    %3038 = vrot.lane.b32.xlu0 %v3034, 120
    %v3039 = vpop.permute.xlu0 %3038
    %3040 = vrot.lane.b32.xlu0 %v3035, 120
    %v3041 = vpop.permute.xlu0 %3040
    %v3042 = vrot.slane %v3039, 1
    %v3043 = vrot.slane %v3041, 1
    %v3044 = vsel %vm90, %v3042, %v3043
    %v3045 = vsel %vm246, %v3039, %v3044
    %v3046 = vsel %vm246, %v3041, %v3043
    %s3049 = scalar_lea.vmem [#allocation3], 1224
    %3050 = vst [vmem:[%s3049] ss:$8 sm:$0xf] %v3045
    %3051 = vst [vmem:[%s3049] ss:$8 sm:$0xf0] %v3045
    %s3052 = scalar_lea.vmem [#allocation3], 1288
    %3053 = vst.msk [vmem:[%s3052] ss:$8 sm:$0x1] %vm75, %v3046
    %3054 = vst.msk [vmem:[%s3052] ss:$8 sm:$0x0] %vm75, %v3046
    %v3055 = vld [vmem:[%s2885] ss:$2 sm:$0xff]
    %v3056 = vld [vmem:[%s2887] ss:$2 sm:$0x3]
    %3059 = vrot.lane.b32.xlu0 %v3055, 119
    %v3060 = vpop.permute.xlu0 %3059
    %3061 = vrot.lane.b32.xlu0 %v3056, 119
    %v3062 = vpop.permute.xlu0 %3061
    %v3063 = vrot.slane %v3060, 1
    %v3064 = vrot.slane %v3062, 1
    %v3065 = vsel %vm90, %v3063, %v3064
    %v3066 = vsel %vm268, %v3060, %v3065
    %v3067 = vsel %vm268, %v3062, %v3064
    %s3070 = scalar_lea.vmem [#allocation3], 1225
    %3071 = vst [vmem:[%s3070] ss:$8 sm:$0xf] %v3066
    %3072 = vst [vmem:[%s3070] ss:$8 sm:$0xf0] %v3066
    %s3073 = scalar_lea.vmem [#allocation3], 1289
    %3074 = vst.msk [vmem:[%s3073] ss:$8 sm:$0x1] %vm75, %v3067
    %3075 = vst.msk [vmem:[%s3073] ss:$8 sm:$0x0] %vm75, %v3067
    %v3076 = vld [vmem:[%s2885] ss:$2 sm:$0xff]
    %v3077 = vld [vmem:[%s2887] ss:$2 sm:$0x3]
    %3080 = vrot.lane.b32.xlu0 %v3076, 118
    %v3081 = vpop.permute.xlu0 %3080
    %3082 = vrot.lane.b32.xlu0 %v3077, 118
    %v3083 = vpop.permute.xlu0 %3082
    %v3084 = vrot.slane %v3081, 1
    %v3085 = vrot.slane %v3083, 1
    %v3086 = vsel %vm90, %v3084, %v3085
    %v3087 = vsel %vm290, %v3081, %v3086
    %v3088 = vsel %vm290, %v3083, %v3085
    %s3091 = scalar_lea.vmem [#allocation3], 1226
    %3092 = vst [vmem:[%s3091] ss:$8 sm:$0xf] %v3087
    %3093 = vst [vmem:[%s3091] ss:$8 sm:$0xf0] %v3087
    %s3094 = scalar_lea.vmem [#allocation3], 1290
    %3095 = vst.msk [vmem:[%s3094] ss:$8 sm:$0x1] %vm75, %v3088
    %3096 = vst.msk [vmem:[%s3094] ss:$8 sm:$0x0] %vm75, %v3088
    %v3097 = vld [vmem:[%s2885] ss:$2 sm:$0xff]
    %v3098 = vld [vmem:[%s2887] ss:$2 sm:$0x3]
    %3101 = vrot.lane.b32.xlu0 %v3097, 117
    %v3102 = vpop.permute.xlu0 %3101
    %3103 = vrot.lane.b32.xlu0 %v3098, 117
    %v3104 = vpop.permute.xlu0 %3103
    %v3105 = vrot.slane %v3102, 1
    %v3106 = vrot.slane %v3104, 1
    %v3107 = vsel %vm90, %v3105, %v3106
    %v3108 = vsel %vm312, %v3102, %v3107
    %v3109 = vsel %vm312, %v3104, %v3106
    %s3112 = scalar_lea.vmem [#allocation3], 1227
    %3113 = vst [vmem:[%s3112] ss:$8 sm:$0xf] %v3108
    %3114 = vst [vmem:[%s3112] ss:$8 sm:$0xf0] %v3108
    %s3115 = scalar_lea.vmem [#allocation3], 1291
    %3116 = vst.msk [vmem:[%s3115] ss:$8 sm:$0x1] %vm75, %v3109
    %3117 = vst.msk [vmem:[%s3115] ss:$8 sm:$0x0] %vm75, %v3109
    %v3118 = vld [vmem:[%s2885] ss:$2 sm:$0xff]
    %v3119 = vld [vmem:[%s2887] ss:$2 sm:$0x3]
    %3122 = vrot.lane.b32.xlu0 %v3118, 116
    %v3123 = vpop.permute.xlu0 %3122
    %3124 = vrot.lane.b32.xlu0 %v3119, 116
    %v3125 = vpop.permute.xlu0 %3124
    %v3126 = vrot.slane %v3123, 1
    %v3127 = vrot.slane %v3125, 1
    %v3128 = vsel %vm90, %v3126, %v3127
    %v3129 = vsel %vm334, %v3123, %v3128
    %v3130 = vsel %vm334, %v3125, %v3127
    %s3133 = scalar_lea.vmem [#allocation3], 1228
    %3134 = vst [vmem:[%s3133] ss:$8 sm:$0xf] %v3129
    %3135 = vst [vmem:[%s3133] ss:$8 sm:$0xf0] %v3129
    %s3136 = scalar_lea.vmem [#allocation3], 1292
    %3137 = vst.msk [vmem:[%s3136] ss:$8 sm:$0x1] %vm75, %v3130
    %3138 = vst.msk [vmem:[%s3136] ss:$8 sm:$0x0] %vm75, %v3130
    %v3139 = vld [vmem:[%s2885] ss:$2 sm:$0xff]
    %v3140 = vld [vmem:[%s2887] ss:$2 sm:$0x3]
    %3143 = vrot.lane.b32.xlu0 %v3139, 115
    %v3144 = vpop.permute.xlu0 %3143
    %3145 = vrot.lane.b32.xlu0 %v3140, 115
    %v3146 = vpop.permute.xlu0 %3145
    %v3147 = vrot.slane %v3144, 1
    %v3148 = vrot.slane %v3146, 1
    %v3149 = vsel %vm90, %v3147, %v3148
    %v3150 = vsel %vm356, %v3144, %v3149
    %v3151 = vsel %vm356, %v3146, %v3148
    %s3154 = scalar_lea.vmem [#allocation3], 1229
    %3155 = vst [vmem:[%s3154] ss:$8 sm:$0xf] %v3150
    %3156 = vst [vmem:[%s3154] ss:$8 sm:$0xf0] %v3150
    %s3157 = scalar_lea.vmem [#allocation3], 1293
    %3158 = vst.msk [vmem:[%s3157] ss:$8 sm:$0x1] %vm75, %v3151
    %3159 = vst.msk [vmem:[%s3157] ss:$8 sm:$0x0] %vm75, %v3151
    %v3160 = vld [vmem:[%s2885] ss:$2 sm:$0xff]
    %v3161 = vld [vmem:[%s2887] ss:$2 sm:$0x3]
    %3164 = vrot.lane.b32.xlu0 %v3160, 114
    %v3165 = vpop.permute.xlu0 %3164
    %3166 = vrot.lane.b32.xlu0 %v3161, 114
    %v3167 = vpop.permute.xlu0 %3166
    %v3168 = vrot.slane %v3165, 1
    %v3169 = vrot.slane %v3167, 1
    %v3170 = vsel %vm90, %v3168, %v3169
    %v3171 = vsel %vm378, %v3165, %v3170
    %v3172 = vsel %vm378, %v3167, %v3169
    %s3175 = scalar_lea.vmem [#allocation3], 1230
    %3176 = vst [vmem:[%s3175] ss:$8 sm:$0xf] %v3171
    %3177 = vst [vmem:[%s3175] ss:$8 sm:$0xf0] %v3171
    %s3178 = scalar_lea.vmem [#allocation3], 1294
    %3179 = vst.msk [vmem:[%s3178] ss:$8 sm:$0x1] %vm75, %v3172
    %3180 = vst.msk [vmem:[%s3178] ss:$8 sm:$0x0] %vm75, %v3172
    %v3181 = vld [vmem:[%s2885] ss:$2 sm:$0xff]
    %v3182 = vld [vmem:[%s2887] ss:$2 sm:$0x3]
    %3185 = vrot.lane.b32.xlu0 %v3181, 113
    %v3186 = vpop.permute.xlu0 %3185
    %3187 = vrot.lane.b32.xlu0 %v3182, 113
    %v3188 = vpop.permute.xlu0 %3187
    %v3189 = vrot.slane %v3186, 1
    %v3190 = vrot.slane %v3188, 1
    %v3191 = vsel %vm90, %v3189, %v3190
    %v3192 = vsel %vm400, %v3186, %v3191
    %v3193 = vsel %vm400, %v3188, %v3190
    %s3196 = scalar_lea.vmem [#allocation3], 1231
    %3197 = vst [vmem:[%s3196] ss:$8 sm:$0xf] %v3192
    %3198 = vst [vmem:[%s3196] ss:$8 sm:$0xf0] %v3192
    %s3199 = scalar_lea.vmem [#allocation3], 1295
    %3200 = vst.msk [vmem:[%s3199] ss:$8 sm:$0x1] %vm75, %v3193
    %3201 = vst.msk [vmem:[%s3199] ss:$8 sm:$0x0] %vm75, %v3193
    %v3202 = vld [vmem:[%s2885] ss:$2 sm:$0xff]
    %v3203 = vld [vmem:[%s2887] ss:$2 sm:$0x3]
    %3206 = vrot.lane.b32.xlu0 %v3202, 112
    %v3207 = vpop.permute.xlu0 %3206
    %3208 = vrot.lane.b32.xlu0 %v3203, 112
    %v3209 = vpop.permute.xlu0 %3208
    %v3210 = vrot.slane %v3207, 1
    %v3211 = vrot.slane %v3209, 1
    %v3212 = vsel %vm90, %v3210, %v3211
    %v3213 = vsel %vm422, %v3207, %v3212
    %v3214 = vsel %vm422, %v3209, %v3211
    %s3217 = scalar_lea.vmem [#allocation3], 1296
    %3218 = vst [vmem:[%s3217] ss:$8 sm:$0xf] %v3213
    %3219 = vst [vmem:[%s3217] ss:$8 sm:$0xf0] %v3213
    %s3220 = scalar_lea.vmem [#allocation3], 1360
    %3221 = vst.msk [vmem:[%s3220] ss:$8 sm:$0x1] %vm75, %v3214
    %3222 = vst.msk [vmem:[%s3220] ss:$8 sm:$0x0] %vm75, %v3214
    %v3223 = vld [vmem:[%s2885] ss:$2 sm:$0xff]
    %v3224 = vld [vmem:[%s2887] ss:$2 sm:$0x3]
    %3227 = vrot.lane.b32.xlu0 %v3223, 111
    %v3228 = vpop.permute.xlu0 %3227
    %3229 = vrot.lane.b32.xlu0 %v3224, 111
    %v3230 = vpop.permute.xlu0 %3229
    %v3231 = vrot.slane %v3228, 1
    %v3232 = vrot.slane %v3230, 1
    %v3233 = vsel %vm90, %v3231, %v3232
    %v3234 = vsel %vm444, %v3228, %v3233
    %v3235 = vsel %vm444, %v3230, %v3232
    %s3238 = scalar_lea.vmem [#allocation3], 1297
    %3239 = vst [vmem:[%s3238] ss:$8 sm:$0xf] %v3234
    %3240 = vst [vmem:[%s3238] ss:$8 sm:$0xf0] %v3234
    %s3241 = scalar_lea.vmem [#allocation3], 1361
    %3242 = vst.msk [vmem:[%s3241] ss:$8 sm:$0x1] %vm75, %v3235
    %3243 = vst.msk [vmem:[%s3241] ss:$8 sm:$0x0] %vm75, %v3235
    %v3244 = vld [vmem:[%s2885] ss:$2 sm:$0xff]
    %v3245 = vld [vmem:[%s2887] ss:$2 sm:$0x3]
    %3248 = vrot.lane.b32.xlu0 %v3244, 110
    %v3249 = vpop.permute.xlu0 %3248
    %3250 = vrot.lane.b32.xlu0 %v3245, 110
    %v3251 = vpop.permute.xlu0 %3250
    %v3252 = vrot.slane %v3249, 1
    %v3253 = vrot.slane %v3251, 1
    %v3254 = vsel %vm90, %v3252, %v3253
    %v3255 = vsel %vm466, %v3249, %v3254
    %v3256 = vsel %vm466, %v3251, %v3253
    %s3259 = scalar_lea.vmem [#allocation3], 1298
    %3260 = vst [vmem:[%s3259] ss:$8 sm:$0xf] %v3255
    %3261 = vst [vmem:[%s3259] ss:$8 sm:$0xf0] %v3255
    %s3262 = scalar_lea.vmem [#allocation3], 1362
    %3263 = vst.msk [vmem:[%s3262] ss:$8 sm:$0x1] %vm75, %v3256
    %3264 = vst.msk [vmem:[%s3262] ss:$8 sm:$0x0] %vm75, %v3256
    %v3265 = vld [vmem:[%s2885] ss:$2 sm:$0xff]
    %v3266 = vld [vmem:[%s2887] ss:$2 sm:$0x3]
    %3269 = vrot.lane.b32.xlu0 %v3265, 109
    %v3270 = vpop.permute.xlu0 %3269
    %3271 = vrot.lane.b32.xlu0 %v3266, 109
    %v3272 = vpop.permute.xlu0 %3271
    %v3273 = vrot.slane %v3270, 1
    %v3274 = vrot.slane %v3272, 1
    %v3275 = vsel %vm90, %v3273, %v3274
    %v3276 = vsel %vm488, %v3270, %v3275
    %v3277 = vsel %vm488, %v3272, %v3274
    %s3280 = scalar_lea.vmem [#allocation3], 1299
    %3281 = vst [vmem:[%s3280] ss:$8 sm:$0xf] %v3276
    %3282 = vst [vmem:[%s3280] ss:$8 sm:$0xf0] %v3276
    %s3283 = scalar_lea.vmem [#allocation3], 1363
    %3284 = vst.msk [vmem:[%s3283] ss:$8 sm:$0x1] %vm75, %v3277
    %3285 = vst.msk [vmem:[%s3283] ss:$8 sm:$0x0] %vm75, %v3277
    %v3286 = vld [vmem:[%s2885] ss:$2 sm:$0xff]
    %v3287 = vld [vmem:[%s2887] ss:$2 sm:$0x3]
    %3290 = vrot.lane.b32.xlu0 %v3286, 108
    %v3291 = vpop.permute.xlu0 %3290
    %3292 = vrot.lane.b32.xlu0 %v3287, 108
    %v3293 = vpop.permute.xlu0 %3292
    %v3294 = vrot.slane %v3291, 1
    %v3295 = vrot.slane %v3293, 1
    %v3296 = vsel %vm90, %v3294, %v3295
    %v3297 = vsel %vm510, %v3291, %v3296
    %v3298 = vsel %vm510, %v3293, %v3295
    %s3301 = scalar_lea.vmem [#allocation3], 1300
    %3302 = vst [vmem:[%s3301] ss:$8 sm:$0xf] %v3297
    %3303 = vst [vmem:[%s3301] ss:$8 sm:$0xf0] %v3297
    %s3304 = scalar_lea.vmem [#allocation3], 1364
    %3305 = vst.msk [vmem:[%s3304] ss:$8 sm:$0x1] %vm75, %v3298
    %3306 = vst.msk [vmem:[%s3304] ss:$8 sm:$0x0] %vm75, %v3298
    %v3307 = vld [vmem:[%s2885] ss:$2 sm:$0xff]
    %v3308 = vld [vmem:[%s2887] ss:$2 sm:$0x3]
    %3311 = vrot.lane.b32.xlu0 %v3307, 107
    %v3312 = vpop.permute.xlu0 %3311
    %3313 = vrot.lane.b32.xlu0 %v3308, 107
    %v3314 = vpop.permute.xlu0 %3313
    %v3315 = vrot.slane %v3312, 1
    %v3316 = vrot.slane %v3314, 1
    %v3317 = vsel %vm90, %v3315, %v3316
    %v3318 = vsel %vm532, %v3312, %v3317
    %v3319 = vsel %vm532, %v3314, %v3316
    %s3322 = scalar_lea.vmem [#allocation3], 1301
    %3323 = vst [vmem:[%s3322] ss:$8 sm:$0xf] %v3318
    %3324 = vst [vmem:[%s3322] ss:$8 sm:$0xf0] %v3318
    %s3325 = scalar_lea.vmem [#allocation3], 1365
    %3326 = vst.msk [vmem:[%s3325] ss:$8 sm:$0x1] %vm75, %v3319
    %3327 = vst.msk [vmem:[%s3325] ss:$8 sm:$0x0] %vm75, %v3319
    %v3328 = vld [vmem:[%s2885] ss:$2 sm:$0xff]
    %v3329 = vld [vmem:[%s2887] ss:$2 sm:$0x3]
    %3332 = vrot.lane.b32.xlu0 %v3328, 106
    %v3333 = vpop.permute.xlu0 %3332
    %3334 = vrot.lane.b32.xlu0 %v3329, 106
    %v3335 = vpop.permute.xlu0 %3334
    %v3336 = vrot.slane %v3333, 1
    %v3337 = vrot.slane %v3335, 1
    %v3338 = vsel %vm90, %v3336, %v3337
    %v3339 = vsel %vm554, %v3333, %v3338
    %v3340 = vsel %vm554, %v3335, %v3337
    %s3343 = scalar_lea.vmem [#allocation3], 1302
    %3344 = vst [vmem:[%s3343] ss:$8 sm:$0xf] %v3339
    %3345 = vst [vmem:[%s3343] ss:$8 sm:$0xf0] %v3339
    %s3346 = scalar_lea.vmem [#allocation3], 1366
    %3347 = vst.msk [vmem:[%s3346] ss:$8 sm:$0x1] %vm75, %v3340
    %3348 = vst.msk [vmem:[%s3346] ss:$8 sm:$0x0] %vm75, %v3340
    %v3349 = vld [vmem:[%s2885] ss:$2 sm:$0xff]
    %v3350 = vld [vmem:[%s2887] ss:$2 sm:$0x3]
    %3353 = vrot.lane.b32.xlu0 %v3349, 105
    %v3354 = vpop.permute.xlu0 %3353
    %3355 = vrot.lane.b32.xlu0 %v3350, 105
    %v3356 = vpop.permute.xlu0 %3355
    %v3357 = vrot.slane %v3354, 1
    %v3358 = vrot.slane %v3356, 1
    %v3359 = vsel %vm90, %v3357, %v3358
    %v3360 = vsel %vm576, %v3354, %v3359
    %v3361 = vsel %vm576, %v3356, %v3358
    %s3364 = scalar_lea.vmem [#allocation3], 1303
    %3365 = vst [vmem:[%s3364] ss:$8 sm:$0xf] %v3360
    %3366 = vst [vmem:[%s3364] ss:$8 sm:$0xf0] %v3360
    %s3367 = scalar_lea.vmem [#allocation3], 1367
    %3368 = vst.msk [vmem:[%s3367] ss:$8 sm:$0x1] %vm75, %v3361
    %3369 = vst.msk [vmem:[%s3367] ss:$8 sm:$0x0] %vm75, %v3361
    %v3370 = vld [vmem:[%s2885] ss:$2 sm:$0xff]
    %v3371 = vld [vmem:[%s2887] ss:$2 sm:$0x3]
    %3374 = vrot.lane.b32.xlu0 %v3370, 104
    %v3375 = vpop.permute.xlu0 %3374
    %3376 = vrot.lane.b32.xlu0 %v3371, 104
    %v3377 = vpop.permute.xlu0 %3376
    %v3378 = vrot.slane %v3375, 1
    %v3379 = vrot.slane %v3377, 1
    %v3380 = vsel %vm90, %v3378, %v3379
    %v3381 = vsel %vm598, %v3375, %v3380
    %v3382 = vsel %vm598, %v3377, %v3379
    %s3385 = scalar_lea.vmem [#allocation3], 1368
    %3386 = vst [vmem:[%s3385] ss:$8 sm:$0xf] %v3381
    %3387 = vst [vmem:[%s3385] ss:$8 sm:$0xf0] %v3381
    %s3388 = scalar_lea.vmem [#allocation3], 1432
    %3389 = vst.msk [vmem:[%s3388] ss:$8 sm:$0x1] %vm75, %v3382
    %3390 = vst.msk [vmem:[%s3388] ss:$8 sm:$0x0] %vm75, %v3382
    %v3391 = vld [vmem:[%s2885] ss:$2 sm:$0xff]
    %v3392 = vld [vmem:[%s2887] ss:$2 sm:$0x3]
    %3395 = vrot.lane.b32.xlu0 %v3391, 103
    %v3396 = vpop.permute.xlu0 %3395
    %3397 = vrot.lane.b32.xlu0 %v3392, 103
    %v3398 = vpop.permute.xlu0 %3397
    %v3399 = vrot.slane %v3396, 1
    %v3400 = vrot.slane %v3398, 1
    %v3401 = vsel %vm90, %v3399, %v3400
    %v3402 = vsel %vm620, %v3396, %v3401
    %v3403 = vsel %vm620, %v3398, %v3400
    %s3406 = scalar_lea.vmem [#allocation3], 1369
    %3407 = vst [vmem:[%s3406] ss:$8 sm:$0xf] %v3402
    %3408 = vst [vmem:[%s3406] ss:$8 sm:$0xf0] %v3402
    %s3409 = scalar_lea.vmem [#allocation3], 1433
    %3410 = vst.msk [vmem:[%s3409] ss:$8 sm:$0x1] %vm75, %v3403
    %3411 = vst.msk [vmem:[%s3409] ss:$8 sm:$0x0] %vm75, %v3403
    %v3412 = vld [vmem:[%s2885] ss:$2 sm:$0xff]
    %v3413 = vld [vmem:[%s2887] ss:$2 sm:$0x3]
    %3416 = vrot.lane.b32.xlu0 %v3412, 102
    %v3417 = vpop.permute.xlu0 %3416
    %3418 = vrot.lane.b32.xlu0 %v3413, 102
    %v3419 = vpop.permute.xlu0 %3418
    %v3420 = vrot.slane %v3417, 1
    %v3421 = vrot.slane %v3419, 1
    %v3422 = vsel %vm90, %v3420, %v3421
    %v3423 = vsel %vm642, %v3417, %v3422
    %v3424 = vsel %vm642, %v3419, %v3421
    %s3427 = scalar_lea.vmem [#allocation3], 1370
    %3428 = vst [vmem:[%s3427] ss:$8 sm:$0xf] %v3423
    %3429 = vst [vmem:[%s3427] ss:$8 sm:$0xf0] %v3423
    %s3430 = scalar_lea.vmem [#allocation3], 1434
    %3431 = vst.msk [vmem:[%s3430] ss:$8 sm:$0x1] %vm75, %v3424
    %3432 = vst.msk [vmem:[%s3430] ss:$8 sm:$0x0] %vm75, %v3424
    %v3433 = vld [vmem:[%s2885] ss:$2 sm:$0xff]
    %v3434 = vld [vmem:[%s2887] ss:$2 sm:$0x3]
    %3437 = vrot.lane.b32.xlu0 %v3433, 101
    %v3438 = vpop.permute.xlu0 %3437
    %3439 = vrot.lane.b32.xlu0 %v3434, 101
    %v3440 = vpop.permute.xlu0 %3439
    %v3441 = vrot.slane %v3438, 1
    %v3442 = vrot.slane %v3440, 1
    %v3443 = vsel %vm90, %v3441, %v3442
    %v3444 = vsel %vm664, %v3438, %v3443
    %v3445 = vsel %vm664, %v3440, %v3442
    %s3448 = scalar_lea.vmem [#allocation3], 1371
    %3449 = vst [vmem:[%s3448] ss:$8 sm:$0xf] %v3444
    %3450 = vst [vmem:[%s3448] ss:$8 sm:$0xf0] %v3444
    %s3451 = scalar_lea.vmem [#allocation3], 1435
    %3452 = vst.msk [vmem:[%s3451] ss:$8 sm:$0x1] %vm75, %v3445
    %3453 = vst.msk [vmem:[%s3451] ss:$8 sm:$0x0] %vm75, %v3445
    %v3454 = vld [vmem:[%s2885] ss:$2 sm:$0xff]
    %v3455 = vld [vmem:[%s2887] ss:$2 sm:$0x3]
    %3458 = vrot.lane.b32.xlu0 %v3454, 100
    %v3459 = vpop.permute.xlu0 %3458
    %3460 = vrot.lane.b32.xlu0 %v3455, 100
    %v3461 = vpop.permute.xlu0 %3460
    %v3462 = vrot.slane %v3459, 1
    %v3463 = vrot.slane %v3461, 1
    %v3464 = vsel %vm90, %v3462, %v3463
    %v3465 = vsel %vm686, %v3459, %v3464
    %v3466 = vsel %vm686, %v3461, %v3463
    %s3469 = scalar_lea.vmem [#allocation3], 1372
    %3470 = vst [vmem:[%s3469] ss:$8 sm:$0xf] %v3465
    %3471 = vst [vmem:[%s3469] ss:$8 sm:$0xf0] %v3465
    %s3472 = scalar_lea.vmem [#allocation3], 1436
    %3473 = vst.msk [vmem:[%s3472] ss:$8 sm:$0x1] %vm75, %v3466
    %3474 = vst.msk [vmem:[%s3472] ss:$8 sm:$0x0] %vm75, %v3466
    %v3475 = vld [vmem:[%s2885] ss:$2 sm:$0xff]
    %v3476 = vld [vmem:[%s2887] ss:$2 sm:$0x3]
    %3479 = vrot.lane.b32.xlu0 %v3475, 99
    %v3480 = vpop.permute.xlu0 %3479
    %3481 = vrot.lane.b32.xlu0 %v3476, 99
    %v3482 = vpop.permute.xlu0 %3481
    %v3483 = vrot.slane %v3480, 1
    %v3484 = vrot.slane %v3482, 1
    %v3485 = vsel %vm90, %v3483, %v3484
    %v3486 = vsel %vm708, %v3480, %v3485
    %v3487 = vsel %vm708, %v3482, %v3484
    %s3490 = scalar_lea.vmem [#allocation3], 1373
    %3491 = vst [vmem:[%s3490] ss:$8 sm:$0xf] %v3486
    %3492 = vst [vmem:[%s3490] ss:$8 sm:$0xf0] %v3486
    %s3493 = scalar_lea.vmem [#allocation3], 1437
    %3494 = vst.msk [vmem:[%s3493] ss:$8 sm:$0x1] %vm75, %v3487
    %3495 = vst.msk [vmem:[%s3493] ss:$8 sm:$0x0] %vm75, %v3487
    %v3496 = vld [vmem:[%s2885] ss:$2 sm:$0xff]
    %v3497 = vld [vmem:[%s2887] ss:$2 sm:$0x3]
    %3500 = vrot.lane.b32.xlu0 %v3496, 98
    %v3501 = vpop.permute.xlu0 %3500
    %3502 = vrot.lane.b32.xlu0 %v3497, 98
    %v3503 = vpop.permute.xlu0 %3502
    %v3504 = vrot.slane %v3501, 1
    %v3505 = vrot.slane %v3503, 1
    %v3506 = vsel %vm90, %v3504, %v3505
    %v3507 = vsel %vm730, %v3501, %v3506
    %v3508 = vsel %vm730, %v3503, %v3505
    %s3511 = scalar_lea.vmem [#allocation3], 1374
    %3512 = vst [vmem:[%s3511] ss:$8 sm:$0xf] %v3507
    %3513 = vst [vmem:[%s3511] ss:$8 sm:$0xf0] %v3507
    %s3514 = scalar_lea.vmem [#allocation3], 1438
    %3515 = vst.msk [vmem:[%s3514] ss:$8 sm:$0x1] %vm75, %v3508
    %3516 = vst.msk [vmem:[%s3514] ss:$8 sm:$0x0] %vm75, %v3508
    %v3517 = vld [vmem:[%s2885] ss:$2 sm:$0xff]
    %v3518 = vld [vmem:[%s2887] ss:$2 sm:$0x3]
    %3521 = vrot.lane.b32.xlu0 %v3517, 97
    %v3522 = vpop.permute.xlu0 %3521
    %3523 = vrot.lane.b32.xlu0 %v3518, 97
    %v3524 = vpop.permute.xlu0 %3523
    %v3525 = vrot.slane %v3522, 1
    %v3526 = vrot.slane %v3524, 1
    %v3527 = vsel %vm90, %v3525, %v3526
    %v3528 = vsel %vm752, %v3522, %v3527
    %v3529 = vsel %vm752, %v3524, %v3526
    %s3532 = scalar_lea.vmem [#allocation3], 1375
    %3533 = vst [vmem:[%s3532] ss:$8 sm:$0xf] %v3528
    %3534 = vst [vmem:[%s3532] ss:$8 sm:$0xf0] %v3528
    %s3535 = scalar_lea.vmem [#allocation3], 1439
    %3536 = vst.msk [vmem:[%s3535] ss:$8 sm:$0x1] %vm75, %v3529
    %3537 = vst.msk [vmem:[%s3535] ss:$8 sm:$0x0] %vm75, %v3529
    %v3538 = vld [vmem:[%s2885] ss:$2 sm:$0xff]
    %v3539 = vld [vmem:[%s2887] ss:$2 sm:$0x3]
    %3542 = vrot.lane.b32.xlu0 %v3538, 96
    %v3543 = vpop.permute.xlu0 %3542
    %3544 = vrot.lane.b32.xlu0 %v3539, 96
    %v3545 = vpop.permute.xlu0 %3544
    %v3546 = vrot.slane %v3543, 1
    %v3547 = vrot.slane %v3545, 1
    %v3548 = vsel %vm90, %v3546, %v3547
    %v3549 = vsel %vm774, %v3543, %v3548
    %v3550 = vsel %vm774, %v3545, %v3547
    %s3553 = scalar_lea.vmem [#allocation3], 1440
    %3554 = vst [vmem:[%s3553] ss:$8 sm:$0xf] %v3549
    %3555 = vst [vmem:[%s3553] ss:$8 sm:$0xf0] %v3549
    %s3556 = scalar_lea.vmem [#allocation3], 1504
    %3557 = vst.msk [vmem:[%s3556] ss:$8 sm:$0x1] %vm75, %v3550
    %3558 = vst.msk [vmem:[%s3556] ss:$8 sm:$0x0] %vm75, %v3550
    %v3559 = vld [vmem:[%s2885] ss:$2 sm:$0xff]
    %v3560 = vld [vmem:[%s2887] ss:$2 sm:$0x3]
    %3563 = vrot.lane.b32.xlu0 %v3559, 95
    %v3564 = vpop.permute.xlu0 %3563
    %3565 = vrot.lane.b32.xlu0 %v3560, 95
    %v3566 = vpop.permute.xlu0 %3565
    %v3567 = vrot.slane %v3564, 1
    %v3568 = vrot.slane %v3566, 1
    %v3569 = vsel %vm90, %v3567, %v3568
    %v3570 = vsel %vm796, %v3564, %v3569
    %v3571 = vsel %vm796, %v3566, %v3568
    %s3574 = scalar_lea.vmem [#allocation3], 1441
    %3575 = vst [vmem:[%s3574] ss:$8 sm:$0xf] %v3570
    %3576 = vst [vmem:[%s3574] ss:$8 sm:$0xf0] %v3570
    %s3577 = scalar_lea.vmem [#allocation3], 1505
    %3578 = vst.msk [vmem:[%s3577] ss:$8 sm:$0x1] %vm75, %v3571
    %3579 = vst.msk [vmem:[%s3577] ss:$8 sm:$0x0] %vm75, %v3571
    %v3580 = vld [vmem:[%s2885] ss:$2 sm:$0xff]
    %v3581 = vld [vmem:[%s2887] ss:$2 sm:$0x3]
    %3584 = vrot.lane.b32.xlu0 %v3580, 94
    %v3585 = vpop.permute.xlu0 %3584
    %3586 = vrot.lane.b32.xlu0 %v3581, 94
    %v3587 = vpop.permute.xlu0 %3586
    %v3588 = vrot.slane %v3585, 1
    %v3589 = vrot.slane %v3587, 1
    %v3590 = vsel %vm90, %v3588, %v3589
    %v3591 = vsel %vm818, %v3585, %v3590
    %v3592 = vsel %vm818, %v3587, %v3589
    %s3595 = scalar_lea.vmem [#allocation3], 1442
    %3596 = vst [vmem:[%s3595] ss:$8 sm:$0xf] %v3591
    %3597 = vst [vmem:[%s3595] ss:$8 sm:$0xf0] %v3591
    %s3598 = scalar_lea.vmem [#allocation3], 1506
    %3599 = vst.msk [vmem:[%s3598] ss:$8 sm:$0x1] %vm75, %v3592
    %3600 = vst.msk [vmem:[%s3598] ss:$8 sm:$0x0] %vm75, %v3592
    %v3601 = vld [vmem:[%s2885] ss:$2 sm:$0xff]
    %v3602 = vld [vmem:[%s2887] ss:$2 sm:$0x3]
    %3605 = vrot.lane.b32.xlu0 %v3601, 93
    %v3606 = vpop.permute.xlu0 %3605
    %3607 = vrot.lane.b32.xlu0 %v3602, 93
    %v3608 = vpop.permute.xlu0 %3607
    %v3609 = vrot.slane %v3606, 1
    %v3610 = vrot.slane %v3608, 1
    %v3611 = vsel %vm90, %v3609, %v3610
    %v3612 = vsel %vm840, %v3606, %v3611
    %v3613 = vsel %vm840, %v3608, %v3610
    %s3616 = scalar_lea.vmem [#allocation3], 1443
    %3617 = vst [vmem:[%s3616] ss:$8 sm:$0xf] %v3612
    %3618 = vst [vmem:[%s3616] ss:$8 sm:$0xf0] %v3612
    %s3619 = scalar_lea.vmem [#allocation3], 1507
    %3620 = vst.msk [vmem:[%s3619] ss:$8 sm:$0x1] %vm75, %v3613
    %3621 = vst.msk [vmem:[%s3619] ss:$8 sm:$0x0] %vm75, %v3613
    %v3622 = vld [vmem:[%s2885] ss:$2 sm:$0xff]
    %v3623 = vld [vmem:[%s2887] ss:$2 sm:$0x3]
    %3626 = vrot.lane.b32.xlu0 %v3622, 92
    %v3627 = vpop.permute.xlu0 %3626
    %3628 = vrot.lane.b32.xlu0 %v3623, 92
    %v3629 = vpop.permute.xlu0 %3628
    %v3630 = vrot.slane %v3627, 1
    %v3631 = vrot.slane %v3629, 1
    %v3632 = vsel %vm90, %v3630, %v3631
    %v3633 = vsel %vm862, %v3627, %v3632
    %v3634 = vsel %vm862, %v3629, %v3631
    %s3637 = scalar_lea.vmem [#allocation3], 1444
    %3638 = vst [vmem:[%s3637] ss:$8 sm:$0xf] %v3633
    %3639 = vst [vmem:[%s3637] ss:$8 sm:$0xf0] %v3633
    %s3640 = scalar_lea.vmem [#allocation3], 1508
    %3641 = vst.msk [vmem:[%s3640] ss:$8 sm:$0x1] %vm75, %v3634
    %3642 = vst.msk [vmem:[%s3640] ss:$8 sm:$0x0] %vm75, %v3634
    %v3643 = vld [vmem:[%s2885] ss:$2 sm:$0xff]
    %v3644 = vld [vmem:[%s2887] ss:$2 sm:$0x3]
    %3647 = vrot.lane.b32.xlu0 %v3643, 91
    %v3648 = vpop.permute.xlu0 %3647
    %3649 = vrot.lane.b32.xlu0 %v3644, 91
    %v3650 = vpop.permute.xlu0 %3649
    %v3651 = vrot.slane %v3648, 1
    %v3652 = vrot.slane %v3650, 1
    %v3653 = vsel %vm90, %v3651, %v3652
    %v3654 = vsel %vm884, %v3648, %v3653
    %v3655 = vsel %vm884, %v3650, %v3652
    %s3658 = scalar_lea.vmem [#allocation3], 1445
    %3659 = vst [vmem:[%s3658] ss:$8 sm:$0xf] %v3654
    %3660 = vst [vmem:[%s3658] ss:$8 sm:$0xf0] %v3654
    %s3661 = scalar_lea.vmem [#allocation3], 1509
    %3662 = vst.msk [vmem:[%s3661] ss:$8 sm:$0x1] %vm75, %v3655
    %3663 = vst.msk [vmem:[%s3661] ss:$8 sm:$0x0] %vm75, %v3655
    %v3664 = vld [vmem:[%s2885] ss:$2 sm:$0xff]
    %v3665 = vld [vmem:[%s2887] ss:$2 sm:$0x3]
    %3668 = vrot.lane.b32.xlu0 %v3664, 90
    %v3669 = vpop.permute.xlu0 %3668
    %3670 = vrot.lane.b32.xlu0 %v3665, 90
    %v3671 = vpop.permute.xlu0 %3670
    %v3672 = vrot.slane %v3669, 1
    %v3673 = vrot.slane %v3671, 1
    %v3674 = vsel %vm90, %v3672, %v3673
    %v3675 = vsel %vm906, %v3669, %v3674
    %v3676 = vsel %vm906, %v3671, %v3673
    %s3679 = scalar_lea.vmem [#allocation3], 1446
    %3680 = vst [vmem:[%s3679] ss:$8 sm:$0xf] %v3675
    %3681 = vst [vmem:[%s3679] ss:$8 sm:$0xf0] %v3675
    %s3682 = scalar_lea.vmem [#allocation3], 1510
    %3683 = vst.msk [vmem:[%s3682] ss:$8 sm:$0x1] %vm75, %v3676
    %3684 = vst.msk [vmem:[%s3682] ss:$8 sm:$0x0] %vm75, %v3676
    %v3685 = vld [vmem:[%s2885] ss:$2 sm:$0xff]
    %v3686 = vld [vmem:[%s2887] ss:$2 sm:$0x3]
    %3689 = vrot.lane.b32.xlu0 %v3685, 89
    %v3690 = vpop.permute.xlu0 %3689
    %3691 = vrot.lane.b32.xlu0 %v3686, 89
    %v3692 = vpop.permute.xlu0 %3691
    %v3693 = vrot.slane %v3690, 1
    %v3694 = vrot.slane %v3692, 1
    %v3695 = vsel %vm90, %v3693, %v3694
    %v3696 = vsel %vm928, %v3690, %v3695
    %v3697 = vsel %vm928, %v3692, %v3694
    %s3700 = scalar_lea.vmem [#allocation3], 1447
    %3701 = vst [vmem:[%s3700] ss:$8 sm:$0xf] %v3696
    %3702 = vst [vmem:[%s3700] ss:$8 sm:$0xf0] %v3696
    %s3703 = scalar_lea.vmem [#allocation3], 1511
    %3704 = vst.msk [vmem:[%s3703] ss:$8 sm:$0x1] %vm75, %v3697
    %3705 = vst.msk [vmem:[%s3703] ss:$8 sm:$0x0] %vm75, %v3697
    %v3706 = vld [vmem:[%s2885] ss:$2 sm:$0xff]
    %v3707 = vld [vmem:[%s2887] ss:$2 sm:$0x3]
    %3710 = vrot.lane.b32.xlu0 %v3706, 88
    %v3711 = vpop.permute.xlu0 %3710
    %3712 = vrot.lane.b32.xlu0 %v3707, 88
    %v3713 = vpop.permute.xlu0 %3712
    %v3714 = vrot.slane %v3711, 1
    %v3715 = vrot.slane %v3713, 1
    %v3716 = vsel %vm90, %v3714, %v3715
    %v3717 = vsel %vm950, %v3711, %v3716
    %v3718 = vsel %vm950, %v3713, %v3715
    %s3721 = scalar_lea.vmem [#allocation3], 1512
    %3722 = vst [vmem:[%s3721] ss:$8 sm:$0xf] %v3717
    %3723 = vst [vmem:[%s3721] ss:$8 sm:$0xf0] %v3717
    %s3724 = scalar_lea.vmem [#allocation3], 1576
    %3725 = vst.msk [vmem:[%s3724] ss:$8 sm:$0x1] %vm75, %v3718
    %3726 = vst.msk [vmem:[%s3724] ss:$8 sm:$0x0] %vm75, %v3718
    %v3727 = vld [vmem:[%s2885] ss:$2 sm:$0xff]
    %v3728 = vld [vmem:[%s2887] ss:$2 sm:$0x3]
    %3731 = vrot.lane.b32.xlu0 %v3727, 87
    %v3732 = vpop.permute.xlu0 %3731
    %3733 = vrot.lane.b32.xlu0 %v3728, 87
    %v3734 = vpop.permute.xlu0 %3733
    %v3735 = vrot.slane %v3732, 1
    %v3736 = vrot.slane %v3734, 1
    %v3737 = vsel %vm90, %v3735, %v3736
    %v3738 = vsel %vm972, %v3732, %v3737
    %v3739 = vsel %vm972, %v3734, %v3736
    %s3742 = scalar_lea.vmem [#allocation3], 1513
    %3743 = vst [vmem:[%s3742] ss:$8 sm:$0xf] %v3738
    %3744 = vst [vmem:[%s3742] ss:$8 sm:$0xf0] %v3738
    %s3745 = scalar_lea.vmem [#allocation3], 1577
    %3746 = vst.msk [vmem:[%s3745] ss:$8 sm:$0x1] %vm75, %v3739
    %3747 = vst.msk [vmem:[%s3745] ss:$8 sm:$0x0] %vm75, %v3739
    %v3748 = vld [vmem:[%s2885] ss:$2 sm:$0xff]
    %v3749 = vld [vmem:[%s2887] ss:$2 sm:$0x3]
    %3752 = vrot.lane.b32.xlu0 %v3748, 86
    %v3753 = vpop.permute.xlu0 %3752
    %3754 = vrot.lane.b32.xlu0 %v3749, 86
    %v3755 = vpop.permute.xlu0 %3754
    %v3756 = vrot.slane %v3753, 1
    %v3757 = vrot.slane %v3755, 1
    %v3758 = vsel %vm90, %v3756, %v3757
    %v3759 = vsel %vm994, %v3753, %v3758
    %v3760 = vsel %vm994, %v3755, %v3757
    %s3763 = scalar_lea.vmem [#allocation3], 1514
    %3764 = vst [vmem:[%s3763] ss:$8 sm:$0xf] %v3759
    %3765 = vst [vmem:[%s3763] ss:$8 sm:$0xf0] %v3759
    %s3766 = scalar_lea.vmem [#allocation3], 1578
    %3767 = vst.msk [vmem:[%s3766] ss:$8 sm:$0x1] %vm75, %v3760
    %3768 = vst.msk [vmem:[%s3766] ss:$8 sm:$0x0] %vm75, %v3760
    %v3769 = vld [vmem:[%s2885] ss:$2 sm:$0xff]
    %v3770 = vld [vmem:[%s2887] ss:$2 sm:$0x3]
    %3773 = vrot.lane.b32.xlu0 %v3769, 85
    %v3774 = vpop.permute.xlu0 %3773
    %3775 = vrot.lane.b32.xlu0 %v3770, 85
    %v3776 = vpop.permute.xlu0 %3775
    %v3777 = vrot.slane %v3774, 1
    %v3778 = vrot.slane %v3776, 1
    %v3779 = vsel %vm90, %v3777, %v3778
    %v3780 = vsel %vm1016, %v3774, %v3779
    %v3781 = vsel %vm1016, %v3776, %v3778
    %s3784 = scalar_lea.vmem [#allocation3], 1515
    %3785 = vst [vmem:[%s3784] ss:$8 sm:$0xf] %v3780
    %3786 = vst [vmem:[%s3784] ss:$8 sm:$0xf0] %v3780
    %s3787 = scalar_lea.vmem [#allocation3], 1579
    %3788 = vst.msk [vmem:[%s3787] ss:$8 sm:$0x1] %vm75, %v3781
    %3789 = vst.msk [vmem:[%s3787] ss:$8 sm:$0x0] %vm75, %v3781
    %v3790 = vld [vmem:[%s2885] ss:$2 sm:$0xff]
    %v3791 = vld [vmem:[%s2887] ss:$2 sm:$0x3]
    %3794 = vrot.lane.b32.xlu0 %v3790, 84
    %v3795 = vpop.permute.xlu0 %3794
    %3796 = vrot.lane.b32.xlu0 %v3791, 84
    %v3797 = vpop.permute.xlu0 %3796
    %v3798 = vrot.slane %v3795, 1
    %v3799 = vrot.slane %v3797, 1
    %v3800 = vsel %vm90, %v3798, %v3799
    %v3801 = vsel %vm1038, %v3795, %v3800
    %v3802 = vsel %vm1038, %v3797, %v3799
    %s3805 = scalar_lea.vmem [#allocation3], 1516
    %3806 = vst [vmem:[%s3805] ss:$8 sm:$0xf] %v3801
    %3807 = vst [vmem:[%s3805] ss:$8 sm:$0xf0] %v3801
    %s3808 = scalar_lea.vmem [#allocation3], 1580
    %3809 = vst.msk [vmem:[%s3808] ss:$8 sm:$0x1] %vm75, %v3802
    %3810 = vst.msk [vmem:[%s3808] ss:$8 sm:$0x0] %vm75, %v3802
    %v3811 = vld [vmem:[%s2885] ss:$2 sm:$0xff]
    %v3812 = vld [vmem:[%s2887] ss:$2 sm:$0x3]
    %3815 = vrot.lane.b32.xlu0 %v3811, 83
    %v3816 = vpop.permute.xlu0 %3815
    %3817 = vrot.lane.b32.xlu0 %v3812, 83
    %v3818 = vpop.permute.xlu0 %3817
    %v3819 = vrot.slane %v3816, 1
    %v3820 = vrot.slane %v3818, 1
    %v3821 = vsel %vm90, %v3819, %v3820
    %v3822 = vsel %vm1060, %v3816, %v3821
    %v3823 = vsel %vm1060, %v3818, %v3820
    %s3826 = scalar_lea.vmem [#allocation3], 1517
    %3827 = vst [vmem:[%s3826] ss:$8 sm:$0xf] %v3822
    %3828 = vst [vmem:[%s3826] ss:$8 sm:$0xf0] %v3822
    %s3829 = scalar_lea.vmem [#allocation3], 1581
    %3830 = vst.msk [vmem:[%s3829] ss:$8 sm:$0x1] %vm75, %v3823
    %3831 = vst.msk [vmem:[%s3829] ss:$8 sm:$0x0] %vm75, %v3823
    %v3832 = vld [vmem:[%s2885] ss:$2 sm:$0xff]
    %v3833 = vld [vmem:[%s2887] ss:$2 sm:$0x3]
    %3836 = vrot.lane.b32.xlu0 %v3832, 82
    %v3837 = vpop.permute.xlu0 %3836
    %3838 = vrot.lane.b32.xlu0 %v3833, 82
    %v3839 = vpop.permute.xlu0 %3838
    %v3840 = vrot.slane %v3837, 1
    %v3841 = vrot.slane %v3839, 1
    %v3842 = vsel %vm90, %v3840, %v3841
    %v3843 = vsel %vm1082, %v3837, %v3842
    %v3844 = vsel %vm1082, %v3839, %v3841
    %s3847 = scalar_lea.vmem [#allocation3], 1518
    %3848 = vst [vmem:[%s3847] ss:$8 sm:$0xf] %v3843
    %3849 = vst [vmem:[%s3847] ss:$8 sm:$0xf0] %v3843
    %s3850 = scalar_lea.vmem [#allocation3], 1582
    %3851 = vst.msk [vmem:[%s3850] ss:$8 sm:$0x1] %vm75, %v3844
    %3852 = vst.msk [vmem:[%s3850] ss:$8 sm:$0x0] %vm75, %v3844
    %v3853 = vld [vmem:[%s2885] ss:$2 sm:$0xff]
    %v3854 = vld [vmem:[%s2887] ss:$2 sm:$0x3]
    %3857 = vrot.lane.b32.xlu0 %v3853, 81
    %v3858 = vpop.permute.xlu0 %3857
    %3859 = vrot.lane.b32.xlu0 %v3854, 81
    %v3860 = vpop.permute.xlu0 %3859
    %v3861 = vrot.slane %v3858, 1
    %v3862 = vrot.slane %v3860, 1
    %v3863 = vsel %vm90, %v3861, %v3862
    %v3864 = vsel %vm1104, %v3858, %v3863
    %v3865 = vsel %vm1104, %v3860, %v3862
    %s3868 = scalar_lea.vmem [#allocation3], 1519
    %3869 = vst [vmem:[%s3868] ss:$8 sm:$0xf] %v3864
    %3870 = vst [vmem:[%s3868] ss:$8 sm:$0xf0] %v3864
    %s3871 = scalar_lea.vmem [#allocation3], 1583
    %3872 = vst.msk [vmem:[%s3871] ss:$8 sm:$0x1] %vm75, %v3865
    %3873 = vst.msk [vmem:[%s3871] ss:$8 sm:$0x0] %vm75, %v3865
    %v3874 = vld [vmem:[%s2885] ss:$2 sm:$0xff]
    %v3875 = vld [vmem:[%s2887] ss:$2 sm:$0x3]
    %3878 = vrot.lane.b32.xlu0 %v3874, 80
    %v3879 = vpop.permute.xlu0 %3878
    %3880 = vrot.lane.b32.xlu0 %v3875, 80
    %v3881 = vpop.permute.xlu0 %3880
    %v3882 = vrot.slane %v3879, 1
    %v3883 = vrot.slane %v3881, 1
    %v3884 = vsel %vm90, %v3882, %v3883
    %v3885 = vsel %vm1126, %v3879, %v3884
    %v3886 = vsel %vm1126, %v3881, %v3883
    %s3889 = scalar_lea.vmem [#allocation3], 1584
    %3890 = vst [vmem:[%s3889] ss:$8 sm:$0xf] %v3885
    %3891 = vst [vmem:[%s3889] ss:$8 sm:$0xf0] %v3885
    %s3892 = scalar_lea.vmem [#allocation3], 1648
    %3893 = vst.msk [vmem:[%s3892] ss:$8 sm:$0x1] %vm75, %v3886
    %3894 = vst.msk [vmem:[%s3892] ss:$8 sm:$0x0] %vm75, %v3886
    %v3895 = vld [vmem:[%s2885] ss:$2 sm:$0xff]
    %v3896 = vld [vmem:[%s2887] ss:$2 sm:$0x3]
    %3899 = vrot.lane.b32.xlu0 %v3895, 79
    %v3900 = vpop.permute.xlu0 %3899
    %3901 = vrot.lane.b32.xlu0 %v3896, 79
    %v3902 = vpop.permute.xlu0 %3901
    %v3903 = vrot.slane %v3900, 1
    %v3904 = vrot.slane %v3902, 1
    %v3905 = vsel %vm90, %v3903, %v3904
    %v3906 = vsel %vm1148, %v3900, %v3905
    %v3907 = vsel %vm1148, %v3902, %v3904
    %s3910 = scalar_lea.vmem [#allocation3], 1585
    %3911 = vst [vmem:[%s3910] ss:$8 sm:$0xf] %v3906
    %3912 = vst [vmem:[%s3910] ss:$8 sm:$0xf0] %v3906
    %s3913 = scalar_lea.vmem [#allocation3], 1649
    %3914 = vst.msk [vmem:[%s3913] ss:$8 sm:$0x1] %vm75, %v3907
    %3915 = vst.msk [vmem:[%s3913] ss:$8 sm:$0x0] %vm75, %v3907
    %v3916 = vld [vmem:[%s2885] ss:$2 sm:$0xff]
    %v3917 = vld [vmem:[%s2887] ss:$2 sm:$0x3]
    %3920 = vrot.lane.b32.xlu0 %v3916, 78
    %v3921 = vpop.permute.xlu0 %3920
    %3922 = vrot.lane.b32.xlu0 %v3917, 78
    %v3923 = vpop.permute.xlu0 %3922
    %v3924 = vrot.slane %v3921, 1
    %v3925 = vrot.slane %v3923, 1
    %v3926 = vsel %vm90, %v3924, %v3925
    %v3927 = vsel %vm1170, %v3921, %v3926
    %v3928 = vsel %vm1170, %v3923, %v3925
    %s3931 = scalar_lea.vmem [#allocation3], 1586
    %3932 = vst [vmem:[%s3931] ss:$8 sm:$0xf] %v3927
    %3933 = vst [vmem:[%s3931] ss:$8 sm:$0xf0] %v3927
    %s3934 = scalar_lea.vmem [#allocation3], 1650
    %3935 = vst.msk [vmem:[%s3934] ss:$8 sm:$0x1] %vm75, %v3928
    %3936 = vst.msk [vmem:[%s3934] ss:$8 sm:$0x0] %vm75, %v3928
    %v3937 = vld [vmem:[%s2885] ss:$2 sm:$0xff]
    %v3938 = vld [vmem:[%s2887] ss:$2 sm:$0x3]
    %3941 = vrot.lane.b32.xlu0 %v3937, 77
    %v3942 = vpop.permute.xlu0 %3941
    %3943 = vrot.lane.b32.xlu0 %v3938, 77
    %v3944 = vpop.permute.xlu0 %3943
    %v3945 = vrot.slane %v3942, 1
    %v3946 = vrot.slane %v3944, 1
    %v3947 = vsel %vm90, %v3945, %v3946
    %v3948 = vsel %vm1192, %v3942, %v3947
    %v3949 = vsel %vm1192, %v3944, %v3946
    %s3952 = scalar_lea.vmem [#allocation3], 1587
    %3953 = vst [vmem:[%s3952] ss:$8 sm:$0xf] %v3948
    %3954 = vst [vmem:[%s3952] ss:$8 sm:$0xf0] %v3948
    %s3955 = scalar_lea.vmem [#allocation3], 1651
    %3956 = vst.msk [vmem:[%s3955] ss:$8 sm:$0x1] %vm75, %v3949
    %3957 = vst.msk [vmem:[%s3955] ss:$8 sm:$0x0] %vm75, %v3949
    %v3958 = vld [vmem:[%s2885] ss:$2 sm:$0xff]
    %v3959 = vld [vmem:[%s2887] ss:$2 sm:$0x3]
    %3962 = vrot.lane.b32.xlu0 %v3958, 76
    %v3963 = vpop.permute.xlu0 %3962
    %3964 = vrot.lane.b32.xlu0 %v3959, 76
    %v3965 = vpop.permute.xlu0 %3964
    %v3966 = vrot.slane %v3963, 1
    %v3967 = vrot.slane %v3965, 1
    %v3968 = vsel %vm90, %v3966, %v3967
    %v3969 = vsel %vm1214, %v3963, %v3968
    %v3970 = vsel %vm1214, %v3965, %v3967
    %s3973 = scalar_lea.vmem [#allocation3], 1588
    %3974 = vst [vmem:[%s3973] ss:$8 sm:$0xf] %v3969
    %3975 = vst [vmem:[%s3973] ss:$8 sm:$0xf0] %v3969
    %s3976 = scalar_lea.vmem [#allocation3], 1652
    %3977 = vst.msk [vmem:[%s3976] ss:$8 sm:$0x1] %vm75, %v3970
    %3978 = vst.msk [vmem:[%s3976] ss:$8 sm:$0x0] %vm75, %v3970
    %v3979 = vld [vmem:[%s2885] ss:$2 sm:$0xff]
    %v3980 = vld [vmem:[%s2887] ss:$2 sm:$0x3]
    %3983 = vrot.lane.b32.xlu0 %v3979, 75
    %v3984 = vpop.permute.xlu0 %3983
    %3985 = vrot.lane.b32.xlu0 %v3980, 75
    %v3986 = vpop.permute.xlu0 %3985
    %v3987 = vrot.slane %v3984, 1
    %v3988 = vrot.slane %v3986, 1
    %v3989 = vsel %vm90, %v3987, %v3988
    %v3990 = vsel %vm1236, %v3984, %v3989
    %v3991 = vsel %vm1236, %v3986, %v3988
    %s3994 = scalar_lea.vmem [#allocation3], 1589
    %3995 = vst [vmem:[%s3994] ss:$8 sm:$0xf] %v3990
    %3996 = vst [vmem:[%s3994] ss:$8 sm:$0xf0] %v3990
    %s3997 = scalar_lea.vmem [#allocation3], 1653
    %3998 = vst.msk [vmem:[%s3997] ss:$8 sm:$0x1] %vm75, %v3991
    %3999 = vst.msk [vmem:[%s3997] ss:$8 sm:$0x0] %vm75, %v3991
    %v4000 = vld [vmem:[%s2885] ss:$2 sm:$0xff]
    %v4001 = vld [vmem:[%s2887] ss:$2 sm:$0x3]
    %4004 = vrot.lane.b32.xlu0 %v4000, 74
    %v4005 = vpop.permute.xlu0 %4004
    %4006 = vrot.lane.b32.xlu0 %v4001, 74
    %v4007 = vpop.permute.xlu0 %4006
    %v4008 = vrot.slane %v4005, 1
    %v4009 = vrot.slane %v4007, 1
    %v4010 = vsel %vm90, %v4008, %v4009
    %v4011 = vsel %vm1258, %v4005, %v4010
    %v4012 = vsel %vm1258, %v4007, %v4009
    %s4015 = scalar_lea.vmem [#allocation3], 1590
    %4016 = vst [vmem:[%s4015] ss:$8 sm:$0xf] %v4011
    %4017 = vst [vmem:[%s4015] ss:$8 sm:$0xf0] %v4011
    %s4018 = scalar_lea.vmem [#allocation3], 1654
    %4019 = vst.msk [vmem:[%s4018] ss:$8 sm:$0x1] %vm75, %v4012
    %4020 = vst.msk [vmem:[%s4018] ss:$8 sm:$0x0] %vm75, %v4012
    %v4021 = vld [vmem:[%s2885] ss:$2 sm:$0xff]
    %v4022 = vld [vmem:[%s2887] ss:$2 sm:$0x3]
    %4025 = vrot.lane.b32.xlu0 %v4021, 73
    %v4026 = vpop.permute.xlu0 %4025
    %4027 = vrot.lane.b32.xlu0 %v4022, 73
    %v4028 = vpop.permute.xlu0 %4027
    %v4029 = vrot.slane %v4026, 1
    %v4030 = vrot.slane %v4028, 1
    %v4031 = vsel %vm90, %v4029, %v4030
    %v4032 = vsel %vm1280, %v4026, %v4031
    %v4033 = vsel %vm1280, %v4028, %v4030
    %s4036 = scalar_lea.vmem [#allocation3], 1591
    %4037 = vst [vmem:[%s4036] ss:$8 sm:$0xf] %v4032
    %4038 = vst [vmem:[%s4036] ss:$8 sm:$0xf0] %v4032
    %s4039 = scalar_lea.vmem [#allocation3], 1655
    %4040 = vst.msk [vmem:[%s4039] ss:$8 sm:$0x1] %vm75, %v4033
    %4041 = vst.msk [vmem:[%s4039] ss:$8 sm:$0x0] %vm75, %v4033
    %v4042 = vld [vmem:[%s2885] ss:$2 sm:$0xff]
    %v4043 = vld [vmem:[%s2887] ss:$2 sm:$0x3]
    %4046 = vrot.lane.b32.xlu0 %v4042, 72
    %v4047 = vpop.permute.xlu0 %4046
    %4048 = vrot.lane.b32.xlu0 %v4043, 72
    %v4049 = vpop.permute.xlu0 %4048
    %v4050 = vrot.slane %v4047, 1
    %v4051 = vrot.slane %v4049, 1
    %v4052 = vsel %vm90, %v4050, %v4051
    %v4053 = vsel %vm1302, %v4047, %v4052
    %v4054 = vsel %vm1302, %v4049, %v4051
    %s4057 = scalar_lea.vmem [#allocation3], 1656
    %4058 = vst [vmem:[%s4057] ss:$8 sm:$0xf] %v4053
    %4059 = vst [vmem:[%s4057] ss:$8 sm:$0xf0] %v4053
    %s4060 = scalar_lea.vmem [#allocation3], 1720
    %4061 = vst.msk [vmem:[%s4060] ss:$8 sm:$0x1] %vm75, %v4054
    %4062 = vst.msk [vmem:[%s4060] ss:$8 sm:$0x0] %vm75, %v4054
    %v4063 = vld [vmem:[%s2885] ss:$2 sm:$0xff]
    %v4064 = vld [vmem:[%s2887] ss:$2 sm:$0x3]
    %4067 = vrot.lane.b32.xlu0 %v4063, 71
    %v4068 = vpop.permute.xlu0 %4067
    %4069 = vrot.lane.b32.xlu0 %v4064, 71
    %v4070 = vpop.permute.xlu0 %4069
    %v4071 = vrot.slane %v4068, 1
    %v4072 = vrot.slane %v4070, 1
    %v4073 = vsel %vm90, %v4071, %v4072
    %v4074 = vsel %vm1324, %v4068, %v4073
    %v4075 = vsel %vm1324, %v4070, %v4072
    %s4078 = scalar_lea.vmem [#allocation3], 1657
    %4079 = vst [vmem:[%s4078] ss:$8 sm:$0xf] %v4074
    %4080 = vst [vmem:[%s4078] ss:$8 sm:$0xf0] %v4074
    %s4081 = scalar_lea.vmem [#allocation3], 1721
    %4082 = vst.msk [vmem:[%s4081] ss:$8 sm:$0x1] %vm75, %v4075
    %4083 = vst.msk [vmem:[%s4081] ss:$8 sm:$0x0] %vm75, %v4075
    %v4084 = vld [vmem:[%s2885] ss:$2 sm:$0xff]
    %v4085 = vld [vmem:[%s2887] ss:$2 sm:$0x3]
    %4088 = vrot.lane.b32.xlu0 %v4084, 70
    %v4089 = vpop.permute.xlu0 %4088
    %4090 = vrot.lane.b32.xlu0 %v4085, 70
    %v4091 = vpop.permute.xlu0 %4090
    %v4092 = vrot.slane %v4089, 1
    %v4093 = vrot.slane %v4091, 1
    %v4094 = vsel %vm90, %v4092, %v4093
    %v4095 = vsel %vm1346, %v4089, %v4094
    %v4096 = vsel %vm1346, %v4091, %v4093
    %s4099 = scalar_lea.vmem [#allocation3], 1658
    %4100 = vst [vmem:[%s4099] ss:$8 sm:$0xf] %v4095
    %4101 = vst [vmem:[%s4099] ss:$8 sm:$0xf0] %v4095
    %s4102 = scalar_lea.vmem [#allocation3], 1722
    %4103 = vst.msk [vmem:[%s4102] ss:$8 sm:$0x1] %vm75, %v4096
    %4104 = vst.msk [vmem:[%s4102] ss:$8 sm:$0x0] %vm75, %v4096
    %v4105 = vld [vmem:[%s2885] ss:$2 sm:$0xff]
    %v4106 = vld [vmem:[%s2887] ss:$2 sm:$0x3]
    %4109 = vrot.lane.b32.xlu0 %v4105, 69
    %v4110 = vpop.permute.xlu0 %4109
    %4111 = vrot.lane.b32.xlu0 %v4106, 69
    %v4112 = vpop.permute.xlu0 %4111
    %v4113 = vrot.slane %v4110, 1
    %v4114 = vrot.slane %v4112, 1
    %v4115 = vsel %vm90, %v4113, %v4114
    %v4116 = vsel %vm1368, %v4110, %v4115
    %v4117 = vsel %vm1368, %v4112, %v4114
    %s4120 = scalar_lea.vmem [#allocation3], 1659
    %4121 = vst [vmem:[%s4120] ss:$8 sm:$0xf] %v4116
    %4122 = vst [vmem:[%s4120] ss:$8 sm:$0xf0] %v4116
    %s4123 = scalar_lea.vmem [#allocation3], 1723
    %4124 = vst.msk [vmem:[%s4123] ss:$8 sm:$0x1] %vm75, %v4117
    %4125 = vst.msk [vmem:[%s4123] ss:$8 sm:$0x0] %vm75, %v4117
    %v4126 = vld [vmem:[%s2885] ss:$2 sm:$0xff]
    %v4127 = vld [vmem:[%s2887] ss:$2 sm:$0x3]
    %4130 = vrot.lane.b32.xlu0 %v4126, 68
    %v4131 = vpop.permute.xlu0 %4130
    %4132 = vrot.lane.b32.xlu0 %v4127, 68
    %v4133 = vpop.permute.xlu0 %4132
    %v4134 = vrot.slane %v4131, 1
    %v4135 = vrot.slane %v4133, 1
    %v4136 = vsel %vm90, %v4134, %v4135
    %v4137 = vsel %vm1390, %v4131, %v4136
    %v4138 = vsel %vm1390, %v4133, %v4135
    %s4141 = scalar_lea.vmem [#allocation3], 1660
    %4142 = vst [vmem:[%s4141] ss:$8 sm:$0xf] %v4137
    %4143 = vst [vmem:[%s4141] ss:$8 sm:$0xf0] %v4137
    %s4144 = scalar_lea.vmem [#allocation3], 1724
    %4145 = vst.msk [vmem:[%s4144] ss:$8 sm:$0x1] %vm75, %v4138
    %4146 = vst.msk [vmem:[%s4144] ss:$8 sm:$0x0] %vm75, %v4138
    %v4147 = vld [vmem:[%s2885] ss:$2 sm:$0xff]
    %v4148 = vld [vmem:[%s2887] ss:$2 sm:$0x3]
    %4151 = vrot.lane.b32.xlu0 %v4147, 67
    %v4152 = vpop.permute.xlu0 %4151
    %4153 = vrot.lane.b32.xlu0 %v4148, 67
    %v4154 = vpop.permute.xlu0 %4153
    %v4155 = vrot.slane %v4152, 1
    %v4156 = vrot.slane %v4154, 1
    %v4157 = vsel %vm90, %v4155, %v4156
    %v4158 = vsel %vm1412, %v4152, %v4157
    %v4159 = vsel %vm1412, %v4154, %v4156
    %s4162 = scalar_lea.vmem [#allocation3], 1661
    %4163 = vst [vmem:[%s4162] ss:$8 sm:$0xf] %v4158
    %4164 = vst [vmem:[%s4162] ss:$8 sm:$0xf0] %v4158
    %s4165 = scalar_lea.vmem [#allocation3], 1725
    %4166 = vst.msk [vmem:[%s4165] ss:$8 sm:$0x1] %vm75, %v4159
    %4167 = vst.msk [vmem:[%s4165] ss:$8 sm:$0x0] %vm75, %v4159
    %v4168 = vld [vmem:[%s2885] ss:$2 sm:$0xff]
    %v4169 = vld [vmem:[%s2887] ss:$2 sm:$0x3]
    %4172 = vrot.lane.b32.xlu0 %v4168, 66
    %v4173 = vpop.permute.xlu0 %4172
    %4174 = vrot.lane.b32.xlu0 %v4169, 66
    %v4175 = vpop.permute.xlu0 %4174
    %v4176 = vrot.slane %v4173, 1
    %v4177 = vrot.slane %v4175, 1
    %v4178 = vsel %vm90, %v4176, %v4177
    %v4179 = vsel %vm1434, %v4173, %v4178
    %v4180 = vsel %vm1434, %v4175, %v4177
    %s4183 = scalar_lea.vmem [#allocation3], 1662
    %4184 = vst [vmem:[%s4183] ss:$8 sm:$0xf] %v4179
    %4185 = vst [vmem:[%s4183] ss:$8 sm:$0xf0] %v4179
    %s4186 = scalar_lea.vmem [#allocation3], 1726
    %4187 = vst.msk [vmem:[%s4186] ss:$8 sm:$0x1] %vm75, %v4180
    %4188 = vst.msk [vmem:[%s4186] ss:$8 sm:$0x0] %vm75, %v4180
    %v4189 = vld [vmem:[%s2885] ss:$2 sm:$0xff]
    %v4190 = vld [vmem:[%s2887] ss:$2 sm:$0x3]
    %4193 = vrot.lane.b32.xlu0 %v4189, 65
    %v4194 = vpop.permute.xlu0 %4193
    %4195 = vrot.lane.b32.xlu0 %v4190, 65
    %v4196 = vpop.permute.xlu0 %4195
    %v4197 = vrot.slane %v4194, 1
    %v4198 = vrot.slane %v4196, 1
    %v4199 = vsel %vm90, %v4197, %v4198
    %v4200 = vsel %vm1456, %v4194, %v4199
    %v4201 = vsel %vm1456, %v4196, %v4198
    %s4204 = scalar_lea.vmem [#allocation3], 1663
    %4205 = vst [vmem:[%s4204] ss:$8 sm:$0xf] %v4200
    %4206 = vst [vmem:[%s4204] ss:$8 sm:$0xf0] %v4200
    %s4207 = scalar_lea.vmem [#allocation3], 1727
    %4208 = vst.msk [vmem:[%s4207] ss:$8 sm:$0x1] %vm75, %v4201
    %4209 = vst.msk [vmem:[%s4207] ss:$8 sm:$0x0] %vm75, %v4201
    %v4210 = vld [vmem:[%s2885] ss:$2 sm:$0xff]
    %v4211 = vld [vmem:[%s2887] ss:$2 sm:$0x3]
    %4214 = vrot.lane.b32.xlu0 %v4210, 64
    %v4215 = vpop.permute.xlu0 %4214
    %4216 = vrot.lane.b32.xlu0 %v4211, 64
    %v4217 = vpop.permute.xlu0 %4216
    %v4218 = vrot.slane %v4215, 1
    %v4219 = vrot.slane %v4217, 1
    %v4220 = vsel %vm90, %v4218, %v4219
    %v4221 = vsel %vm1478, %v4215, %v4220
    %v4222 = vsel %vm1478, %v4217, %v4219
    %s4225 = scalar_lea.vmem [#allocation3], 1728
    %4226 = vst [vmem:[%s4225] ss:$8 sm:$0xf] %v4221
    %4227 = vst [vmem:[%s4225] ss:$8 sm:$0xf0] %v4221
    %s4228 = scalar_lea.vmem [#allocation3], 1792
    %4229 = vst.msk [vmem:[%s4228] ss:$8 sm:$0x1] %vm75, %v4222
    %4230 = vst.msk [vmem:[%s4228] ss:$8 sm:$0x0] %vm75, %v4222
    %v4231 = vld [vmem:[%s2885] ss:$2 sm:$0xff]
    %v4232 = vld [vmem:[%s2887] ss:$2 sm:$0x3]
    %4235 = vrot.lane.b32.xlu0 %v4231, 63
    %v4236 = vpop.permute.xlu0 %4235
    %4237 = vrot.lane.b32.xlu0 %v4232, 63
    %v4238 = vpop.permute.xlu0 %4237
    %v4239 = vrot.slane %v4236, 1
    %v4240 = vrot.slane %v4238, 1
    %v4241 = vsel %vm90, %v4239, %v4240
    %v4242 = vsel %vm1500, %v4236, %v4241
    %v4243 = vsel %vm1500, %v4238, %v4240
    %s4246 = scalar_lea.vmem [#allocation3], 1729
    %4247 = vst [vmem:[%s4246] ss:$8 sm:$0xf] %v4242
    %4248 = vst [vmem:[%s4246] ss:$8 sm:$0xf0] %v4242
    %s4249 = scalar_lea.vmem [#allocation3], 1793
    %4250 = vst.msk [vmem:[%s4249] ss:$8 sm:$0x1] %vm75, %v4243
    %4251 = vst.msk [vmem:[%s4249] ss:$8 sm:$0x0] %vm75, %v4243
    %v4252 = vld [vmem:[%s2885] ss:$2 sm:$0xff]
    %v4253 = vld [vmem:[%s2887] ss:$2 sm:$0x3]
    %4256 = vrot.lane.b32.xlu0 %v4252, 62
    %v4257 = vpop.permute.xlu0 %4256
    %4258 = vrot.lane.b32.xlu0 %v4253, 62
    %v4259 = vpop.permute.xlu0 %4258
    %v4260 = vrot.slane %v4257, 1
    %v4261 = vrot.slane %v4259, 1
    %v4262 = vsel %vm90, %v4260, %v4261
    %v4263 = vsel %vm1522, %v4257, %v4262
    %v4264 = vsel %vm1522, %v4259, %v4261
    %s4267 = scalar_lea.vmem [#allocation3], 1730
    %4268 = vst [vmem:[%s4267] ss:$8 sm:$0xf] %v4263
    %4269 = vst [vmem:[%s4267] ss:$8 sm:$0xf0] %v4263
    %s4270 = scalar_lea.vmem [#allocation3], 1794
    %4271 = vst.msk [vmem:[%s4270] ss:$8 sm:$0x1] %vm75, %v4264
    %4272 = vst.msk [vmem:[%s4270] ss:$8 sm:$0x0] %vm75, %v4264
    %v4273 = vld [vmem:[%s2885] ss:$2 sm:$0xff]
    %v4274 = vld [vmem:[%s2887] ss:$2 sm:$0x3]
    %4277 = vrot.lane.b32.xlu0 %v4273, 61
    %v4278 = vpop.permute.xlu0 %4277
    %4279 = vrot.lane.b32.xlu0 %v4274, 61
    %v4280 = vpop.permute.xlu0 %4279
    %v4281 = vrot.slane %v4278, 1
    %v4282 = vrot.slane %v4280, 1
    %v4283 = vsel %vm90, %v4281, %v4282
    %v4284 = vsel %vm1544, %v4278, %v4283
    %v4285 = vsel %vm1544, %v4280, %v4282
    %s4288 = scalar_lea.vmem [#allocation3], 1731
    %4289 = vst [vmem:[%s4288] ss:$8 sm:$0xf] %v4284
    %4290 = vst [vmem:[%s4288] ss:$8 sm:$0xf0] %v4284
    %s4291 = scalar_lea.vmem [#allocation3], 1795
    %4292 = vst.msk [vmem:[%s4291] ss:$8 sm:$0x1] %vm75, %v4285
    %4293 = vst.msk [vmem:[%s4291] ss:$8 sm:$0x0] %vm75, %v4285
    %v4294 = vld [vmem:[%s2885] ss:$2 sm:$0xff]
    %v4295 = vld [vmem:[%s2887] ss:$2 sm:$0x3]
    %4298 = vrot.lane.b32.xlu0 %v4294, 60
    %v4299 = vpop.permute.xlu0 %4298
    %4300 = vrot.lane.b32.xlu0 %v4295, 60
    %v4301 = vpop.permute.xlu0 %4300
    %v4302 = vrot.slane %v4299, 1
    %v4303 = vrot.slane %v4301, 1
    %v4304 = vsel %vm90, %v4302, %v4303
    %v4305 = vsel %vm1566, %v4299, %v4304
    %v4306 = vsel %vm1566, %v4301, %v4303
    %s4309 = scalar_lea.vmem [#allocation3], 1732
    %4310 = vst [vmem:[%s4309] ss:$8 sm:$0xf] %v4305
    %4311 = vst [vmem:[%s4309] ss:$8 sm:$0xf0] %v4305
    %s4312 = scalar_lea.vmem [#allocation3], 1796
    %4313 = vst.msk [vmem:[%s4312] ss:$8 sm:$0x1] %vm75, %v4306
    %4314 = vst.msk [vmem:[%s4312] ss:$8 sm:$0x0] %vm75, %v4306
    %v4315 = vld [vmem:[%s2885] ss:$2 sm:$0xff]
    %v4316 = vld [vmem:[%s2887] ss:$2 sm:$0x3]
    %4319 = vrot.lane.b32.xlu0 %v4315, 59
    %v4320 = vpop.permute.xlu0 %4319
    %4321 = vrot.lane.b32.xlu0 %v4316, 59
    %v4322 = vpop.permute.xlu0 %4321
    %v4323 = vrot.slane %v4320, 1
    %v4324 = vrot.slane %v4322, 1
    %v4325 = vsel %vm90, %v4323, %v4324
    %v4326 = vsel %vm1588, %v4320, %v4325
    %v4327 = vsel %vm1588, %v4322, %v4324
    %s4330 = scalar_lea.vmem [#allocation3], 1733
    %4331 = vst [vmem:[%s4330] ss:$8 sm:$0xf] %v4326
    %4332 = vst [vmem:[%s4330] ss:$8 sm:$0xf0] %v4326
    %s4333 = scalar_lea.vmem [#allocation3], 1797
    %4334 = vst.msk [vmem:[%s4333] ss:$8 sm:$0x1] %vm75, %v4327
    %4335 = vst.msk [vmem:[%s4333] ss:$8 sm:$0x0] %vm75, %v4327
    %v4336 = vld [vmem:[%s2885] ss:$2 sm:$0xff]
    %v4337 = vld [vmem:[%s2887] ss:$2 sm:$0x3]
    %4340 = vrot.lane.b32.xlu0 %v4336, 58
    %v4341 = vpop.permute.xlu0 %4340
    %4342 = vrot.lane.b32.xlu0 %v4337, 58
    %v4343 = vpop.permute.xlu0 %4342
    %v4344 = vrot.slane %v4341, 1
    %v4345 = vrot.slane %v4343, 1
    %v4346 = vsel %vm90, %v4344, %v4345
    %v4347 = vsel %vm1610, %v4341, %v4346
    %v4348 = vsel %vm1610, %v4343, %v4345
    %s4351 = scalar_lea.vmem [#allocation3], 1734
    %4352 = vst [vmem:[%s4351] ss:$8 sm:$0xf] %v4347
    %4353 = vst [vmem:[%s4351] ss:$8 sm:$0xf0] %v4347
    %s4354 = scalar_lea.vmem [#allocation3], 1798
    %4355 = vst.msk [vmem:[%s4354] ss:$8 sm:$0x1] %vm75, %v4348
    %4356 = vst.msk [vmem:[%s4354] ss:$8 sm:$0x0] %vm75, %v4348
    %v4357 = vld [vmem:[%s2885] ss:$2 sm:$0xff]
    %v4358 = vld [vmem:[%s2887] ss:$2 sm:$0x3]
    %4361 = vrot.lane.b32.xlu0 %v4357, 57
    %v4362 = vpop.permute.xlu0 %4361
    %4363 = vrot.lane.b32.xlu0 %v4358, 57
    %v4364 = vpop.permute.xlu0 %4363
    %v4365 = vrot.slane %v4362, 1
    %v4366 = vrot.slane %v4364, 1
    %v4367 = vsel %vm90, %v4365, %v4366
    %v4368 = vsel %vm1632, %v4362, %v4367
    %v4369 = vsel %vm1632, %v4364, %v4366
    %s4372 = scalar_lea.vmem [#allocation3], 1735
    %4373 = vst [vmem:[%s4372] ss:$8 sm:$0xf] %v4368
    %4374 = vst [vmem:[%s4372] ss:$8 sm:$0xf0] %v4368
    %s4375 = scalar_lea.vmem [#allocation3], 1799
    %4376 = vst.msk [vmem:[%s4375] ss:$8 sm:$0x1] %vm75, %v4369
    %4377 = vst.msk [vmem:[%s4375] ss:$8 sm:$0x0] %vm75, %v4369
    %v4378 = vld [vmem:[%s2885] ss:$2 sm:$0xff]
    %v4379 = vld [vmem:[%s2887] ss:$2 sm:$0x3]
    %4382 = vrot.lane.b32.xlu0 %v4378, 56
    %v4383 = vpop.permute.xlu0 %4382
    %4384 = vrot.lane.b32.xlu0 %v4379, 56
    %v4385 = vpop.permute.xlu0 %4384
    %v4386 = vrot.slane %v4383, 1
    %v4387 = vrot.slane %v4385, 1
    %v4388 = vsel %vm90, %v4386, %v4387
    %v4389 = vsel %vm1654, %v4383, %v4388
    %v4390 = vsel %vm1654, %v4385, %v4387
    %s4393 = scalar_lea.vmem [#allocation3], 1800
    %4394 = vst [vmem:[%s4393] ss:$8 sm:$0xf] %v4389
    %4395 = vst [vmem:[%s4393] ss:$8 sm:$0xf0] %v4389
    %s4396 = scalar_lea.vmem [#allocation3], 1864
    %4397 = vst.msk [vmem:[%s4396] ss:$8 sm:$0x1] %vm75, %v4390
    %4398 = vst.msk [vmem:[%s4396] ss:$8 sm:$0x0] %vm75, %v4390
    %v4399 = vld [vmem:[%s2885] ss:$2 sm:$0xff]
    %v4400 = vld [vmem:[%s2887] ss:$2 sm:$0x3]
    %4403 = vrot.lane.b32.xlu0 %v4399, 55
    %v4404 = vpop.permute.xlu0 %4403
    %4405 = vrot.lane.b32.xlu0 %v4400, 55
    %v4406 = vpop.permute.xlu0 %4405
    %v4407 = vrot.slane %v4404, 1
    %v4408 = vrot.slane %v4406, 1
    %v4409 = vsel %vm90, %v4407, %v4408
    %v4410 = vsel %vm1676, %v4404, %v4409
    %v4411 = vsel %vm1676, %v4406, %v4408
    %s4414 = scalar_lea.vmem [#allocation3], 1801
    %4415 = vst [vmem:[%s4414] ss:$8 sm:$0xf] %v4410
    %4416 = vst [vmem:[%s4414] ss:$8 sm:$0xf0] %v4410
    %s4417 = scalar_lea.vmem [#allocation3], 1865
    %4418 = vst.msk [vmem:[%s4417] ss:$8 sm:$0x1] %vm75, %v4411
    %4419 = vst.msk [vmem:[%s4417] ss:$8 sm:$0x0] %vm75, %v4411
    %v4420 = vld [vmem:[%s2885] ss:$2 sm:$0xff]
    %v4421 = vld [vmem:[%s2887] ss:$2 sm:$0x3]
    %4424 = vrot.lane.b32.xlu0 %v4420, 54
    %v4425 = vpop.permute.xlu0 %4424
    %4426 = vrot.lane.b32.xlu0 %v4421, 54
    %v4427 = vpop.permute.xlu0 %4426
    %v4428 = vrot.slane %v4425, 1
    %v4429 = vrot.slane %v4427, 1
    %v4430 = vsel %vm90, %v4428, %v4429
    %v4431 = vsel %vm1698, %v4425, %v4430
    %v4432 = vsel %vm1698, %v4427, %v4429
    %s4435 = scalar_lea.vmem [#allocation3], 1802
    %4436 = vst [vmem:[%s4435] ss:$8 sm:$0xf] %v4431
    %4437 = vst [vmem:[%s4435] ss:$8 sm:$0xf0] %v4431
    %s4438 = scalar_lea.vmem [#allocation3], 1866
    %4439 = vst.msk [vmem:[%s4438] ss:$8 sm:$0x1] %vm75, %v4432
    %4440 = vst.msk [vmem:[%s4438] ss:$8 sm:$0x0] %vm75, %v4432
    %v4441 = vld [vmem:[%s2885] ss:$2 sm:$0xff]
    %v4442 = vld [vmem:[%s2887] ss:$2 sm:$0x3]
    %4445 = vrot.lane.b32.xlu0 %v4441, 53
    %v4446 = vpop.permute.xlu0 %4445
    %4447 = vrot.lane.b32.xlu0 %v4442, 53
    %v4448 = vpop.permute.xlu0 %4447
    %v4449 = vrot.slane %v4446, 1
    %v4450 = vrot.slane %v4448, 1
    %v4451 = vsel %vm90, %v4449, %v4450
    %v4452 = vsel %vm1720, %v4446, %v4451
    %v4453 = vsel %vm1720, %v4448, %v4450
    %s4456 = scalar_lea.vmem [#allocation3], 1803
    %4457 = vst [vmem:[%s4456] ss:$8 sm:$0xf] %v4452
    %4458 = vst [vmem:[%s4456] ss:$8 sm:$0xf0] %v4452
    %s4459 = scalar_lea.vmem [#allocation3], 1867
    %4460 = vst.msk [vmem:[%s4459] ss:$8 sm:$0x1] %vm75, %v4453
    %4461 = vst.msk [vmem:[%s4459] ss:$8 sm:$0x0] %vm75, %v4453
    %v4462 = vld [vmem:[%s2885] ss:$2 sm:$0xff]
    %v4463 = vld [vmem:[%s2887] ss:$2 sm:$0x3]
    %4466 = vrot.lane.b32.xlu0 %v4462, 52
    %v4467 = vpop.permute.xlu0 %4466
    %4468 = vrot.lane.b32.xlu0 %v4463, 52
    %v4469 = vpop.permute.xlu0 %4468
    %v4470 = vrot.slane %v4467, 1
    %v4471 = vrot.slane %v4469, 1
    %v4472 = vsel %vm90, %v4470, %v4471
    %v4473 = vsel %vm1742, %v4467, %v4472
    %v4474 = vsel %vm1742, %v4469, %v4471
    %s4477 = scalar_lea.vmem [#allocation3], 1804
    %4478 = vst [vmem:[%s4477] ss:$8 sm:$0xf] %v4473
    %4479 = vst [vmem:[%s4477] ss:$8 sm:$0xf0] %v4473
    %s4480 = scalar_lea.vmem [#allocation3], 1868
    %4481 = vst.msk [vmem:[%s4480] ss:$8 sm:$0x1] %vm75, %v4474
    %4482 = vst.msk [vmem:[%s4480] ss:$8 sm:$0x0] %vm75, %v4474
    %v4483 = vld [vmem:[%s2885] ss:$2 sm:$0xff]
    %v4484 = vld [vmem:[%s2887] ss:$2 sm:$0x3]
    %4487 = vrot.lane.b32.xlu0 %v4483, 51
    %v4488 = vpop.permute.xlu0 %4487
    %4489 = vrot.lane.b32.xlu0 %v4484, 51
    %v4490 = vpop.permute.xlu0 %4489
    %v4491 = vrot.slane %v4488, 1
    %v4492 = vrot.slane %v4490, 1
    %v4493 = vsel %vm90, %v4491, %v4492
    %v4494 = vsel %vm1764, %v4488, %v4493
    %v4495 = vsel %vm1764, %v4490, %v4492
    %s4498 = scalar_lea.vmem [#allocation3], 1805
    %4499 = vst [vmem:[%s4498] ss:$8 sm:$0xf] %v4494
    %4500 = vst [vmem:[%s4498] ss:$8 sm:$0xf0] %v4494
    %s4501 = scalar_lea.vmem [#allocation3], 1869
    %4502 = vst.msk [vmem:[%s4501] ss:$8 sm:$0x1] %vm75, %v4495
    %4503 = vst.msk [vmem:[%s4501] ss:$8 sm:$0x0] %vm75, %v4495
    %v4504 = vld [vmem:[%s2885] ss:$2 sm:$0xff]
    %v4505 = vld [vmem:[%s2887] ss:$2 sm:$0x3]
    %4508 = vrot.lane.b32.xlu0 %v4504, 50
    %v4509 = vpop.permute.xlu0 %4508
    %4510 = vrot.lane.b32.xlu0 %v4505, 50
    %v4511 = vpop.permute.xlu0 %4510
    %v4512 = vrot.slane %v4509, 1
    %v4513 = vrot.slane %v4511, 1
    %v4514 = vsel %vm90, %v4512, %v4513
    %v4515 = vsel %vm1786, %v4509, %v4514
    %v4516 = vsel %vm1786, %v4511, %v4513
    %s4519 = scalar_lea.vmem [#allocation3], 1806
    %4520 = vst [vmem:[%s4519] ss:$8 sm:$0xf] %v4515
    %4521 = vst [vmem:[%s4519] ss:$8 sm:$0xf0] %v4515
    %s4522 = scalar_lea.vmem [#allocation3], 1870
    %4523 = vst.msk [vmem:[%s4522] ss:$8 sm:$0x1] %vm75, %v4516
    %4524 = vst.msk [vmem:[%s4522] ss:$8 sm:$0x0] %vm75, %v4516
    %v4525 = vld [vmem:[%s2885] ss:$2 sm:$0xff]
    %v4526 = vld [vmem:[%s2887] ss:$2 sm:$0x3]
    %4529 = vrot.lane.b32.xlu0 %v4525, 49
    %v4530 = vpop.permute.xlu0 %4529
    %4531 = vrot.lane.b32.xlu0 %v4526, 49
    %v4532 = vpop.permute.xlu0 %4531
    %v4533 = vrot.slane %v4530, 1
    %v4534 = vrot.slane %v4532, 1
    %v4535 = vsel %vm90, %v4533, %v4534
    %v4536 = vsel %vm1808, %v4530, %v4535
    %v4537 = vsel %vm1808, %v4532, %v4534
    %s4540 = scalar_lea.vmem [#allocation3], 1807
    %4541 = vst [vmem:[%s4540] ss:$8 sm:$0xf] %v4536
    %4542 = vst [vmem:[%s4540] ss:$8 sm:$0xf0] %v4536
    %s4543 = scalar_lea.vmem [#allocation3], 1871
    %4544 = vst.msk [vmem:[%s4543] ss:$8 sm:$0x1] %vm75, %v4537
    %4545 = vst.msk [vmem:[%s4543] ss:$8 sm:$0x0] %vm75, %v4537
    %v4546 = vld [vmem:[%s2885] ss:$2 sm:$0xff]
    %v4547 = vld [vmem:[%s2887] ss:$2 sm:$0x3]
    %4550 = vrot.lane.b32.xlu0 %v4546, 48
    %v4551 = vpop.permute.xlu0 %4550
    %4552 = vrot.lane.b32.xlu0 %v4547, 48
    %v4553 = vpop.permute.xlu0 %4552
    %v4554 = vrot.slane %v4551, 1
    %v4555 = vrot.slane %v4553, 1
    %v4556 = vsel %vm90, %v4554, %v4555
    %v4557 = vsel %vm1830, %v4551, %v4556
    %v4558 = vsel %vm1830, %v4553, %v4555
    %s4561 = scalar_lea.vmem [#allocation3], 1872
    %4562 = vst [vmem:[%s4561] ss:$8 sm:$0xf] %v4557
    %4563 = vst [vmem:[%s4561] ss:$8 sm:$0xf0] %v4557
    %s4564 = scalar_lea.vmem [#allocation3], 1936
    %4565 = vst.msk [vmem:[%s4564] ss:$8 sm:$0x1] %vm75, %v4558
    %4566 = vst.msk [vmem:[%s4564] ss:$8 sm:$0x0] %vm75, %v4558
    %v4567 = vld [vmem:[%s2885] ss:$2 sm:$0xff]
    %v4568 = vld [vmem:[%s2887] ss:$2 sm:$0x3]
    %4571 = vrot.lane.b32.xlu0 %v4567, 47
    %v4572 = vpop.permute.xlu0 %4571
    %4573 = vrot.lane.b32.xlu0 %v4568, 47
    %v4574 = vpop.permute.xlu0 %4573
    %v4575 = vrot.slane %v4572, 1
    %v4576 = vrot.slane %v4574, 1
    %v4577 = vsel %vm90, %v4575, %v4576
    %v4578 = vsel %vm1852, %v4572, %v4577
    %v4579 = vsel %vm1852, %v4574, %v4576
    %s4582 = scalar_lea.vmem [#allocation3], 1873
    %4583 = vst [vmem:[%s4582] ss:$8 sm:$0xf] %v4578
    %4584 = vst [vmem:[%s4582] ss:$8 sm:$0xf0] %v4578
    %s4585 = scalar_lea.vmem [#allocation3], 1937
    %4586 = vst.msk [vmem:[%s4585] ss:$8 sm:$0x1] %vm75, %v4579
    %4587 = vst.msk [vmem:[%s4585] ss:$8 sm:$0x0] %vm75, %v4579
    %v4588 = vld [vmem:[%s2885] ss:$2 sm:$0xff]
    %v4589 = vld [vmem:[%s2887] ss:$2 sm:$0x3]
    %4592 = vrot.lane.b32.xlu0 %v4588, 46
    %v4593 = vpop.permute.xlu0 %4592
    %4594 = vrot.lane.b32.xlu0 %v4589, 46
    %v4595 = vpop.permute.xlu0 %4594
    %v4596 = vrot.slane %v4593, 1
    %v4597 = vrot.slane %v4595, 1
    %v4598 = vsel %vm90, %v4596, %v4597
    %v4599 = vsel %vm1874, %v4593, %v4598
    %v4600 = vsel %vm1874, %v4595, %v4597
    %s4603 = scalar_lea.vmem [#allocation3], 1874
    %4604 = vst [vmem:[%s4603] ss:$8 sm:$0xf] %v4599
    %4605 = vst [vmem:[%s4603] ss:$8 sm:$0xf0] %v4599
    %s4606 = scalar_lea.vmem [#allocation3], 1938
    %4607 = vst.msk [vmem:[%s4606] ss:$8 sm:$0x1] %vm75, %v4600
    %4608 = vst.msk [vmem:[%s4606] ss:$8 sm:$0x0] %vm75, %v4600
    %v4609 = vld [vmem:[%s2885] ss:$2 sm:$0xff]
    %v4610 = vld [vmem:[%s2887] ss:$2 sm:$0x3]
    %4613 = vrot.lane.b32.xlu0 %v4609, 45
    %v4614 = vpop.permute.xlu0 %4613
    %4615 = vrot.lane.b32.xlu0 %v4610, 45
    %v4616 = vpop.permute.xlu0 %4615
    %v4617 = vrot.slane %v4614, 1
    %v4618 = vrot.slane %v4616, 1
    %v4619 = vsel %vm90, %v4617, %v4618
    %v4620 = vsel %vm1896, %v4614, %v4619
    %v4621 = vsel %vm1896, %v4616, %v4618
    %s4624 = scalar_lea.vmem [#allocation3], 1875
    %4625 = vst [vmem:[%s4624] ss:$8 sm:$0xf] %v4620
    %4626 = vst [vmem:[%s4624] ss:$8 sm:$0xf0] %v4620
    %s4627 = scalar_lea.vmem [#allocation3], 1939
    %4628 = vst.msk [vmem:[%s4627] ss:$8 sm:$0x1] %vm75, %v4621
    %4629 = vst.msk [vmem:[%s4627] ss:$8 sm:$0x0] %vm75, %v4621
    %v4630 = vld [vmem:[%s2885] ss:$2 sm:$0xff]
    %v4631 = vld [vmem:[%s2887] ss:$2 sm:$0x3]
    %4634 = vrot.lane.b32.xlu0 %v4630, 44
    %v4635 = vpop.permute.xlu0 %4634
    %4636 = vrot.lane.b32.xlu0 %v4631, 44
    %v4637 = vpop.permute.xlu0 %4636
    %v4638 = vrot.slane %v4635, 1
    %v4639 = vrot.slane %v4637, 1
    %v4640 = vsel %vm90, %v4638, %v4639
    %v4641 = vsel %vm1918, %v4635, %v4640
    %v4642 = vsel %vm1918, %v4637, %v4639
    %s4645 = scalar_lea.vmem [#allocation3], 1876
    %4646 = vst [vmem:[%s4645] ss:$8 sm:$0xf] %v4641
    %4647 = vst [vmem:[%s4645] ss:$8 sm:$0xf0] %v4641
    %s4648 = scalar_lea.vmem [#allocation3], 1940
    %4649 = vst.msk [vmem:[%s4648] ss:$8 sm:$0x1] %vm75, %v4642
    %4650 = vst.msk [vmem:[%s4648] ss:$8 sm:$0x0] %vm75, %v4642
    %v4651 = vld [vmem:[%s2885] ss:$2 sm:$0xff]
    %v4652 = vld [vmem:[%s2887] ss:$2 sm:$0x3]
    %4655 = vrot.lane.b32.xlu0 %v4651, 43
    %v4656 = vpop.permute.xlu0 %4655
    %4657 = vrot.lane.b32.xlu0 %v4652, 43
    %v4658 = vpop.permute.xlu0 %4657
    %v4659 = vrot.slane %v4656, 1
    %v4660 = vrot.slane %v4658, 1
    %v4661 = vsel %vm90, %v4659, %v4660
    %v4662 = vsel %vm1940, %v4656, %v4661
    %v4663 = vsel %vm1940, %v4658, %v4660
    %s4666 = scalar_lea.vmem [#allocation3], 1877
    %4667 = vst [vmem:[%s4666] ss:$8 sm:$0xf] %v4662
    %4668 = vst [vmem:[%s4666] ss:$8 sm:$0xf0] %v4662
    %s4669 = scalar_lea.vmem [#allocation3], 1941
    %4670 = vst.msk [vmem:[%s4669] ss:$8 sm:$0x1] %vm75, %v4663
    %4671 = vst.msk [vmem:[%s4669] ss:$8 sm:$0x0] %vm75, %v4663
    %v4672 = vld [vmem:[%s2885] ss:$2 sm:$0xff]
    %v4673 = vld [vmem:[%s2887] ss:$2 sm:$0x3]
    %4676 = vrot.lane.b32.xlu0 %v4672, 42
    %v4677 = vpop.permute.xlu0 %4676
    %4678 = vrot.lane.b32.xlu0 %v4673, 42
    %v4679 = vpop.permute.xlu0 %4678
    %v4680 = vrot.slane %v4677, 1
    %v4681 = vrot.slane %v4679, 1
    %v4682 = vsel %vm90, %v4680, %v4681
    %v4683 = vsel %vm1962, %v4677, %v4682
    %v4684 = vsel %vm1962, %v4679, %v4681
    %s4687 = scalar_lea.vmem [#allocation3], 1878
    %4688 = vst [vmem:[%s4687] ss:$8 sm:$0xf] %v4683
    %4689 = vst [vmem:[%s4687] ss:$8 sm:$0xf0] %v4683
    %s4690 = scalar_lea.vmem [#allocation3], 1942
    %4691 = vst.msk [vmem:[%s4690] ss:$8 sm:$0x1] %vm75, %v4684
    %4692 = vst.msk [vmem:[%s4690] ss:$8 sm:$0x0] %vm75, %v4684
    %v4693 = vld [vmem:[%s2885] ss:$2 sm:$0xff]
    %v4694 = vld [vmem:[%s2887] ss:$2 sm:$0x3]
    %4697 = vrot.lane.b32.xlu0 %v4693, 41
    %v4698 = vpop.permute.xlu0 %4697
    %4699 = vrot.lane.b32.xlu0 %v4694, 41
    %v4700 = vpop.permute.xlu0 %4699
    %v4701 = vrot.slane %v4698, 1
    %v4702 = vrot.slane %v4700, 1
    %v4703 = vsel %vm90, %v4701, %v4702
    %v4704 = vsel %vm1984, %v4698, %v4703
    %v4705 = vsel %vm1984, %v4700, %v4702
    %s4708 = scalar_lea.vmem [#allocation3], 1879
    %4709 = vst [vmem:[%s4708] ss:$8 sm:$0xf] %v4704
    %4710 = vst [vmem:[%s4708] ss:$8 sm:$0xf0] %v4704
    %s4711 = scalar_lea.vmem [#allocation3], 1943
    %4712 = vst.msk [vmem:[%s4711] ss:$8 sm:$0x1] %vm75, %v4705
    %4713 = vst.msk [vmem:[%s4711] ss:$8 sm:$0x0] %vm75, %v4705
    %v4714 = vld [vmem:[%s2885] ss:$2 sm:$0xff]
    %v4715 = vld [vmem:[%s2887] ss:$2 sm:$0x3]
    %4718 = vrot.lane.b32.xlu0 %v4714, 40
    %v4719 = vpop.permute.xlu0 %4718
    %4720 = vrot.lane.b32.xlu0 %v4715, 40
    %v4721 = vpop.permute.xlu0 %4720
    %v4722 = vrot.slane %v4719, 1
    %v4723 = vrot.slane %v4721, 1
    %v4724 = vsel %vm90, %v4722, %v4723
    %v4725 = vsel %vm2006, %v4719, %v4724
    %v4726 = vsel %vm2006, %v4721, %v4723
    %s4729 = scalar_lea.vmem [#allocation3], 1944
    %4730 = vst [vmem:[%s4729] ss:$8 sm:$0xf] %v4725
    %4731 = vst [vmem:[%s4729] ss:$8 sm:$0xf0] %v4725
    %s4732 = scalar_lea.vmem [#allocation3], 2008
    %4733 = vst.msk [vmem:[%s4732] ss:$8 sm:$0x1] %vm75, %v4726
    %4734 = vst.msk [vmem:[%s4732] ss:$8 sm:$0x0] %vm75, %v4726
    %v4735 = vld [vmem:[%s2885] ss:$2 sm:$0xff]
    %v4736 = vld [vmem:[%s2887] ss:$2 sm:$0x3]
    %4739 = vrot.lane.b32.xlu0 %v4735, 39
    %v4740 = vpop.permute.xlu0 %4739
    %4741 = vrot.lane.b32.xlu0 %v4736, 39
    %v4742 = vpop.permute.xlu0 %4741
    %v4743 = vrot.slane %v4740, 1
    %v4744 = vrot.slane %v4742, 1
    %v4745 = vsel %vm90, %v4743, %v4744
    %v4746 = vsel %vm2028, %v4740, %v4745
    %v4747 = vsel %vm2028, %v4742, %v4744
    %s4750 = scalar_lea.vmem [#allocation3], 1945
    %4751 = vst [vmem:[%s4750] ss:$8 sm:$0xf] %v4746
    %4752 = vst [vmem:[%s4750] ss:$8 sm:$0xf0] %v4746
    %s4753 = scalar_lea.vmem [#allocation3], 2009
    %4754 = vst.msk [vmem:[%s4753] ss:$8 sm:$0x1] %vm75, %v4747
    %4755 = vst.msk [vmem:[%s4753] ss:$8 sm:$0x0] %vm75, %v4747
    %v4756 = vld [vmem:[%s2885] ss:$2 sm:$0xff]
    %v4757 = vld [vmem:[%s2887] ss:$2 sm:$0x3]
    %4760 = vrot.lane.b32.xlu0 %v4756, 38
    %v4761 = vpop.permute.xlu0 %4760
    %4762 = vrot.lane.b32.xlu0 %v4757, 38
    %v4763 = vpop.permute.xlu0 %4762
    %v4764 = vrot.slane %v4761, 1
    %v4765 = vrot.slane %v4763, 1
    %v4766 = vsel %vm90, %v4764, %v4765
    %v4767 = vsel %vm2050, %v4761, %v4766
    %v4768 = vsel %vm2050, %v4763, %v4765
    %s4771 = scalar_lea.vmem [#allocation3], 1946
    %4772 = vst [vmem:[%s4771] ss:$8 sm:$0xf] %v4767
    %4773 = vst [vmem:[%s4771] ss:$8 sm:$0xf0] %v4767
    %s4774 = scalar_lea.vmem [#allocation3], 2010
    %4775 = vst.msk [vmem:[%s4774] ss:$8 sm:$0x1] %vm75, %v4768
    %4776 = vst.msk [vmem:[%s4774] ss:$8 sm:$0x0] %vm75, %v4768
    %v4777 = vld [vmem:[%s2885] ss:$2 sm:$0xff]
    %v4778 = vld [vmem:[%s2887] ss:$2 sm:$0x3]
    %4781 = vrot.lane.b32.xlu0 %v4777, 37
    %v4782 = vpop.permute.xlu0 %4781
    %4783 = vrot.lane.b32.xlu0 %v4778, 37
    %v4784 = vpop.permute.xlu0 %4783
    %v4785 = vrot.slane %v4782, 1
    %v4786 = vrot.slane %v4784, 1
    %v4787 = vsel %vm90, %v4785, %v4786
    %v4788 = vsel %vm2072, %v4782, %v4787
    %v4789 = vsel %vm2072, %v4784, %v4786
    %s4792 = scalar_lea.vmem [#allocation3], 1947
    %4793 = vst [vmem:[%s4792] ss:$8 sm:$0xf] %v4788
    %4794 = vst [vmem:[%s4792] ss:$8 sm:$0xf0] %v4788
    %s4795 = scalar_lea.vmem [#allocation3], 2011
    %4796 = vst.msk [vmem:[%s4795] ss:$8 sm:$0x1] %vm75, %v4789
    %4797 = vst.msk [vmem:[%s4795] ss:$8 sm:$0x0] %vm75, %v4789
    %v4798 = vld [vmem:[%s2885] ss:$2 sm:$0xff]
    %v4799 = vld [vmem:[%s2887] ss:$2 sm:$0x3]
    %4802 = vrot.lane.b32.xlu0 %v4798, 36
    %v4803 = vpop.permute.xlu0 %4802
    %4804 = vrot.lane.b32.xlu0 %v4799, 36
    %v4805 = vpop.permute.xlu0 %4804
    %v4806 = vrot.slane %v4803, 1
    %v4807 = vrot.slane %v4805, 1
    %v4808 = vsel %vm90, %v4806, %v4807
    %v4809 = vsel %vm2094, %v4803, %v4808
    %v4810 = vsel %vm2094, %v4805, %v4807
    %s4813 = scalar_lea.vmem [#allocation3], 1948
    %4814 = vst [vmem:[%s4813] ss:$8 sm:$0xf] %v4809
    %4815 = vst [vmem:[%s4813] ss:$8 sm:$0xf0] %v4809
    %s4816 = scalar_lea.vmem [#allocation3], 2012
    %4817 = vst.msk [vmem:[%s4816] ss:$8 sm:$0x1] %vm75, %v4810
    %4818 = vst.msk [vmem:[%s4816] ss:$8 sm:$0x0] %vm75, %v4810
    %v4819 = vld [vmem:[%s2885] ss:$2 sm:$0xff]
    %v4820 = vld [vmem:[%s2887] ss:$2 sm:$0x3]
    %4823 = vrot.lane.b32.xlu0 %v4819, 35
    %v4824 = vpop.permute.xlu0 %4823
    %4825 = vrot.lane.b32.xlu0 %v4820, 35
    %v4826 = vpop.permute.xlu0 %4825
    %v4827 = vrot.slane %v4824, 1
    %v4828 = vrot.slane %v4826, 1
    %v4829 = vsel %vm90, %v4827, %v4828
    %v4830 = vsel %vm2116, %v4824, %v4829
    %v4831 = vsel %vm2116, %v4826, %v4828
    %s4834 = scalar_lea.vmem [#allocation3], 1949
    %4835 = vst [vmem:[%s4834] ss:$8 sm:$0xf] %v4830
    %4836 = vst [vmem:[%s4834] ss:$8 sm:$0xf0] %v4830
    %s4837 = scalar_lea.vmem [#allocation3], 2013
    %4838 = vst.msk [vmem:[%s4837] ss:$8 sm:$0x1] %vm75, %v4831
    %4839 = vst.msk [vmem:[%s4837] ss:$8 sm:$0x0] %vm75, %v4831
    %v4840 = vld [vmem:[%s2885] ss:$2 sm:$0xff]
    %v4841 = vld [vmem:[%s2887] ss:$2 sm:$0x3]
    %4844 = vrot.lane.b32.xlu0 %v4840, 34
    %v4845 = vpop.permute.xlu0 %4844
    %4846 = vrot.lane.b32.xlu0 %v4841, 34
    %v4847 = vpop.permute.xlu0 %4846
    %v4848 = vrot.slane %v4845, 1
    %v4849 = vrot.slane %v4847, 1
    %v4850 = vsel %vm90, %v4848, %v4849
    %v4851 = vsel %vm2138, %v4845, %v4850
    %v4852 = vsel %vm2138, %v4847, %v4849
    %s4855 = scalar_lea.vmem [#allocation3], 1950
    %4856 = vst [vmem:[%s4855] ss:$8 sm:$0xf] %v4851
    %4857 = vst [vmem:[%s4855] ss:$8 sm:$0xf0] %v4851
    %s4858 = scalar_lea.vmem [#allocation3], 2014
    %4859 = vst.msk [vmem:[%s4858] ss:$8 sm:$0x1] %vm75, %v4852
    %4860 = vst.msk [vmem:[%s4858] ss:$8 sm:$0x0] %vm75, %v4852
    %v4861 = vld [vmem:[%s2885] ss:$2 sm:$0xff]
    %v4862 = vld [vmem:[%s2887] ss:$2 sm:$0x3]
    %4865 = vrot.lane.b32.xlu0 %v4861, 33
    %v4866 = vpop.permute.xlu0 %4865
    %4867 = vrot.lane.b32.xlu0 %v4862, 33
    %v4868 = vpop.permute.xlu0 %4867
    %v4869 = vrot.slane %v4866, 1
    %v4870 = vrot.slane %v4868, 1
    %v4871 = vsel %vm90, %v4869, %v4870
    %v4872 = vsel %vm2160, %v4866, %v4871
    %v4873 = vsel %vm2160, %v4868, %v4870
    %s4876 = scalar_lea.vmem [#allocation3], 1951
    %4877 = vst [vmem:[%s4876] ss:$8 sm:$0xf] %v4872
    %4878 = vst [vmem:[%s4876] ss:$8 sm:$0xf0] %v4872
    %s4879 = scalar_lea.vmem [#allocation3], 2015
    %4880 = vst.msk [vmem:[%s4879] ss:$8 sm:$0x1] %vm75, %v4873
    %4881 = vst.msk [vmem:[%s4879] ss:$8 sm:$0x0] %vm75, %v4873
    %v4882 = vld [vmem:[%s2885] ss:$2 sm:$0xff]
    %v4883 = vld [vmem:[%s2887] ss:$2 sm:$0x3]
    %4886 = vrot.lane.b32.xlu0 %v4882, 32
    %v4887 = vpop.permute.xlu0 %4886
    %4888 = vrot.lane.b32.xlu0 %v4883, 32
    %v4889 = vpop.permute.xlu0 %4888
    %v4890 = vrot.slane %v4887, 1
    %v4891 = vrot.slane %v4889, 1
    %v4892 = vsel %vm90, %v4890, %v4891
    %v4893 = vsel %vm2182, %v4887, %v4892
    %v4894 = vsel %vm2182, %v4889, %v4891
    %s4897 = scalar_lea.vmem [#allocation3], 2016
    %4898 = vst [vmem:[%s4897] ss:$8 sm:$0xf] %v4893
    %4899 = vst [vmem:[%s4897] ss:$8 sm:$0xf0] %v4893
    %s4900 = scalar_lea.vmem [#allocation3], 2080
    %4901 = vst.msk [vmem:[%s4900] ss:$8 sm:$0x1] %vm75, %v4894
    %4902 = vst.msk [vmem:[%s4900] ss:$8 sm:$0x0] %vm75, %v4894
    %v4903 = vld [vmem:[%s2885] ss:$2 sm:$0xff]
    %v4904 = vld [vmem:[%s2887] ss:$2 sm:$0x3]
    %4907 = vrot.lane.b32.xlu0 %v4903, 31
    %v4908 = vpop.permute.xlu0 %4907
    %4909 = vrot.lane.b32.xlu0 %v4904, 31
    %v4910 = vpop.permute.xlu0 %4909
    %v4911 = vrot.slane %v4908, 1
    %v4912 = vrot.slane %v4910, 1
    %v4913 = vsel %vm90, %v4911, %v4912
    %v4914 = vsel %vm2204, %v4908, %v4913
    %v4915 = vsel %vm2204, %v4910, %v4912
    %s4918 = scalar_lea.vmem [#allocation3], 2017
    %4919 = vst [vmem:[%s4918] ss:$8 sm:$0xf] %v4914
    %4920 = vst [vmem:[%s4918] ss:$8 sm:$0xf0] %v4914
    %s4921 = scalar_lea.vmem [#allocation3], 2081
    %4922 = vst.msk [vmem:[%s4921] ss:$8 sm:$0x1] %vm75, %v4915
    %4923 = vst.msk [vmem:[%s4921] ss:$8 sm:$0x0] %vm75, %v4915
    %v4924 = vld [vmem:[%s2885] ss:$2 sm:$0xff]
    %v4925 = vld [vmem:[%s2887] ss:$2 sm:$0x3]
    %4928 = vrot.lane.b32.xlu0 %v4924, 30
    %v4929 = vpop.permute.xlu0 %4928
    %4930 = vrot.lane.b32.xlu0 %v4925, 30
    %v4931 = vpop.permute.xlu0 %4930
    %v4932 = vrot.slane %v4929, 1
    %v4933 = vrot.slane %v4931, 1
    %v4934 = vsel %vm90, %v4932, %v4933
    %v4935 = vsel %vm2226, %v4929, %v4934
    %v4936 = vsel %vm2226, %v4931, %v4933
    %s4939 = scalar_lea.vmem [#allocation3], 2018
    %4940 = vst [vmem:[%s4939] ss:$8 sm:$0xf] %v4935
    %4941 = vst [vmem:[%s4939] ss:$8 sm:$0xf0] %v4935
    %s4942 = scalar_lea.vmem [#allocation3], 2082
    %4943 = vst.msk [vmem:[%s4942] ss:$8 sm:$0x1] %vm75, %v4936
    %4944 = vst.msk [vmem:[%s4942] ss:$8 sm:$0x0] %vm75, %v4936
    %v4945 = vld [vmem:[%s2885] ss:$2 sm:$0xff]
    %v4946 = vld [vmem:[%s2887] ss:$2 sm:$0x3]
    %4949 = vrot.lane.b32.xlu0 %v4945, 29
    %v4950 = vpop.permute.xlu0 %4949
    %4951 = vrot.lane.b32.xlu0 %v4946, 29
    %v4952 = vpop.permute.xlu0 %4951
    %v4953 = vrot.slane %v4950, 1
    %v4954 = vrot.slane %v4952, 1
    %v4955 = vsel %vm90, %v4953, %v4954
    %v4956 = vsel %vm2248, %v4950, %v4955
    %v4957 = vsel %vm2248, %v4952, %v4954
    %s4960 = scalar_lea.vmem [#allocation3], 2019
    %4961 = vst [vmem:[%s4960] ss:$8 sm:$0xf] %v4956
    %4962 = vst [vmem:[%s4960] ss:$8 sm:$0xf0] %v4956
    %s4963 = scalar_lea.vmem [#allocation3], 2083
    %4964 = vst.msk [vmem:[%s4963] ss:$8 sm:$0x1] %vm75, %v4957
    %4965 = vst.msk [vmem:[%s4963] ss:$8 sm:$0x0] %vm75, %v4957
    %v4966 = vld [vmem:[%s2885] ss:$2 sm:$0xff]
    %v4967 = vld [vmem:[%s2887] ss:$2 sm:$0x3]
    %4970 = vrot.lane.b32.xlu0 %v4966, 28
    %v4971 = vpop.permute.xlu0 %4970
    %4972 = vrot.lane.b32.xlu0 %v4967, 28
    %v4973 = vpop.permute.xlu0 %4972
    %v4974 = vrot.slane %v4971, 1
    %v4975 = vrot.slane %v4973, 1
    %v4976 = vsel %vm90, %v4974, %v4975
    %v4977 = vsel %vm2270, %v4971, %v4976
    %v4978 = vsel %vm2270, %v4973, %v4975
    %s4981 = scalar_lea.vmem [#allocation3], 2020
    %4982 = vst [vmem:[%s4981] ss:$8 sm:$0xf] %v4977
    %4983 = vst [vmem:[%s4981] ss:$8 sm:$0xf0] %v4977
    %s4984 = scalar_lea.vmem [#allocation3], 2084
    %4985 = vst.msk [vmem:[%s4984] ss:$8 sm:$0x1] %vm75, %v4978
    %4986 = vst.msk [vmem:[%s4984] ss:$8 sm:$0x0] %vm75, %v4978
    %v4987 = vld [vmem:[%s2885] ss:$2 sm:$0xff]
    %v4988 = vld [vmem:[%s2887] ss:$2 sm:$0x3]
    %4991 = vrot.lane.b32.xlu0 %v4987, 27
    %v4992 = vpop.permute.xlu0 %4991
    %4993 = vrot.lane.b32.xlu0 %v4988, 27
    %v4994 = vpop.permute.xlu0 %4993
    %v4995 = vrot.slane %v4992, 1
    %v4996 = vrot.slane %v4994, 1
    %v4997 = vsel %vm90, %v4995, %v4996
    %v4998 = vsel %vm2292, %v4992, %v4997
    %v4999 = vsel %vm2292, %v4994, %v4996
    %s5002 = scalar_lea.vmem [#allocation3], 2021
    %5003 = vst [vmem:[%s5002] ss:$8 sm:$0xf] %v4998
    %5004 = vst [vmem:[%s5002] ss:$8 sm:$0xf0] %v4998
    %s5005 = scalar_lea.vmem [#allocation3], 2085
    %5006 = vst.msk [vmem:[%s5005] ss:$8 sm:$0x1] %vm75, %v4999
    %5007 = vst.msk [vmem:[%s5005] ss:$8 sm:$0x0] %vm75, %v4999
    %v5008 = vld [vmem:[%s2885] ss:$2 sm:$0xff]
    %v5009 = vld [vmem:[%s2887] ss:$2 sm:$0x3]
    %5012 = vrot.lane.b32.xlu0 %v5008, 26
    %v5013 = vpop.permute.xlu0 %5012
    %5014 = vrot.lane.b32.xlu0 %v5009, 26
    %v5015 = vpop.permute.xlu0 %5014
    %v5016 = vrot.slane %v5013, 1
    %v5017 = vrot.slane %v5015, 1
    %v5018 = vsel %vm90, %v5016, %v5017
    %v5019 = vsel %vm2314, %v5013, %v5018
    %v5020 = vsel %vm2314, %v5015, %v5017
    %s5023 = scalar_lea.vmem [#allocation3], 2022
    %5024 = vst [vmem:[%s5023] ss:$8 sm:$0xf] %v5019
    %5025 = vst [vmem:[%s5023] ss:$8 sm:$0xf0] %v5019
    %s5026 = scalar_lea.vmem [#allocation3], 2086
    %5027 = vst.msk [vmem:[%s5026] ss:$8 sm:$0x1] %vm75, %v5020
    %5028 = vst.msk [vmem:[%s5026] ss:$8 sm:$0x0] %vm75, %v5020
    %v5029 = vld [vmem:[%s2885] ss:$2 sm:$0xff]
    %v5030 = vld [vmem:[%s2887] ss:$2 sm:$0x3]
    %5033 = vrot.lane.b32.xlu0 %v5029, 25
    %v5034 = vpop.permute.xlu0 %5033
    %5035 = vrot.lane.b32.xlu0 %v5030, 25
    %v5036 = vpop.permute.xlu0 %5035
    %v5037 = vrot.slane %v5034, 1
    %v5038 = vrot.slane %v5036, 1
    %v5039 = vsel %vm90, %v5037, %v5038
    %v5040 = vsel %vm2336, %v5034, %v5039
    %v5041 = vsel %vm2336, %v5036, %v5038
    %s5044 = scalar_lea.vmem [#allocation3], 2023
    %5045 = vst [vmem:[%s5044] ss:$8 sm:$0xf] %v5040
    %5046 = vst [vmem:[%s5044] ss:$8 sm:$0xf0] %v5040
    %s5047 = scalar_lea.vmem [#allocation3], 2087
    %5048 = vst.msk [vmem:[%s5047] ss:$8 sm:$0x1] %vm75, %v5041
    %5049 = vst.msk [vmem:[%s5047] ss:$8 sm:$0x0] %vm75, %v5041
    %v5050 = vld [vmem:[%s2885] ss:$2 sm:$0xff]
    %v5051 = vld [vmem:[%s2887] ss:$2 sm:$0x3]
    %5054 = vrot.lane.b32.xlu0 %v5050, 24
    %v5055 = vpop.permute.xlu0 %5054
    %5056 = vrot.lane.b32.xlu0 %v5051, 24
    %v5057 = vpop.permute.xlu0 %5056
    %v5058 = vrot.slane %v5055, 1
    %v5059 = vrot.slane %v5057, 1
    %v5060 = vsel %vm90, %v5058, %v5059
    %v5061 = vsel %vm2358, %v5055, %v5060
    %v5062 = vsel %vm2358, %v5057, %v5059
    %s5065 = scalar_lea.vmem [#allocation3], 2088
    %5066 = vst [vmem:[%s5065] ss:$8 sm:$0xf] %v5061
    %5067 = vst [vmem:[%s5065] ss:$8 sm:$0xf0] %v5061
    %s5068 = scalar_lea.vmem [#allocation3], 2152
    %5069 = vst.msk [vmem:[%s5068] ss:$8 sm:$0x1] %vm75, %v5062
    %5070 = vst.msk [vmem:[%s5068] ss:$8 sm:$0x0] %vm75, %v5062
    %v5071 = vld [vmem:[%s2885] ss:$2 sm:$0xff]
    %v5072 = vld [vmem:[%s2887] ss:$2 sm:$0x3]
    %5075 = vrot.lane.b32.xlu0 %v5071, 23
    %v5076 = vpop.permute.xlu0 %5075
    %5077 = vrot.lane.b32.xlu0 %v5072, 23
    %v5078 = vpop.permute.xlu0 %5077
    %v5079 = vrot.slane %v5076, 1
    %v5080 = vrot.slane %v5078, 1
    %v5081 = vsel %vm90, %v5079, %v5080
    %v5082 = vsel %vm2380, %v5076, %v5081
    %v5083 = vsel %vm2380, %v5078, %v5080
    %s5086 = scalar_lea.vmem [#allocation3], 2089
    %5087 = vst [vmem:[%s5086] ss:$8 sm:$0xf] %v5082
    %5088 = vst [vmem:[%s5086] ss:$8 sm:$0xf0] %v5082
    %s5089 = scalar_lea.vmem [#allocation3], 2153
    %5090 = vst.msk [vmem:[%s5089] ss:$8 sm:$0x1] %vm75, %v5083
    %5091 = vst.msk [vmem:[%s5089] ss:$8 sm:$0x0] %vm75, %v5083
    %v5092 = vld [vmem:[%s2885] ss:$2 sm:$0xff]
    %v5093 = vld [vmem:[%s2887] ss:$2 sm:$0x3]
    %5096 = vrot.lane.b32.xlu0 %v5092, 22
    %v5097 = vpop.permute.xlu0 %5096
    %5098 = vrot.lane.b32.xlu0 %v5093, 22
    %v5099 = vpop.permute.xlu0 %5098
    %v5100 = vrot.slane %v5097, 1
    %v5101 = vrot.slane %v5099, 1
    %v5102 = vsel %vm90, %v5100, %v5101
    %v5103 = vsel %vm2402, %v5097, %v5102
    %v5104 = vsel %vm2402, %v5099, %v5101
    %s5107 = scalar_lea.vmem [#allocation3], 2090
    %5108 = vst [vmem:[%s5107] ss:$8 sm:$0xf] %v5103
    %5109 = vst [vmem:[%s5107] ss:$8 sm:$0xf0] %v5103
    %s5110 = scalar_lea.vmem [#allocation3], 2154
    %5111 = vst.msk [vmem:[%s5110] ss:$8 sm:$0x1] %vm75, %v5104
    %5112 = vst.msk [vmem:[%s5110] ss:$8 sm:$0x0] %vm75, %v5104
    %v5113 = vld [vmem:[%s2885] ss:$2 sm:$0xff]
    %v5114 = vld [vmem:[%s2887] ss:$2 sm:$0x3]
    %5117 = vrot.lane.b32.xlu0 %v5113, 21
    %v5118 = vpop.permute.xlu0 %5117
    %5119 = vrot.lane.b32.xlu0 %v5114, 21
    %v5120 = vpop.permute.xlu0 %5119
    %v5121 = vrot.slane %v5118, 1
    %v5122 = vrot.slane %v5120, 1
    %v5123 = vsel %vm90, %v5121, %v5122
    %v5124 = vsel %vm2424, %v5118, %v5123
    %v5125 = vsel %vm2424, %v5120, %v5122
    %s5128 = scalar_lea.vmem [#allocation3], 2091
    %5129 = vst [vmem:[%s5128] ss:$8 sm:$0xf] %v5124
    %5130 = vst [vmem:[%s5128] ss:$8 sm:$0xf0] %v5124
    %s5131 = scalar_lea.vmem [#allocation3], 2155
    %5132 = vst.msk [vmem:[%s5131] ss:$8 sm:$0x1] %vm75, %v5125
    %5133 = vst.msk [vmem:[%s5131] ss:$8 sm:$0x0] %vm75, %v5125
    %v5134 = vld [vmem:[%s2885] ss:$2 sm:$0xff]
    %v5135 = vld [vmem:[%s2887] ss:$2 sm:$0x3]
    %5138 = vrot.lane.b32.xlu0 %v5134, 20
    %v5139 = vpop.permute.xlu0 %5138
    %5140 = vrot.lane.b32.xlu0 %v5135, 20
    %v5141 = vpop.permute.xlu0 %5140
    %v5142 = vrot.slane %v5139, 1
    %v5143 = vrot.slane %v5141, 1
    %v5144 = vsel %vm90, %v5142, %v5143
    %v5145 = vsel %vm2446, %v5139, %v5144
    %v5146 = vsel %vm2446, %v5141, %v5143
    %s5149 = scalar_lea.vmem [#allocation3], 2092
    %5150 = vst [vmem:[%s5149] ss:$8 sm:$0xf] %v5145
    %5151 = vst [vmem:[%s5149] ss:$8 sm:$0xf0] %v5145
    %s5152 = scalar_lea.vmem [#allocation3], 2156
    %5153 = vst.msk [vmem:[%s5152] ss:$8 sm:$0x1] %vm75, %v5146
    %5154 = vst.msk [vmem:[%s5152] ss:$8 sm:$0x0] %vm75, %v5146
    %v5155 = vld [vmem:[%s2885] ss:$2 sm:$0xff]
    %v5156 = vld [vmem:[%s2887] ss:$2 sm:$0x3]
    %5159 = vrot.lane.b32.xlu0 %v5155, 19
    %v5160 = vpop.permute.xlu0 %5159
    %5161 = vrot.lane.b32.xlu0 %v5156, 19
    %v5162 = vpop.permute.xlu0 %5161
    %v5163 = vrot.slane %v5160, 1
    %v5164 = vrot.slane %v5162, 1
    %v5165 = vsel %vm90, %v5163, %v5164
    %v5166 = vsel %vm2468, %v5160, %v5165
    %v5167 = vsel %vm2468, %v5162, %v5164
    %s5170 = scalar_lea.vmem [#allocation3], 2093
    %5171 = vst [vmem:[%s5170] ss:$8 sm:$0xf] %v5166
    %5172 = vst [vmem:[%s5170] ss:$8 sm:$0xf0] %v5166
    %s5173 = scalar_lea.vmem [#allocation3], 2157
    %5174 = vst.msk [vmem:[%s5173] ss:$8 sm:$0x1] %vm75, %v5167
    %5175 = vst.msk [vmem:[%s5173] ss:$8 sm:$0x0] %vm75, %v5167
    %v5176 = vld [vmem:[%s2885] ss:$2 sm:$0xff]
    %v5177 = vld [vmem:[%s2887] ss:$2 sm:$0x3]
    %5180 = vrot.lane.b32.xlu0 %v5176, 18
    %v5181 = vpop.permute.xlu0 %5180
    %5182 = vrot.lane.b32.xlu0 %v5177, 18
    %v5183 = vpop.permute.xlu0 %5182
    %v5184 = vrot.slane %v5181, 1
    %v5185 = vrot.slane %v5183, 1
    %v5186 = vsel %vm90, %v5184, %v5185
    %v5187 = vsel %vm2490, %v5181, %v5186
    %v5188 = vsel %vm2490, %v5183, %v5185
    %s5191 = scalar_lea.vmem [#allocation3], 2094
    %5192 = vst [vmem:[%s5191] ss:$8 sm:$0xf] %v5187
    %5193 = vst [vmem:[%s5191] ss:$8 sm:$0xf0] %v5187
    %s5194 = scalar_lea.vmem [#allocation3], 2158
    %5195 = vst.msk [vmem:[%s5194] ss:$8 sm:$0x1] %vm75, %v5188
    %5196 = vst.msk [vmem:[%s5194] ss:$8 sm:$0x0] %vm75, %v5188
    %v5197 = vld [vmem:[%s2885] ss:$2 sm:$0xff]
    %v5198 = vld [vmem:[%s2887] ss:$2 sm:$0x3]
    %5201 = vrot.lane.b32.xlu0 %v5197, 17
    %v5202 = vpop.permute.xlu0 %5201
    %5203 = vrot.lane.b32.xlu0 %v5198, 17
    %v5204 = vpop.permute.xlu0 %5203
    %v5205 = vrot.slane %v5202, 1
    %v5206 = vrot.slane %v5204, 1
    %v5207 = vsel %vm90, %v5205, %v5206
    %v5208 = vsel %vm2512, %v5202, %v5207
    %v5209 = vsel %vm2512, %v5204, %v5206
    %s5212 = scalar_lea.vmem [#allocation3], 2095
    %5213 = vst [vmem:[%s5212] ss:$8 sm:$0xf] %v5208
    %5214 = vst [vmem:[%s5212] ss:$8 sm:$0xf0] %v5208
    %s5215 = scalar_lea.vmem [#allocation3], 2159
    %5216 = vst.msk [vmem:[%s5215] ss:$8 sm:$0x1] %vm75, %v5209
    %5217 = vst.msk [vmem:[%s5215] ss:$8 sm:$0x0] %vm75, %v5209
    %v5218 = vld [vmem:[%s2885] ss:$2 sm:$0xff]
    %v5219 = vld [vmem:[%s2887] ss:$2 sm:$0x3]
    %5222 = vrot.lane.b32.xlu0 %v5218, 16
    %v5223 = vpop.permute.xlu0 %5222
    %5224 = vrot.lane.b32.xlu0 %v5219, 16
    %v5225 = vpop.permute.xlu0 %5224
    %v5226 = vrot.slane %v5223, 1
    %v5227 = vrot.slane %v5225, 1
    %v5228 = vsel %vm90, %v5226, %v5227
    %v5229 = vsel %vm2534, %v5223, %v5228
    %v5230 = vsel %vm2534, %v5225, %v5227
    %s5233 = scalar_lea.vmem [#allocation3], 2160
    %5234 = vst [vmem:[%s5233] ss:$8 sm:$0xf] %v5229
    %5235 = vst [vmem:[%s5233] ss:$8 sm:$0xf0] %v5229
    %s5236 = scalar_lea.vmem [#allocation3], 2224
    %5237 = vst.msk [vmem:[%s5236] ss:$8 sm:$0x1] %vm75, %v5230
    %5238 = vst.msk [vmem:[%s5236] ss:$8 sm:$0x0] %vm75, %v5230
    %v5239 = vld [vmem:[%s2885] ss:$2 sm:$0xff]
    %v5240 = vld [vmem:[%s2887] ss:$2 sm:$0x3]
    %5243 = vrot.lane.b32.xlu0 %v5239, 15
    %v5244 = vpop.permute.xlu0 %5243
    %5245 = vrot.lane.b32.xlu0 %v5240, 15
    %v5246 = vpop.permute.xlu0 %5245
    %v5247 = vrot.slane %v5244, 1
    %v5248 = vrot.slane %v5246, 1
    %v5249 = vsel %vm90, %v5247, %v5248
    %v5250 = vsel %vm2556, %v5244, %v5249
    %v5251 = vsel %vm2556, %v5246, %v5248
    %s5254 = scalar_lea.vmem [#allocation3], 2161
    %5255 = vst [vmem:[%s5254] ss:$8 sm:$0xf] %v5250
    %5256 = vst [vmem:[%s5254] ss:$8 sm:$0xf0] %v5250
    %s5257 = scalar_lea.vmem [#allocation3], 2225
    %5258 = vst.msk [vmem:[%s5257] ss:$8 sm:$0x1] %vm75, %v5251
    %5259 = vst.msk [vmem:[%s5257] ss:$8 sm:$0x0] %vm75, %v5251
    %v5260 = vld [vmem:[%s2885] ss:$2 sm:$0xff]
    %v5261 = vld [vmem:[%s2887] ss:$2 sm:$0x3]
    %5264 = vrot.lane.b32.xlu0 %v5260, 14
    %v5265 = vpop.permute.xlu0 %5264
    %5266 = vrot.lane.b32.xlu0 %v5261, 14
    %v5267 = vpop.permute.xlu0 %5266
    %v5268 = vrot.slane %v5265, 1
    %v5269 = vrot.slane %v5267, 1
    %v5270 = vsel %vm90, %v5268, %v5269
    %v5271 = vsel %vm2578, %v5265, %v5270
    %v5272 = vsel %vm2578, %v5267, %v5269
    %s5275 = scalar_lea.vmem [#allocation3], 2162
    %5276 = vst [vmem:[%s5275] ss:$8 sm:$0xf] %v5271
    %5277 = vst [vmem:[%s5275] ss:$8 sm:$0xf0] %v5271
    %s5278 = scalar_lea.vmem [#allocation3], 2226
    %5279 = vst.msk [vmem:[%s5278] ss:$8 sm:$0x1] %vm75, %v5272
    %5280 = vst.msk [vmem:[%s5278] ss:$8 sm:$0x0] %vm75, %v5272
    %v5281 = vld [vmem:[%s2885] ss:$2 sm:$0xff]
    %v5282 = vld [vmem:[%s2887] ss:$2 sm:$0x3]
    %5285 = vrot.lane.b32.xlu0 %v5281, 13
    %v5286 = vpop.permute.xlu0 %5285
    %5287 = vrot.lane.b32.xlu0 %v5282, 13
    %v5288 = vpop.permute.xlu0 %5287
    %v5289 = vrot.slane %v5286, 1
    %v5290 = vrot.slane %v5288, 1
    %v5291 = vsel %vm90, %v5289, %v5290
    %v5292 = vsel %vm2600, %v5286, %v5291
    %v5293 = vsel %vm2600, %v5288, %v5290
    %s5296 = scalar_lea.vmem [#allocation3], 2163
    %5297 = vst [vmem:[%s5296] ss:$8 sm:$0xf] %v5292
    %5298 = vst [vmem:[%s5296] ss:$8 sm:$0xf0] %v5292
    %s5299 = scalar_lea.vmem [#allocation3], 2227
    %5300 = vst.msk [vmem:[%s5299] ss:$8 sm:$0x1] %vm75, %v5293
    %5301 = vst.msk [vmem:[%s5299] ss:$8 sm:$0x0] %vm75, %v5293
    %v5302 = vld [vmem:[%s2885] ss:$2 sm:$0xff]
    %v5303 = vld [vmem:[%s2887] ss:$2 sm:$0x3]
    %5306 = vrot.lane.b32.xlu0 %v5302, 12
    %v5307 = vpop.permute.xlu0 %5306
    %5308 = vrot.lane.b32.xlu0 %v5303, 12
    %v5309 = vpop.permute.xlu0 %5308
    %v5310 = vrot.slane %v5307, 1
    %v5311 = vrot.slane %v5309, 1
    %v5312 = vsel %vm90, %v5310, %v5311
    %v5313 = vsel %vm2622, %v5307, %v5312
    %v5314 = vsel %vm2622, %v5309, %v5311
    %s5317 = scalar_lea.vmem [#allocation3], 2164
    %5318 = vst [vmem:[%s5317] ss:$8 sm:$0xf] %v5313
    %5319 = vst [vmem:[%s5317] ss:$8 sm:$0xf0] %v5313
    %s5320 = scalar_lea.vmem [#allocation3], 2228
    %5321 = vst.msk [vmem:[%s5320] ss:$8 sm:$0x1] %vm75, %v5314
    %5322 = vst.msk [vmem:[%s5320] ss:$8 sm:$0x0] %vm75, %v5314
    %v5323 = vld [vmem:[%s2885] ss:$2 sm:$0xff]
    %v5324 = vld [vmem:[%s2887] ss:$2 sm:$0x3]
    %5327 = vrot.lane.b32.xlu0 %v5323, 11
    %v5328 = vpop.permute.xlu0 %5327
    %5329 = vrot.lane.b32.xlu0 %v5324, 11
    %v5330 = vpop.permute.xlu0 %5329
    %v5331 = vrot.slane %v5328, 1
    %v5332 = vrot.slane %v5330, 1
    %v5333 = vsel %vm90, %v5331, %v5332
    %v5334 = vsel %vm2644, %v5328, %v5333
    %v5335 = vsel %vm2644, %v5330, %v5332
    %s5338 = scalar_lea.vmem [#allocation3], 2165
    %5339 = vst [vmem:[%s5338] ss:$8 sm:$0xf] %v5334
    %5340 = vst [vmem:[%s5338] ss:$8 sm:$0xf0] %v5334
    %s5341 = scalar_lea.vmem [#allocation3], 2229
    %5342 = vst.msk [vmem:[%s5341] ss:$8 sm:$0x1] %vm75, %v5335
    %5343 = vst.msk [vmem:[%s5341] ss:$8 sm:$0x0] %vm75, %v5335
    %v5344 = vld [vmem:[%s2885] ss:$2 sm:$0xff]
    %v5345 = vld [vmem:[%s2887] ss:$2 sm:$0x3]
    %5348 = vrot.lane.b32.xlu0 %v5344, 10
    %v5349 = vpop.permute.xlu0 %5348
    %5350 = vrot.lane.b32.xlu0 %v5345, 10
    %v5351 = vpop.permute.xlu0 %5350
    %v5352 = vrot.slane %v5349, 1
    %v5353 = vrot.slane %v5351, 1
    %v5354 = vsel %vm90, %v5352, %v5353
    %v5355 = vsel %vm2666, %v5349, %v5354
    %v5356 = vsel %vm2666, %v5351, %v5353
    %s5359 = scalar_lea.vmem [#allocation3], 2166
    %5360 = vst [vmem:[%s5359] ss:$8 sm:$0xf] %v5355
    %5361 = vst [vmem:[%s5359] ss:$8 sm:$0xf0] %v5355
    %s5362 = scalar_lea.vmem [#allocation3], 2230
    %5363 = vst.msk [vmem:[%s5362] ss:$8 sm:$0x1] %vm75, %v5356
    %5364 = vst.msk [vmem:[%s5362] ss:$8 sm:$0x0] %vm75, %v5356
    %v5365 = vld [vmem:[%s2885] ss:$2 sm:$0xff]
    %v5366 = vld [vmem:[%s2887] ss:$2 sm:$0x3]
    %5369 = vrot.lane.b32.xlu0 %v5365, 9
    %v5370 = vpop.permute.xlu0 %5369
    %5371 = vrot.lane.b32.xlu0 %v5366, 9
    %v5372 = vpop.permute.xlu0 %5371
    %v5373 = vrot.slane %v5370, 1
    %v5374 = vrot.slane %v5372, 1
    %v5375 = vsel %vm90, %v5373, %v5374
    %v5376 = vsel %vm2688, %v5370, %v5375
    %v5377 = vsel %vm2688, %v5372, %v5374
    %s5380 = scalar_lea.vmem [#allocation3], 2167
    %5381 = vst [vmem:[%s5380] ss:$8 sm:$0xf] %v5376
    %5382 = vst [vmem:[%s5380] ss:$8 sm:$0xf0] %v5376
    %s5383 = scalar_lea.vmem [#allocation3], 2231
    %5384 = vst.msk [vmem:[%s5383] ss:$8 sm:$0x1] %vm75, %v5377
    %5385 = vst.msk [vmem:[%s5383] ss:$8 sm:$0x0] %vm75, %v5377
    %v5386 = vld [vmem:[%s2885] ss:$2 sm:$0xff]
    %v5387 = vld [vmem:[%s2887] ss:$2 sm:$0x3]
    %5390 = vrot.lane.b32.xlu0 %v5386, 8
    %v5391 = vpop.permute.xlu0 %5390
    %5392 = vrot.lane.b32.xlu0 %v5387, 8
    %v5393 = vpop.permute.xlu0 %5392
    %v5394 = vrot.slane %v5391, 1
    %v5395 = vrot.slane %v5393, 1
    %v5396 = vsel %vm90, %v5394, %v5395
    %v5397 = vsel %vm2710, %v5391, %v5396
    %v5398 = vsel %vm2710, %v5393, %v5395
    %s5401 = scalar_lea.vmem [#allocation3], 2232
    %5402 = vst [vmem:[%s5401] ss:$8 sm:$0xf] %v5397
    %5403 = vst [vmem:[%s5401] ss:$8 sm:$0xf0] %v5397
    %s5404 = scalar_lea.vmem [#allocation3], 2296
    %5405 = vst.msk [vmem:[%s5404] ss:$8 sm:$0x1] %vm75, %v5398
    %5406 = vst.msk [vmem:[%s5404] ss:$8 sm:$0x0] %vm75, %v5398
    %v5407 = vld [vmem:[%s2885] ss:$2 sm:$0xff]
    %v5408 = vld [vmem:[%s2887] ss:$2 sm:$0x3]
    %5411 = vrot.lane.b32.xlu0 %v5407, 7
    %v5412 = vpop.permute.xlu0 %5411
    %5413 = vrot.lane.b32.xlu0 %v5408, 7
    %v5414 = vpop.permute.xlu0 %5413
    %v5415 = vrot.slane %v5412, 1
    %v5416 = vrot.slane %v5414, 1
    %v5417 = vsel %vm90, %v5415, %v5416
    %v5418 = vsel %vm2732, %v5412, %v5417
    %v5419 = vsel %vm2732, %v5414, %v5416
    %s5422 = scalar_lea.vmem [#allocation3], 2233
    %5423 = vst [vmem:[%s5422] ss:$8 sm:$0xf] %v5418
    %5424 = vst [vmem:[%s5422] ss:$8 sm:$0xf0] %v5418
    %s5425 = scalar_lea.vmem [#allocation3], 2297
    %5426 = vst.msk [vmem:[%s5425] ss:$8 sm:$0x1] %vm75, %v5419
    %5427 = vst.msk [vmem:[%s5425] ss:$8 sm:$0x0] %vm75, %v5419
    %v5428 = vld [vmem:[%s2885] ss:$2 sm:$0xff]
    %v5429 = vld [vmem:[%s2887] ss:$2 sm:$0x3]
    %5432 = vrot.lane.b32.xlu0 %v5428, 6
    %v5433 = vpop.permute.xlu0 %5432
    %5434 = vrot.lane.b32.xlu0 %v5429, 6
    %v5435 = vpop.permute.xlu0 %5434
    %v5436 = vrot.slane %v5433, 1
    %v5437 = vrot.slane %v5435, 1
    %v5438 = vsel %vm90, %v5436, %v5437
    %v5439 = vsel %vm2754, %v5433, %v5438
    %v5440 = vsel %vm2754, %v5435, %v5437
    %s5443 = scalar_lea.vmem [#allocation3], 2234
    %5444 = vst [vmem:[%s5443] ss:$8 sm:$0xf] %v5439
    %5445 = vst [vmem:[%s5443] ss:$8 sm:$0xf0] %v5439
    %s5446 = scalar_lea.vmem [#allocation3], 2298
    %5447 = vst.msk [vmem:[%s5446] ss:$8 sm:$0x1] %vm75, %v5440
    %5448 = vst.msk [vmem:[%s5446] ss:$8 sm:$0x0] %vm75, %v5440
    %v5449 = vld [vmem:[%s2885] ss:$2 sm:$0xff]
    %v5450 = vld [vmem:[%s2887] ss:$2 sm:$0x3]
    %5453 = vrot.lane.b32.xlu0 %v5449, 5
    %v5454 = vpop.permute.xlu0 %5453
    %5455 = vrot.lane.b32.xlu0 %v5450, 5
    %v5456 = vpop.permute.xlu0 %5455
    %v5457 = vrot.slane %v5454, 1
    %v5458 = vrot.slane %v5456, 1
    %v5459 = vsel %vm90, %v5457, %v5458
    %v5460 = vsel %vm2776, %v5454, %v5459
    %v5461 = vsel %vm2776, %v5456, %v5458
    %s5464 = scalar_lea.vmem [#allocation3], 2235
    %5465 = vst [vmem:[%s5464] ss:$8 sm:$0xf] %v5460
    %5466 = vst [vmem:[%s5464] ss:$8 sm:$0xf0] %v5460
    %s5467 = scalar_lea.vmem [#allocation3], 2299
    %5468 = vst.msk [vmem:[%s5467] ss:$8 sm:$0x1] %vm75, %v5461
    %5469 = vst.msk [vmem:[%s5467] ss:$8 sm:$0x0] %vm75, %v5461
    %v5470 = vld [vmem:[%s2885] ss:$2 sm:$0xff]
    %v5471 = vld [vmem:[%s2887] ss:$2 sm:$0x3]
    %5474 = vrot.lane.b32.xlu0 %v5470, 4
    %v5475 = vpop.permute.xlu0 %5474
    %5476 = vrot.lane.b32.xlu0 %v5471, 4
    %v5477 = vpop.permute.xlu0 %5476
    %v5478 = vrot.slane %v5475, 1
    %v5479 = vrot.slane %v5477, 1
    %v5480 = vsel %vm90, %v5478, %v5479
    %v5481 = vsel %vm2798, %v5475, %v5480
    %v5482 = vsel %vm2798, %v5477, %v5479
    %s5485 = scalar_lea.vmem [#allocation3], 2236
    %5486 = vst [vmem:[%s5485] ss:$8 sm:$0xf] %v5481
    %5487 = vst [vmem:[%s5485] ss:$8 sm:$0xf0] %v5481
    %s5488 = scalar_lea.vmem [#allocation3], 2300
    %5489 = vst.msk [vmem:[%s5488] ss:$8 sm:$0x1] %vm75, %v5482
    %5490 = vst.msk [vmem:[%s5488] ss:$8 sm:$0x0] %vm75, %v5482
    %v5491 = vld [vmem:[%s2885] ss:$2 sm:$0xff]
    %v5492 = vld [vmem:[%s2887] ss:$2 sm:$0x3]
    %5495 = vrot.lane.b32.xlu0 %v5491, 3
    %v5496 = vpop.permute.xlu0 %5495
    %5497 = vrot.lane.b32.xlu0 %v5492, 3
    %v5498 = vpop.permute.xlu0 %5497
    %v5499 = vrot.slane %v5496, 1
    %v5500 = vrot.slane %v5498, 1
    %v5501 = vsel %vm90, %v5499, %v5500
    %v5502 = vsel %vm2820, %v5496, %v5501
    %v5503 = vsel %vm2820, %v5498, %v5500
    %s5506 = scalar_lea.vmem [#allocation3], 2237
    %5507 = vst [vmem:[%s5506] ss:$8 sm:$0xf] %v5502
    %5508 = vst [vmem:[%s5506] ss:$8 sm:$0xf0] %v5502
    %s5509 = scalar_lea.vmem [#allocation3], 2301
    %5510 = vst.msk [vmem:[%s5509] ss:$8 sm:$0x1] %vm75, %v5503
    %5511 = vst.msk [vmem:[%s5509] ss:$8 sm:$0x0] %vm75, %v5503
    %v5512 = vld [vmem:[%s2885] ss:$2 sm:$0xff]
    %v5513 = vld [vmem:[%s2887] ss:$2 sm:$0x3]
    %5516 = vrot.lane.b32.xlu0 %v5512, 2
    %v5517 = vpop.permute.xlu0 %5516
    %5518 = vrot.lane.b32.xlu0 %v5513, 2
    %v5519 = vpop.permute.xlu0 %5518
    %v5520 = vrot.slane %v5517, 1
    %v5521 = vrot.slane %v5519, 1
    %v5522 = vsel %vm90, %v5520, %v5521
    %v5523 = vsel %vm2842, %v5517, %v5522
    %v5524 = vsel %vm2842, %v5519, %v5521
    %s5527 = scalar_lea.vmem [#allocation3], 2238
    %5528 = vst [vmem:[%s5527] ss:$8 sm:$0xf] %v5523
    %5529 = vst [vmem:[%s5527] ss:$8 sm:$0xf0] %v5523
    %s5530 = scalar_lea.vmem [#allocation3], 2302
    %5531 = vst.msk [vmem:[%s5530] ss:$8 sm:$0x1] %vm75, %v5524
    %5532 = vst.msk [vmem:[%s5530] ss:$8 sm:$0x0] %vm75, %v5524
    %v5533 = vld [vmem:[%s2885] ss:$2 sm:$0xff]
    %v5534 = vld [vmem:[%s2887] ss:$2 sm:$0x3]
    %5537 = vrot.lane.b32.xlu0 %v5533, 1
    %v5538 = vpop.permute.xlu0 %5537
    %5539 = vrot.lane.b32.xlu0 %v5534, 1
    %v5540 = vpop.permute.xlu0 %5539
    %v5541 = vrot.slane %v5538, 1
    %v5542 = vrot.slane %v5540, 1
    %v5543 = vsel %vm90, %v5541, %v5542
    %v5544 = vsel %vm2864, %v5538, %v5543
    %v5545 = vsel %vm2864, %v5540, %v5542
    %s5548 = scalar_lea.vmem [#allocation3], 2239
    %5549 = vst [vmem:[%s5548] ss:$8 sm:$0xf] %v5544
    %5550 = vst [vmem:[%s5548] ss:$8 sm:$0xf0] %v5544
    %s5551 = scalar_lea.vmem [#allocation3], 2303
    %5552 = vst.msk [vmem:[%s5551] ss:$8 sm:$0x1] %vm75, %v5545
    %5553 = vst.msk [vmem:[%s5551] ss:$8 sm:$0x0] %vm75, %v5545
    %v5554 = vld [vmem:[#allocation4] sm:$0xff]
    %v5555 = vunpack.c.l.bf16 %v5554
    %v5556 = vunpack.c.h.bf16 %v5554
    %v5557 = vld [vmem:[#allocation3] sm:$0xff]
    %v5558 = vld [vmem:[#allocation3 + $0x8] sm:$0xff]
    %v5559 = vld [vmem:[#allocation3 + $0x10] sm:$0xff]
    %v5560 = vld [vmem:[#allocation3 + $0x18] sm:$0xff]
    %v5561 = vld [vmem:[#allocation3 + $0x20] sm:$0xff]
    %v5562 = vld [vmem:[#allocation3 + $0x28] sm:$0xff]
    %v5563 = vld [vmem:[#allocation3 + $0x30] sm:$0xff]
    %v5564 = vld [vmem:[#allocation3 + $0x38] sm:$0xff]
    %v5565 = vld [vmem:[#allocation3 + $0x40] sm:$0xff]
    %v5566 = vld [vmem:[#allocation3 + $0x48] sm:$0xff]
    %v5567 = vld [vmem:[#allocation3 + $0x50] sm:$0xff]
    %v5568 = vld [vmem:[#allocation3 + $0x58] sm:$0xff]
    %v5569 = vld [vmem:[#allocation3 + $0x60] sm:$0xff]
    %v5570 = vld [vmem:[#allocation3 + $0x68] sm:$0xff]
    %v5571 = vld [vmem:[#allocation3 + $0x70] sm:$0xff]
    %v5572 = vld [vmem:[#allocation3 + $0x78] sm:$0xff]
    %v5573 = vld [vmem:[#allocation3 + $0x80] sm:$0xff]
    %v5574 = vld [vmem:[#allocation3 + $0x88] sm:$0xff]
    %v5575 = vld [vmem:[#allocation3 + $0x90] sm:$0xff]
    %v5576 = vld [vmem:[#allocation3 + $0x98] sm:$0xff]
    %v5577 = vld [vmem:[#allocation3 + $0xa0] sm:$0xff]
    %v5578 = vld [vmem:[#allocation3 + $0xa8] sm:$0xff]
    %v5579 = vld [vmem:[#allocation3 + $0xb0] sm:$0xff]
    %v5580 = vld [vmem:[#allocation3 + $0xb8] sm:$0xff]
    %v5581 = vld [vmem:[#allocation3 + $0xc0] sm:$0xff]
    %v5582 = vld [vmem:[#allocation3 + $0xc8] sm:$0xff]
    %v5583 = vld [vmem:[#allocation3 + $0xd0] sm:$0xff]
    %v5584 = vld [vmem:[#allocation3 + $0xd8] sm:$0xff]
    %v5585 = vld [vmem:[#allocation3 + $0xe0] sm:$0xff]
    %v5586 = vld [vmem:[#allocation3 + $0xe8] sm:$0xff]
    %v5587 = vld [vmem:[#allocation3 + $0xf0] sm:$0xff]
    %v5588 = vld [vmem:[#allocation3 + $0xf8] sm:$0xff]
    %v5589 = vld [vmem:[#allocation3 + $0x100] sm:$0xff]
    %v5590 = vld [vmem:[#allocation3 + $0x108] sm:$0xff]
    %v5591 = vld [vmem:[#allocation3 + $0x110] sm:$0xff]
    %v5592 = vld [vmem:[#allocation3 + $0x118] sm:$0xff]
    %v5593 = vld [vmem:[#allocation3 + $0x120] sm:$0xff]
    %v5594 = vld [vmem:[#allocation3 + $0x128] sm:$0xff]
    %v5595 = vld [vmem:[#allocation3 + $0x130] sm:$0xff]
    %v5596 = vld [vmem:[#allocation3 + $0x138] sm:$0xff]
    %v5597 = vld [vmem:[#allocation3 + $0x140] sm:$0xff]
    %v5598 = vld [vmem:[#allocation3 + $0x148] sm:$0xff]
    %v5599 = vld [vmem:[#allocation3 + $0x150] sm:$0xff]
    %v5600 = vld [vmem:[#allocation3 + $0x158] sm:$0xff]
    %v5601 = vld [vmem:[#allocation3 + $0x160] sm:$0xff]
    %v5602 = vld [vmem:[#allocation3 + $0x168] sm:$0xff]
    %v5603 = vld [vmem:[#allocation3 + $0x170] sm:$0xff]
    %v5604 = vld [vmem:[#allocation3 + $0x178] sm:$0xff]
    %v5605 = vld [vmem:[#allocation3 + $0x180] sm:$0xff]
    %v5606 = vld [vmem:[#allocation3 + $0x188] sm:$0xff]
    %v5607 = vld [vmem:[#allocation3 + $0x190] sm:$0xff]
    %v5608 = vld [vmem:[#allocation3 + $0x198] sm:$0xff]
    %v5609 = vld [vmem:[#allocation3 + $0x1a0] sm:$0xff]
    %v5610 = vld [vmem:[#allocation3 + $0x1a8] sm:$0xff]
    %v5611 = vld [vmem:[#allocation3 + $0x1b0] sm:$0xff]
    %v5612 = vld [vmem:[#allocation3 + $0x1b8] sm:$0xff]
    %v5613 = vld [vmem:[#allocation3 + $0x1c0] sm:$0xff]
    %v5614 = vld [vmem:[#allocation3 + $0x1c8] sm:$0xff]
    %v5615 = vld [vmem:[#allocation3 + $0x1d0] sm:$0xff]
    %v5616 = vld [vmem:[#allocation3 + $0x1d8] sm:$0xff]
    %v5617 = vld [vmem:[#allocation3 + $0x1e0] sm:$0xff]
    %v5618 = vld [vmem:[#allocation3 + $0x1e8] sm:$0xff]
    %v5619 = vld [vmem:[#allocation3 + $0x1f0] sm:$0xff]
    %v5620 = vld [vmem:[#allocation3 + $0x1f8] sm:$0xff]
    %v5621 = vld [vmem:[#allocation3 + $0x200] sm:$0xff]
    %v5622 = vld [vmem:[#allocation3 + $0x208] sm:$0xff]
    %v5623 = vld [vmem:[#allocation3 + $0x210] sm:$0xff]
    %v5624 = vld [vmem:[#allocation3 + $0x218] sm:$0xff]
    %v5625 = vld [vmem:[#allocation3 + $0x220] sm:$0xff]
    %v5626 = vld [vmem:[#allocation3 + $0x228] sm:$0xff]
    %v5627 = vld [vmem:[#allocation3 + $0x230] sm:$0xff]
    %v5628 = vld [vmem:[#allocation3 + $0x238] sm:$0xff]
    %v5629 = vld [vmem:[#allocation3 + $0x240] sm:$0xff]
    %v5630 = vld [vmem:[#allocation3 + $0x248] sm:$0xff]
    %v5631 = vld [vmem:[#allocation3 + $0x250] sm:$0xff]
    %v5632 = vld [vmem:[#allocation3 + $0x258] sm:$0xff]
    %v5633 = vld [vmem:[#allocation3 + $0x260] sm:$0xff]
    %v5634 = vld [vmem:[#allocation3 + $0x268] sm:$0xff]
    %v5635 = vld [vmem:[#allocation3 + $0x270] sm:$0xff]
    %v5636 = vld [vmem:[#allocation3 + $0x278] sm:$0xff]
    %v5637 = vld [vmem:[#allocation3 + $0x280] sm:$0xff]
    %v5638 = vld [vmem:[#allocation3 + $0x288] sm:$0xff]
    %v5639 = vld [vmem:[#allocation3 + $0x290] sm:$0xff]
    %v5640 = vld [vmem:[#allocation3 + $0x298] sm:$0xff]
    %v5641 = vld [vmem:[#allocation3 + $0x2a0] sm:$0xff]
    %v5642 = vld [vmem:[#allocation3 + $0x2a8] sm:$0xff]
    %v5643 = vld [vmem:[#allocation3 + $0x2b0] sm:$0xff]
    %v5644 = vld [vmem:[#allocation3 + $0x2b8] sm:$0xff]
    %v5645 = vld [vmem:[#allocation3 + $0x2c0] sm:$0xff]
    %v5646 = vld [vmem:[#allocation3 + $0x2c8] sm:$0xff]
    %v5647 = vld [vmem:[#allocation3 + $0x2d0] sm:$0xff]
    %v5648 = vld [vmem:[#allocation3 + $0x2d8] sm:$0xff]
    %v5649 = vld [vmem:[#allocation3 + $0x2e0] sm:$0xff]
    %v5650 = vld [vmem:[#allocation3 + $0x2e8] sm:$0xff]
    %v5651 = vld [vmem:[#allocation3 + $0x2f0] sm:$0xff]
    %v5652 = vld [vmem:[#allocation3 + $0x2f8] sm:$0xff]
    %v5653 = vld [vmem:[#allocation3 + $0x300] sm:$0xff]
    %v5654 = vld [vmem:[#allocation3 + $0x308] sm:$0xff]
    %v5655 = vld [vmem:[#allocation3 + $0x310] sm:$0xff]
    %v5656 = vld [vmem:[#allocation3 + $0x318] sm:$0xff]
    %v5657 = vld [vmem:[#allocation3 + $0x320] sm:$0xff]
    %v5658 = vld [vmem:[#allocation3 + $0x328] sm:$0xff]
    %v5659 = vld [vmem:[#allocation3 + $0x330] sm:$0xff]
    %v5660 = vld [vmem:[#allocation3 + $0x338] sm:$0xff]
    %v5661 = vld [vmem:[#allocation3 + $0x340] sm:$0xff]
    %v5662 = vld [vmem:[#allocation3 + $0x348] sm:$0xff]
    %v5663 = vld [vmem:[#allocation3 + $0x350] sm:$0xff]
    %v5664 = vld [vmem:[#allocation3 + $0x358] sm:$0xff]
    %v5665 = vld [vmem:[#allocation3 + $0x360] sm:$0xff]
    %v5666 = vld [vmem:[#allocation3 + $0x368] sm:$0xff]
    %v5667 = vld [vmem:[#allocation3 + $0x370] sm:$0xff]
    %v5668 = vld [vmem:[#allocation3 + $0x378] sm:$0xff]
    %v5669 = vld [vmem:[#allocation3 + $0x380] sm:$0xff]
    %v5670 = vld [vmem:[#allocation3 + $0x388] sm:$0xff]
    %v5671 = vld [vmem:[#allocation3 + $0x390] sm:$0xff]
    %v5672 = vld [vmem:[#allocation3 + $0x398] sm:$0xff]
    %v5673 = vld [vmem:[#allocation3 + $0x3a0] sm:$0xff]
    %v5674 = vld [vmem:[#allocation3 + $0x3a8] sm:$0xff]
    %v5675 = vld [vmem:[#allocation3 + $0x3b0] sm:$0xff]
    %v5676 = vld [vmem:[#allocation3 + $0x3b8] sm:$0xff]
    %v5677 = vld [vmem:[#allocation3 + $0x3c0] sm:$0xff]
    %v5678 = vld [vmem:[#allocation3 + $0x3c8] sm:$0xff]
    %v5679 = vld [vmem:[#allocation3 + $0x3d0] sm:$0xff]
    %v5680 = vld [vmem:[#allocation3 + $0x3d8] sm:$0xff]
    %v5681 = vld [vmem:[#allocation3 + $0x3e0] sm:$0xff]
    %v5682 = vld [vmem:[#allocation3 + $0x3e8] sm:$0xff]
    %v5683 = vld [vmem:[#allocation3 + $0x3f0] sm:$0xff]
    %v5684 = vld [vmem:[#allocation3 + $0x3f8] sm:$0xff]
    %v5685 = vld [vmem:[#allocation3 + $0x400] sm:$0xff]
    %v5686 = vld [vmem:[#allocation3 + $0x408] sm:$0xff]
    %v5687 = vld [vmem:[#allocation3 + $0x410] sm:$0xff]
    %v5688 = vld [vmem:[#allocation3 + $0x418] sm:$0xff]
    %v5689 = vld [vmem:[#allocation3 + $0x420] sm:$0xff]
    %v5690 = vld [vmem:[#allocation3 + $0x428] sm:$0xff]
    %v5691 = vld [vmem:[#allocation3 + $0x430] sm:$0xff]
    %v5692 = vld [vmem:[#allocation3 + $0x438] sm:$0xff]
    %v5693 = vld [vmem:[#allocation3 + $0x440] sm:$0xff]
    %v5694 = vld [vmem:[#allocation3 + $0x448] sm:$0xff]
    %v5695 = vld [vmem:[#allocation3 + $0x450] sm:$0xff]
    %v5696 = vld [vmem:[#allocation3 + $0x458] sm:$0xff]
    %v5697 = vld [vmem:[#allocation3 + $0x460] sm:$0xff]
    %v5698 = vld [vmem:[#allocation3 + $0x468] sm:$0xff]
    %v5699 = vld [vmem:[#allocation3 + $0x470] sm:$0xff]
    %v5700 = vld [vmem:[#allocation3 + $0x478] sm:$0xff]
    %v5701 = vld [vmem:[#allocation3 + $0x480] sm:$0xff]
    %v5702 = vld [vmem:[#allocation3 + $0x488] sm:$0xff]
    %v5703 = vld [vmem:[#allocation3 + $0x490] sm:$0xff]
    %v5704 = vld [vmem:[#allocation3 + $0x498] sm:$0xff]
    %v5705 = vld [vmem:[#allocation3 + $0x4a0] sm:$0xff]
    %v5706 = vld [vmem:[#allocation3 + $0x4a8] sm:$0xff]
    %v5707 = vld [vmem:[#allocation3 + $0x4b0] sm:$0xff]
    %v5708 = vld [vmem:[#allocation3 + $0x4b8] sm:$0xff]
    %v5709 = vld [vmem:[#allocation3 + $0x4c0] sm:$0xff]
    %v5710 = vld [vmem:[#allocation3 + $0x4c8] sm:$0xff]
    %v5711 = vld [vmem:[#allocation3 + $0x4d0] sm:$0xff]
    %v5712 = vld [vmem:[#allocation3 + $0x4d8] sm:$0xff]
    %v5713 = vld [vmem:[#allocation3 + $0x4e0] sm:$0xff]
    %v5714 = vld [vmem:[#allocation3 + $0x4e8] sm:$0xff]
    %v5715 = vld [vmem:[#allocation3 + $0x4f0] sm:$0xff]
    %v5716 = vld [vmem:[#allocation3 + $0x4f8] sm:$0xff]
    %v5717 = vld [vmem:[#allocation3 + $0x500] sm:$0xff]
    %v5718 = vld [vmem:[#allocation3 + $0x508] sm:$0xff]
    %v5719 = vld [vmem:[#allocation3 + $0x510] sm:$0xff]
    %v5720 = vld [vmem:[#allocation3 + $0x518] sm:$0xff]
    %v5721 = vld [vmem:[#allocation3 + $0x520] sm:$0xff]
    %v5722 = vld [vmem:[#allocation3 + $0x528] sm:$0xff]
    %v5723 = vld [vmem:[#allocation3 + $0x530] sm:$0xff]
    %v5724 = vld [vmem:[#allocation3 + $0x538] sm:$0xff]
    %v5725 = vld [vmem:[#allocation3 + $0x540] sm:$0xff]
    %v5726 = vld [vmem:[#allocation3 + $0x548] sm:$0xff]
    %v5727 = vld [vmem:[#allocation3 + $0x550] sm:$0xff]
    %v5728 = vld [vmem:[#allocation3 + $0x558] sm:$0xff]
    %v5729 = vld [vmem:[#allocation3 + $0x560] sm:$0xff]
    %v5730 = vld [vmem:[#allocation3 + $0x568] sm:$0xff]
    %v5731 = vld [vmem:[#allocation3 + $0x570] sm:$0xff]
    %v5732 = vld [vmem:[#allocation3 + $0x578] sm:$0xff]
    %v5733 = vld [vmem:[#allocation3 + $0x580] sm:$0xff]
    %v5734 = vld [vmem:[#allocation3 + $0x588] sm:$0xff]
    %v5735 = vld [vmem:[#allocation3 + $0x590] sm:$0xff]
    %v5736 = vld [vmem:[#allocation3 + $0x598] sm:$0xff]
    %v5737 = vld [vmem:[#allocation3 + $0x5a0] sm:$0xff]
    %v5738 = vld [vmem:[#allocation3 + $0x5a8] sm:$0xff]
    %v5739 = vld [vmem:[#allocation3 + $0x5b0] sm:$0xff]
    %v5740 = vld [vmem:[#allocation3 + $0x5b8] sm:$0xff]
    %v5741 = vld [vmem:[#allocation3 + $0x5c0] sm:$0xff]
    %v5742 = vld [vmem:[#allocation3 + $0x5c8] sm:$0xff]
    %v5743 = vld [vmem:[#allocation3 + $0x5d0] sm:$0xff]
    %v5744 = vld [vmem:[#allocation3 + $0x5d8] sm:$0xff]
    %v5745 = vld [vmem:[#allocation3 + $0x5e0] sm:$0xff]
    %v5746 = vld [vmem:[#allocation3 + $0x5e8] sm:$0xff]
    %v5747 = vld [vmem:[#allocation3 + $0x5f0] sm:$0xff]
    %v5748 = vld [vmem:[#allocation3 + $0x5f8] sm:$0xff]
    %v5749 = vld [vmem:[#allocation3 + $0x600] sm:$0xff]
    %v5750 = vld [vmem:[#allocation3 + $0x608] sm:$0xff]
    %v5751 = vld [vmem:[#allocation3 + $0x610] sm:$0xff]
    %v5752 = vld [vmem:[#allocation3 + $0x618] sm:$0xff]
    %v5753 = vld [vmem:[#allocation3 + $0x620] sm:$0xff]
    %v5754 = vld [vmem:[#allocation3 + $0x628] sm:$0xff]
    %v5755 = vld [vmem:[#allocation3 + $0x630] sm:$0xff]
    %v5756 = vld [vmem:[#allocation3 + $0x638] sm:$0xff]
    %v5757 = vld [vmem:[#allocation3 + $0x640] sm:$0xff]
    %v5758 = vld [vmem:[#allocation3 + $0x648] sm:$0xff]
    %v5759 = vld [vmem:[#allocation3 + $0x650] sm:$0xff]
    %v5760 = vld [vmem:[#allocation3 + $0x658] sm:$0xff]
    %v5761 = vld [vmem:[#allocation3 + $0x660] sm:$0xff]
    %v5762 = vld [vmem:[#allocation3 + $0x668] sm:$0xff]
    %v5763 = vld [vmem:[#allocation3 + $0x670] sm:$0xff]
    %v5764 = vld [vmem:[#allocation3 + $0x678] sm:$0xff]
    %v5765 = vld [vmem:[#allocation3 + $0x680] sm:$0xff]
    %v5766 = vld [vmem:[#allocation3 + $0x688] sm:$0xff]
    %v5767 = vld [vmem:[#allocation3 + $0x690] sm:$0xff]
    %v5768 = vld [vmem:[#allocation3 + $0x698] sm:$0xff]
    %v5769 = vld [vmem:[#allocation3 + $0x6a0] sm:$0xff]
    %v5770 = vld [vmem:[#allocation3 + $0x6a8] sm:$0xff]
    %v5771 = vld [vmem:[#allocation3 + $0x6b0] sm:$0xff]
    %v5772 = vld [vmem:[#allocation3 + $0x6b8] sm:$0xff]
    %v5773 = vld [vmem:[#allocation3 + $0x6c0] sm:$0xff]
    %v5774 = vld [vmem:[#allocation3 + $0x6c8] sm:$0xff]
    %v5775 = vld [vmem:[#allocation3 + $0x6d0] sm:$0xff]
    %v5776 = vld [vmem:[#allocation3 + $0x6d8] sm:$0xff]
    %v5777 = vld [vmem:[#allocation3 + $0x6e0] sm:$0xff]
    %v5778 = vld [vmem:[#allocation3 + $0x6e8] sm:$0xff]
    %v5779 = vld [vmem:[#allocation3 + $0x6f0] sm:$0xff]
    %v5780 = vld [vmem:[#allocation3 + $0x6f8] sm:$0xff]
    %v5781 = vld [vmem:[#allocation3 + $0x700] sm:$0xff]
    %v5782 = vld [vmem:[#allocation3 + $0x708] sm:$0xff]
    %v5783 = vld [vmem:[#allocation3 + $0x710] sm:$0xff]
    %v5784 = vld [vmem:[#allocation3 + $0x718] sm:$0xff]
    %v5785 = vld [vmem:[#allocation3 + $0x720] sm:$0xff]
    %v5786 = vld [vmem:[#allocation3 + $0x728] sm:$0xff]
    %v5787 = vld [vmem:[#allocation3 + $0x730] sm:$0xff]
    %v5788 = vld [vmem:[#allocation3 + $0x738] sm:$0xff]
    %v5789 = vld [vmem:[#allocation3 + $0x740] sm:$0xff]
    %v5790 = vld [vmem:[#allocation3 + $0x748] sm:$0xff]
    %v5791 = vld [vmem:[#allocation3 + $0x750] sm:$0xff]
    %v5792 = vld [vmem:[#allocation3 + $0x758] sm:$0xff]
    %v5793 = vld [vmem:[#allocation3 + $0x760] sm:$0xff]
    %v5794 = vld [vmem:[#allocation3 + $0x768] sm:$0xff]
    %v5795 = vld [vmem:[#allocation3 + $0x770] sm:$0xff]
    %v5796 = vld [vmem:[#allocation3 + $0x778] sm:$0xff]
    %v5797 = vld [vmem:[#allocation3 + $0x780] sm:$0xff]
    %v5798 = vld [vmem:[#allocation3 + $0x788] sm:$0xff]
    %v5799 = vld [vmem:[#allocation3 + $0x790] sm:$0xff]
    %v5800 = vld [vmem:[#allocation3 + $0x798] sm:$0xff]
    %v5801 = vld [vmem:[#allocation3 + $0x7a0] sm:$0xff]
    %v5802 = vld [vmem:[#allocation3 + $0x7a8] sm:$0xff]
    %v5803 = vld [vmem:[#allocation3 + $0x7b0] sm:$0xff]
    %v5804 = vld [vmem:[#allocation3 + $0x7b8] sm:$0xff]
    %v5805 = vld [vmem:[#allocation3 + $0x7c0] sm:$0xff]
    %v5806 = vld [vmem:[#allocation3 + $0x7c8] sm:$0xff]
    %v5807 = vld [vmem:[#allocation3 + $0x7d0] sm:$0xff]
    %v5808 = vld [vmem:[#allocation3 + $0x7d8] sm:$0xff]
    %v5809 = vld [vmem:[#allocation3 + $0x7e0] sm:$0xff]
    %v5810 = vld [vmem:[#allocation3 + $0x7e8] sm:$0xff]
    %v5811 = vld [vmem:[#allocation3 + $0x7f0] sm:$0xff]
    %v5812 = vld [vmem:[#allocation3 + $0x7f8] sm:$0xff]
    %v5813 = vld [vmem:[#allocation3 + $0x800] sm:$0xff]
    %v5814 = vld [vmem:[#allocation3 + $0x808] sm:$0xff]
    %v5815 = vld [vmem:[#allocation3 + $0x810] sm:$0xff]
    %v5816 = vld [vmem:[#allocation3 + $0x818] sm:$0xff]
    %v5817 = vld [vmem:[#allocation3 + $0x820] sm:$0xff]
    %v5818 = vld [vmem:[#allocation3 + $0x828] sm:$0xff]
    %v5819 = vld [vmem:[#allocation3 + $0x830] sm:$0xff]
    %v5820 = vld [vmem:[#allocation3 + $0x838] sm:$0xff]
    %v5821 = vld [vmem:[#allocation3 + $0x840] sm:$0xff]
    %v5822 = vld [vmem:[#allocation3 + $0x848] sm:$0xff]
    %v5823 = vld [vmem:[#allocation3 + $0x850] sm:$0xff]
    %v5824 = vld [vmem:[#allocation3 + $0x858] sm:$0xff]
    %v5825 = vld [vmem:[#allocation3 + $0x860] sm:$0xff]
    %v5826 = vld [vmem:[#allocation3 + $0x868] sm:$0xff]
    %v5827 = vld [vmem:[#allocation3 + $0x870] sm:$0xff]
    %v5828 = vld [vmem:[#allocation3 + $0x878] sm:$0xff]
    %v5829 = vld [vmem:[#allocation3 + $0x880] sm:$0xff]
    %v5830 = vld [vmem:[#allocation3 + $0x888] sm:$0xff]
    %v5831 = vld [vmem:[#allocation3 + $0x890] sm:$0xff]
    %v5832 = vld [vmem:[#allocation3 + $0x898] sm:$0xff]
    %v5833 = vld [vmem:[#allocation3 + $0x8a0] sm:$0xff]
    %v5834 = vld [vmem:[#allocation3 + $0x8a8] sm:$0xff]
    %v5835 = vld [vmem:[#allocation3 + $0x8b0] sm:$0xff]
    %v5836 = vld [vmem:[#allocation3 + $0x8b8] sm:$0xff]
    %v5837 = vld [vmem:[#allocation3 + $0x8c0] sm:$0xff]
    %v5838 = vld [vmem:[#allocation3 + $0x8c8] sm:$0xff]
    %v5839 = vld [vmem:[#allocation3 + $0x8d0] sm:$0xff]
    %v5840 = vld [vmem:[#allocation3 + $0x8d8] sm:$0xff]
    %v5841 = vld [vmem:[#allocation3 + $0x8e0] sm:$0xff]
    %v5842 = vld [vmem:[#allocation3 + $0x8e8] sm:$0xff]
    %v5843 = vld [vmem:[#allocation3 + $0x8f0] sm:$0xff]
    %v5844 = vld [vmem:[#allocation3 + $0x8f8] sm:$0xff]
    %5845 = vmatprep.subr.mxu0 %v5558
    %5846 = vmatpush1.msra.mxu0 %v5557
    %5847 = vmatprep.subr.mxu0 %v5567
    %5848 = vmatpush1.msra.mxu0 %v5566
    %5849 = vmatprep.subr.mxu0 %v5576
    %5850 = vmatpush1.msra.mxu0 %v5575
    %5851 = vmatprep.subr.mxu0 %v5585
    %5852 = vmatpush1.msra.mxu0 %v5584
    %5853 = vmatprep.subr.mxu0 %v5594
    %5854 = vmatpush1.msra.mxu0 %v5593
    %5855 = vmatprep.subr.mxu0 %v5603
    %5856 = vmatpush1.msra.mxu0 %v5602
    %5857 = vmatprep.subr.mxu0 %v5612
    %5858 = vmatpush1.msra.mxu0 %v5611
    %5859 = vmatprep.subr.mxu0 %v5621
    %5860 = vmatpush1.msra.mxu0 %v5620
    %5861 = vmatprep.subr.mxu0 %v5630
    %5862 = vmatpush1.msra.mxu0 %v5629
    %5863 = vmatprep.subr.mxu0 %v5639
    %5864 = vmatpush1.msra.mxu0 %v5638
    %5865 = vmatprep.subr.mxu0 %v5648
    %5866 = vmatpush1.msra.mxu0 %v5647
    %5867 = vmatprep.subr.mxu0 %v5657
    %5868 = vmatpush1.msra.mxu0 %v5656
    %5869 = vmatprep.subr.mxu0 %v5666
    %5870 = vmatpush1.msra.mxu0 %v5665
    %5871 = vmatprep.subr.mxu0 %v5675
    %5872 = vmatpush1.msra.mxu0 %v5674
    %5873 = vmatprep.subr.mxu0 %v5684
    %5874 = vmatpush1.msra.mxu0 %v5683
    %5875 = vmatprep.subr.mxu0 %v5693
    %5876 = vmatpush1.msra.mxu0 %v5692
    %5877 = vmatprep.subr.mxu0 %v5702
    %5878 = vmatpush1.msra.mxu0 %v5701
    %5879 = vmatprep.subr.mxu0 %v5711
    %5880 = vmatpush1.msra.mxu0 %v5710
    %5881 = vmatprep.subr.mxu0 %v5720
    %5882 = vmatpush1.msra.mxu0 %v5719
    %5883 = vmatprep.subr.mxu0 %v5729
    %5884 = vmatpush1.msra.mxu0 %v5728
    %5885 = vmatprep.subr.mxu0 %v5738
    %5886 = vmatpush1.msra.mxu0 %v5737
    %5887 = vmatprep.subr.mxu0 %v5747
    %5888 = vmatpush1.msra.mxu0 %v5746
    %5889 = vmatprep.subr.mxu0 %v5756
    %5890 = vmatpush1.msra.mxu0 %v5755
    %5891 = vmatprep.subr.mxu0 %v5765
    %5892 = vmatpush1.msra.mxu0 %v5764
    %5893 = vmatprep.subr.mxu0 %v5774
    %5894 = vmatpush1.msra.mxu0 %v5773
    %5895 = vmatprep.subr.mxu0 %v5783
    %5896 = vmatpush1.msra.mxu0 %v5782
    %5897 = vmatprep.subr.mxu0 %v5792
    %5898 = vmatpush1.msra.mxu0 %v5791
    %5899 = vmatprep.subr.mxu0 %v5801
    %5900 = vmatpush1.msra.mxu0 %v5800
    %5901 = vmatprep.subr.mxu0 %v5810
    %5902 = vmatpush1.msra.mxu0 %v5809
    %5903 = vmatprep.subr.mxu0 %v5819
    %5904 = vmatpush1.msra.mxu0 %v5818
    %5905 = vmatprep.subr.mxu0 %v5828
    %5906 = vmatpush1.msra.mxu0 %v5827
    %5907 = vmatprep.subr.mxu0 %v5837
    %5908 = vmatpush1.msra.mxu0 %v5836
    %5909 = vmatprep.mubr.f32.mxu0 %v5556
    %5910 = vmatmul.mubr.f32.gmra.mrb[0].mxu0 %v5555
    %v5911 = vpop.f32.mrb[0].mxu0
    %v5912 = vadd.f32 0.0, %v5911
    %v5913 = vpop.f32.mrb[0].mxu0
    %v5914 = vadd.f32 0.0, %v5913
    %5915 = vdwg.mxu0
    %5916 = vmatprep.subr.mxu0 %v5560
    %5917 = vmatpush1.msra.mxu0 %v5559
    %5918 = vmatprep.subr.mxu0 %v5569
    %5919 = vmatpush1.msra.mxu0 %v5568
    %5920 = vmatprep.subr.mxu0 %v5578
    %5921 = vmatpush1.msra.mxu0 %v5577
    %5922 = vmatprep.subr.mxu0 %v5587
    %5923 = vmatpush1.msra.mxu0 %v5586
    %5924 = vmatprep.subr.mxu0 %v5596
    %5925 = vmatpush1.msra.mxu0 %v5595
    %5926 = vmatprep.subr.mxu0 %v5605
    %5927 = vmatpush1.msra.mxu0 %v5604
    %5928 = vmatprep.subr.mxu0 %v5614
    %5929 = vmatpush1.msra.mxu0 %v5613
    %5930 = vmatprep.subr.mxu0 %v5623
    %5931 = vmatpush1.msra.mxu0 %v5622
    %5932 = vmatprep.subr.mxu0 %v5632
    %5933 = vmatpush1.msra.mxu0 %v5631
    %5934 = vmatprep.subr.mxu0 %v5641
    %5935 = vmatpush1.msra.mxu0 %v5640
    %5936 = vmatprep.subr.mxu0 %v5650
    %5937 = vmatpush1.msra.mxu0 %v5649
    %5938 = vmatprep.subr.mxu0 %v5659
    %5939 = vmatpush1.msra.mxu0 %v5658
    %5940 = vmatprep.subr.mxu0 %v5668
    %5941 = vmatpush1.msra.mxu0 %v5667
    %5942 = vmatprep.subr.mxu0 %v5677
    %5943 = vmatpush1.msra.mxu0 %v5676
    %5944 = vmatprep.subr.mxu0 %v5686
    %5945 = vmatpush1.msra.mxu0 %v5685
    %5946 = vmatprep.subr.mxu0 %v5695
    %5947 = vmatpush1.msra.mxu0 %v5694
    %5948 = vmatprep.subr.mxu0 %v5704
    %5949 = vmatpush1.msra.mxu0 %v5703
    %5950 = vmatprep.subr.mxu0 %v5713
    %5951 = vmatpush1.msra.mxu0 %v5712
    %5952 = vmatprep.subr.mxu0 %v5722
    %5953 = vmatpush1.msra.mxu0 %v5721
    %5954 = vmatprep.subr.mxu0 %v5731
    %5955 = vmatpush1.msra.mxu0 %v5730
    %5956 = vmatprep.subr.mxu0 %v5740
    %5957 = vmatpush1.msra.mxu0 %v5739
    %5958 = vmatprep.subr.mxu0 %v5749
    %5959 = vmatpush1.msra.mxu0 %v5748
    %5960 = vmatprep.subr.mxu0 %v5758
    %5961 = vmatpush1.msra.mxu0 %v5757
    %5962 = vmatprep.subr.mxu0 %v5767
    %5963 = vmatpush1.msra.mxu0 %v5766
    %5964 = vmatprep.subr.mxu0 %v5776
    %5965 = vmatpush1.msra.mxu0 %v5775
    %5966 = vmatprep.subr.mxu0 %v5785
    %5967 = vmatpush1.msra.mxu0 %v5784
    %5968 = vmatprep.subr.mxu0 %v5794
    %5969 = vmatpush1.msra.mxu0 %v5793
    %5970 = vmatprep.subr.mxu0 %v5803
    %5971 = vmatpush1.msra.mxu0 %v5802
    %5972 = vmatprep.subr.mxu0 %v5812
    %5973 = vmatpush1.msra.mxu0 %v5811
    %5974 = vmatprep.subr.mxu0 %v5821
    %5975 = vmatpush1.msra.mxu0 %v5820
    %5976 = vmatprep.subr.mxu0 %v5830
    %5977 = vmatpush1.msra.mxu0 %v5829
    %5978 = vmatprep.subr.mxu0 %v5839
    %5979 = vmatpush1.msra.mxu0 %v5838
    %5980 = vmatprep.mubr.f32.mxu0 %v5556
    %5981 = vmatmul.mubr.f32.gmra.mrb[0].mxu0 %v5555
    %v5982 = vpop.f32.mrb[0].mxu0
    %v5983 = vadd.f32 0.0, %v5982
    %v5984 = vpop.f32.mrb[0].mxu0
    %v5985 = vadd.f32 0.0, %v5984
    %5986 = vdwg.mxu0
    %5987 = vmatprep.subr.mxu0 %v5562
    %5988 = vmatpush1.msra.mxu0 %v5561
    %5989 = vmatprep.subr.mxu0 %v5571
    %5990 = vmatpush1.msra.mxu0 %v5570
    %5991 = vmatprep.subr.mxu0 %v5580
    %5992 = vmatpush1.msra.mxu0 %v5579
    %5993 = vmatprep.subr.mxu0 %v5589
    %5994 = vmatpush1.msra.mxu0 %v5588
    %5995 = vmatprep.subr.mxu0 %v5598
    %5996 = vmatpush1.msra.mxu0 %v5597
    %5997 = vmatprep.subr.mxu0 %v5607
    %5998 = vmatpush1.msra.mxu0 %v5606
    %5999 = vmatprep.subr.mxu0 %v5616
    %6000 = vmatpush1.msra.mxu0 %v5615
    %6001 = vmatprep.subr.mxu0 %v5625
    %6002 = vmatpush1.msra.mxu0 %v5624
    %6003 = vmatprep.subr.mxu0 %v5634
    %6004 = vmatpush1.msra.mxu0 %v5633
    %6005 = vmatprep.subr.mxu0 %v5643
    %6006 = vmatpush1.msra.mxu0 %v5642
    %6007 = vmatprep.subr.mxu0 %v5652
    %6008 = vmatpush1.msra.mxu0 %v5651
    %6009 = vmatprep.subr.mxu0 %v5661
    %6010 = vmatpush1.msra.mxu0 %v5660
    %6011 = vmatprep.subr.mxu0 %v5670
    %6012 = vmatpush1.msra.mxu0 %v5669
    %6013 = vmatprep.subr.mxu0 %v5679
    %6014 = vmatpush1.msra.mxu0 %v5678
    %6015 = vmatprep.subr.mxu0 %v5688
    %6016 = vmatpush1.msra.mxu0 %v5687
    %6017 = vmatprep.subr.mxu0 %v5697
    %6018 = vmatpush1.msra.mxu0 %v5696
    %6019 = vmatprep.subr.mxu0 %v5706
    %6020 = vmatpush1.msra.mxu0 %v5705
    %6021 = vmatprep.subr.mxu0 %v5715
    %6022 = vmatpush1.msra.mxu0 %v5714
    %6023 = vmatprep.subr.mxu0 %v5724
    %6024 = vmatpush1.msra.mxu0 %v5723
    %6025 = vmatprep.subr.mxu0 %v5733
    %6026 = vmatpush1.msra.mxu0 %v5732
    %6027 = vmatprep.subr.mxu0 %v5742
    %6028 = vmatpush1.msra.mxu0 %v5741
    %6029 = vmatprep.subr.mxu0 %v5751
    %6030 = vmatpush1.msra.mxu0 %v5750
    %6031 = vmatprep.subr.mxu0 %v5760
    %6032 = vmatpush1.msra.mxu0 %v5759
    %6033 = vmatprep.subr.mxu0 %v5769
    %6034 = vmatpush1.msra.mxu0 %v5768
    %6035 = vmatprep.subr.mxu0 %v5778
    %6036 = vmatpush1.msra.mxu0 %v5777
    %6037 = vmatprep.subr.mxu0 %v5787
    %6038 = vmatpush1.msra.mxu0 %v5786
    %6039 = vmatprep.subr.mxu0 %v5796
    %6040 = vmatpush1.msra.mxu0 %v5795
    %6041 = vmatprep.subr.mxu0 %v5805
    %6042 = vmatpush1.msra.mxu0 %v5804
    %6043 = vmatprep.subr.mxu0 %v5814
    %6044 = vmatpush1.msra.mxu0 %v5813
    %6045 = vmatprep.subr.mxu0 %v5823
    %6046 = vmatpush1.msra.mxu0 %v5822
    %6047 = vmatprep.subr.mxu0 %v5832
    %6048 = vmatpush1.msra.mxu0 %v5831
    %6049 = vmatprep.subr.mxu0 %v5841
    %6050 = vmatpush1.msra.mxu0 %v5840
    %6051 = vmatprep.mubr.f32.mxu0 %v5556
    %6052 = vmatmul.mubr.f32.gmra.mrb[0].mxu0 %v5555
    %v6053 = vpop.f32.mrb[0].mxu0
    %v6054 = vadd.f32 0.0, %v6053
    %v6055 = vpop.f32.mrb[0].mxu0
    %v6056 = vadd.f32 0.0, %v6055
    %6057 = vdwg.mxu0
    %6058 = vmatprep.subr.mxu0 %v5564
    %6059 = vmatpush1.msra.mxu0 %v5563
    %6060 = vmatprep.subr.mxu0 %v5573
    %6061 = vmatpush1.msra.mxu0 %v5572
    %6062 = vmatprep.subr.mxu0 %v5582
    %6063 = vmatpush1.msra.mxu0 %v5581
    %6064 = vmatprep.subr.mxu0 %v5591
    %6065 = vmatpush1.msra.mxu0 %v5590
    %6066 = vmatprep.subr.mxu0 %v5600
    %6067 = vmatpush1.msra.mxu0 %v5599
    %6068 = vmatprep.subr.mxu0 %v5609
    %6069 = vmatpush1.msra.mxu0 %v5608
    %6070 = vmatprep.subr.mxu0 %v5618
    %6071 = vmatpush1.msra.mxu0 %v5617
    %6072 = vmatprep.subr.mxu0 %v5627
    %6073 = vmatpush1.msra.mxu0 %v5626
    %6074 = vmatprep.subr.mxu0 %v5636
    %6075 = vmatpush1.msra.mxu0 %v5635
    %6076 = vmatprep.subr.mxu0 %v5645
    %6077 = vmatpush1.msra.mxu0 %v5644
    %6078 = vmatprep.subr.mxu0 %v5654
    %6079 = vmatpush1.msra.mxu0 %v5653
    %6080 = vmatprep.subr.mxu0 %v5663
    %6081 = vmatpush1.msra.mxu0 %v5662
    %6082 = vmatprep.subr.mxu0 %v5672
    %6083 = vmatpush1.msra.mxu0 %v5671
    %6084 = vmatprep.subr.mxu0 %v5681
    %6085 = vmatpush1.msra.mxu0 %v5680
    %6086 = vmatprep.subr.mxu0 %v5690
    %6087 = vmatpush1.msra.mxu0 %v5689
    %6088 = vmatprep.subr.mxu0 %v5699
    %6089 = vmatpush1.msra.mxu0 %v5698
    %6090 = vmatprep.subr.mxu0 %v5708
    %6091 = vmatpush1.msra.mxu0 %v5707
    %6092 = vmatprep.subr.mxu0 %v5717
    %6093 = vmatpush1.msra.mxu0 %v5716
    %6094 = vmatprep.subr.mxu0 %v5726
    %6095 = vmatpush1.msra.mxu0 %v5725
    %6096 = vmatprep.subr.mxu0 %v5735
    %6097 = vmatpush1.msra.mxu0 %v5734
    %6098 = vmatprep.subr.mxu0 %v5744
    %6099 = vmatpush1.msra.mxu0 %v5743
    %6100 = vmatprep.subr.mxu0 %v5753
    %6101 = vmatpush1.msra.mxu0 %v5752
    %6102 = vmatprep.subr.mxu0 %v5762
    %6103 = vmatpush1.msra.mxu0 %v5761
    %6104 = vmatprep.subr.mxu0 %v5771
    %6105 = vmatpush1.msra.mxu0 %v5770
    %6106 = vmatprep.subr.mxu0 %v5780
    %6107 = vmatpush1.msra.mxu0 %v5779
    %6108 = vmatprep.subr.mxu0 %v5789
    %6109 = vmatpush1.msra.mxu0 %v5788
    %6110 = vmatprep.subr.mxu0 %v5798
    %6111 = vmatpush1.msra.mxu0 %v5797
    %6112 = vmatprep.subr.mxu0 %v5807
    %6113 = vmatpush1.msra.mxu0 %v5806
    %6114 = vmatprep.subr.mxu0 %v5816
    %6115 = vmatpush1.msra.mxu0 %v5815
    %6116 = vmatprep.subr.mxu0 %v5825
    %6117 = vmatpush1.msra.mxu0 %v5824
    %6118 = vmatprep.subr.mxu0 %v5834
    %6119 = vmatpush1.msra.mxu0 %v5833
    %6120 = vmatprep.subr.mxu0 %v5843
    %6121 = vmatpush1.msra.mxu0 %v5842
    %6122 = vmatprep.mubr.f32.mxu0 %v5556
    %6123 = vmatmul.mubr.f32.gmra.mrb[0].mxu0 %v5555
    %v6124 = vpop.f32.mrb[0].mxu0
    %v6125 = vadd.f32 0.0, %v6124
    %v6126 = vpop.f32.mrb[0].mxu0
    %v6127 = vadd.f32 0.0, %v6126
    %6128 = vdwg.mxu0
    %6129 = vmatprep.subr.mxu0 0.0
    %6130 = vmatpush1.msra.mxu0 %v5565
    %6131 = vmatprep.subr.mxu0 0.0
    %6132 = vmatpush1.msra.mxu0 %v5574
    %6133 = vmatprep.subr.mxu0 0.0
    %6134 = vmatpush1.msra.mxu0 %v5583
    %6135 = vmatprep.subr.mxu0 0.0
    %6136 = vmatpush1.msra.mxu0 %v5592
    %6137 = vmatprep.subr.mxu0 0.0
    %6138 = vmatpush1.msra.mxu0 %v5601
    %6139 = vmatprep.subr.mxu0 0.0
    %6140 = vmatpush1.msra.mxu0 %v5610
    %6141 = vmatprep.subr.mxu0 0.0
    %6142 = vmatpush1.msra.mxu0 %v5619
    %6143 = vmatprep.subr.mxu0 0.0
    %6144 = vmatpush1.msra.mxu0 %v5628
    %6145 = vmatprep.subr.mxu0 0.0
    %6146 = vmatpush1.msra.mxu0 %v5637
    %6147 = vmatprep.subr.mxu0 0.0
    %6148 = vmatpush1.msra.mxu0 %v5646
    %6149 = vmatprep.subr.mxu0 0.0
    %6150 = vmatpush1.msra.mxu0 %v5655
    %6151 = vmatprep.subr.mxu0 0.0
    %6152 = vmatpush1.msra.mxu0 %v5664
    %6153 = vmatprep.subr.mxu0 0.0
    %6154 = vmatpush1.msra.mxu0 %v5673
    %6155 = vmatprep.subr.mxu0 0.0
    %6156 = vmatpush1.msra.mxu0 %v5682
    %6157 = vmatprep.subr.mxu0 0.0
    %6158 = vmatpush1.msra.mxu0 %v5691
    %6159 = vmatprep.subr.mxu0 0.0
    %6160 = vmatpush1.msra.mxu0 %v5700
    %6161 = vmatprep.subr.mxu0 0.0
    %6162 = vmatpush1.msra.mxu0 %v5709
    %6163 = vmatprep.subr.mxu0 0.0
    %6164 = vmatpush1.msra.mxu0 %v5718
    %6165 = vmatprep.subr.mxu0 0.0
    %6166 = vmatpush1.msra.mxu0 %v5727
    %6167 = vmatprep.subr.mxu0 0.0
    %6168 = vmatpush1.msra.mxu0 %v5736
    %6169 = vmatprep.subr.mxu0 0.0
    %6170 = vmatpush1.msra.mxu0 %v5745
    %6171 = vmatprep.subr.mxu0 0.0
    %6172 = vmatpush1.msra.mxu0 %v5754
    %6173 = vmatprep.subr.mxu0 0.0
    %6174 = vmatpush1.msra.mxu0 %v5763
    %6175 = vmatprep.subr.mxu0 0.0
    %6176 = vmatpush1.msra.mxu0 %v5772
    %6177 = vmatprep.subr.mxu0 0.0
    %6178 = vmatpush1.msra.mxu0 %v5781
    %6179 = vmatprep.subr.mxu0 0.0
    %6180 = vmatpush1.msra.mxu0 %v5790
    %6181 = vmatprep.subr.mxu0 0.0
    %6182 = vmatpush1.msra.mxu0 %v5799
    %6183 = vmatprep.subr.mxu0 0.0
    %6184 = vmatpush1.msra.mxu0 %v5808
    %6185 = vmatprep.subr.mxu0 0.0
    %6186 = vmatpush1.msra.mxu0 %v5817
    %6187 = vmatprep.subr.mxu0 0.0
    %6188 = vmatpush1.msra.mxu0 %v5826
    %6189 = vmatprep.subr.mxu0 0.0
    %6190 = vmatpush1.msra.mxu0 %v5835
    %6191 = vmatprep.subr.mxu0 0.0
    %6192 = vmatpush1.msra.mxu0 %v5844
    %6193 = vmatprep.mubr.f32.mxu0 %v5556
    %6194 = vmatmul.mubr.f32.gmra.mrb[0].mxu0 %v5555
    %v6195 = vpop.f32.mrb[0].mxu0
    %v6196 = vadd.f32 0.0, %v6195
    %v6197 = vpop.f32.mrb[0].mxu0
    %6198 = vdwg.mxu0
    %6199 = vst [vmem:[#allocation10] sm:$0xff] %v5912
    %6200 = vst [vmem:[#allocation10 + $0x8] sm:$0xff] %v5914
    %6201 = vst [vmem:[#allocation10 + $0x10] sm:$0xff] %v5983
    %6202 = vst [vmem:[#allocation10 + $0x18] sm:$0xff] %v5985
    %6203 = vst [vmem:[#allocation10 + $0x20] sm:$0xff] %v6054
    %6204 = vst [vmem:[#allocation10 + $0x28] sm:$0xff] %v6056
    %6205 = vst [vmem:[#allocation10 + $0x30] sm:$0xff] %v6125
    %6206 = vst [vmem:[#allocation10 + $0x38] sm:$0xff] %v6127
    %6207 = vst [vmem:[#allocation10 + $0x40] sm:$0xff] %v6196
    // Predicated region
    $region26: #{tpu_custom_call.1} parent=1 // pred_check
      _
    $region27: #{tpu_custom_call.1} parent=1 // pred_check_branch
      %6209 = sbr.rel (0) target = $region29
    $region28: #{tpu_custom_call.1} parent=1 // pred_region
      %s6211 = ssub.s32 1152, 1152
      %6212 = vsyncadd [#allocation6], %s6211
      %s6214 = sshll.u32 [#allocation10], 4
      %s6215 = int_to_ptr.vmem [resolvable:$true] %s6214
      %6217 = dma.vmem_to_hbm [thread:$0]  %s6215, 1152, %s3, [#allocation6]
    $region29: #{tpu_custom_call.1} parent=1 // pred_fallthru
      _
    // Predicated region
    $region30: #{tpu_custom_call.1} parent=1 // pred_check
      _
    $region31: #{tpu_custom_call.1} parent=1 // pred_check_branch
      %6219 = sbr.rel (0) target = $region33
    $region32: #{tpu_custom_call.1} parent=1 // pred_region
      %6220 = dma.done [#allocation6], 1152
    $region33: #{tpu_custom_call.1} parent=1 // pred_fallthru
      _
    %6221 = vsyncpa [#allocation5], 1
    %6222 = vsyncpa [#allocation8], 1
    %6223 = vsyncpa [#allocation6], 1

</llo_original>
